<compile_context>
chip_gen: v7x
topology: tpu7x:2x2x1
jax: 0.10.0
libtpu: 0.0.40
codegen_flags: <defaults>
</compile_context>

<pallas_src>
import functools
import math

import jax
import jax.numpy as jnp
from jax.experimental import pallas as pl
from jax.experimental.pallas import tpu as pltpu


# ---------------------------------------------------------------------------
# Fused kernel: TB batch elements (flattened to (TB*S, D)) per grid step.
# ---------------------------------------------------------------------------
def _har_transformer_kernel(
    x_ref,          # (TB*S, D)            activations of TB batch elements
    w_qkv_ref,      # (N, D, 3D)           fused q|k|v projection weights (pre-transposed)
    b_qkv_ref,      # (N, 1, 3D)           fused q|k|v biases
    w_out_ref,      # (N, D, D)            output projection weights (pre-transposed)
    b_out_ref,      # (N, 1, D)            output projection biases
    ln_a_ref,       # (2N+1, 1, D)         LayerNorm gains  (2 per layer + final)
    ln_b_ref,       # (2N+1, 1, D)         LayerNorm biases
    conv_w_ref,     # (N*sum(filters),D,D) real conv taps only, pre-transposed
    conv_b_ref,     # (N*len(filters),1,D) conv biases
    bn_scale_ref,   # (N, 1, D)            folded BatchNorm scale (eval mode)
    bn_shift_ref,   # (N, 1, D)            folded BatchNorm shift (eval mode)
    o_ref,          # (TB*S, D)
    *, num_layers, num_heads, seq_len, batch_block, filters, ln_eps, mxu_dtype):
  R, D = x_ref.shape
  S = seq_len
  TB = batch_block
  H = num_heads
  d_k = D // H
  n_f = len(filters)
  taps_per_layer = sum(filters)
  tap_off, off = [], 0
  for fs in filters:
    tap_off.append(off)
    off += fs
  inv_sqrt_dk = 1.0 / math.sqrt(d_k)

  def mm(a, b, transpose_rhs=False):
    dims = (((1,), (1,)), ((), ())) if transpose_rhs else (((1,), (0,)), ((), ()))
    return jax.lax.dot_general(a.astype(mxu_dtype), b.astype(mxu_dtype), dims,
                               preferred_element_type=jnp.float32)

  def layer_norm(v, a, b):
    # torch-style custom LayerNorm of the reference module: unbiased std
    # (/(D-1)), eps added to std (not to var).  One divide per row, then a
    # broadcast multiply (VALU) instead of S*D divides.
    mean = jnp.mean(v, axis=-1, keepdims=True)
    vc = v - mean
    var = jnp.sum(vc * vc, axis=-1, keepdims=True) * (1.0 / (D - 1))
    inv = 1.0 / (jnp.sqrt(var) + ln_eps)
    return a * (vc * inv) + b

  # Edge masks for the shifted conv taps: they implement both the Conv1d zero
  # padding and the batch-element boundaries inside the flattened slab.
  # Depend only on the filter geometry -> built once, hoisted out of all loops.
  t_local = jax.lax.broadcasted_iota(jnp.int32, (R, 1), 0) % S
  shift_mask = {}
  for fs in filters:
    pad = (fs - 1) // 2
    for j in range(fs):
      s = pad - j
      if s == 0 or s in shift_mask:
        continue
      keep = (t_local >= s) if s > 0 else (t_local < S + s)
      shift_mask[s] = keep.astype(jnp.float32)

  h = x_ref[...].astype(jnp.float32)                       # (R, D)

  for n in range(num_layers):                              # static unroll (small N)
    # ------------- sublayer 0:  h + MultiHeadedAttention(LayerNorm(h)) ------
    xn = layer_norm(h, ln_a_ref[2 * n].astype(jnp.float32),
                    ln_b_ref[2 * n].astype(jnp.float32))
    # Fused Q/K/V projection: one MXU launch, 3D-wide (lane-dense) output.
    qkv = mm(xn, w_qkv_ref[n]) + b_qkv_ref[n].astype(jnp.float32)   # (R, 3D)
    q, k, v = qkv[:, :D], qkv[:, D:2 * D], qkv[:, 2 * D:]
    w_o = w_out_ref[n]                                              # (D, D)

    blocks = []
    for b in range(TB):                  # softmax is per batch element
      r0 = b * S
      attn_b = jnp.zeros((S, D), jnp.float32)
      for hh in range(H):                # static unroll over heads
        lo = hh * d_k
        qh = q[r0:r0 + S, lo:lo + d_k]
        kh = k[r0:r0 + S, lo:lo + d_k]
        vh = v[r0:r0 + S, lo:lo + d_k]
        sc = mm(qh, kh, transpose_rhs=True) * inv_sqrt_dk           # (S, S)
        # TODO(synk): attention mask (masked_fill) not implemented; the module
        #             is exercised with mask=None as in HARTransformer.forward.
        sc = sc - jnp.max(sc, axis=-1, keepdims=True)
        p = jnp.exp(sc)
        p = p * (1.0 / jnp.sum(p, axis=-1, keepdims=True))          # softmax
        # Accumulate heads straight into the lane-dense output projection:
        # no concatenate, no separate (S, D) x (D, D) out-proj matmul.
        attn_b = attn_b + mm(mm(p, vh), w_o[lo:lo + d_k, :])
      blocks.append(attn_b)
    attn = blocks[0] if TB == 1 else jnp.concatenate(blocks, axis=0)
    h = h + attn + b_out_ref[n].astype(jnp.float32)        # residual (dropout = id)

    # ------------- sublayer 1:  h + HAR_CNN(LayerNorm(h)) -------------------
    xn = layer_norm(h, ln_a_ref[2 * n + 1].astype(jnp.float32),
                    ln_b_ref[2 * n + 1].astype(jnp.float32))
    bn_scale = bn_scale_ref[n].astype(jnp.float32)
    bn_shift = bn_shift_ref[n].astype(jnp.float32)

    total = jnp.zeros((R, D), jnp.float32)
    for f, fs in enumerate(filters):                       # Conv1d per filter size
      pad = (fs - 1) // 2
      acc = jnp.zeros((R, D), jnp.float32)
      for j in range(fs):                                  # only the real taps
        tap = conv_w_ref[n * taps_per_layer + tap_off[f] + j]       # (D, D)
        yj = mm(xn, tap)                                   # aligned full-width matmul
        s = pad - j
        if s != 0:
          # Row shift on the XLU + zero-pad / element-boundary mask.
          yj = pltpu.roll(yj, shift=s % R, axis=0) * shift_mask[s]
        acc = acc + yj
      acc = acc + conv_b_ref[n * n_f + f].astype(jnp.float32)
      y = acc * bn_scale + bn_shift                        # BatchNorm1d (eval)
      total = total + jnp.maximum(y, 0.0)                  # ReLU (dropout = id)
    # torch.div(torch.sum(...), 3): the reference hard-codes 3 regardless of filters.
    h = h + total * (1.0 / 3.0)                            # residual

  # ------------- Encoder's final LayerNorm ---------------------------------
  h = layer_norm(h, ln_a_ref[2 * num_layers].astype(jnp.float32),
                 ln_b_ref[2 * num_layers].astype(jnp.float32))
  o_ref[...] = h.astype(o_ref.dtype)


# ---------------------------------------------------------------------------
# Wrapper: single fused pallas_call over batch blocks
# ---------------------------------------------------------------------------
def har_transformer_forward(x, params, *, num_heads, mask=None,
                            filters=(1, 3, 5), ln_eps=1e-6,
                            mxu_dtype=None, batch_block=None):
  """x: (B, S, D) activations. params: dict from init_har_transformer_params.

  mxu_dtype defaults to the dtype the packed matmul weights were stored in
  (pass mxu_dtype=jnp.bfloat16 to init + here for ~2-4x MXU throughput on all
  TPU generations; elementwise math always stays f32).
  """
  assert mask is None, "TODO(synk): attention mask (masked_fill) not implemented"
  B, S, D = x.shape
  N = int(params["num_layers"])
  assert D % num_heads == 0
  assert D % 128 == 0, "keep the feature dim lane-dense (multiple of 128)"
  assert S % 8 == 0, "sequence length must be a sublane (8) multiple"

  if mxu_dtype is None:
    mxu_dtype = params["w_qkv"].dtype

  # Rows per grid step: batch enough elements so matmuls see >=128 rows when
  # the batch allows (MXU row fill); TB must divide B.
  if batch_block is None:
    target = max(1, pl.cdiv(128, S))
    TB = 1
    for t in range(min(B, target), 0, -1):
      if B % t == 0:
        TB = t
        break
  else:
    TB = int(batch_block)
  assert B % TB == 0
  R = TB * S

  kernel = functools.partial(
      _har_transformer_kernel, num_layers=N, num_heads=num_heads,
      seq_len=S, batch_block=TB, filters=tuple(filters), ln_eps=ln_eps,
      mxu_dtype=mxu_dtype)

  def resident():
    # Whole array lives in VMEM for the duration of the call: one copy, one
    # DMA, no per-grid-step pipelining and no double-buffering.
    return pl.BlockSpec(memory_space=pltpu.MemorySpace.VMEM)

  operands = (params["w_qkv"], params["b_qkv"], params["w_out"], params["b_out"],
              params["ln_a"], params["ln_b"], params["conv_w"], params["conv_b"],
              params["bn_scale"], params["bn_shift"])

  # Explicit scoped-VMEM budget: resident weights + double-buffered in/out
  # activation blocks + generous headroom for f32 temporaries/spills.
  weight_bytes = sum(int(a.size) * a.dtype.itemsize for a in operands)
  act_bytes = R * D * x.dtype.itemsize
  vmem_limit = int(min(128 << 20,
                       max(32 << 20,
                           weight_bytes + 4 * act_bytes + 48 * R * D * 4 + (8 << 20))))

  x2 = x.reshape(B * S, D)            # free layout change outside the kernel
  out = pl.pallas_call(
      kernel,
      out_shape=jax.ShapeDtypeStruct((B * S, D), x.dtype),
      grid=(B // TB,),
      in_specs=[pl.BlockSpec((R, D), lambda i: (i, 0))] + [resident() for _ in operands],
      out_specs=pl.BlockSpec((R, D), lambda i: (i, 0)),
      input_output_aliases={0: 0},          # update the activation buffer in place
      compiler_params=pltpu.CompilerParams(
          dimension_semantics=("parallel",),   # batch blocks shard across TCs (v7x)
          vmem_limit_bytes=vmem_limit),
  )(x2, *operands)
  return out.reshape(B, S, D)


# ---------------------------------------------------------------------------
# Parameter construction / packing (mirrors the PyTorch module layout)
# ---------------------------------------------------------------------------
def init_har_transformer_params(key, hidden_dim, N, H, filters=(1, 3, 5),
                                dtype=jnp.float32, mxu_dtype=jnp.float32):
  """Deterministic parameters in the stacked layout the fused kernel consumes.

  PyTorch layouts folded here:
    nn.Linear  : y = x @ W.T + b        -> q,k,v stored as one (D, 3D) = [Wq.T|Wk.T|Wv.T],
                                           out proj stored as W.T                 (D, D)
    nn.Conv1d  : weight (out, in, k)    -> per real tap j store W[:,:,j].T        (D, D)
    nn.BatchNorm1d (eval): y = g*(x-rm)/sqrt(rv+eps)+b
                 -> scale = g/sqrt(rv+eps), shift = b - rm*scale
    LayerNorm / BatchNorm use default torch init (ones/zeros, rm=0, rv=1).

  Matmul weights (w_qkv, w_out, conv_w) are stored in `mxu_dtype` (bf16 halves
  resident VMEM + weight DMA); biases / LN / BN parameters stay in `dtype`.
  """
  del H  # head count only affects the forward split, not parameter shapes
  D = hidden_dim
  n_f = len(filters)
  bn_eps = 1e-5

  keys = iter(jax.random.split(key, N * (2 * 4 + 2 * n_f)))

  w_qkv, b_qkv, w_out, b_out = [], [], [], []
  ln_a, ln_b = [], []
  conv_w, conv_b, bn_scale, bn_shift = [], [], [], []

  for _ in range(N):
    # MultiHeadedAttention: 4 x nn.Linear(D, D)  (q, k, v, out)
    lin_w, lin_b = [], []
    for _ in range(4):
      w = jax.random.normal(next(keys), (D, D), dtype) * (1.0 / math.sqrt(D))
      b = 0.02 * jax.random.normal(next(keys), (D,), dtype)
      lin_w.append(w.T)
      lin_b.append(b)
    w_qkv.append(jnp.concatenate(lin_w[:3], axis=1))        # (D, 3D)
    b_qkv.append(jnp.concatenate(lin_b[:3]).reshape(1, 3 * D))
    w_out.append(lin_w[3])
    b_out.append(lin_b[3].reshape(1, D))
    # SublayerConnection pre-norms (default init)
    for _ in range(2):
      ln_a.append(jnp.ones((1, D), dtype))
      ln_b.append(jnp.zeros((1, D), dtype))
    # HAR_CNN: Conv1d(D, D, fs, padding=(fs-1)//2) per filter size (real taps only)
    for fs in filters:
      wc = jax.random.normal(next(keys), (D, D, fs), dtype) * (1.0 / math.sqrt(D * fs))
      bc = 0.02 * jax.random.normal(next(keys), (D,), dtype)
      for j in range(fs):
        conv_w.append(wc[:, :, j].T)
      conv_b.append(bc.reshape(1, D))
    # Shared nn.BatchNorm1d(D), eval mode, default parameters/buffers
    gamma, beta = jnp.ones((D,), dtype), jnp.zeros((D,), dtype)
    rmean, rvar = jnp.zeros((D,), dtype), jnp.ones((D,), dtype)
    scale = gamma / jnp.sqrt(rvar + bn_eps)
    bn_scale.append(scale.reshape(1, D))
    bn_shift.append((beta - rmean * scale).reshape(1, D))

  # Encoder's final LayerNorm (default init)
  ln_a.append(jnp.ones((1, D), dtype))
  ln_b.append(jnp.zeros((1, D), dtype))

  return dict(
      num_layers=N,
      w_qkv=jnp.stack(w_qkv).astype(mxu_dtype),
      b_qkv=jnp.stack(b_qkv),
      w_out=jnp.stack(w_out).astype(mxu_dtype),
      b_out=jnp.stack(b_out),
      ln_a=jnp.stack(ln_a), ln_b=jnp.stack(ln_b),
      conv_w=jnp.stack(conv_w).astype(mxu_dtype),
      conv_b=jnp.stack(conv_b),
      bn_scale=jnp.stack(bn_scale), bn_shift=jnp.stack(bn_shift),
  )


# ---------------------------------------------------------------------------
if __name__ == "__main__":
  # Small, module-consistent shapes.  hidden_dim is a multiple of 128 so the
  # feature axis is lane-dense; batch elements are packed per grid step to
  # fill the MXU's row dimension.
  B, S, D, N, H = 2, 16, 128, 2, 4

  key = jax.random.PRNGKey(0)
  kx, kp = jax.random.split(key)
  x = jax.random.normal(kx, (B, S, D), dtype=jnp.float32)
  params = init_har_transformer_params(kp, hidden_dim=D, N=N, H=H)

  out = har_transformer_forward(x, params, num_heads=H)
  out = jax.block_until_ready(out)

  assert out.shape == (B, S, D)
  assert bool(jnp.all(jnp.isfinite(out)))
  print("KERNEL_OK")
</pallas_src>

<mosaic_0001>
module attributes {stable_mosaic.version = 11 : i64} {
  func.func @_har_transformer_kernel(%arg0: i32, %arg1: memref<32x128xf32, #tpu.memory_space<vmem>>, %arg2: memref<2x128x384xf32, #tpu.memory_space<vmem>>, %arg3: memref<2x1x384xf32, #tpu.memory_space<vmem>>, %arg4: memref<2x128x128xf32, #tpu.memory_space<vmem>>, %arg5: memref<2x1x128xf32, #tpu.memory_space<vmem>>, %arg6: memref<5x1x128xf32, #tpu.memory_space<vmem>>, %arg7: memref<5x1x128xf32, #tpu.memory_space<vmem>>, %arg8: memref<18x128x128xf32, #tpu.memory_space<vmem>>, %arg9: memref<6x1x128xf32, #tpu.memory_space<vmem>>, %arg10: memref<2x1x128xf32, #tpu.memory_space<vmem>>, %arg11: memref<2x1x128xf32, #tpu.memory_space<vmem>>, %arg12: memref<32x128xf32, #tpu.memory_space<vmem>>) attributes {dimension_semantics = [#tpu.dimension_semantics<parallel>], iteration_bounds = array<i64: 1>, scalar_prefetch = 0 : i64, scratch_operands = 0 : i64, tpu.core_type = #tpu.core_type<tc>, window_params = [{transform_indices = @transform_0, window_bounds = array<i64: 32, 128>}, {pipeline_mode = #tpu.pipeline_mode<synchronous>, transform_indices = @transform_1, window_bounds = array<i64: 2, 128, 384>}, {pipeline_mode = #tpu.pipeline_mode<synchronous>, transform_indices = @transform_2, window_bounds = array<i64: 2, 1, 384>}, {pipeline_mode = #tpu.pipeline_mode<synchronous>, transform_indices = @transform_3, window_bounds = array<i64: 2, 128, 128>}, {pipeline_mode = #tpu.pipeline_mode<synchronous>, transform_indices = @transform_4, window_bounds = array<i64: 2, 1, 128>}, {pipeline_mode = #tpu.pipeline_mode<synchronous>, transform_indices = @transform_5, window_bounds = array<i64: 5, 1, 128>}, {pipeline_mode = #tpu.pipeline_mode<synchronous>, transform_indices = @transform_6, window_bounds = array<i64: 5, 1, 128>}, {pipeline_mode = #tpu.pipeline_mode<synchronous>, transform_indices = @transform_7, window_bounds = array<i64: 18, 128, 128>}, {pipeline_mode = #tpu.pipeline_mode<synchronous>, transform_indices = @transform_8, window_bounds = array<i64: 6, 1, 128>}, {pipeline_mode = #tpu.pipeline_mode<synchronous>, transform_indices = @transform_9, window_bounds = array<i64: 2, 1, 128>}, {pipeline_mode = #tpu.pipeline_mode<synchronous>, transform_indices = @transform_10, window_bounds = array<i64: 2, 1, 128>}, {transform_indices = @transform_11, window_bounds = array<i64: 32, 128>}]} {
    %0 = tpu.iota {dimensions = array<i32: 0>} : vector<32x1xi32>
    %c16_i32 = arith.constant 16 : i32
    %c0_i32 = arith.constant 0 : i32
    %1 = arith.cmpi eq, %c16_i32, %c0_i32 : i32
    %c1_i32 = arith.constant 1 : i32
    %2 = arith.select %1, %c1_i32, %c16_i32 : i32
    %3 = vector.broadcast %2 : i32 to vector<32x1xi32>
    %4 = arith.remsi %0, %3 : vector<32x1xi32>
    %c0_i32_0 = arith.constant 0 : i32
    %5 = vector.broadcast %c0_i32_0 : i32 to vector<32x1xi32>
    %6 = arith.cmpi ne, %4, %5 : vector<32x1xi32>
    %c0_i32_1 = arith.constant 0 : i32
    %7 = vector.broadcast %c0_i32_1 : i32 to vector<32x1xi32>
    %8 = arith.cmpi slt, %4, %7 : vector<32x1xi32>
    %c0_i32_2 = arith.constant 0 : i32
    %9 = arith.cmpi slt, %2, %c0_i32_2 : i32
    %10 = vector.broadcast %9 : i1 to vector<32x1xi1>
    %11 = vector.broadcast %10 : vector<32x1xi1> to vector<32x1xi1>
    %12 = arith.xori %8, %11 : vector<32x1xi1>
    %13 = arith.andi %12, %6 : vector<32x1xi1>
    %14 = vector.broadcast %2 : i32 to vector<32x1xi32>
    %15 = arith.addi %4, %14 : vector<32x1xi32>
    %16 = arith.select %13, %15, %4 : vector<32x1xi1>, vector<32x1xi32>
    %c1_i32_3 = arith.constant 1 : i32
    %17 = vector.broadcast %c1_i32_3 : i32 to vector<32x1xi32>
    %18 = arith.cmpi sge, %16, %17 : vector<32x1xi32>
    %19 = arith.extui %18 : vector<32x1xi1> to vector<32x1xi32>
    %20 = arith.sitofp %19 : vector<32x1xi32> to vector<32x1xf32>
    %c15_i32 = arith.constant 15 : i32
    %21 = vector.broadcast %c15_i32 : i32 to vector<32x1xi32>
    %22 = arith.cmpi slt, %16, %21 : vector<32x1xi32>
    %23 = arith.extui %22 : vector<32x1xi1> to vector<32x1xi32>
    %24 = arith.sitofp %23 : vector<32x1xi32> to vector<32x1xf32>
    %c2_i32 = arith.constant 2 : i32
    %25 = vector.broadcast %c2_i32 : i32 to vector<32x1xi32>
    %26 = arith.cmpi sge, %16, %25 : vector<32x1xi32>
    %27 = arith.extui %26 : vector<32x1xi1> to vector<32x1xi32>
    %28 = arith.sitofp %27 : vector<32x1xi32> to vector<32x1xf32>
    %c14_i32 = arith.constant 14 : i32
    %29 = vector.broadcast %c14_i32 : i32 to vector<32x1xi32>
    %30 = arith.cmpi slt, %16, %29 : vector<32x1xi32>
    %31 = arith.extui %30 : vector<32x1xi1> to vector<32x1xi32>
    %32 = arith.sitofp %31 : vector<32x1xi32> to vector<32x1xf32>
    %c0 = arith.constant 0 : index
    %c0_4 = arith.constant 0 : index
    %33 = vector.load %arg1[%c0, %c0_4] : memref<32x128xf32, #tpu.memory_space<vmem>>, vector<32x128xf32>
    %c0_5 = arith.constant 0 : index
    %c0_6 = arith.constant 0 : index
    %c0_7 = arith.constant 0 : index
    %34 = vector.load %arg6[%c0_5, %c0_6, %c0_7] : memref<5x1x128xf32, #tpu.memory_space<vmem>>, vector<1x1x128xf32>
    %35 = vector.shape_cast %34 : vector<1x1x128xf32> to vector<1x128xf32>
    %c0_8 = arith.constant 0 : index
    %c0_9 = arith.constant 0 : index
    %c0_10 = arith.constant 0 : index
    %36 = vector.load %arg7[%c0_8, %c0_9, %c0_10] : memref<5x1x128xf32, #tpu.memory_space<vmem>>, vector<1x1x128xf32>
    %37 = vector.shape_cast %36 : vector<1x1x128xf32> to vector<1x128xf32>
    %cst = arith.constant dense<0.000000e+00> : vector<32xf32>
    %38 = vector.multi_reduction <add>, %33, %cst [1] : vector<32x128xf32> to vector<32xf32>
    %39 = vector.shape_cast %38 : vector<32xf32> to vector<32x1xf32>
    %cst_11 = arith.constant 1.280000e+02 : f32
    %40 = vector.broadcast %cst_11 : f32 to vector<32x1xf32>
    %41 = arith.divf %39, %40 : vector<32x1xf32>
    %42 = vector.broadcast %41 : vector<32x1xf32> to vector<32x128xf32>
    %43 = arith.subf %33, %42 : vector<32x128xf32>
    %44 = arith.mulf %43, %43 : vector<32x128xf32>
    %cst_12 = arith.constant dense<0.000000e+00> : vector<32xf32>
    %45 = vector.multi_reduction <add>, %44, %cst_12 [1] : vector<32x128xf32> to vector<32xf32>
    %46 = vector.shape_cast %45 : vector<32xf32> to vector<32x1xf32>
    %cst_13 = arith.constant 0.00787401571 : f32
    %47 = vector.broadcast %cst_13 : f32 to vector<32x1xf32>
    %48 = arith.mulf %46, %47 : vector<32x1xf32>
    %49 = math.sqrt %48 : vector<32x1xf32>
    %cst_14 = arith.constant 9.99999997E-7 : f32
    %50 = vector.broadcast %cst_14 : f32 to vector<32x1xf32>
    %51 = arith.addf %49, %50 : vector<32x1xf32>
    %cst_15 = arith.constant 1.000000e+00 : f32
    %52 = vector.broadcast %cst_15 : f32 to vector<32x1xf32>
    %53 = arith.divf %52, %51 : vector<32x1xf32>
    %54 = vector.broadcast %53 : vector<32x1xf32> to vector<32x128xf32>
    %55 = arith.mulf %43, %54 : vector<32x128xf32>
    %56 = vector.broadcast %35 : vector<1x128xf32> to vector<32x128xf32>
    %57 = arith.mulf %56, %55 : vector<32x128xf32>
    %58 = vector.broadcast %37 : vector<1x128xf32> to vector<32x128xf32>
    %59 = arith.addf %57, %58 : vector<32x128xf32>
    %c0_16 = arith.constant 0 : index
    %c0_17 = arith.constant 0 : index
    %c0_18 = arith.constant 0 : index
    %60 = vector.load %arg2[%c0_16, %c0_17, %c0_18] : memref<2x128x384xf32, #tpu.memory_space<vmem>>, vector<1x128x384xf32>
    %61 = vector.shape_cast %60 : vector<1x128x384xf32> to vector<128x384xf32>
    %cst_19 = arith.constant dense<0.000000e+00> : vector<32x384xf32>
    %62 = tpu.matmul %59, %61, %cst_19 {dimension_numbers = #tpu.dot_dimension_numbers<[1], [0], [0], [1], [0, 0, 1, 1], [], []>} : vector<32x128xf32>, vector<128x384xf32>, vector<32x384xf32> -> vector<32x384xf32>
    %c0_20 = arith.constant 0 : index
    %c0_21 = arith.constant 0 : index
    %c0_22 = arith.constant 0 : index
    %63 = vector.load %arg3[%c0_20, %c0_21, %c0_22] : memref<2x1x384xf32, #tpu.memory_space<vmem>>, vector<1x1x384xf32>
    %64 = vector.shape_cast %63 : vector<1x1x384xf32> to vector<1x384xf32>
    %65 = vector.broadcast %64 : vector<1x384xf32> to vector<32x384xf32>
    %66 = arith.addf %62, %65 : vector<32x384xf32>
    %67 = vector.extract_strided_slice %66 {offsets = [0, 0], sizes = [32, 128], strides = [1, 1]} : vector<32x384xf32> to vector<32x128xf32>
    %68 = vector.extract_strided_slice %66 {offsets = [0, 128], sizes = [32, 128], strides = [1, 1]} : vector<32x384xf32> to vector<32x128xf32>
    %69 = vector.extract_strided_slice %66 {offsets = [0, 256], sizes = [32, 128], strides = [1, 1]} : vector<32x384xf32> to vector<32x128xf32>
    %c0_23 = arith.constant 0 : index
    %c0_24 = arith.constant 0 : index
    %c0_25 = arith.constant 0 : index
    %70 = vector.load %arg4[%c0_23, %c0_24, %c0_25] : memref<2x128x128xf32, #tpu.memory_space<vmem>>, vector<1x128x128xf32>
    %71 = vector.shape_cast %70 : vector<1x128x128xf32> to vector<128x128xf32>
    %cst_26 = arith.constant 0.000000e+00 : f32
    %72 = vector.broadcast %cst_26 : f32 to vector<16x128xf32>
    %73 = vector.extract_strided_slice %67 {offsets = [0, 0], sizes = [16, 32], strides = [1, 1]} : vector<32x128xf32> to vector<16x32xf32>
    %74 = vector.extract_strided_slice %68 {offsets = [0, 0], sizes = [16, 32], strides = [1, 1]} : vector<32x128xf32> to vector<16x32xf32>
    %75 = vector.extract_strided_slice %69 {offsets = [0, 0], sizes = [16, 32], strides = [1, 1]} : vector<32x128xf32> to vector<16x32xf32>
    %cst_27 = arith.constant dense<0.000000e+00> : vector<16x16xf32>
    %76 = tpu.matmul %73, %74, %cst_27 {dimension_numbers = #tpu.dot_dimension_numbers<[1], [1], [0], [0], [0, 0, 1, 0], [], []>} : vector<16x32xf32>, vector<16x32xf32>, vector<16x16xf32> -> vector<16x16xf32>
    %cst_28 = arith.constant 0.176776692 : f32
    %77 = vector.broadcast %cst_28 : f32 to vector<16x16xf32>
    %78 = arith.mulf %76, %77 : vector<16x16xf32>
    %cst_29 = arith.constant dense<0xFF800000> : vector<16xf32>
    %79 = vector.multi_reduction <maximumf>, %78, %cst_29 [1] : vector<16x16xf32> to vector<16xf32>
    %80 = vector.shape_cast %79 : vector<16xf32> to vector<16x1xf32>
    %81 = vector.broadcast %80 : vector<16x1xf32> to vector<16x16xf32>
    %82 = arith.subf %78, %81 : vector<16x16xf32>
    %83 = math.exp %82 : vector<16x16xf32>
    %cst_30 = arith.constant dense<0.000000e+00> : vector<16xf32>
    %84 = vector.multi_reduction <add>, %83, %cst_30 [1] : vector<16x16xf32> to vector<16xf32>
    %85 = vector.shape_cast %84 : vector<16xf32> to vector<16x1xf32>
    %cst_31 = arith.constant 1.000000e+00 : f32
    %86 = vector.broadcast %cst_31 : f32 to vector<16x1xf32>
    %87 = arith.divf %86, %85 : vector<16x1xf32>
    %88 = vector.broadcast %87 : vector<16x1xf32> to vector<16x16xf32>
    %89 = arith.mulf %83, %88 : vector<16x16xf32>
    %cst_32 = arith.constant dense<0.000000e+00> : vector<16x32xf32>
    %90 = tpu.matmul %89, %75, %cst_32 {dimension_numbers = #tpu.dot_dimension_numbers<[1], [0], [0], [1], [0, 0, 1, 1], [], []>} : vector<16x16xf32>, vector<16x32xf32>, vector<16x32xf32> -> vector<16x32xf32>
    %91 = vector.extract_strided_slice %71 {offsets = [0, 0], sizes = [32, 128], strides = [1, 1]} : vector<128x128xf32> to vector<32x128xf32>
    %cst_33 = arith.constant dense<0.000000e+00> : vector<16x128xf32>
    %92 = tpu.matmul %90, %91, %cst_33 {dimension_numbers = #tpu.dot_dimension_numbers<[1], [0], [0], [1], [0, 0, 1, 1], [], []>} : vector<16x32xf32>, vector<32x128xf32>, vector<16x128xf32> -> vector<16x128xf32>
    %93 = arith.addf %72, %92 : vector<16x128xf32>
    %94 = vector.extract_strided_slice %67 {offsets = [0, 32], sizes = [16, 32], strides = [1, 1]} : vector<32x128xf32> to vector<16x32xf32>
    %95 = vector.extract_strided_slice %68 {offsets = [0, 32], sizes = [16, 32], strides = [1, 1]} : vector<32x128xf32> to vector<16x32xf32>
    %96 = vector.extract_strided_slice %69 {offsets = [0, 32], sizes = [16, 32], strides = [1, 1]} : vector<32x128xf32> to vector<16x32xf32>
    %cst_34 = arith.constant dense<0.000000e+00> : vector<16x16xf32>
    %97 = tpu.matmul %94, %95, %cst_34 {dimension_numbers = #tpu.dot_dimension_numbers<[1], [1], [0], [0], [0, 0, 1, 0], [], []>} : vector<16x32xf32>, vector<16x32xf32>, vector<16x16xf32> -> vector<16x16xf32>
    %cst_35 = arith.constant 0.176776692 : f32
    %98 = vector.broadcast %cst_35 : f32 to vector<16x16xf32>
    %99 = arith.mulf %97, %98 : vector<16x16xf32>
    %cst_36 = arith.constant dense<0xFF800000> : vector<16xf32>
    %100 = vector.multi_reduction <maximumf>, %99, %cst_36 [1] : vector<16x16xf32> to vector<16xf32>
    %101 = vector.shape_cast %100 : vector<16xf32> to vector<16x1xf32>
    %102 = vector.broadcast %101 : vector<16x1xf32> to vector<16x16xf32>
    %103 = arith.subf %99, %102 : vector<16x16xf32>
    %104 = math.exp %103 : vector<16x16xf32>
    %cst_37 = arith.constant dense<0.000000e+00> : vector<16xf32>
    %105 = vector.multi_reduction <add>, %104, %cst_37 [1] : vector<16x16xf32> to vector<16xf32>
    %106 = vector.shape_cast %105 : vector<16xf32> to vector<16x1xf32>
    %cst_38 = arith.constant 1.000000e+00 : f32
    %107 = vector.broadcast %cst_38 : f32 to vector<16x1xf32>
    %108 = arith.divf %107, %106 : vector<16x1xf32>
    %109 = vector.broadcast %108 : vector<16x1xf32> to vector<16x16xf32>
    %110 = arith.mulf %104, %109 : vector<16x16xf32>
    %cst_39 = arith.constant dense<0.000000e+00> : vector<16x32xf32>
    %111 = tpu.matmul %110, %96, %cst_39 {dimension_numbers = #tpu.dot_dimension_numbers<[1], [0], [0], [1], [0, 0, 1, 1], [], []>} : vector<16x16xf32>, vector<16x32xf32>, vector<16x32xf32> -> vector<16x32xf32>
    %112 = vector.extract_strided_slice %71 {offsets = [32, 0], sizes = [32, 128], strides = [1, 1]} : vector<128x128xf32> to vector<32x128xf32>
    %cst_40 = arith.constant dense<0.000000e+00> : vector<16x128xf32>
    %113 = tpu.matmul %111, %112, %cst_40 {dimension_numbers = #tpu.dot_dimension_numbers<[1], [0], [0], [1], [0, 0, 1, 1], [], []>} : vector<16x32xf32>, vector<32x128xf32>, vector<16x128xf32> -> vector<16x128xf32>
    %114 = arith.addf %93, %113 : vector<16x128xf32>
    %115 = vector.extract_strided_slice %67 {offsets = [0, 64], sizes = [16, 32], strides = [1, 1]} : vector<32x128xf32> to vector<16x32xf32>
    %116 = vector.extract_strided_slice %68 {offsets = [0, 64], sizes = [16, 32], strides = [1, 1]} : vector<32x128xf32> to vector<16x32xf32>
    %117 = vector.extract_strided_slice %69 {offsets = [0, 64], sizes = [16, 32], strides = [1, 1]} : vector<32x128xf32> to vector<16x32xf32>
    %cst_41 = arith.constant dense<0.000000e+00> : vector<16x16xf32>
    %118 = tpu.matmul %115, %116, %cst_41 {dimension_numbers = #tpu.dot_dimension_numbers<[1], [1], [0], [0], [0, 0, 1, 0], [], []>} : vector<16x32xf32>, vector<16x32xf32>, vector<16x16xf32> -> vector<16x16xf32>
    %cst_42 = arith.constant 0.176776692 : f32
    %119 = vector.broadcast %cst_42 : f32 to vector<16x16xf32>
    %120 = arith.mulf %118, %119 : vector<16x16xf32>
    %cst_43 = arith.constant dense<0xFF800000> : vector<16xf32>
    %121 = vector.multi_reduction <maximumf>, %120, %cst_43 [1] : vector<16x16xf32> to vector<16xf32>
    %122 = vector.shape_cast %121 : vector<16xf32> to vector<16x1xf32>
    %123 = vector.broadcast %122 : vector<16x1xf32> to vector<16x16xf32>
    %124 = arith.subf %120, %123 : vector<16x16xf32>
    %125 = math.exp %124 : vector<16x16xf32>
    %cst_44 = arith.constant dense<0.000000e+00> : vector<16xf32>
    %126 = vector.multi_reduction <add>, %125, %cst_44 [1] : vector<16x16xf32> to vector<16xf32>
    %127 = vector.shape_cast %126 : vector<16xf32> to vector<16x1xf32>
    %cst_45 = arith.constant 1.000000e+00 : f32
    %128 = vector.broadcast %cst_45 : f32 to vector<16x1xf32>
    %129 = arith.divf %128, %127 : vector<16x1xf32>
    %130 = vector.broadcast %129 : vector<16x1xf32> to vector<16x16xf32>
    %131 = arith.mulf %125, %130 : vector<16x16xf32>
    %cst_46 = arith.constant dense<0.000000e+00> : vector<16x32xf32>
    %132 = tpu.matmul %131, %117, %cst_46 {dimension_numbers = #tpu.dot_dimension_numbers<[1], [0], [0], [1], [0, 0, 1, 1], [], []>} : vector<16x16xf32>, vector<16x32xf32>, vector<16x32xf32> -> vector<16x32xf32>
    %133 = vector.extract_strided_slice %71 {offsets = [64, 0], sizes = [32, 128], strides = [1, 1]} : vector<128x128xf32> to vector<32x128xf32>
    %cst_47 = arith.constant dense<0.000000e+00> : vector<16x128xf32>
    %134 = tpu.matmul %132, %133, %cst_47 {dimension_numbers = #tpu.dot_dimension_numbers<[1], [0], [0], [1], [0, 0, 1, 1], [], []>} : vector<16x32xf32>, vector<32x128xf32>, vector<16x128xf32> -> vector<16x128xf32>
    %135 = arith.addf %114, %134 : vector<16x128xf32>
    %136 = vector.extract_strided_slice %67 {offsets = [0, 96], sizes = [16, 32], strides = [1, 1]} : vector<32x128xf32> to vector<16x32xf32>
    %137 = vector.extract_strided_slice %68 {offsets = [0, 96], sizes = [16, 32], strides = [1, 1]} : vector<32x128xf32> to vector<16x32xf32>
    %138 = vector.extract_strided_slice %69 {offsets = [0, 96], sizes = [16, 32], strides = [1, 1]} : vector<32x128xf32> to vector<16x32xf32>
    %cst_48 = arith.constant dense<0.000000e+00> : vector<16x16xf32>
    %139 = tpu.matmul %136, %137, %cst_48 {dimension_numbers = #tpu.dot_dimension_numbers<[1], [1], [0], [0], [0, 0, 1, 0], [], []>} : vector<16x32xf32>, vector<16x32xf32>, vector<16x16xf32> -> vector<16x16xf32>
    %cst_49 = arith.constant 0.176776692 : f32
    %140 = vector.broadcast %cst_49 : f32 to vector<16x16xf32>
    %141 = arith.mulf %139, %140 : vector<16x16xf32>
    %cst_50 = arith.constant dense<0xFF800000> : vector<16xf32>
    %142 = vector.multi_reduction <maximumf>, %141, %cst_50 [1] : vector<16x16xf32> to vector<16xf32>
    %143 = vector.shape_cast %142 : vector<16xf32> to vector<16x1xf32>
    %144 = vector.broadcast %143 : vector<16x1xf32> to vector<16x16xf32>
    %145 = arith.subf %141, %144 : vector<16x16xf32>
    %146 = math.exp %145 : vector<16x16xf32>
    %cst_51 = arith.constant dense<0.000000e+00> : vector<16xf32>
    %147 = vector.multi_reduction <add>, %146, %cst_51 [1] : vector<16x16xf32> to vector<16xf32>
    %148 = vector.shape_cast %147 : vector<16xf32> to vector<16x1xf32>
    %cst_52 = arith.constant 1.000000e+00 : f32
    %149 = vector.broadcast %cst_52 : f32 to vector<16x1xf32>
    %150 = arith.divf %149, %148 : vector<16x1xf32>
    %151 = vector.broadcast %150 : vector<16x1xf32> to vector<16x16xf32>
    %152 = arith.mulf %146, %151 : vector<16x16xf32>
    %cst_53 = arith.constant dense<0.000000e+00> : vector<16x32xf32>
    %153 = tpu.matmul %152, %138, %cst_53 {dimension_numbers = #tpu.dot_dimension_numbers<[1], [0], [0], [1], [0, 0, 1, 1], [], []>} : vector<16x16xf32>, vector<16x32xf32>, vector<16x32xf32> -> vector<16x32xf32>
    %154 = vector.extract_strided_slice %71 {offsets = [96, 0], sizes = [32, 128], strides = [1, 1]} : vector<128x128xf32> to vector<32x128xf32>
    %cst_54 = arith.constant dense<0.000000e+00> : vector<16x128xf32>
    %155 = tpu.matmul %153, %154, %cst_54 {dimension_numbers = #tpu.dot_dimension_numbers<[1], [0], [0], [1], [0, 0, 1, 1], [], []>} : vector<16x32xf32>, vector<32x128xf32>, vector<16x128xf32> -> vector<16x128xf32>
    %156 = arith.addf %135, %155 : vector<16x128xf32>
    %cst_55 = arith.constant 0.000000e+00 : f32
    %157 = vector.broadcast %cst_55 : f32 to vector<16x128xf32>
    %158 = vector.extract_strided_slice %67 {offsets = [16, 0], sizes = [16, 32], strides = [1, 1]} : vector<32x128xf32> to vector<16x32xf32>
    %159 = vector.extract_strided_slice %68 {offsets = [16, 0], sizes = [16, 32], strides = [1, 1]} : vector<32x128xf32> to vector<16x32xf32>
    %160 = vector.extract_strided_slice %69 {offsets = [16, 0], sizes = [16, 32], strides = [1, 1]} : vector<32x128xf32> to vector<16x32xf32>
    %cst_56 = arith.constant dense<0.000000e+00> : vector<16x16xf32>
    %161 = tpu.matmul %158, %159, %cst_56 {dimension_numbers = #tpu.dot_dimension_numbers<[1], [1], [0], [0], [0, 0, 1, 0], [], []>} : vector<16x32xf32>, vector<16x32xf32>, vector<16x16xf32> -> vector<16x16xf32>
    %cst_57 = arith.constant 0.176776692 : f32
    %162 = vector.broadcast %cst_57 : f32 to vector<16x16xf32>
    %163 = arith.mulf %161, %162 : vector<16x16xf32>
    %cst_58 = arith.constant dense<0xFF800000> : vector<16xf32>
    %164 = vector.multi_reduction <maximumf>, %163, %cst_58 [1] : vector<16x16xf32> to vector<16xf32>
    %165 = vector.shape_cast %164 : vector<16xf32> to vector<16x1xf32>
    %166 = vector.broadcast %165 : vector<16x1xf32> to vector<16x16xf32>
    %167 = arith.subf %163, %166 : vector<16x16xf32>
    %168 = math.exp %167 : vector<16x16xf32>
    %cst_59 = arith.constant dense<0.000000e+00> : vector<16xf32>
    %169 = vector.multi_reduction <add>, %168, %cst_59 [1] : vector<16x16xf32> to vector<16xf32>
    %170 = vector.shape_cast %169 : vector<16xf32> to vector<16x1xf32>
    %cst_60 = arith.constant 1.000000e+00 : f32
    %171 = vector.broadcast %cst_60 : f32 to vector<16x1xf32>
    %172 = arith.divf %171, %170 : vector<16x1xf32>
    %173 = vector.broadcast %172 : vector<16x1xf32> to vector<16x16xf32>
    %174 = arith.mulf %168, %173 : vector<16x16xf32>
    %cst_61 = arith.constant dense<0.000000e+00> : vector<16x32xf32>
    %175 = tpu.matmul %174, %160, %cst_61 {dimension_numbers = #tpu.dot_dimension_numbers<[1], [0], [0], [1], [0, 0, 1, 1], [], []>} : vector<16x16xf32>, vector<16x32xf32>, vector<16x32xf32> -> vector<16x32xf32>
    %176 = vector.extract_strided_slice %71 {offsets = [0, 0], sizes = [32, 128], strides = [1, 1]} : vector<128x128xf32> to vector<32x128xf32>
    %cst_62 = arith.constant dense<0.000000e+00> : vector<16x128xf32>
    %177 = tpu.matmul %175, %176, %cst_62 {dimension_numbers = #tpu.dot_dimension_numbers<[1], [0], [0], [1], [0, 0, 1, 1], [], []>} : vector<16x32xf32>, vector<32x128xf32>, vector<16x128xf32> -> vector<16x128xf32>
    %178 = arith.addf %157, %177 : vector<16x128xf32>
    %179 = vector.extract_strided_slice %67 {offsets = [16, 32], sizes = [16, 32], strides = [1, 1]} : vector<32x128xf32> to vector<16x32xf32>
    %180 = vector.extract_strided_slice %68 {offsets = [16, 32], sizes = [16, 32], strides = [1, 1]} : vector<32x128xf32> to vector<16x32xf32>
    %181 = vector.extract_strided_slice %69 {offsets = [16, 32], sizes = [16, 32], strides = [1, 1]} : vector<32x128xf32> to vector<16x32xf32>
    %cst_63 = arith.constant dense<0.000000e+00> : vector<16x16xf32>
    %182 = tpu.matmul %179, %180, %cst_63 {dimension_numbers = #tpu.dot_dimension_numbers<[1], [1], [0], [0], [0, 0, 1, 0], [], []>} : vector<16x32xf32>, vector<16x32xf32>, vector<16x16xf32> -> vector<16x16xf32>
    %cst_64 = arith.constant 0.176776692 : f32
    %183 = vector.broadcast %cst_64 : f32 to vector<16x16xf32>
    %184 = arith.mulf %182, %183 : vector<16x16xf32>
    %cst_65 = arith.constant dense<0xFF800000> : vector<16xf32>
    %185 = vector.multi_reduction <maximumf>, %184, %cst_65 [1] : vector<16x16xf32> to vector<16xf32>
    %186 = vector.shape_cast %185 : vector<16xf32> to vector<16x1xf32>
    %187 = vector.broadcast %186 : vector<16x1xf32> to vector<16x16xf32>
    %188 = arith.subf %184, %187 : vector<16x16xf32>
    %189 = math.exp %188 : vector<16x16xf32>
    %cst_66 = arith.constant dense<0.000000e+00> : vector<16xf32>
    %190 = vector.multi_reduction <add>, %189, %cst_66 [1] : vector<16x16xf32> to vector<16xf32>
    %191 = vector.shape_cast %190 : vector<16xf32> to vector<16x1xf32>
    %cst_67 = arith.constant 1.000000e+00 : f32
    %192 = vector.broadcast %cst_67 : f32 to vector<16x1xf32>
    %193 = arith.divf %192, %191 : vector<16x1xf32>
    %194 = vector.broadcast %193 : vector<16x1xf32> to vector<16x16xf32>
    %195 = arith.mulf %189, %194 : vector<16x16xf32>
    %cst_68 = arith.constant dense<0.000000e+00> : vector<16x32xf32>
    %196 = tpu.matmul %195, %181, %cst_68 {dimension_numbers = #tpu.dot_dimension_numbers<[1], [0], [0], [1], [0, 0, 1, 1], [], []>} : vector<16x16xf32>, vector<16x32xf32>, vector<16x32xf32> -> vector<16x32xf32>
    %197 = vector.extract_strided_slice %71 {offsets = [32, 0], sizes = [32, 128], strides = [1, 1]} : vector<128x128xf32> to vector<32x128xf32>
    %cst_69 = arith.constant dense<0.000000e+00> : vector<16x128xf32>
    %198 = tpu.matmul %196, %197, %cst_69 {dimension_numbers = #tpu.dot_dimension_numbers<[1], [0], [0], [1], [0, 0, 1, 1], [], []>} : vector<16x32xf32>, vector<32x128xf32>, vector<16x128xf32> -> vector<16x128xf32>
    %199 = arith.addf %178, %198 : vector<16x128xf32>
    %200 = vector.extract_strided_slice %67 {offsets = [16, 64], sizes = [16, 32], strides = [1, 1]} : vector<32x128xf32> to vector<16x32xf32>
    %201 = vector.extract_strided_slice %68 {offsets = [16, 64], sizes = [16, 32], strides = [1, 1]} : vector<32x128xf32> to vector<16x32xf32>
    %202 = vector.extract_strided_slice %69 {offsets = [16, 64], sizes = [16, 32], strides = [1, 1]} : vector<32x128xf32> to vector<16x32xf32>
    %cst_70 = arith.constant dense<0.000000e+00> : vector<16x16xf32>
    %203 = tpu.matmul %200, %201, %cst_70 {dimension_numbers = #tpu.dot_dimension_numbers<[1], [1], [0], [0], [0, 0, 1, 0], [], []>} : vector<16x32xf32>, vector<16x32xf32>, vector<16x16xf32> -> vector<16x16xf32>
    %cst_71 = arith.constant 0.176776692 : f32
    %204 = vector.broadcast %cst_71 : f32 to vector<16x16xf32>
    %205 = arith.mulf %203, %204 : vector<16x16xf32>
    %cst_72 = arith.constant dense<0xFF800000> : vector<16xf32>
    %206 = vector.multi_reduction <maximumf>, %205, %cst_72 [1] : vector<16x16xf32> to vector<16xf32>
    %207 = vector.shape_cast %206 : vector<16xf32> to vector<16x1xf32>
    %208 = vector.broadcast %207 : vector<16x1xf32> to vector<16x16xf32>
    %209 = arith.subf %205, %208 : vector<16x16xf32>
    %210 = math.exp %209 : vector<16x16xf32>
    %cst_73 = arith.constant dense<0.000000e+00> : vector<16xf32>
    %211 = vector.multi_reduction <add>, %210, %cst_73 [1] : vector<16x16xf32> to vector<16xf32>
    %212 = vector.shape_cast %211 : vector<16xf32> to vector<16x1xf32>
    %cst_74 = arith.constant 1.000000e+00 : f32
    %213 = vector.broadcast %cst_74 : f32 to vector<16x1xf32>
    %214 = arith.divf %213, %212 : vector<16x1xf32>
    %215 = vector.broadcast %214 : vector<16x1xf32> to vector<16x16xf32>
    %216 = arith.mulf %210, %215 : vector<16x16xf32>
    %cst_75 = arith.constant dense<0.000000e+00> : vector<16x32xf32>
    %217 = tpu.matmul %216, %202, %cst_75 {dimension_numbers = #tpu.dot_dimension_numbers<[1], [0], [0], [1], [0, 0, 1, 1], [], []>} : vector<16x16xf32>, vector<16x32xf32>, vector<16x32xf32> -> vector<16x32xf32>
    %218 = vector.extract_strided_slice %71 {offsets = [64, 0], sizes = [32, 128], strides = [1, 1]} : vector<128x128xf32> to vector<32x128xf32>
    %cst_76 = arith.constant dense<0.000000e+00> : vector<16x128xf32>
    %219 = tpu.matmul %217, %218, %cst_76 {dimension_numbers = #tpu.dot_dimension_numbers<[1], [0], [0], [1], [0, 0, 1, 1], [], []>} : vector<16x32xf32>, vector<32x128xf32>, vector<16x128xf32> -> vector<16x128xf32>
    %220 = arith.addf %199, %219 : vector<16x128xf32>
    %221 = vector.extract_strided_slice %67 {offsets = [16, 96], sizes = [16, 32], strides = [1, 1]} : vector<32x128xf32> to vector<16x32xf32>
    %222 = vector.extract_strided_slice %68 {offsets = [16, 96], sizes = [16, 32], strides = [1, 1]} : vector<32x128xf32> to vector<16x32xf32>
    %223 = vector.extract_strided_slice %69 {offsets = [16, 96], sizes = [16, 32], strides = [1, 1]} : vector<32x128xf32> to vector<16x32xf32>
    %cst_77 = arith.constant dense<0.000000e+00> : vector<16x16xf32>
    %224 = tpu.matmul %221, %222, %cst_77 {dimension_numbers = #tpu.dot_dimension_numbers<[1], [1], [0], [0], [0, 0, 1, 0], [], []>} : vector<16x32xf32>, vector<16x32xf32>, vector<16x16xf32> -> vector<16x16xf32>
    %cst_78 = arith.constant 0.176776692 : f32
    %225 = vector.broadcast %cst_78 : f32 to vector<16x16xf32>
    %226 = arith.mulf %224, %225 : vector<16x16xf32>
    %cst_79 = arith.constant dense<0xFF800000> : vector<16xf32>
    %227 = vector.multi_reduction <maximumf>, %226, %cst_79 [1] : vector<16x16xf32> to vector<16xf32>
    %228 = vector.shape_cast %227 : vector<16xf32> to vector<16x1xf32>
    %229 = vector.broadcast %228 : vector<16x1xf32> to vector<16x16xf32>
    %230 = arith.subf %226, %229 : vector<16x16xf32>
    %231 = math.exp %230 : vector<16x16xf32>
    %cst_80 = arith.constant dense<0.000000e+00> : vector<16xf32>
    %232 = vector.multi_reduction <add>, %231, %cst_80 [1] : vector<16x16xf32> to vector<16xf32>
    %233 = vector.shape_cast %232 : vector<16xf32> to vector<16x1xf32>
    %cst_81 = arith.constant 1.000000e+00 : f32
    %234 = vector.broadcast %cst_81 : f32 to vector<16x1xf32>
    %235 = arith.divf %234, %233 : vector<16x1xf32>
    %236 = vector.broadcast %235 : vector<16x1xf32> to vector<16x16xf32>
    %237 = arith.mulf %231, %236 : vector<16x16xf32>
    %cst_82 = arith.constant dense<0.000000e+00> : vector<16x32xf32>
    %238 = tpu.matmul %237, %223, %cst_82 {dimension_numbers = #tpu.dot_dimension_numbers<[1], [0], [0], [1], [0, 0, 1, 1], [], []>} : vector<16x16xf32>, vector<16x32xf32>, vector<16x32xf32> -> vector<16x32xf32>
    %239 = vector.extract_strided_slice %71 {offsets = [96, 0], sizes = [32, 128], strides = [1, 1]} : vector<128x128xf32> to vector<32x128xf32>
    %cst_83 = arith.constant dense<0.000000e+00> : vector<16x128xf32>
    %240 = tpu.matmul %238, %239, %cst_83 {dimension_numbers = #tpu.dot_dimension_numbers<[1], [0], [0], [1], [0, 0, 1, 1], [], []>} : vector<16x32xf32>, vector<32x128xf32>, vector<16x128xf32> -> vector<16x128xf32>
    %241 = arith.addf %220, %240 : vector<16x128xf32>
    %242 = tpu.concatenate %156, %241 in 0 : vector<16x128xf32>, vector<16x128xf32> -> vector<32x128xf32>
    %243 = arith.addf %33, %242 : vector<32x128xf32>
    %c0_84 = arith.constant 0 : index
    %c0_85 = arith.constant 0 : index
    %c0_86 = arith.constant 0 : index
    %244 = vector.load %arg5[%c0_84, %c0_85, %c0_86] : memref<2x1x128xf32, #tpu.memory_space<vmem>>, vector<1x1x128xf32>
    %245 = vector.shape_cast %244 : vector<1x1x128xf32> to vector<1x128xf32>
    %246 = vector.broadcast %245 : vector<1x128xf32> to vector<32x128xf32>
    %247 = arith.addf %243, %246 : vector<32x128xf32>
    %c1 = arith.constant 1 : index
    %c0_87 = arith.constant 0 : index
    %c0_88 = arith.constant 0 : index
    %248 = vector.load %arg6[%c1, %c0_87, %c0_88] : memref<5x1x128xf32, #tpu.memory_space<vmem>>, vector<1x1x128xf32>
    %249 = vector.shape_cast %248 : vector<1x1x128xf32> to vector<1x128xf32>
    %c1_89 = arith.constant 1 : index
    %c0_90 = arith.constant 0 : index
    %c0_91 = arith.constant 0 : index
    %250 = vector.load %arg7[%c1_89, %c0_90, %c0_91] : memref<5x1x128xf32, #tpu.memory_space<vmem>>, vector<1x1x128xf32>
    %251 = vector.shape_cast %250 : vector<1x1x128xf32> to vector<1x128xf32>
    %cst_92 = arith.constant dense<0.000000e+00> : vector<32xf32>
    %252 = vector.multi_reduction <add>, %247, %cst_92 [1] : vector<32x128xf32> to vector<32xf32>
    %253 = vector.shape_cast %252 : vector<32xf32> to vector<32x1xf32>
    %cst_93 = arith.constant 1.280000e+02 : f32
    %254 = vector.broadcast %cst_93 : f32 to vector<32x1xf32>
    %255 = arith.divf %253, %254 : vector<32x1xf32>
    %256 = vector.broadcast %255 : vector<32x1xf32> to vector<32x128xf32>
    %257 = arith.subf %247, %256 : vector<32x128xf32>
    %258 = arith.mulf %257, %257 : vector<32x128xf32>
    %cst_94 = arith.constant dense<0.000000e+00> : vector<32xf32>
    %259 = vector.multi_reduction <add>, %258, %cst_94 [1] : vector<32x128xf32> to vector<32xf32>
    %260 = vector.shape_cast %259 : vector<32xf32> to vector<32x1xf32>
    %cst_95 = arith.constant 0.00787401571 : f32
    %261 = vector.broadcast %cst_95 : f32 to vector<32x1xf32>
    %262 = arith.mulf %260, %261 : vector<32x1xf32>
    %263 = math.sqrt %262 : vector<32x1xf32>
    %cst_96 = arith.constant 9.99999997E-7 : f32
    %264 = vector.broadcast %cst_96 : f32 to vector<32x1xf32>
    %265 = arith.addf %263, %264 : vector<32x1xf32>
    %cst_97 = arith.constant 1.000000e+00 : f32
    %266 = vector.broadcast %cst_97 : f32 to vector<32x1xf32>
    %267 = arith.divf %266, %265 : vector<32x1xf32>
    %268 = vector.broadcast %267 : vector<32x1xf32> to vector<32x128xf32>
    %269 = arith.mulf %257, %268 : vector<32x128xf32>
    %270 = vector.broadcast %249 : vector<1x128xf32> to vector<32x128xf32>
    %271 = arith.mulf %270, %269 : vector<32x128xf32>
    %272 = vector.broadcast %251 : vector<1x128xf32> to vector<32x128xf32>
    %273 = arith.addf %271, %272 : vector<32x128xf32>
    %c0_98 = arith.constant 0 : index
    %c0_99 = arith.constant 0 : index
    %c0_100 = arith.constant 0 : index
    %274 = vector.load %arg10[%c0_98, %c0_99, %c0_100] : memref<2x1x128xf32, #tpu.memory_space<vmem>>, vector<1x1x128xf32>
    %275 = vector.shape_cast %274 : vector<1x1x128xf32> to vector<1x128xf32>
    %c0_101 = arith.constant 0 : index
    %c0_102 = arith.constant 0 : index
    %c0_103 = arith.constant 0 : index
    %276 = vector.load %arg11[%c0_101, %c0_102, %c0_103] : memref<2x1x128xf32, #tpu.memory_space<vmem>>, vector<1x1x128xf32>
    %277 = vector.shape_cast %276 : vector<1x1x128xf32> to vector<1x128xf32>
    %cst_104 = arith.constant 0.000000e+00 : f32
    %278 = vector.broadcast %cst_104 : f32 to vector<32x128xf32>
    %cst_105 = arith.constant 0.000000e+00 : f32
    %279 = vector.broadcast %cst_105 : f32 to vector<32x128xf32>
    %c0_106 = arith.constant 0 : index
    %c0_107 = arith.constant 0 : index
    %c0_108 = arith.constant 0 : index
    %280 = vector.load %arg8[%c0_106, %c0_107, %c0_108] : memref<18x128x128xf32, #tpu.memory_space<vmem>>, vector<1x128x128xf32>
    %281 = vector.shape_cast %280 : vector<1x128x128xf32> to vector<128x128xf32>
    %cst_109 = arith.constant dense<0.000000e+00> : vector<32x128xf32>
    %282 = tpu.matmul %273, %281, %cst_109 {dimension_numbers = #tpu.dot_dimension_numbers<[1], [0], [0], [1], [0, 0, 1, 1], [], []>} : vector<32x128xf32>, vector<128x128xf32>, vector<32x128xf32> -> vector<32x128xf32>
    %283 = arith.addf %279, %282 : vector<32x128xf32>
    %c0_110 = arith.constant 0 : index
    %c0_111 = arith.constant 0 : index
    %c0_112 = arith.constant 0 : index
    %284 = vector.load %arg9[%c0_110, %c0_111, %c0_112] : memref<6x1x128xf32, #tpu.memory_space<vmem>>, vector<1x1x128xf32>
    %285 = vector.shape_cast %284 : vector<1x1x128xf32> to vector<1x128xf32>
    %286 = vector.broadcast %285 : vector<1x128xf32> to vector<32x128xf32>
    %287 = arith.addf %283, %286 : vector<32x128xf32>
    %288 = vector.broadcast %275 : vector<1x128xf32> to vector<32x128xf32>
    %289 = arith.mulf %287, %288 : vector<32x128xf32>
    %290 = vector.broadcast %277 : vector<1x128xf32> to vector<32x128xf32>
    %291 = arith.addf %289, %290 : vector<32x128xf32>
    %cst_113 = arith.constant 0.000000e+00 : f32
    %292 = vector.broadcast %cst_113 : f32 to vector<32x128xf32>
    %293 = arith.maximumf %291, %292 : vector<32x128xf32>
    %294 = arith.addf %278, %293 : vector<32x128xf32>
    %cst_114 = arith.constant 0.000000e+00 : f32
    %295 = vector.broadcast %cst_114 : f32 to vector<32x128xf32>
    %c1_115 = arith.constant 1 : index
    %c0_116 = arith.constant 0 : index
    %c0_117 = arith.constant 0 : index
    %296 = vector.load %arg8[%c1_115, %c0_116, %c0_117] : memref<18x128x128xf32, #tpu.memory_space<vmem>>, vector<1x128x128xf32>
    %297 = vector.shape_cast %296 : vector<1x128x128xf32> to vector<128x128xf32>
    %cst_118 = arith.constant dense<0.000000e+00> : vector<32x128xf32>
    %298 = tpu.matmul %273, %297, %cst_118 {dimension_numbers = #tpu.dot_dimension_numbers<[1], [0], [0], [1], [0, 0, 1, 1], [], []>} : vector<32x128xf32>, vector<128x128xf32>, vector<32x128xf32> -> vector<32x128xf32>
    %c1_i32_119 = arith.constant 1 : i32
    %299 = tpu.dynamic_rotate %298 by %c1_i32_119 dim 0 : vector<32x128xf32>, i32 -> vector<32x128xf32>
    %300 = vector.broadcast %20 : vector<32x1xf32> to vector<32x128xf32>
    %301 = arith.mulf %299, %300 : vector<32x128xf32>
    %302 = arith.addf %295, %301 : vector<32x128xf32>
    %c2 = arith.constant 2 : index
    %c0_120 = arith.constant 0 : index
    %c0_121 = arith.constant 0 : index
    %303 = vector.load %arg8[%c2, %c0_120, %c0_121] : memref<18x128x128xf32, #tpu.memory_space<vmem>>, vector<1x128x128xf32>
    %304 = vector.shape_cast %303 : vector<1x128x128xf32> to vector<128x128xf32>
    %cst_122 = arith.constant dense<0.000000e+00> : vector<32x128xf32>
    %305 = tpu.matmul %273, %304, %cst_122 {dimension_numbers = #tpu.dot_dimension_numbers<[1], [0], [0], [1], [0, 0, 1, 1], [], []>} : vector<32x128xf32>, vector<128x128xf32>, vector<32x128xf32> -> vector<32x128xf32>
    %306 = arith.addf %302, %305 : vector<32x128xf32>
    %c3 = arith.constant 3 : index
    %c0_123 = arith.constant 0 : index
    %c0_124 = arith.constant 0 : index
    %307 = vector.load %arg8[%c3, %c0_123, %c0_124] : memref<18x128x128xf32, #tpu.memory_space<vmem>>, vector<1x128x128xf32>
    %308 = vector.shape_cast %307 : vector<1x128x128xf32> to vector<128x128xf32>
    %cst_125 = arith.constant dense<0.000000e+00> : vector<32x128xf32>
    %309 = tpu.matmul %273, %308, %cst_125 {dimension_numbers = #tpu.dot_dimension_numbers<[1], [0], [0], [1], [0, 0, 1, 1], [], []>} : vector<32x128xf32>, vector<128x128xf32>, vector<32x128xf32> -> vector<32x128xf32>
    %c31_i32 = arith.constant 31 : i32
    %310 = tpu.dynamic_rotate %309 by %c31_i32 dim 0 : vector<32x128xf32>, i32 -> vector<32x128xf32>
    %311 = vector.broadcast %24 : vector<32x1xf32> to vector<32x128xf32>
    %312 = arith.mulf %310, %311 : vector<32x128xf32>
    %313 = arith.addf %306, %312 : vector<32x128xf32>
    %c1_126 = arith.constant 1 : index
    %c0_127 = arith.constant 0 : index
    %c0_128 = arith.constant 0 : index
    %314 = vector.load %arg9[%c1_126, %c0_127, %c0_128] : memref<6x1x128xf32, #tpu.memory_space<vmem>>, vector<1x1x128xf32>
    %315 = vector.shape_cast %314 : vector<1x1x128xf32> to vector<1x128xf32>
    %316 = vector.broadcast %315 : vector<1x128xf32> to vector<32x128xf32>
    %317 = arith.addf %313, %316 : vector<32x128xf32>
    %318 = vector.broadcast %275 : vector<1x128xf32> to vector<32x128xf32>
    %319 = arith.mulf %317, %318 : vector<32x128xf32>
    %320 = vector.broadcast %277 : vector<1x128xf32> to vector<32x128xf32>
    %321 = arith.addf %319, %320 : vector<32x128xf32>
    %cst_129 = arith.constant 0.000000e+00 : f32
    %322 = vector.broadcast %cst_129 : f32 to vector<32x128xf32>
    %323 = arith.maximumf %321, %322 : vector<32x128xf32>
    %324 = arith.addf %294, %323 : vector<32x128xf32>
    %cst_130 = arith.constant 0.000000e+00 : f32
    %325 = vector.broadcast %cst_130 : f32 to vector<32x128xf32>
    %c4 = arith.constant 4 : index
    %c0_131 = arith.constant 0 : index
    %c0_132 = arith.constant 0 : index
    %326 = vector.load %arg8[%c4, %c0_131, %c0_132] : memref<18x128x128xf32, #tpu.memory_space<vmem>>, vector<1x128x128xf32>
    %327 = vector.shape_cast %326 : vector<1x128x128xf32> to vector<128x128xf32>
    %cst_133 = arith.constant dense<0.000000e+00> : vector<32x128xf32>
    %328 = tpu.matmul %273, %327, %cst_133 {dimension_numbers = #tpu.dot_dimension_numbers<[1], [0], [0], [1], [0, 0, 1, 1], [], []>} : vector<32x128xf32>, vector<128x128xf32>, vector<32x128xf32> -> vector<32x128xf32>
    %c2_i32_134 = arith.constant 2 : i32
    %329 = tpu.dynamic_rotate %328 by %c2_i32_134 dim 0 : vector<32x128xf32>, i32 -> vector<32x128xf32>
    %330 = vector.broadcast %28 : vector<32x1xf32> to vector<32x128xf32>
    %331 = arith.mulf %329, %330 : vector<32x128xf32>
    %332 = arith.addf %325, %331 : vector<32x128xf32>
    %c5 = arith.constant 5 : index
    %c0_135 = arith.constant 0 : index
    %c0_136 = arith.constant 0 : index
    %333 = vector.load %arg8[%c5, %c0_135, %c0_136] : memref<18x128x128xf32, #tpu.memory_space<vmem>>, vector<1x128x128xf32>
    %334 = vector.shape_cast %333 : vector<1x128x128xf32> to vector<128x128xf32>
    %cst_137 = arith.constant dense<0.000000e+00> : vector<32x128xf32>
    %335 = tpu.matmul %273, %334, %cst_137 {dimension_numbers = #tpu.dot_dimension_numbers<[1], [0], [0], [1], [0, 0, 1, 1], [], []>} : vector<32x128xf32>, vector<128x128xf32>, vector<32x128xf32> -> vector<32x128xf32>
    %c1_i32_138 = arith.constant 1 : i32
    %336 = tpu.dynamic_rotate %335 by %c1_i32_138 dim 0 : vector<32x128xf32>, i32 -> vector<32x128xf32>
    %337 = vector.broadcast %20 : vector<32x1xf32> to vector<32x128xf32>
    %338 = arith.mulf %336, %337 : vector<32x128xf32>
    %339 = arith.addf %332, %338 : vector<32x128xf32>
    %c6 = arith.constant 6 : index
    %c0_139 = arith.constant 0 : index
    %c0_140 = arith.constant 0 : index
    %340 = vector.load %arg8[%c6, %c0_139, %c0_140] : memref<18x128x128xf32, #tpu.memory_space<vmem>>, vector<1x128x128xf32>
    %341 = vector.shape_cast %340 : vector<1x128x128xf32> to vector<128x128xf32>
    %cst_141 = arith.constant dense<0.000000e+00> : vector<32x128xf32>
    %342 = tpu.matmul %273, %341, %cst_141 {dimension_numbers = #tpu.dot_dimension_numbers<[1], [0], [0], [1], [0, 0, 1, 1], [], []>} : vector<32x128xf32>, vector<128x128xf32>, vector<32x128xf32> -> vector<32x128xf32>
    %343 = arith.addf %339, %342 : vector<32x128xf32>
    %c7 = arith.constant 7 : index
    %c0_142 = arith.constant 0 : index
    %c0_143 = arith.constant 0 : index
    %344 = vector.load %arg8[%c7, %c0_142, %c0_143] : memref<18x128x128xf32, #tpu.memory_space<vmem>>, vector<1x128x128xf32>
    %345 = vector.shape_cast %344 : vector<1x128x128xf32> to vector<128x128xf32>
    %cst_144 = arith.constant dense<0.000000e+00> : vector<32x128xf32>
    %346 = tpu.matmul %273, %345, %cst_144 {dimension_numbers = #tpu.dot_dimension_numbers<[1], [0], [0], [1], [0, 0, 1, 1], [], []>} : vector<32x128xf32>, vector<128x128xf32>, vector<32x128xf32> -> vector<32x128xf32>
    %c31_i32_145 = arith.constant 31 : i32
    %347 = tpu.dynamic_rotate %346 by %c31_i32_145 dim 0 : vector<32x128xf32>, i32 -> vector<32x128xf32>
    %348 = vector.broadcast %24 : vector<32x1xf32> to vector<32x128xf32>
    %349 = arith.mulf %347, %348 : vector<32x128xf32>
    %350 = arith.addf %343, %349 : vector<32x128xf32>
    %c8 = arith.constant 8 : index
    %c0_146 = arith.constant 0 : index
    %c0_147 = arith.constant 0 : index
    %351 = vector.load %arg8[%c8, %c0_146, %c0_147] : memref<18x128x128xf32, #tpu.memory_space<vmem>>, vector<1x128x128xf32>
    %352 = vector.shape_cast %351 : vector<1x128x128xf32> to vector<128x128xf32>
    %cst_148 = arith.constant dense<0.000000e+00> : vector<32x128xf32>
    %353 = tpu.matmul %273, %352, %cst_148 {dimension_numbers = #tpu.dot_dimension_numbers<[1], [0], [0], [1], [0, 0, 1, 1], [], []>} : vector<32x128xf32>, vector<128x128xf32>, vector<32x128xf32> -> vector<32x128xf32>
    %c30_i32 = arith.constant 30 : i32
    %354 = tpu.dynamic_rotate %353 by %c30_i32 dim 0 : vector<32x128xf32>, i32 -> vector<32x128xf32>
    %355 = vector.broadcast %32 : vector<32x1xf32> to vector<32x128xf32>
    %356 = arith.mulf %354, %355 : vector<32x128xf32>
    %357 = arith.addf %350, %356 : vector<32x128xf32>
    %c2_149 = arith.constant 2 : index
    %c0_150 = arith.constant 0 : index
    %c0_151 = arith.constant 0 : index
    %358 = vector.load %arg9[%c2_149, %c0_150, %c0_151] : memref<6x1x128xf32, #tpu.memory_space<vmem>>, vector<1x1x128xf32>
    %359 = vector.shape_cast %358 : vector<1x1x128xf32> to vector<1x128xf32>
    %360 = vector.broadcast %359 : vector<1x128xf32> to vector<32x128xf32>
    %361 = arith.addf %357, %360 : vector<32x128xf32>
    %362 = vector.broadcast %275 : vector<1x128xf32> to vector<32x128xf32>
    %363 = arith.mulf %361, %362 : vector<32x128xf32>
    %364 = vector.broadcast %277 : vector<1x128xf32> to vector<32x128xf32>
    %365 = arith.addf %363, %364 : vector<32x128xf32>
    %cst_152 = arith.constant 0.000000e+00 : f32
    %366 = vector.broadcast %cst_152 : f32 to vector<32x128xf32>
    %367 = arith.maximumf %365, %366 : vector<32x128xf32>
    %368 = arith.addf %324, %367 : vector<32x128xf32>
    %cst_153 = arith.constant 0.333333343 : f32
    %369 = vector.broadcast %cst_153 : f32 to vector<32x128xf32>
    %370 = arith.mulf %368, %369 : vector<32x128xf32>
    %371 = arith.addf %247, %370 : vector<32x128xf32>
    %c2_154 = arith.constant 2 : index
    %c0_155 = arith.constant 0 : index
    %c0_156 = arith.constant 0 : index
    %372 = vector.load %arg6[%c2_154, %c0_155, %c0_156] : memref<5x1x128xf32, #tpu.memory_space<vmem>>, vector<1x1x128xf32>
    %373 = vector.shape_cast %372 : vector<1x1x128xf32> to vector<1x128xf32>
    %c2_157 = arith.constant 2 : index
    %c0_158 = arith.constant 0 : index
    %c0_159 = arith.constant 0 : index
    %374 = vector.load %arg7[%c2_157, %c0_158, %c0_159] : memref<5x1x128xf32, #tpu.memory_space<vmem>>, vector<1x1x128xf32>
    %375 = vector.shape_cast %374 : vector<1x1x128xf32> to vector<1x128xf32>
    %cst_160 = arith.constant dense<0.000000e+00> : vector<32xf32>
    %376 = vector.multi_reduction <add>, %371, %cst_160 [1] : vector<32x128xf32> to vector<32xf32>
    %377 = vector.shape_cast %376 : vector<32xf32> to vector<32x1xf32>
    %cst_161 = arith.constant 1.280000e+02 : f32
    %378 = vector.broadcast %cst_161 : f32 to vector<32x1xf32>
    %379 = arith.divf %377, %378 : vector<32x1xf32>
    %380 = vector.broadcast %379 : vector<32x1xf32> to vector<32x128xf32>
    %381 = arith.subf %371, %380 : vector<32x128xf32>
    %382 = arith.mulf %381, %381 : vector<32x128xf32>
    %cst_162 = arith.constant dense<0.000000e+00> : vector<32xf32>
    %383 = vector.multi_reduction <add>, %382, %cst_162 [1] : vector<32x128xf32> to vector<32xf32>
    %384 = vector.shape_cast %383 : vector<32xf32> to vector<32x1xf32>
    %cst_163 = arith.constant 0.00787401571 : f32
    %385 = vector.broadcast %cst_163 : f32 to vector<32x1xf32>
    %386 = arith.mulf %384, %385 : vector<32x1xf32>
    %387 = math.sqrt %386 : vector<32x1xf32>
    %cst_164 = arith.constant 9.99999997E-7 : f32
    %388 = vector.broadcast %cst_164 : f32 to vector<32x1xf32>
    %389 = arith.addf %387, %388 : vector<32x1xf32>
    %cst_165 = arith.constant 1.000000e+00 : f32
    %390 = vector.broadcast %cst_165 : f32 to vector<32x1xf32>
    %391 = arith.divf %390, %389 : vector<32x1xf32>
    %392 = vector.broadcast %391 : vector<32x1xf32> to vector<32x128xf32>
    %393 = arith.mulf %381, %392 : vector<32x128xf32>
    %394 = vector.broadcast %373 : vector<1x128xf32> to vector<32x128xf32>
    %395 = arith.mulf %394, %393 : vector<32x128xf32>
    %396 = vector.broadcast %375 : vector<1x128xf32> to vector<32x128xf32>
    %397 = arith.addf %395, %396 : vector<32x128xf32>
    %c1_166 = arith.constant 1 : index
    %c0_167 = arith.constant 0 : index
    %c0_168 = arith.constant 0 : index
    %398 = vector.load %arg2[%c1_166, %c0_167, %c0_168] : memref<2x128x384xf32, #tpu.memory_space<vmem>>, vector<1x128x384xf32>
    %399 = vector.shape_cast %398 : vector<1x128x384xf32> to vector<128x384xf32>
    %cst_169 = arith.constant dense<0.000000e+00> : vector<32x384xf32>
    %400 = tpu.matmul %397, %399, %cst_169 {dimension_numbers = #tpu.dot_dimension_numbers<[1], [0], [0], [1], [0, 0, 1, 1], [], []>} : vector<32x128xf32>, vector<128x384xf32>, vector<32x384xf32> -> vector<32x384xf32>
    %c1_170 = arith.constant 1 : index
    %c0_171 = arith.constant 0 : index
    %c0_172 = arith.constant 0 : index
    %401 = vector.load %arg3[%c1_170, %c0_171, %c0_172] : memref<2x1x384xf32, #tpu.memory_space<vmem>>, vector<1x1x384xf32>
    %402 = vector.shape_cast %401 : vector<1x1x384xf32> to vector<1x384xf32>
    %403 = vector.broadcast %402 : vector<1x384xf32> to vector<32x384xf32>
    %404 = arith.addf %400, %403 : vector<32x384xf32>
    %405 = vector.extract_strided_slice %404 {offsets = [0, 0], sizes = [32, 128], strides = [1, 1]} : vector<32x384xf32> to vector<32x128xf32>
    %406 = vector.extract_strided_slice %404 {offsets = [0, 128], sizes = [32, 128], strides = [1, 1]} : vector<32x384xf32> to vector<32x128xf32>
    %407 = vector.extract_strided_slice %404 {offsets = [0, 256], sizes = [32, 128], strides = [1, 1]} : vector<32x384xf32> to vector<32x128xf32>
    %c1_173 = arith.constant 1 : index
    %c0_174 = arith.constant 0 : index
    %c0_175 = arith.constant 0 : index
    %408 = vector.load %arg4[%c1_173, %c0_174, %c0_175] : memref<2x128x128xf32, #tpu.memory_space<vmem>>, vector<1x128x128xf32>
    %409 = vector.shape_cast %408 : vector<1x128x128xf32> to vector<128x128xf32>
    %cst_176 = arith.constant 0.000000e+00 : f32
    %410 = vector.broadcast %cst_176 : f32 to vector<16x128xf32>
    %411 = vector.extract_strided_slice %405 {offsets = [0, 0], sizes = [16, 32], strides = [1, 1]} : vector<32x128xf32> to vector<16x32xf32>
    %412 = vector.extract_strided_slice %406 {offsets = [0, 0], sizes = [16, 32], strides = [1, 1]} : vector<32x128xf32> to vector<16x32xf32>
    %413 = vector.extract_strided_slice %407 {offsets = [0, 0], sizes = [16, 32], strides = [1, 1]} : vector<32x128xf32> to vector<16x32xf32>
    %cst_177 = arith.constant dense<0.000000e+00> : vector<16x16xf32>
    %414 = tpu.matmul %411, %412, %cst_177 {dimension_numbers = #tpu.dot_dimension_numbers<[1], [1], [0], [0], [0, 0, 1, 0], [], []>} : vector<16x32xf32>, vector<16x32xf32>, vector<16x16xf32> -> vector<16x16xf32>
    %cst_178 = arith.constant 0.176776692 : f32
    %415 = vector.broadcast %cst_178 : f32 to vector<16x16xf32>
    %416 = arith.mulf %414, %415 : vector<16x16xf32>
    %cst_179 = arith.constant dense<0xFF800000> : vector<16xf32>
    %417 = vector.multi_reduction <maximumf>, %416, %cst_179 [1] : vector<16x16xf32> to vector<16xf32>
    %418 = vector.shape_cast %417 : vector<16xf32> to vector<16x1xf32>
    %419 = vector.broadcast %418 : vector<16x1xf32> to vector<16x16xf32>
    %420 = arith.subf %416, %419 : vector<16x16xf32>
    %421 = math.exp %420 : vector<16x16xf32>
    %cst_180 = arith.constant dense<0.000000e+00> : vector<16xf32>
    %422 = vector.multi_reduction <add>, %421, %cst_180 [1] : vector<16x16xf32> to vector<16xf32>
    %423 = vector.shape_cast %422 : vector<16xf32> to vector<16x1xf32>
    %cst_181 = arith.constant 1.000000e+00 : f32
    %424 = vector.broadcast %cst_181 : f32 to vector<16x1xf32>
    %425 = arith.divf %424, %423 : vector<16x1xf32>
    %426 = vector.broadcast %425 : vector<16x1xf32> to vector<16x16xf32>
    %427 = arith.mulf %421, %426 : vector<16x16xf32>
    %cst_182 = arith.constant dense<0.000000e+00> : vector<16x32xf32>
    %428 = tpu.matmul %427, %413, %cst_182 {dimension_numbers = #tpu.dot_dimension_numbers<[1], [0], [0], [1], [0, 0, 1, 1], [], []>} : vector<16x16xf32>, vector<16x32xf32>, vector<16x32xf32> -> vector<16x32xf32>
    %429 = vector.extract_strided_slice %409 {offsets = [0, 0], sizes = [32, 128], strides = [1, 1]} : vector<128x128xf32> to vector<32x128xf32>
    %cst_183 = arith.constant dense<0.000000e+00> : vector<16x128xf32>
    %430 = tpu.matmul %428, %429, %cst_183 {dimension_numbers = #tpu.dot_dimension_numbers<[1], [0], [0], [1], [0, 0, 1, 1], [], []>} : vector<16x32xf32>, vector<32x128xf32>, vector<16x128xf32> -> vector<16x128xf32>
    %431 = arith.addf %410, %430 : vector<16x128xf32>
    %432 = vector.extract_strided_slice %405 {offsets = [0, 32], sizes = [16, 32], strides = [1, 1]} : vector<32x128xf32> to vector<16x32xf32>
    %433 = vector.extract_strided_slice %406 {offsets = [0, 32], sizes = [16, 32], strides = [1, 1]} : vector<32x128xf32> to vector<16x32xf32>
    %434 = vector.extract_strided_slice %407 {offsets = [0, 32], sizes = [16, 32], strides = [1, 1]} : vector<32x128xf32> to vector<16x32xf32>
    %cst_184 = arith.constant dense<0.000000e+00> : vector<16x16xf32>
    %435 = tpu.matmul %432, %433, %cst_184 {dimension_numbers = #tpu.dot_dimension_numbers<[1], [1], [0], [0], [0, 0, 1, 0], [], []>} : vector<16x32xf32>, vector<16x32xf32>, vector<16x16xf32> -> vector<16x16xf32>
    %cst_185 = arith.constant 0.176776692 : f32
    %436 = vector.broadcast %cst_185 : f32 to vector<16x16xf32>
    %437 = arith.mulf %435, %436 : vector<16x16xf32>
    %cst_186 = arith.constant dense<0xFF800000> : vector<16xf32>
    %438 = vector.multi_reduction <maximumf>, %437, %cst_186 [1] : vector<16x16xf32> to vector<16xf32>
    %439 = vector.shape_cast %438 : vector<16xf32> to vector<16x1xf32>
    %440 = vector.broadcast %439 : vector<16x1xf32> to vector<16x16xf32>
    %441 = arith.subf %437, %440 : vector<16x16xf32>
    %442 = math.exp %441 : vector<16x16xf32>
    %cst_187 = arith.constant dense<0.000000e+00> : vector<16xf32>
    %443 = vector.multi_reduction <add>, %442, %cst_187 [1] : vector<16x16xf32> to vector<16xf32>
    %444 = vector.shape_cast %443 : vector<16xf32> to vector<16x1xf32>
    %cst_188 = arith.constant 1.000000e+00 : f32
    %445 = vector.broadcast %cst_188 : f32 to vector<16x1xf32>
    %446 = arith.divf %445, %444 : vector<16x1xf32>
    %447 = vector.broadcast %446 : vector<16x1xf32> to vector<16x16xf32>
    %448 = arith.mulf %442, %447 : vector<16x16xf32>
    %cst_189 = arith.constant dense<0.000000e+00> : vector<16x32xf32>
    %449 = tpu.matmul %448, %434, %cst_189 {dimension_numbers = #tpu.dot_dimension_numbers<[1], [0], [0], [1], [0, 0, 1, 1], [], []>} : vector<16x16xf32>, vector<16x32xf32>, vector<16x32xf32> -> vector<16x32xf32>
    %450 = vector.extract_strided_slice %409 {offsets = [32, 0], sizes = [32, 128], strides = [1, 1]} : vector<128x128xf32> to vector<32x128xf32>
    %cst_190 = arith.constant dense<0.000000e+00> : vector<16x128xf32>
    %451 = tpu.matmul %449, %450, %cst_190 {dimension_numbers = #tpu.dot_dimension_numbers<[1], [0], [0], [1], [0, 0, 1, 1], [], []>} : vector<16x32xf32>, vector<32x128xf32>, vector<16x128xf32> -> vector<16x128xf32>
    %452 = arith.addf %431, %451 : vector<16x128xf32>
    %453 = vector.extract_strided_slice %405 {offsets = [0, 64], sizes = [16, 32], strides = [1, 1]} : vector<32x128xf32> to vector<16x32xf32>
    %454 = vector.extract_strided_slice %406 {offsets = [0, 64], sizes = [16, 32], strides = [1, 1]} : vector<32x128xf32> to vector<16x32xf32>
    %455 = vector.extract_strided_slice %407 {offsets = [0, 64], sizes = [16, 32], strides = [1, 1]} : vector<32x128xf32> to vector<16x32xf32>
    %cst_191 = arith.constant dense<0.000000e+00> : vector<16x16xf32>
    %456 = tpu.matmul %453, %454, %cst_191 {dimension_numbers = #tpu.dot_dimension_numbers<[1], [1], [0], [0], [0, 0, 1, 0], [], []>} : vector<16x32xf32>, vector<16x32xf32>, vector<16x16xf32> -> vector<16x16xf32>
    %cst_192 = arith.constant 0.176776692 : f32
    %457 = vector.broadcast %cst_192 : f32 to vector<16x16xf32>
    %458 = arith.mulf %456, %457 : vector<16x16xf32>
    %cst_193 = arith.constant dense<0xFF800000> : vector<16xf32>
    %459 = vector.multi_reduction <maximumf>, %458, %cst_193 [1] : vector<16x16xf32> to vector<16xf32>
    %460 = vector.shape_cast %459 : vector<16xf32> to vector<16x1xf32>
    %461 = vector.broadcast %460 : vector<16x1xf32> to vector<16x16xf32>
    %462 = arith.subf %458, %461 : vector<16x16xf32>
    %463 = math.exp %462 : vector<16x16xf32>
    %cst_194 = arith.constant dense<0.000000e+00> : vector<16xf32>
    %464 = vector.multi_reduction <add>, %463, %cst_194 [1] : vector<16x16xf32> to vector<16xf32>
    %465 = vector.shape_cast %464 : vector<16xf32> to vector<16x1xf32>
    %cst_195 = arith.constant 1.000000e+00 : f32
    %466 = vector.broadcast %cst_195 : f32 to vector<16x1xf32>
    %467 = arith.divf %466, %465 : vector<16x1xf32>
    %468 = vector.broadcast %467 : vector<16x1xf32> to vector<16x16xf32>
    %469 = arith.mulf %463, %468 : vector<16x16xf32>
    %cst_196 = arith.constant dense<0.000000e+00> : vector<16x32xf32>
    %470 = tpu.matmul %469, %455, %cst_196 {dimension_numbers = #tpu.dot_dimension_numbers<[1], [0], [0], [1], [0, 0, 1, 1], [], []>} : vector<16x16xf32>, vector<16x32xf32>, vector<16x32xf32> -> vector<16x32xf32>
    %471 = vector.extract_strided_slice %409 {offsets = [64, 0], sizes = [32, 128], strides = [1, 1]} : vector<128x128xf32> to vector<32x128xf32>
    %cst_197 = arith.constant dense<0.000000e+00> : vector<16x128xf32>
    %472 = tpu.matmul %470, %471, %cst_197 {dimension_numbers = #tpu.dot_dimension_numbers<[1], [0], [0], [1], [0, 0, 1, 1], [], []>} : vector<16x32xf32>, vector<32x128xf32>, vector<16x128xf32> -> vector<16x128xf32>
    %473 = arith.addf %452, %472 : vector<16x128xf32>
    %474 = vector.extract_strided_slice %405 {offsets = [0, 96], sizes = [16, 32], strides = [1, 1]} : vector<32x128xf32> to vector<16x32xf32>
    %475 = vector.extract_strided_slice %406 {offsets = [0, 96], sizes = [16, 32], strides = [1, 1]} : vector<32x128xf32> to vector<16x32xf32>
    %476 = vector.extract_strided_slice %407 {offsets = [0, 96], sizes = [16, 32], strides = [1, 1]} : vector<32x128xf32> to vector<16x32xf32>
    %cst_198 = arith.constant dense<0.000000e+00> : vector<16x16xf32>
    %477 = tpu.matmul %474, %475, %cst_198 {dimension_numbers = #tpu.dot_dimension_numbers<[1], [1], [0], [0], [0, 0, 1, 0], [], []>} : vector<16x32xf32>, vector<16x32xf32>, vector<16x16xf32> -> vector<16x16xf32>
    %cst_199 = arith.constant 0.176776692 : f32
    %478 = vector.broadcast %cst_199 : f32 to vector<16x16xf32>
    %479 = arith.mulf %477, %478 : vector<16x16xf32>
    %cst_200 = arith.constant dense<0xFF800000> : vector<16xf32>
    %480 = vector.multi_reduction <maximumf>, %479, %cst_200 [1] : vector<16x16xf32> to vector<16xf32>
    %481 = vector.shape_cast %480 : vector<16xf32> to vector<16x1xf32>
    %482 = vector.broadcast %481 : vector<16x1xf32> to vector<16x16xf32>
    %483 = arith.subf %479, %482 : vector<16x16xf32>
    %484 = math.exp %483 : vector<16x16xf32>
    %cst_201 = arith.constant dense<0.000000e+00> : vector<16xf32>
    %485 = vector.multi_reduction <add>, %484, %cst_201 [1] : vector<16x16xf32> to vector<16xf32>
    %486 = vector.shape_cast %485 : vector<16xf32> to vector<16x1xf32>
    %cst_202 = arith.constant 1.000000e+00 : f32
    %487 = vector.broadcast %cst_202 : f32 to vector<16x1xf32>
    %488 = arith.divf %487, %486 : vector<16x1xf32>
    %489 = vector.broadcast %488 : vector<16x1xf32> to vector<16x16xf32>
    %490 = arith.mulf %484, %489 : vector<16x16xf32>
    %cst_203 = arith.constant dense<0.000000e+00> : vector<16x32xf32>
    %491 = tpu.matmul %490, %476, %cst_203 {dimension_numbers = #tpu.dot_dimension_numbers<[1], [0], [0], [1], [0, 0, 1, 1], [], []>} : vector<16x16xf32>, vector<16x32xf32>, vector<16x32xf32> -> vector<16x32xf32>
    %492 = vector.extract_strided_slice %409 {offsets = [96, 0], sizes = [32, 128], strides = [1, 1]} : vector<128x128xf32> to vector<32x128xf32>
    %cst_204 = arith.constant dense<0.000000e+00> : vector<16x128xf32>
    %493 = tpu.matmul %491, %492, %cst_204 {dimension_numbers = #tpu.dot_dimension_numbers<[1], [0], [0], [1], [0, 0, 1, 1], [], []>} : vector<16x32xf32>, vector<32x128xf32>, vector<16x128xf32> -> vector<16x128xf32>
    %494 = arith.addf %473, %493 : vector<16x128xf32>
    %cst_205 = arith.constant 0.000000e+00 : f32
    %495 = vector.broadcast %cst_205 : f32 to vector<16x128xf32>
    %496 = vector.extract_strided_slice %405 {offsets = [16, 0], sizes = [16, 32], strides = [1, 1]} : vector<32x128xf32> to vector<16x32xf32>
    %497 = vector.extract_strided_slice %406 {offsets = [16, 0], sizes = [16, 32], strides = [1, 1]} : vector<32x128xf32> to vector<16x32xf32>
    %498 = vector.extract_strided_slice %407 {offsets = [16, 0], sizes = [16, 32], strides = [1, 1]} : vector<32x128xf32> to vector<16x32xf32>
    %cst_206 = arith.constant dense<0.000000e+00> : vector<16x16xf32>
    %499 = tpu.matmul %496, %497, %cst_206 {dimension_numbers = #tpu.dot_dimension_numbers<[1], [1], [0], [0], [0, 0, 1, 0], [], []>} : vector<16x32xf32>, vector<16x32xf32>, vector<16x16xf32> -> vector<16x16xf32>
    %cst_207 = arith.constant 0.176776692 : f32
    %500 = vector.broadcast %cst_207 : f32 to vector<16x16xf32>
    %501 = arith.mulf %499, %500 : vector<16x16xf32>
    %cst_208 = arith.constant dense<0xFF800000> : vector<16xf32>
    %502 = vector.multi_reduction <maximumf>, %501, %cst_208 [1] : vector<16x16xf32> to vector<16xf32>
    %503 = vector.shape_cast %502 : vector<16xf32> to vector<16x1xf32>
    %504 = vector.broadcast %503 : vector<16x1xf32> to vector<16x16xf32>
    %505 = arith.subf %501, %504 : vector<16x16xf32>
    %506 = math.exp %505 : vector<16x16xf32>
    %cst_209 = arith.constant dense<0.000000e+00> : vector<16xf32>
    %507 = vector.multi_reduction <add>, %506, %cst_209 [1] : vector<16x16xf32> to vector<16xf32>
    %508 = vector.shape_cast %507 : vector<16xf32> to vector<16x1xf32>
    %cst_210 = arith.constant 1.000000e+00 : f32
    %509 = vector.broadcast %cst_210 : f32 to vector<16x1xf32>
    %510 = arith.divf %509, %508 : vector<16x1xf32>
    %511 = vector.broadcast %510 : vector<16x1xf32> to vector<16x16xf32>
    %512 = arith.mulf %506, %511 : vector<16x16xf32>
    %cst_211 = arith.constant dense<0.000000e+00> : vector<16x32xf32>
    %513 = tpu.matmul %512, %498, %cst_211 {dimension_numbers = #tpu.dot_dimension_numbers<[1], [0], [0], [1], [0, 0, 1, 1], [], []>} : vector<16x16xf32>, vector<16x32xf32>, vector<16x32xf32> -> vector<16x32xf32>
    %514 = vector.extract_strided_slice %409 {offsets = [0, 0], sizes = [32, 128], strides = [1, 1]} : vector<128x128xf32> to vector<32x128xf32>
    %cst_212 = arith.constant dense<0.000000e+00> : vector<16x128xf32>
    %515 = tpu.matmul %513, %514, %cst_212 {dimension_numbers = #tpu.dot_dimension_numbers<[1], [0], [0], [1], [0, 0, 1, 1], [], []>} : vector<16x32xf32>, vector<32x128xf32>, vector<16x128xf32> -> vector<16x128xf32>
    %516 = arith.addf %495, %515 : vector<16x128xf32>
    %517 = vector.extract_strided_slice %405 {offsets = [16, 32], sizes = [16, 32], strides = [1, 1]} : vector<32x128xf32> to vector<16x32xf32>
    %518 = vector.extract_strided_slice %406 {offsets = [16, 32], sizes = [16, 32], strides = [1, 1]} : vector<32x128xf32> to vector<16x32xf32>
    %519 = vector.extract_strided_slice %407 {offsets = [16, 32], sizes = [16, 32], strides = [1, 1]} : vector<32x128xf32> to vector<16x32xf32>
    %cst_213 = arith.constant dense<0.000000e+00> : vector<16x16xf32>
    %520 = tpu.matmul %517, %518, %cst_213 {dimension_numbers = #tpu.dot_dimension_numbers<[1], [1], [0], [0], [0, 0, 1, 0], [], []>} : vector<16x32xf32>, vector<16x32xf32>, vector<16x16xf32> -> vector<16x16xf32>
    %cst_214 = arith.constant 0.176776692 : f32
    %521 = vector.broadcast %cst_214 : f32 to vector<16x16xf32>
    %522 = arith.mulf %520, %521 : vector<16x16xf32>
    %cst_215 = arith.constant dense<0xFF800000> : vector<16xf32>
    %523 = vector.multi_reduction <maximumf>, %522, %cst_215 [1] : vector<16x16xf32> to vector<16xf32>
    %524 = vector.shape_cast %523 : vector<16xf32> to vector<16x1xf32>
    %525 = vector.broadcast %524 : vector<16x1xf32> to vector<16x16xf32>
    %526 = arith.subf %522, %525 : vector<16x16xf32>
    %527 = math.exp %526 : vector<16x16xf32>
    %cst_216 = arith.constant dense<0.000000e+00> : vector<16xf32>
    %528 = vector.multi_reduction <add>, %527, %cst_216 [1] : vector<16x16xf32> to vector<16xf32>
    %529 = vector.shape_cast %528 : vector<16xf32> to vector<16x1xf32>
    %cst_217 = arith.constant 1.000000e+00 : f32
    %530 = vector.broadcast %cst_217 : f32 to vector<16x1xf32>
    %531 = arith.divf %530, %529 : vector<16x1xf32>
    %532 = vector.broadcast %531 : vector<16x1xf32> to vector<16x16xf32>
    %533 = arith.mulf %527, %532 : vector<16x16xf32>
    %cst_218 = arith.constant dense<0.000000e+00> : vector<16x32xf32>
    %534 = tpu.matmul %533, %519, %cst_218 {dimension_numbers = #tpu.dot_dimension_numbers<[1], [0], [0], [1], [0, 0, 1, 1], [], []>} : vector<16x16xf32>, vector<16x32xf32>, vector<16x32xf32> -> vector<16x32xf32>
    %535 = vector.extract_strided_slice %409 {offsets = [32, 0], sizes = [32, 128], strides = [1, 1]} : vector<128x128xf32> to vector<32x128xf32>
    %cst_219 = arith.constant dense<0.000000e+00> : vector<16x128xf32>
    %536 = tpu.matmul %534, %535, %cst_219 {dimension_numbers = #tpu.dot_dimension_numbers<[1], [0], [0], [1], [0, 0, 1, 1], [], []>} : vector<16x32xf32>, vector<32x128xf32>, vector<16x128xf32> -> vector<16x128xf32>
    %537 = arith.addf %516, %536 : vector<16x128xf32>
    %538 = vector.extract_strided_slice %405 {offsets = [16, 64], sizes = [16, 32], strides = [1, 1]} : vector<32x128xf32> to vector<16x32xf32>
    %539 = vector.extract_strided_slice %406 {offsets = [16, 64], sizes = [16, 32], strides = [1, 1]} : vector<32x128xf32> to vector<16x32xf32>
    %540 = vector.extract_strided_slice %407 {offsets = [16, 64], sizes = [16, 32], strides = [1, 1]} : vector<32x128xf32> to vector<16x32xf32>
    %cst_220 = arith.constant dense<0.000000e+00> : vector<16x16xf32>
    %541 = tpu.matmul %538, %539, %cst_220 {dimension_numbers = #tpu.dot_dimension_numbers<[1], [1], [0], [0], [0, 0, 1, 0], [], []>} : vector<16x32xf32>, vector<16x32xf32>, vector<16x16xf32> -> vector<16x16xf32>
    %cst_221 = arith.constant 0.176776692 : f32
    %542 = vector.broadcast %cst_221 : f32 to vector<16x16xf32>
    %543 = arith.mulf %541, %542 : vector<16x16xf32>
    %cst_222 = arith.constant dense<0xFF800000> : vector<16xf32>
    %544 = vector.multi_reduction <maximumf>, %543, %cst_222 [1] : vector<16x16xf32> to vector<16xf32>
    %545 = vector.shape_cast %544 : vector<16xf32> to vector<16x1xf32>
    %546 = vector.broadcast %545 : vector<16x1xf32> to vector<16x16xf32>
    %547 = arith.subf %543, %546 : vector<16x16xf32>
    %548 = math.exp %547 : vector<16x16xf32>
    %cst_223 = arith.constant dense<0.000000e+00> : vector<16xf32>
    %549 = vector.multi_reduction <add>, %548, %cst_223 [1] : vector<16x16xf32> to vector<16xf32>
    %550 = vector.shape_cast %549 : vector<16xf32> to vector<16x1xf32>
    %cst_224 = arith.constant 1.000000e+00 : f32
    %551 = vector.broadcast %cst_224 : f32 to vector<16x1xf32>
    %552 = arith.divf %551, %550 : vector<16x1xf32>
    %553 = vector.broadcast %552 : vector<16x1xf32> to vector<16x16xf32>
    %554 = arith.mulf %548, %553 : vector<16x16xf32>
    %cst_225 = arith.constant dense<0.000000e+00> : vector<16x32xf32>
    %555 = tpu.matmul %554, %540, %cst_225 {dimension_numbers = #tpu.dot_dimension_numbers<[1], [0], [0], [1], [0, 0, 1, 1], [], []>} : vector<16x16xf32>, vector<16x32xf32>, vector<16x32xf32> -> vector<16x32xf32>
    %556 = vector.extract_strided_slice %409 {offsets = [64, 0], sizes = [32, 128], strides = [1, 1]} : vector<128x128xf32> to vector<32x128xf32>
    %cst_226 = arith.constant dense<0.000000e+00> : vector<16x128xf32>
    %557 = tpu.matmul %555, %556, %cst_226 {dimension_numbers = #tpu.dot_dimension_numbers<[1], [0], [0], [1], [0, 0, 1, 1], [], []>} : vector<16x32xf32>, vector<32x128xf32>, vector<16x128xf32> -> vector<16x128xf32>
    %558 = arith.addf %537, %557 : vector<16x128xf32>
    %559 = vector.extract_strided_slice %405 {offsets = [16, 96], sizes = [16, 32], strides = [1, 1]} : vector<32x128xf32> to vector<16x32xf32>
    %560 = vector.extract_strided_slice %406 {offsets = [16, 96], sizes = [16, 32], strides = [1, 1]} : vector<32x128xf32> to vector<16x32xf32>
    %561 = vector.extract_strided_slice %407 {offsets = [16, 96], sizes = [16, 32], strides = [1, 1]} : vector<32x128xf32> to vector<16x32xf32>
    %cst_227 = arith.constant dense<0.000000e+00> : vector<16x16xf32>
    %562 = tpu.matmul %559, %560, %cst_227 {dimension_numbers = #tpu.dot_dimension_numbers<[1], [1], [0], [0], [0, 0, 1, 0], [], []>} : vector<16x32xf32>, vector<16x32xf32>, vector<16x16xf32> -> vector<16x16xf32>
    %cst_228 = arith.constant 0.176776692 : f32
    %563 = vector.broadcast %cst_228 : f32 to vector<16x16xf32>
    %564 = arith.mulf %562, %563 : vector<16x16xf32>
    %cst_229 = arith.constant dense<0xFF800000> : vector<16xf32>
    %565 = vector.multi_reduction <maximumf>, %564, %cst_229 [1] : vector<16x16xf32> to vector<16xf32>
    %566 = vector.shape_cast %565 : vector<16xf32> to vector<16x1xf32>
    %567 = vector.broadcast %566 : vector<16x1xf32> to vector<16x16xf32>
    %568 = arith.subf %564, %567 : vector<16x16xf32>
    %569 = math.exp %568 : vector<16x16xf32>
    %cst_230 = arith.constant dense<0.000000e+00> : vector<16xf32>
    %570 = vector.multi_reduction <add>, %569, %cst_230 [1] : vector<16x16xf32> to vector<16xf32>
    %571 = vector.shape_cast %570 : vector<16xf32> to vector<16x1xf32>
    %cst_231 = arith.constant 1.000000e+00 : f32
    %572 = vector.broadcast %cst_231 : f32 to vector<16x1xf32>
    %573 = arith.divf %572, %571 : vector<16x1xf32>
    %574 = vector.broadcast %573 : vector<16x1xf32> to vector<16x16xf32>
    %575 = arith.mulf %569, %574 : vector<16x16xf32>
    %cst_232 = arith.constant dense<0.000000e+00> : vector<16x32xf32>
    %576 = tpu.matmul %575, %561, %cst_232 {dimension_numbers = #tpu.dot_dimension_numbers<[1], [0], [0], [1], [0, 0, 1, 1], [], []>} : vector<16x16xf32>, vector<16x32xf32>, vector<16x32xf32> -> vector<16x32xf32>
    %577 = vector.extract_strided_slice %409 {offsets = [96, 0], sizes = [32, 128], strides = [1, 1]} : vector<128x128xf32> to vector<32x128xf32>
    %cst_233 = arith.constant dense<0.000000e+00> : vector<16x128xf32>
    %578 = tpu.matmul %576, %577, %cst_233 {dimension_numbers = #tpu.dot_dimension_numbers<[1], [0], [0], [1], [0, 0, 1, 1], [], []>} : vector<16x32xf32>, vector<32x128xf32>, vector<16x128xf32> -> vector<16x128xf32>
    %579 = arith.addf %558, %578 : vector<16x128xf32>
    %580 = tpu.concatenate %494, %579 in 0 : vector<16x128xf32>, vector<16x128xf32> -> vector<32x128xf32>
    %581 = arith.addf %371, %580 : vector<32x128xf32>
    %c1_234 = arith.constant 1 : index
    %c0_235 = arith.constant 0 : index
    %c0_236 = arith.constant 0 : index
    %582 = vector.load %arg5[%c1_234, %c0_235, %c0_236] : memref<2x1x128xf32, #tpu.memory_space<vmem>>, vector<1x1x128xf32>
    %583 = vector.shape_cast %582 : vector<1x1x128xf32> to vector<1x128xf32>
    %584 = vector.broadcast %583 : vector<1x128xf32> to vector<32x128xf32>
    %585 = arith.addf %581, %584 : vector<32x128xf32>
    %c3_237 = arith.constant 3 : index
    %c0_238 = arith.constant 0 : index
    %c0_239 = arith.constant 0 : index
    %586 = vector.load %arg6[%c3_237, %c0_238, %c0_239] : memref<5x1x128xf32, #tpu.memory_space<vmem>>, vector<1x1x128xf32>
    %587 = vector.shape_cast %586 : vector<1x1x128xf32> to vector<1x128xf32>
    %c3_240 = arith.constant 3 : index
    %c0_241 = arith.constant 0 : index
    %c0_242 = arith.constant 0 : index
    %588 = vector.load %arg7[%c3_240, %c0_241, %c0_242] : memref<5x1x128xf32, #tpu.memory_space<vmem>>, vector<1x1x128xf32>
    %589 = vector.shape_cast %588 : vector<1x1x128xf32> to vector<1x128xf32>
    %cst_243 = arith.constant dense<0.000000e+00> : vector<32xf32>
    %590 = vector.multi_reduction <add>, %585, %cst_243 [1] : vector<32x128xf32> to vector<32xf32>
    %591 = vector.shape_cast %590 : vector<32xf32> to vector<32x1xf32>
    %cst_244 = arith.constant 1.280000e+02 : f32
    %592 = vector.broadcast %cst_244 : f32 to vector<32x1xf32>
    %593 = arith.divf %591, %592 : vector<32x1xf32>
    %594 = vector.broadcast %593 : vector<32x1xf32> to vector<32x128xf32>
    %595 = arith.subf %585, %594 : vector<32x128xf32>
    %596 = arith.mulf %595, %595 : vector<32x128xf32>
    %cst_245 = arith.constant dense<0.000000e+00> : vector<32xf32>
    %597 = vector.multi_reduction <add>, %596, %cst_245 [1] : vector<32x128xf32> to vector<32xf32>
    %598 = vector.shape_cast %597 : vector<32xf32> to vector<32x1xf32>
    %cst_246 = arith.constant 0.00787401571 : f32
    %599 = vector.broadcast %cst_246 : f32 to vector<32x1xf32>
    %600 = arith.mulf %598, %599 : vector<32x1xf32>
    %601 = math.sqrt %600 : vector<32x1xf32>
    %cst_247 = arith.constant 9.99999997E-7 : f32
    %602 = vector.broadcast %cst_247 : f32 to vector<32x1xf32>
    %603 = arith.addf %601, %602 : vector<32x1xf32>
    %cst_248 = arith.constant 1.000000e+00 : f32
    %604 = vector.broadcast %cst_248 : f32 to vector<32x1xf32>
    %605 = arith.divf %604, %603 : vector<32x1xf32>
    %606 = vector.broadcast %605 : vector<32x1xf32> to vector<32x128xf32>
    %607 = arith.mulf %595, %606 : vector<32x128xf32>
    %608 = vector.broadcast %587 : vector<1x128xf32> to vector<32x128xf32>
    %609 = arith.mulf %608, %607 : vector<32x128xf32>
    %610 = vector.broadcast %589 : vector<1x128xf32> to vector<32x128xf32>
    %611 = arith.addf %609, %610 : vector<32x128xf32>
    %c1_249 = arith.constant 1 : index
    %c0_250 = arith.constant 0 : index
    %c0_251 = arith.constant 0 : index
    %612 = vector.load %arg10[%c1_249, %c0_250, %c0_251] : memref<2x1x128xf32, #tpu.memory_space<vmem>>, vector<1x1x128xf32>
    %613 = vector.shape_cast %612 : vector<1x1x128xf32> to vector<1x128xf32>
    %c1_252 = arith.constant 1 : index
    %c0_253 = arith.constant 0 : index
    %c0_254 = arith.constant 0 : index
    %614 = vector.load %arg11[%c1_252, %c0_253, %c0_254] : memref<2x1x128xf32, #tpu.memory_space<vmem>>, vector<1x1x128xf32>
    %615 = vector.shape_cast %614 : vector<1x1x128xf32> to vector<1x128xf32>
    %cst_255 = arith.constant 0.000000e+00 : f32
    %616 = vector.broadcast %cst_255 : f32 to vector<32x128xf32>
    %cst_256 = arith.constant 0.000000e+00 : f32
    %617 = vector.broadcast %cst_256 : f32 to vector<32x128xf32>
    %c9 = arith.constant 9 : index
    %c0_257 = arith.constant 0 : index
    %c0_258 = arith.constant 0 : index
    %618 = vector.load %arg8[%c9, %c0_257, %c0_258] : memref<18x128x128xf32, #tpu.memory_space<vmem>>, vector<1x128x128xf32>
    %619 = vector.shape_cast %618 : vector<1x128x128xf32> to vector<128x128xf32>
    %cst_259 = arith.constant dense<0.000000e+00> : vector<32x128xf32>
    %620 = tpu.matmul %611, %619, %cst_259 {dimension_numbers = #tpu.dot_dimension_numbers<[1], [0], [0], [1], [0, 0, 1, 1], [], []>} : vector<32x128xf32>, vector<128x128xf32>, vector<32x128xf32> -> vector<32x128xf32>
    %621 = arith.addf %617, %620 : vector<32x128xf32>
    %c3_260 = arith.constant 3 : index
    %c0_261 = arith.constant 0 : index
    %c0_262 = arith.constant 0 : index
    %622 = vector.load %arg9[%c3_260, %c0_261, %c0_262] : memref<6x1x128xf32, #tpu.memory_space<vmem>>, vector<1x1x128xf32>
    %623 = vector.shape_cast %622 : vector<1x1x128xf32> to vector<1x128xf32>
    %624 = vector.broadcast %623 : vector<1x128xf32> to vector<32x128xf32>
    %625 = arith.addf %621, %624 : vector<32x128xf32>
    %626 = vector.broadcast %613 : vector<1x128xf32> to vector<32x128xf32>
    %627 = arith.mulf %625, %626 : vector<32x128xf32>
    %628 = vector.broadcast %615 : vector<1x128xf32> to vector<32x128xf32>
    %629 = arith.addf %627, %628 : vector<32x128xf32>
    %cst_263 = arith.constant 0.000000e+00 : f32
    %630 = vector.broadcast %cst_263 : f32 to vector<32x128xf32>
    %631 = arith.maximumf %629, %630 : vector<32x128xf32>
    %632 = arith.addf %616, %631 : vector<32x128xf32>
    %cst_264 = arith.constant 0.000000e+00 : f32
    %633 = vector.broadcast %cst_264 : f32 to vector<32x128xf32>
    %c10 = arith.constant 10 : index
    %c0_265 = arith.constant 0 : index
    %c0_266 = arith.constant 0 : index
    %634 = vector.load %arg8[%c10, %c0_265, %c0_266] : memref<18x128x128xf32, #tpu.memory_space<vmem>>, vector<1x128x128xf32>
    %635 = vector.shape_cast %634 : vector<1x128x128xf32> to vector<128x128xf32>
    %cst_267 = arith.constant dense<0.000000e+00> : vector<32x128xf32>
    %636 = tpu.matmul %611, %635, %cst_267 {dimension_numbers = #tpu.dot_dimension_numbers<[1], [0], [0], [1], [0, 0, 1, 1], [], []>} : vector<32x128xf32>, vector<128x128xf32>, vector<32x128xf32> -> vector<32x128xf32>
    %c1_i32_268 = arith.constant 1 : i32
    %637 = tpu.dynamic_rotate %636 by %c1_i32_268 dim 0 : vector<32x128xf32>, i32 -> vector<32x128xf32>
    %638 = vector.broadcast %20 : vector<32x1xf32> to vector<32x128xf32>
    %639 = arith.mulf %637, %638 : vector<32x128xf32>
    %640 = arith.addf %633, %639 : vector<32x128xf32>
    %c11 = arith.constant 11 : index
    %c0_269 = arith.constant 0 : index
    %c0_270 = arith.constant 0 : index
    %641 = vector.load %arg8[%c11, %c0_269, %c0_270] : memref<18x128x128xf32, #tpu.memory_space<vmem>>, vector<1x128x128xf32>
    %642 = vector.shape_cast %641 : vector<1x128x128xf32> to vector<128x128xf32>
    %cst_271 = arith.constant dense<0.000000e+00> : vector<32x128xf32>
    %643 = tpu.matmul %611, %642, %cst_271 {dimension_numbers = #tpu.dot_dimension_numbers<[1], [0], [0], [1], [0, 0, 1, 1], [], []>} : vector<32x128xf32>, vector<128x128xf32>, vector<32x128xf32> -> vector<32x128xf32>
    %644 = arith.addf %640, %643 : vector<32x128xf32>
    %c12 = arith.constant 12 : index
    %c0_272 = arith.constant 0 : index
    %c0_273 = arith.constant 0 : index
    %645 = vector.load %arg8[%c12, %c0_272, %c0_273] : memref<18x128x128xf32, #tpu.memory_space<vmem>>, vector<1x128x128xf32>
    %646 = vector.shape_cast %645 : vector<1x128x128xf32> to vector<128x128xf32>
    %cst_274 = arith.constant dense<0.000000e+00> : vector<32x128xf32>
    %647 = tpu.matmul %611, %646, %cst_274 {dimension_numbers = #tpu.dot_dimension_numbers<[1], [0], [0], [1], [0, 0, 1, 1], [], []>} : vector<32x128xf32>, vector<128x128xf32>, vector<32x128xf32> -> vector<32x128xf32>
    %c31_i32_275 = arith.constant 31 : i32
    %648 = tpu.dynamic_rotate %647 by %c31_i32_275 dim 0 : vector<32x128xf32>, i32 -> vector<32x128xf32>
    %649 = vector.broadcast %24 : vector<32x1xf32> to vector<32x128xf32>
    %650 = arith.mulf %648, %649 : vector<32x128xf32>
    %651 = arith.addf %644, %650 : vector<32x128xf32>
    %c4_276 = arith.constant 4 : index
    %c0_277 = arith.constant 0 : index
    %c0_278 = arith.constant 0 : index
    %652 = vector.load %arg9[%c4_276, %c0_277, %c0_278] : memref<6x1x128xf32, #tpu.memory_space<vmem>>, vector<1x1x128xf32>
    %653 = vector.shape_cast %652 : vector<1x1x128xf32> to vector<1x128xf32>
    %654 = vector.broadcast %653 : vector<1x128xf32> to vector<32x128xf32>
    %655 = arith.addf %651, %654 : vector<32x128xf32>
    %656 = vector.broadcast %613 : vector<1x128xf32> to vector<32x128xf32>
    %657 = arith.mulf %655, %656 : vector<32x128xf32>
    %658 = vector.broadcast %615 : vector<1x128xf32> to vector<32x128xf32>
    %659 = arith.addf %657, %658 : vector<32x128xf32>
    %cst_279 = arith.constant 0.000000e+00 : f32
    %660 = vector.broadcast %cst_279 : f32 to vector<32x128xf32>
    %661 = arith.maximumf %659, %660 : vector<32x128xf32>
    %662 = arith.addf %632, %661 : vector<32x128xf32>
    %cst_280 = arith.constant 0.000000e+00 : f32
    %663 = vector.broadcast %cst_280 : f32 to vector<32x128xf32>
    %c13 = arith.constant 13 : index
    %c0_281 = arith.constant 0 : index
    %c0_282 = arith.constant 0 : index
    %664 = vector.load %arg8[%c13, %c0_281, %c0_282] : memref<18x128x128xf32, #tpu.memory_space<vmem>>, vector<1x128x128xf32>
    %665 = vector.shape_cast %664 : vector<1x128x128xf32> to vector<128x128xf32>
    %cst_283 = arith.constant dense<0.000000e+00> : vector<32x128xf32>
    %666 = tpu.matmul %611, %665, %cst_283 {dimension_numbers = #tpu.dot_dimension_numbers<[1], [0], [0], [1], [0, 0, 1, 1], [], []>} : vector<32x128xf32>, vector<128x128xf32>, vector<32x128xf32> -> vector<32x128xf32>
    %c2_i32_284 = arith.constant 2 : i32
    %667 = tpu.dynamic_rotate %666 by %c2_i32_284 dim 0 : vector<32x128xf32>, i32 -> vector<32x128xf32>
    %668 = vector.broadcast %28 : vector<32x1xf32> to vector<32x128xf32>
    %669 = arith.mulf %667, %668 : vector<32x128xf32>
    %670 = arith.addf %663, %669 : vector<32x128xf32>
    %c14 = arith.constant 14 : index
    %c0_285 = arith.constant 0 : index
    %c0_286 = arith.constant 0 : index
    %671 = vector.load %arg8[%c14, %c0_285, %c0_286] : memref<18x128x128xf32, #tpu.memory_space<vmem>>, vector<1x128x128xf32>
    %672 = vector.shape_cast %671 : vector<1x128x128xf32> to vector<128x128xf32>
    %cst_287 = arith.constant dense<0.000000e+00> : vector<32x128xf32>
    %673 = tpu.matmul %611, %672, %cst_287 {dimension_numbers = #tpu.dot_dimension_numbers<[1], [0], [0], [1], [0, 0, 1, 1], [], []>} : vector<32x128xf32>, vector<128x128xf32>, vector<32x128xf32> -> vector<32x128xf32>
    %c1_i32_288 = arith.constant 1 : i32
    %674 = tpu.dynamic_rotate %673 by %c1_i32_288 dim 0 : vector<32x128xf32>, i32 -> vector<32x128xf32>
    %675 = vector.broadcast %20 : vector<32x1xf32> to vector<32x128xf32>
    %676 = arith.mulf %674, %675 : vector<32x128xf32>
    %677 = arith.addf %670, %676 : vector<32x128xf32>
    %c15 = arith.constant 15 : index
    %c0_289 = arith.constant 0 : index
    %c0_290 = arith.constant 0 : index
    %678 = vector.load %arg8[%c15, %c0_289, %c0_290] : memref<18x128x128xf32, #tpu.memory_space<vmem>>, vector<1x128x128xf32>
    %679 = vector.shape_cast %678 : vector<1x128x128xf32> to vector<128x128xf32>
    %cst_291 = arith.constant dense<0.000000e+00> : vector<32x128xf32>
    %680 = tpu.matmul %611, %679, %cst_291 {dimension_numbers = #tpu.dot_dimension_numbers<[1], [0], [0], [1], [0, 0, 1, 1], [], []>} : vector<32x128xf32>, vector<128x128xf32>, vector<32x128xf32> -> vector<32x128xf32>
    %681 = arith.addf %677, %680 : vector<32x128xf32>
    %c16 = arith.constant 16 : index
    %c0_292 = arith.constant 0 : index
    %c0_293 = arith.constant 0 : index
    %682 = vector.load %arg8[%c16, %c0_292, %c0_293] : memref<18x128x128xf32, #tpu.memory_space<vmem>>, vector<1x128x128xf32>
    %683 = vector.shape_cast %682 : vector<1x128x128xf32> to vector<128x128xf32>
    %cst_294 = arith.constant dense<0.000000e+00> : vector<32x128xf32>
    %684 = tpu.matmul %611, %683, %cst_294 {dimension_numbers = #tpu.dot_dimension_numbers<[1], [0], [0], [1], [0, 0, 1, 1], [], []>} : vector<32x128xf32>, vector<128x128xf32>, vector<32x128xf32> -> vector<32x128xf32>
    %c31_i32_295 = arith.constant 31 : i32
    %685 = tpu.dynamic_rotate %684 by %c31_i32_295 dim 0 : vector<32x128xf32>, i32 -> vector<32x128xf32>
    %686 = vector.broadcast %24 : vector<32x1xf32> to vector<32x128xf32>
    %687 = arith.mulf %685, %686 : vector<32x128xf32>
    %688 = arith.addf %681, %687 : vector<32x128xf32>
    %c17 = arith.constant 17 : index
    %c0_296 = arith.constant 0 : index
    %c0_297 = arith.constant 0 : index
    %689 = vector.load %arg8[%c17, %c0_296, %c0_297] : memref<18x128x128xf32, #tpu.memory_space<vmem>>, vector<1x128x128xf32>
    %690 = vector.shape_cast %689 : vector<1x128x128xf32> to vector<128x128xf32>
    %cst_298 = arith.constant dense<0.000000e+00> : vector<32x128xf32>
    %691 = tpu.matmul %611, %690, %cst_298 {dimension_numbers = #tpu.dot_dimension_numbers<[1], [0], [0], [1], [0, 0, 1, 1], [], []>} : vector<32x128xf32>, vector<128x128xf32>, vector<32x128xf32> -> vector<32x128xf32>
    %c30_i32_299 = arith.constant 30 : i32
    %692 = tpu.dynamic_rotate %691 by %c30_i32_299 dim 0 : vector<32x128xf32>, i32 -> vector<32x128xf32>
    %693 = vector.broadcast %32 : vector<32x1xf32> to vector<32x128xf32>
    %694 = arith.mulf %692, %693 : vector<32x128xf32>
    %695 = arith.addf %688, %694 : vector<32x128xf32>
    %c5_300 = arith.constant 5 : index
    %c0_301 = arith.constant 0 : index
    %c0_302 = arith.constant 0 : index
    %696 = vector.load %arg9[%c5_300, %c0_301, %c0_302] : memref<6x1x128xf32, #tpu.memory_space<vmem>>, vector<1x1x128xf32>
    %697 = vector.shape_cast %696 : vector<1x1x128xf32> to vector<1x128xf32>
    %698 = vector.broadcast %697 : vector<1x128xf32> to vector<32x128xf32>
    %699 = arith.addf %695, %698 : vector<32x128xf32>
    %700 = vector.broadcast %613 : vector<1x128xf32> to vector<32x128xf32>
    %701 = arith.mulf %699, %700 : vector<32x128xf32>
    %702 = vector.broadcast %615 : vector<1x128xf32> to vector<32x128xf32>
    %703 = arith.addf %701, %702 : vector<32x128xf32>
    %cst_303 = arith.constant 0.000000e+00 : f32
    %704 = vector.broadcast %cst_303 : f32 to vector<32x128xf32>
    %705 = arith.maximumf %703, %704 : vector<32x128xf32>
    %706 = arith.addf %662, %705 : vector<32x128xf32>
    %cst_304 = arith.constant 0.333333343 : f32
    %707 = vector.broadcast %cst_304 : f32 to vector<32x128xf32>
    %708 = arith.mulf %706, %707 : vector<32x128xf32>
    %709 = arith.addf %585, %708 : vector<32x128xf32>
    %c4_305 = arith.constant 4 : index
    %c0_306 = arith.constant 0 : index
    %c0_307 = arith.constant 0 : index
    %710 = vector.load %arg6[%c4_305, %c0_306, %c0_307] : memref<5x1x128xf32, #tpu.memory_space<vmem>>, vector<1x1x128xf32>
    %711 = vector.shape_cast %710 : vector<1x1x128xf32> to vector<1x128xf32>
    %c4_308 = arith.constant 4 : index
    %c0_309 = arith.constant 0 : index
    %c0_310 = arith.constant 0 : index
    %712 = vector.load %arg7[%c4_308, %c0_309, %c0_310] : memref<5x1x128xf32, #tpu.memory_space<vmem>>, vector<1x1x128xf32>
    %713 = vector.shape_cast %712 : vector<1x1x128xf32> to vector<1x128xf32>
    %cst_311 = arith.constant dense<0.000000e+00> : vector<32xf32>
    %714 = vector.multi_reduction <add>, %709, %cst_311 [1] : vector<32x128xf32> to vector<32xf32>
    %715 = vector.shape_cast %714 : vector<32xf32> to vector<32x1xf32>
    %cst_312 = arith.constant 1.280000e+02 : f32
    %716 = vector.broadcast %cst_312 : f32 to vector<32x1xf32>
    %717 = arith.divf %715, %716 : vector<32x1xf32>
    %718 = vector.broadcast %717 : vector<32x1xf32> to vector<32x128xf32>
    %719 = arith.subf %709, %718 : vector<32x128xf32>
    %720 = arith.mulf %719, %719 : vector<32x128xf32>
    %cst_313 = arith.constant dense<0.000000e+00> : vector<32xf32>
    %721 = vector.multi_reduction <add>, %720, %cst_313 [1] : vector<32x128xf32> to vector<32xf32>
    %722 = vector.shape_cast %721 : vector<32xf32> to vector<32x1xf32>
    %cst_314 = arith.constant 0.00787401571 : f32
    %723 = vector.broadcast %cst_314 : f32 to vector<32x1xf32>
    %724 = arith.mulf %722, %723 : vector<32x1xf32>
    %725 = math.sqrt %724 : vector<32x1xf32>
    %cst_315 = arith.constant 9.99999997E-7 : f32
    %726 = vector.broadcast %cst_315 : f32 to vector<32x1xf32>
    %727 = arith.addf %725, %726 : vector<32x1xf32>
    %cst_316 = arith.constant 1.000000e+00 : f32
    %728 = vector.broadcast %cst_316 : f32 to vector<32x1xf32>
    %729 = arith.divf %728, %727 : vector<32x1xf32>
    %730 = vector.broadcast %729 : vector<32x1xf32> to vector<32x128xf32>
    %731 = arith.mulf %719, %730 : vector<32x128xf32>
    %732 = vector.broadcast %711 : vector<1x128xf32> to vector<32x128xf32>
    %733 = arith.mulf %732, %731 : vector<32x128xf32>
    %734 = vector.broadcast %713 : vector<1x128xf32> to vector<32x128xf32>
    %735 = arith.addf %733, %734 : vector<32x128xf32>
    %c0_317 = arith.constant 0 : index
    %c0_318 = arith.constant 0 : index
    %736 = vector.load %arg12[%c0_317, %c0_318] : memref<32x128xf32, #tpu.memory_space<vmem>>, vector<32x128xf32>
    tpu.vector_store %arg12[%c0_317, %c0_318], %735 {strides = array<i32>} : memref<32x128xf32, #tpu.memory_space<vmem>>, vector<32x128xf32>,
    return
  }
  func.func @transform_0(%arg0: i32) -> (i32, i32) {
    %c0_i32 = arith.constant 0 : i32
    %c0_i32_0 = arith.constant 0 : i32
    return %arg0, %c0_i32 : i32, i32
  }
  func.func @transform_1(%arg0: i32) -> (i32, i32, i32) {
    %c0_i32 = arith.constant 0 : i32
    %c0_i32_0 = arith.constant 0 : i32
    %c0_i32_1 = arith.constant 0 : i32
    %c0_i32_2 = arith.constant 0 : i32
    return %c0_i32, %c0_i32_0, %c0_i32_1 : i32, i32, i32
  }
  func.func @transform_2(%arg0: i32) -> (i32, i32, i32) {
    %c0_i32 = arith.constant 0 : i32
    %c0_i32_0 = arith.constant 0 : i32
    %c0_i32_1 = arith.constant 0 : i32
    %c0_i32_2 = arith.constant 0 : i32
    return %c0_i32, %c0_i32_0, %c0_i32_1 : i32, i32, i32
  }
  func.func @transform_3(%arg0: i32) -> (i32, i32, i32) {
    %c0_i32 = arith.constant 0 : i32
    %c0_i32_0 = arith.constant 0 : i32
    %c0_i32_1 = arith.constant 0 : i32
    %c0_i32_2 = arith.constant 0 : i32
    return %c0_i32, %c0_i32_0, %c0_i32_1 : i32, i32, i32
  }
  func.func @transform_4(%arg0: i32) -> (i32, i32, i32) {
    %c0_i32 = arith.constant 0 : i32
    %c0_i32_0 = arith.constant 0 : i32
    %c0_i32_1 = arith.constant 0 : i32
    %c0_i32_2 = arith.constant 0 : i32
    return %c0_i32, %c0_i32_0, %c0_i32_1 : i32, i32, i32
  }
  func.func @transform_5(%arg0: i32) -> (i32, i32, i32) {
    %c0_i32 = arith.constant 0 : i32
    %c0_i32_0 = arith.constant 0 : i32
    %c0_i32_1 = arith.constant 0 : i32
    %c0_i32_2 = arith.constant 0 : i32
    return %c0_i32, %c0_i32_0, %c0_i32_1 : i32, i32, i32
  }
  func.func @transform_6(%arg0: i32) -> (i32, i32, i32) {
    %c0_i32 = arith.constant 0 : i32
    %c0_i32_0 = arith.constant 0 : i32
    %c0_i32_1 = arith.constant 0 : i32
    %c0_i32_2 = arith.constant 0 : i32
    return %c0_i32, %c0_i32_0, %c0_i32_1 : i32, i32, i32
  }
  func.func @transform_7(%arg0: i32) -> (i32, i32, i32) {
    %c0_i32 = arith.constant 0 : i32
    %c0_i32_0 = arith.constant 0 : i32
    %c0_i32_1 = arith.constant 0 : i32
    %c0_i32_2 = arith.constant 0 : i32
    return %c0_i32, %c0_i32_0, %c0_i32_1 : i32, i32, i32
  }
  func.func @transform_8(%arg0: i32) -> (i32, i32, i32) {
    %c0_i32 = arith.constant 0 : i32
    %c0_i32_0 = arith.constant 0 : i32
    %c0_i32_1 = arith.constant 0 : i32
    %c0_i32_2 = arith.constant 0 : i32
    return %c0_i32, %c0_i32_0, %c0_i32_1 : i32, i32, i32
  }
  func.func @transform_9(%arg0: i32) -> (i32, i32, i32) {
    %c0_i32 = arith.constant 0 : i32
    %c0_i32_0 = arith.constant 0 : i32
    %c0_i32_1 = arith.constant 0 : i32
    %c0_i32_2 = arith.constant 0 : i32
    return %c0_i32, %c0_i32_0, %c0_i32_1 : i32, i32, i32
  }
  func.func @transform_10(%arg0: i32) -> (i32, i32, i32) {
    %c0_i32 = arith.constant 0 : i32
    %c0_i32_0 = arith.constant 0 : i32
    %c0_i32_1 = arith.constant 0 : i32
    %c0_i32_2 = arith.constant 0 : i32
    return %c0_i32, %c0_i32_0, %c0_i32_1 : i32, i32, i32
  }
  func.func @transform_11(%arg0: i32) -> (i32, i32) {
    %c0_i32 = arith.constant 0 : i32
    %c0_i32_0 = arith.constant 0 : i32
    return %arg0, %c0_i32 : i32, i32
  }
}

</mosaic_0001>

<llo_original>
// kernel: tpu_custom_call.1
$region0: #{tpu_custom_call.1}
  #allocation0 [shape = 'u32[]', space=smem, size = 0x4, offset = 0x4, fixed_abs, tag = 'smem constant byte address 0x4 - core index']
  #allocation1 [shape = 'u32[144,128]{1,0:T(1,128)}', space=vmem, size = 0x12000, scoped, tag = 'internal scratch']
  %s0 = inlined_call_operand.hbm [shape: f32[32,128], index: 0, kind: input, shape index: {}, may-alias: {0,11}]
  %s1 = inlined_call_operand.hbm [shape: f32[2,128,384], index: 1, kind: input, shape index: {}]
  %s2 = inlined_call_operand.hbm [shape: f32[2,1,384], index: 2, kind: input, shape index: {}]
  %s3 = inlined_call_operand.hbm [shape: f32[2,128,128], index: 3, kind: input, shape index: {}]
  %s4 = inlined_call_operand.hbm [shape: f32[2,1,128], index: 4, kind: input, shape index: {}]
  %s5 = inlined_call_operand.hbm [shape: f32[5,1,128], index: 5, kind: input, shape index: {}]
  %s6 = inlined_call_operand.hbm [shape: f32[5,1,128], index: 6, kind: input, shape index: {}]
  %s7 = inlined_call_operand.hbm [shape: f32[18,128,128], index: 7, kind: input, shape index: {}]
  %s8 = inlined_call_operand.hbm [shape: f32[6,1,128], index: 8, kind: input, shape index: {}]
  %s9 = inlined_call_operand.hbm [shape: f32[2,1,128], index: 9, kind: input, shape index: {}]
  %s10 = inlined_call_operand.hbm [shape: f32[2,1,128], index: 10, kind: input, shape index: {}]
  %s11 = inlined_call_operand.hbm [shape: f32[32,128], index: 11, kind: output, shape index: {}, may-alias: {0,11}]
  %s12 = sld [smem:[#allocation0]]
  $region98: #{tpu_custom_call.1} parent=0
    _
  %s14 = ssub.s32 1, %s12
  %s15 = scalar_select 0, %s14, %s12
  $region1: #{tpu_custom_call.1} parent=0
    #allocation2 [shape = 'u8[16384]{0}', space=vmem, size = 0x4000, scoped, tag = 'input window, operand 0, single buffered']
    #allocation3 [shape = 's32[1]{0}', space=sflag, size = 0x4, scoped, tag = 'scoped memory for tpu_custom_call.1']
    #allocation4 [shape = 's32[1]{0}', space=sflag, size = 0x4, scoped, tag = 'scoped memory for tpu_custom_call.1']
    #allocation5 [shape = 'u8[393216]{0}', space=vmem, size = 0x60000, scoped, tag = 'input window, operand 1, single buffered']
    #allocation6 [shape = 's32[1]{0}', space=sflag, size = 0x4, scoped, tag = 'scoped memory for tpu_custom_call.1']
    #allocation7 [shape = 'u8[3072]{0}', space=vmem, size = 0xc00, scoped, tag = 'input window, operand 2, single buffered']
    #allocation8 [shape = 'u8[131072]{0}', space=vmem, size = 0x20000, scoped, tag = 'input window, operand 3, single buffered']
    #allocation9 [shape = 's32[1]{0}', space=sflag, size = 0x4, scoped, tag = 'scoped memory for tpu_custom_call.1']
    #allocation10 [shape = 'u8[1024]{0}', space=vmem, size = 0x400, scoped, tag = 'input window, operand 4, single buffered']
    #allocation11 [shape = 'u8[2560]{0}', space=vmem, size = 0xc00, scoped, tag = 'input window, operand 5, single buffered']
    #allocation12 [shape = 's32[1]{0}', space=sflag, size = 0x4, scoped, tag = 'scoped memory for tpu_custom_call.1']
    #allocation13 [shape = 'u8[2560]{0}', space=vmem, size = 0xc00, scoped, tag = 'input window, operand 6, single buffered']
    #allocation14 [shape = 'u8[1179648]{0}', space=vmem, size = 0x120000, scoped, tag = 'input window, operand 7, single buffered']
    #allocation15 [shape = 's32[1]{0}', space=sflag, size = 0x4, scoped, tag = 'scoped memory for tpu_custom_call.1']
    #allocation16 [shape = 'u8[3072]{0}', space=vmem, size = 0xc00, scoped, tag = 'input window, operand 8, single buffered']
    #allocation17 [shape = 'u8[1024]{0}', space=vmem, size = 0x400, scoped, tag = 'input window, operand 9, single buffered']
    #allocation18 [shape = 's32[1]{0}', space=sflag, size = 0x4, scoped, tag = 'scoped memory for tpu_custom_call.1']
    #allocation19 [shape = 'u8[1024]{0}', space=vmem, size = 0x400, scoped, tag = 'input window, operand 10, single buffered']
    #allocation20 [shape = 'u8[16384]{0}', space=vmem, size = 0x4000, scoped, tag = 'output window, operand 0, single buffered']
    %16 = vsyncpa [#allocation3], 0
    %17 = vsyncpa [#allocation6], 0
    %18 = vsyncpa [#allocation9], 0
    %19 = vsyncpa [#allocation12], 0
    %20 = vsyncpa [#allocation15], 0
    %21 = vsyncpa [#allocation18], 0
    %22 = vsyncpa [#allocation4], 0
    // Predicated region
    $region2: #{tpu_custom_call.1} parent=1 // pred_check
      _
    $region3: #{tpu_custom_call.1} parent=1 // pred_check_branch
      %24 = sbr.rel (0) target = $region5
    $region4: #{tpu_custom_call.1} parent=1 // pred_region
      %s26 = ssub.s32 512, 512
      %27 = vsyncadd [#allocation3], %s26
      %s28 = sshll.u32 [#allocation2], 4
      %s29 = int_to_ptr.vmem [resolvable:$true] %s28
      %34 = dma.hbm_to_vmem [thread:$0]  %s0, 512, %s29, [#allocation3], 128, 128, 8
    $region5: #{tpu_custom_call.1} parent=1 // pred_fallthru
      _
    // Predicated region
    $region6: #{tpu_custom_call.1} parent=1 // pred_check
      _
    $region7: #{tpu_custom_call.1} parent=1 // pred_check_branch
      %36 = sbr.rel (0) target = $region9
    $region8: #{tpu_custom_call.1} parent=1 // pred_region
      %s38 = ssub.s32 12288, 12288
      %39 = vsyncadd [#allocation6], %s38
      %s40 = sshll.u32 [#allocation5], 4
      %s41 = int_to_ptr.vmem [resolvable:$true] %s40
      %46 = dma.hbm_to_vmem [thread:$0]  %s1, 12288, %s41, [#allocation6], 384, 384, 24
    $region9: #{tpu_custom_call.1} parent=1 // pred_fallthru
      _
    // Predicated region
    $region10: #{tpu_custom_call.1} parent=1 // pred_check
      _
    $region11: #{tpu_custom_call.1} parent=1 // pred_check_branch
      %48 = sbr.rel (0) target = $region13
    $region12: #{tpu_custom_call.1} parent=1 // pred_region
      %s50 = ssub.s32 96, 96
      %51 = vsyncadd [#allocation6], %s50
      %s52 = sshll.u32 [#allocation7], 4
      %s53 = int_to_ptr.vmem [resolvable:$true] %s52
      %58 = dma.hbm_to_vmem [thread:$0]  %s2, 96, %s53, [#allocation6], 48, 48, 3
    $region13: #{tpu_custom_call.1} parent=1 // pred_fallthru
      _
    // Predicated region
    $region14: #{tpu_custom_call.1} parent=1 // pred_check
      _
    $region15: #{tpu_custom_call.1} parent=1 // pred_check_branch
      %60 = sbr.rel (0) target = $region17
    $region16: #{tpu_custom_call.1} parent=1 // pred_region
      %s62 = ssub.s32 4096, 4096
      %63 = vsyncadd [#allocation9], %s62
      %s64 = sshll.u32 [#allocation8], 4
      %s65 = int_to_ptr.vmem [resolvable:$true] %s64
      %70 = dma.hbm_to_vmem [thread:$0]  %s3, 4096, %s65, [#allocation9], 128, 128, 8
    $region17: #{tpu_custom_call.1} parent=1 // pred_fallthru
      _
    // Predicated region
    $region18: #{tpu_custom_call.1} parent=1 // pred_check
      _
    $region19: #{tpu_custom_call.1} parent=1 // pred_check_branch
      %72 = sbr.rel (0) target = $region21
    $region20: #{tpu_custom_call.1} parent=1 // pred_region
      %s74 = ssub.s32 32, 32
      %75 = vsyncadd [#allocation9], %s74
      %s76 = sshll.u32 [#allocation10], 4
      %s77 = int_to_ptr.vmem [resolvable:$true] %s76
      %82 = dma.hbm_to_vmem [thread:$0]  %s4, 32, %s77, [#allocation9], 16, 16, 1
    $region21: #{tpu_custom_call.1} parent=1 // pred_fallthru
      _
    // Predicated region
    $region22: #{tpu_custom_call.1} parent=1 // pred_check
      _
    $region23: #{tpu_custom_call.1} parent=1 // pred_check_branch
      %84 = sbr.rel (0) target = $region25
    $region24: #{tpu_custom_call.1} parent=1 // pred_region
      %s86 = ssub.s32 80, 80
      %87 = vsyncadd [#allocation12], %s86
      %s88 = sshll.u32 [#allocation11], 4
      %s89 = int_to_ptr.vmem [resolvable:$true] %s88
      %94 = dma.hbm_to_vmem [thread:$0]  %s5, 80, %s89, [#allocation12], 16, 16, 1
    $region25: #{tpu_custom_call.1} parent=1 // pred_fallthru
      _
    // Predicated region
    $region26: #{tpu_custom_call.1} parent=1 // pred_check
      _
    $region27: #{tpu_custom_call.1} parent=1 // pred_check_branch
      %96 = sbr.rel (0) target = $region29
    $region28: #{tpu_custom_call.1} parent=1 // pred_region
      %s98 = ssub.s32 80, 80
      %99 = vsyncadd [#allocation12], %s98
      %s100 = sshll.u32 [#allocation13], 4
      %s101 = int_to_ptr.vmem [resolvable:$true] %s100
      %106 = dma.hbm_to_vmem [thread:$0]  %s6, 80, %s101, [#allocation12], 16, 16, 1
    $region29: #{tpu_custom_call.1} parent=1 // pred_fallthru
      _
    // Predicated region
    $region30: #{tpu_custom_call.1} parent=1 // pred_check
      _
    $region31: #{tpu_custom_call.1} parent=1 // pred_check_branch
      %108 = sbr.rel (0) target = $region33
    $region32: #{tpu_custom_call.1} parent=1 // pred_region
      %s110 = ssub.s32 36864, 36864
      %111 = vsyncadd [#allocation15], %s110
      %s112 = sshll.u32 [#allocation14], 4
      %s113 = int_to_ptr.vmem [resolvable:$true] %s112
      %118 = dma.hbm_to_vmem [thread:$0]  %s7, 36864, %s113, [#allocation15], 128, 128, 8
    $region33: #{tpu_custom_call.1} parent=1 // pred_fallthru
      _
    // Predicated region
    $region34: #{tpu_custom_call.1} parent=1 // pred_check
      _
    $region35: #{tpu_custom_call.1} parent=1 // pred_check_branch
      %120 = sbr.rel (0) target = $region37
    $region36: #{tpu_custom_call.1} parent=1 // pred_region
      %s122 = ssub.s32 96, 96
      %123 = vsyncadd [#allocation15], %s122
      %s124 = sshll.u32 [#allocation16], 4
      %s125 = int_to_ptr.vmem [resolvable:$true] %s124
      %130 = dma.hbm_to_vmem [thread:$0]  %s8, 96, %s125, [#allocation15], 16, 16, 1
    $region37: #{tpu_custom_call.1} parent=1 // pred_fallthru
      _
    // Predicated region
    $region38: #{tpu_custom_call.1} parent=1 // pred_check
      _
    $region39: #{tpu_custom_call.1} parent=1 // pred_check_branch
      %132 = sbr.rel (0) target = $region41
    $region40: #{tpu_custom_call.1} parent=1 // pred_region
      %s134 = ssub.s32 32, 32
      %135 = vsyncadd [#allocation18], %s134
      %s136 = sshll.u32 [#allocation17], 4
      %s137 = int_to_ptr.vmem [resolvable:$true] %s136
      %142 = dma.hbm_to_vmem [thread:$0]  %s9, 32, %s137, [#allocation18], 16, 16, 1
    $region41: #{tpu_custom_call.1} parent=1 // pred_fallthru
      _
    // Predicated region
    $region42: #{tpu_custom_call.1} parent=1 // pred_check
      _
    $region43: #{tpu_custom_call.1} parent=1 // pred_check_branch
      %144 = sbr.rel (0) target = $region45
    $region44: #{tpu_custom_call.1} parent=1 // pred_region
      %s146 = ssub.s32 32, 32
      %147 = vsyncadd [#allocation18], %s146
      %s148 = sshll.u32 [#allocation19], 4
      %s149 = int_to_ptr.vmem [resolvable:$true] %s148
      %154 = dma.hbm_to_vmem [thread:$0]  %s10, 32, %s149, [#allocation18], 16, 16, 1
    $region45: #{tpu_custom_call.1} parent=1 // pred_fallthru
      _
    // Predicated region
    $region46: #{tpu_custom_call.1} parent=1 // pred_check
      _
    $region47: #{tpu_custom_call.1} parent=1 // pred_check_branch
      %156 = sbr.rel (0) target = $region49
    $region48: #{tpu_custom_call.1} parent=1 // pred_region
      %157 = dma.done [#allocation3], 512
    $region49: #{tpu_custom_call.1} parent=1 // pred_fallthru
      _
    // Predicated region
    $region50: #{tpu_custom_call.1} parent=1 // pred_check
      _
    $region51: #{tpu_custom_call.1} parent=1 // pred_check_branch
      %159 = sbr.rel (0) target = $region53
    $region52: #{tpu_custom_call.1} parent=1 // pred_region
      %160 = dma.done [#allocation6], 12288
    $region53: #{tpu_custom_call.1} parent=1 // pred_fallthru
      _
    // Predicated region
    $region54: #{tpu_custom_call.1} parent=1 // pred_check
      _
    $region55: #{tpu_custom_call.1} parent=1 // pred_check_branch
      %162 = sbr.rel (0) target = $region57
    $region56: #{tpu_custom_call.1} parent=1 // pred_region
      %163 = dma.done [#allocation6], 96
    $region57: #{tpu_custom_call.1} parent=1 // pred_fallthru
      _
    // Predicated region
    $region58: #{tpu_custom_call.1} parent=1 // pred_check
      _
    $region59: #{tpu_custom_call.1} parent=1 // pred_check_branch
      %165 = sbr.rel (0) target = $region61
    $region60: #{tpu_custom_call.1} parent=1 // pred_region
      %166 = dma.done [#allocation9], 4096
    $region61: #{tpu_custom_call.1} parent=1 // pred_fallthru
      _
    // Predicated region
    $region62: #{tpu_custom_call.1} parent=1 // pred_check
      _
    $region63: #{tpu_custom_call.1} parent=1 // pred_check_branch
      %168 = sbr.rel (0) target = $region65
    $region64: #{tpu_custom_call.1} parent=1 // pred_region
      %169 = dma.done [#allocation9], 32
    $region65: #{tpu_custom_call.1} parent=1 // pred_fallthru
      _
    // Predicated region
    $region66: #{tpu_custom_call.1} parent=1 // pred_check
      _
    $region67: #{tpu_custom_call.1} parent=1 // pred_check_branch
      %171 = sbr.rel (0) target = $region69
    $region68: #{tpu_custom_call.1} parent=1 // pred_region
      %172 = dma.done [#allocation12], 80
    $region69: #{tpu_custom_call.1} parent=1 // pred_fallthru
      _
    // Predicated region
    $region70: #{tpu_custom_call.1} parent=1 // pred_check
      _
    $region71: #{tpu_custom_call.1} parent=1 // pred_check_branch
      %174 = sbr.rel (0) target = $region73
    $region72: #{tpu_custom_call.1} parent=1 // pred_region
      %175 = dma.done [#allocation12], 80
    $region73: #{tpu_custom_call.1} parent=1 // pred_fallthru
      _
    // Predicated region
    $region74: #{tpu_custom_call.1} parent=1 // pred_check
      _
    $region75: #{tpu_custom_call.1} parent=1 // pred_check_branch
      %177 = sbr.rel (0) target = $region77
    $region76: #{tpu_custom_call.1} parent=1 // pred_region
      %178 = dma.done [#allocation15], 36864
    $region77: #{tpu_custom_call.1} parent=1 // pred_fallthru
      _
    // Predicated region
    $region78: #{tpu_custom_call.1} parent=1 // pred_check
      _
    $region79: #{tpu_custom_call.1} parent=1 // pred_check_branch
      %180 = sbr.rel (0) target = $region81
    $region80: #{tpu_custom_call.1} parent=1 // pred_region
      %181 = dma.done [#allocation15], 96
    $region81: #{tpu_custom_call.1} parent=1 // pred_fallthru
      _
    // Predicated region
    $region82: #{tpu_custom_call.1} parent=1 // pred_check
      _
    $region83: #{tpu_custom_call.1} parent=1 // pred_check_branch
      %183 = sbr.rel (0) target = $region85
    $region84: #{tpu_custom_call.1} parent=1 // pred_region
      %184 = dma.done [#allocation18], 32
    $region85: #{tpu_custom_call.1} parent=1 // pred_fallthru
      _
    // Predicated region
    $region86: #{tpu_custom_call.1} parent=1 // pred_check
      _
    $region87: #{tpu_custom_call.1} parent=1 // pred_check_branch
      %186 = sbr.rel (0) target = $region89
    $region88: #{tpu_custom_call.1} parent=1 // pred_region
      %187 = dma.done [#allocation18], 32
    $region89: #{tpu_custom_call.1} parent=1 // pred_fallthru
      _
    %v188 = vlaneseq
    %v189 = vshrl.u32 %v188, 7
    %v190 = vadd.s32 %v189, 8
    %v191 = vadd.s32 %v189, 16
    %v192 = vadd.s32 %v189, 24
    %vm193 = vcmp.lt.s32.totalorder %v189, 0
    %v194 = vsub.s32 0, %v189
    %v195 = vsel %vm193, %v194, %v189
    %v196 = vshrl.u32 %v195, 4
    %v197 = vand.u32 %v195, 15
    %v198 = vsub.s32 0, %v197
    %v199 = vsel %vm193, %v198, %v197
    %vm200 = vcmp.lt.s32.totalorder %v190, 0
    %v201 = vsub.s32 0, %v190
    %v202 = vsel %vm200, %v201, %v190
    %v203 = vshrl.u32 %v202, 4
    %v204 = vand.u32 %v202, 15
    %v205 = vsub.s32 0, %v204
    %v206 = vsel %vm200, %v205, %v204
    %vm207 = vcmp.lt.s32.totalorder %v191, 0
    %v208 = vsub.s32 0, %v191
    %v209 = vsel %vm207, %v208, %v191
    %v210 = vshrl.u32 %v209, 4
    %v211 = vand.u32 %v209, 15
    %v212 = vsub.s32 0, %v211
    %v213 = vsel %vm207, %v212, %v211
    %vm214 = vcmp.lt.s32.totalorder %v192, 0
    %v215 = vsub.s32 0, %v192
    %v216 = vsel %vm214, %v215, %v192
    %v217 = vshrl.u32 %v216, 4
    %v218 = vand.u32 %v216, 15
    %v219 = vsub.s32 0, %v218
    %v220 = vsel %vm214, %v219, %v218
    %vm221 = vcmp.ne.s32.totalorder %v199, 0
    %vm222 = vcmp.ne.s32.totalorder %v206, 0
    %vm223 = vcmp.ne.s32.totalorder %v213, 0
    %vm224 = vcmp.ne.s32.totalorder %v220, 0
    %vm225 = vcmp.lt.s32.totalorder %v199, 0
    %vm226 = vcmp.lt.s32.totalorder %v206, 0
    %vm227 = vcmp.lt.s32.totalorder %v213, 0
    %vm228 = vcmp.lt.s32.totalorder %v220, 0
    %vm229 = vmand %vm225, %vm221
    %vm230 = vmand %vm226, %vm222
    %vm231 = vmand %vm227, %vm223
    %vm232 = vmand %vm228, %vm224
    %v233 = vadd.s32 %v199, 16
    %v234 = vadd.s32 %v206, 16
    %v235 = vadd.s32 %v213, 16
    %v236 = vadd.s32 %v220, 16
    %v237 = vsel %vm229, %v233, %v199
    %v238 = vsel %vm230, %v234, %v206
    %v239 = vsel %vm231, %v235, %v213
    %v240 = vsel %vm232, %v236, %v220
    %vm241 = vcmp.ge.s32.totalorder %v237, 1
    %vm242 = vcmp.ge.s32.totalorder %v238, 1
    %vm243 = vcmp.ge.s32.totalorder %v239, 1
    %vm244 = vcmp.ge.s32.totalorder %v240, 1
    %v245 = vsel %vm241, 1, 0
    %v246 = vsel %vm242, 1, 0
    %v247 = vsel %vm243, 1, 0
    %v248 = vsel %vm244, 1, 0
    %v249 = vcvt.s32.f32 %v245
    %v250 = vcvt.s32.f32 %v246
    %v251 = vcvt.s32.f32 %v247
    %v252 = vcvt.s32.f32 %v248
    %vm253 = vcmp.lt.s32.totalorder %v237, 15
    %vm254 = vcmp.lt.s32.totalorder %v238, 15
    %vm255 = vcmp.lt.s32.totalorder %v239, 15
    %vm256 = vcmp.lt.s32.totalorder %v240, 15
    %v257 = vsel %vm253, 1, 0
    %v258 = vsel %vm254, 1, 0
    %v259 = vsel %vm255, 1, 0
    %v260 = vsel %vm256, 1, 0
    %v261 = vcvt.s32.f32 %v257
    %v262 = vcvt.s32.f32 %v258
    %v263 = vcvt.s32.f32 %v259
    %v264 = vcvt.s32.f32 %v260
    %vm265 = vcmp.ge.s32.totalorder %v237, 2
    %vm266 = vcmp.ge.s32.totalorder %v238, 2
    %vm267 = vcmp.ge.s32.totalorder %v239, 2
    %vm268 = vcmp.ge.s32.totalorder %v240, 2
    %v269 = vsel %vm265, 1, 0
    %v270 = vsel %vm266, 1, 0
    %v271 = vsel %vm267, 1, 0
    %v272 = vsel %vm268, 1, 0
    %v273 = vcvt.s32.f32 %v269
    %v274 = vcvt.s32.f32 %v270
    %v275 = vcvt.s32.f32 %v271
    %v276 = vcvt.s32.f32 %v272
    %vm277 = vcmp.lt.s32.totalorder %v237, 14
    %vm278 = vcmp.lt.s32.totalorder %v238, 14
    %vm279 = vcmp.lt.s32.totalorder %v239, 14
    %vm280 = vcmp.lt.s32.totalorder %v240, 14
    %v281 = vsel %vm277, 1, 0
    %v282 = vsel %vm278, 1, 0
    %v283 = vsel %vm279, 1, 0
    %v284 = vsel %vm280, 1, 0
    %v285 = vcvt.s32.f32 %v281
    %v286 = vcvt.s32.f32 %v282
    %v287 = vcvt.s32.f32 %v283
    %v288 = vcvt.s32.f32 %v284
    %v289 = vld [vmem:[#allocation2] sm:$0xff]
    %v290 = vld [vmem:[#allocation2 + $0x8] sm:$0xff]
    %v291 = vld [vmem:[#allocation2 + $0x10] sm:$0xff]
    %v292 = vld [vmem:[#allocation2 + $0x18] sm:$0xff]
    %v293 = vld [vmem:[#allocation11] sm:$0x1]
    %v294 = vld [vmem:[#allocation13] sm:$0x1]
    %295 = vadd.xlane.f32.xlu0 %v289
    %v296 = vpop.xlane.xlu0 %295
    %297 = vadd.xlane.f32.xlu0 %v290
    %v298 = vpop.xlane.xlu0 %297
    %299 = vadd.xlane.f32.xlu0 %v291
    %v300 = vpop.xlane.xlu0 %299
    %301 = vadd.xlane.f32.xlu0 %v292
    %v302 = vpop.xlane.xlu0 %301
    %v303 = vrcp.pop 128.0
    %v304 = vmul.f32 %v296, %v303
    %v305 = vmul.f32 %v298, %v303
    %v306 = vmul.f32 %v300, %v303
    %v307 = vmul.f32 %v302, %v303
    %v308 = vsub.f32 %v289, %v304
    %v309 = vsub.f32 %v290, %v305
    %v310 = vsub.f32 %v291, %v306
    %v311 = vsub.f32 %v292, %v307
    %v312 = vmul.f32 %v308, %v308
    %v313 = vmul.f32 %v309, %v309
    %v314 = vmul.f32 %v310, %v310
    %v315 = vmul.f32 %v311, %v311
    %316 = vadd.xlane.f32.xlu0 %v312
    %v317 = vpop.xlane.xlu0 %316
    %318 = vadd.xlane.f32.xlu0 %v313
    %v319 = vpop.xlane.xlu0 %318
    %320 = vadd.xlane.f32.xlu0 %v314
    %v321 = vpop.xlane.xlu0 %320
    %322 = vadd.xlane.f32.xlu0 %v315
    %v323 = vpop.xlane.xlu0 %322
    %v324 = vmul.f32 %v317, 0.007874016
    %v325 = vmul.f32 %v319, 0.007874016
    %v326 = vmul.f32 %v321, 0.007874016
    %v327 = vmul.f32 %v323, 0.007874016
    %v328 = vrsqrt.pop %v324
    %v329 = vmul.f32 %v324, %v328
    %vm330 = vcmp.eq.f32.partialorder %v324, inf
    %v331 = vsel %vm330, %v324, %v329
    %vm332 = vcmp.eq.f32.partialorder %v324, 0.0
    %v333 = vand.u32 %v324, 2147483648
    %v334 = vsel %vm332, %v333, %v331
    %v335 = vrsqrt.pop %v325
    %v336 = vmul.f32 %v325, %v335
    %vm337 = vcmp.eq.f32.partialorder %v325, inf
    %v338 = vsel %vm337, %v325, %v336
    %vm339 = vcmp.eq.f32.partialorder %v325, 0.0
    %v340 = vand.u32 %v325, 2147483648
    %v341 = vsel %vm339, %v340, %v338
    %v342 = vrsqrt.pop %v326
    %v343 = vmul.f32 %v326, %v342
    %vm344 = vcmp.eq.f32.partialorder %v326, inf
    %v345 = vsel %vm344, %v326, %v343
    %vm346 = vcmp.eq.f32.partialorder %v326, 0.0
    %v347 = vand.u32 %v326, 2147483648
    %v348 = vsel %vm346, %v347, %v345
    %v349 = vrsqrt.pop %v327
    %v350 = vmul.f32 %v327, %v349
    %vm351 = vcmp.eq.f32.partialorder %v327, inf
    %v352 = vsel %vm351, %v327, %v350
    %vm353 = vcmp.eq.f32.partialorder %v327, 0.0
    %v354 = vand.u32 %v327, 2147483648
    %v355 = vsel %vm353, %v354, %v352
    %v356 = vadd.f32 %v334, 1e-06
    %v357 = vadd.f32 %v341, 1e-06
    %v358 = vadd.f32 %v348, 1e-06
    %v359 = vadd.f32 %v355, 1e-06
    %v360 = vrcp.pop %v356
    %v361 = vmul.f32 1.0, %v360
    %v362 = vrcp.pop %v357
    %v363 = vmul.f32 1.0, %v362
    %v364 = vrcp.pop %v358
    %v365 = vmul.f32 1.0, %v364
    %v366 = vrcp.pop %v359
    %v367 = vmul.f32 1.0, %v366
    %v368 = vmul.f32 %v308, %v361
    %v369 = vmul.f32 %v309, %v363
    %v370 = vmul.f32 %v310, %v365
    %v371 = vmul.f32 %v311, %v367
    %v373 = vlaneseq
    %v374 = vshrl.u32 %v373, 7
    %v375 = vsub.s32 0, %v374
    %v376 = vrot.slane %v293, %v375
    %v378 = vmul.f32 %v376, %v368
    %v379 = vmul.f32 %v376, %v369
    %v380 = vmul.f32 %v376, %v370
    %v381 = vmul.f32 %v376, %v371
    %v383 = vlaneseq
    %v384 = vshrl.u32 %v383, 7
    %v385 = vsub.s32 0, %v384
    %v386 = vrot.slane %v294, %v385
    %v388 = vadd.f32 %v378, %v386
    %v389 = vadd.f32 %v379, %v386
    %v390 = vadd.f32 %v380, %v386
    %v391 = vadd.f32 %v381, %v386
    %v392 = vld [vmem:[#allocation5] sm:$0xff]
    %v393 = vld [vmem:[#allocation5 + $0x8] sm:$0xff]
    %v394 = vld [vmem:[#allocation5 + $0x10] sm:$0xff]
    %v395 = vld [vmem:[#allocation5 + $0x18] sm:$0xff]
    %v396 = vld [vmem:[#allocation5 + $0x20] sm:$0xff]
    %v397 = vld [vmem:[#allocation5 + $0x28] sm:$0xff]
    %v398 = vld [vmem:[#allocation5 + $0x30] sm:$0xff]
    %v399 = vld [vmem:[#allocation5 + $0x38] sm:$0xff]
    %v400 = vld [vmem:[#allocation5 + $0x40] sm:$0xff]
    %v401 = vld [vmem:[#allocation5 + $0x48] sm:$0xff]
    %v402 = vld [vmem:[#allocation5 + $0x50] sm:$0xff]
    %v403 = vld [vmem:[#allocation5 + $0x58] sm:$0xff]
    %v404 = vld [vmem:[#allocation5 + $0x60] sm:$0xff]
    %v405 = vld [vmem:[#allocation5 + $0x68] sm:$0xff]
    %v406 = vld [vmem:[#allocation5 + $0x70] sm:$0xff]
    %v407 = vld [vmem:[#allocation5 + $0x78] sm:$0xff]
    %v408 = vld [vmem:[#allocation5 + $0x80] sm:$0xff]
    %v409 = vld [vmem:[#allocation5 + $0x88] sm:$0xff]
    %v410 = vld [vmem:[#allocation5 + $0x90] sm:$0xff]
    %v411 = vld [vmem:[#allocation5 + $0x98] sm:$0xff]
    %v412 = vld [vmem:[#allocation5 + $0xa0] sm:$0xff]
    %v413 = vld [vmem:[#allocation5 + $0xa8] sm:$0xff]
    %v414 = vld [vmem:[#allocation5 + $0xb0] sm:$0xff]
    %v415 = vld [vmem:[#allocation5 + $0xb8] sm:$0xff]
    %v416 = vld [vmem:[#allocation5 + $0xc0] sm:$0xff]
    %v417 = vld [vmem:[#allocation5 + $0xc8] sm:$0xff]
    %v418 = vld [vmem:[#allocation5 + $0xd0] sm:$0xff]
    %v419 = vld [vmem:[#allocation5 + $0xd8] sm:$0xff]
    %v420 = vld [vmem:[#allocation5 + $0xe0] sm:$0xff]
    %v421 = vld [vmem:[#allocation5 + $0xe8] sm:$0xff]
    %v422 = vld [vmem:[#allocation5 + $0xf0] sm:$0xff]
    %v423 = vld [vmem:[#allocation5 + $0xf8] sm:$0xff]
    %v424 = vld [vmem:[#allocation5 + $0x100] sm:$0xff]
    %v425 = vld [vmem:[#allocation5 + $0x108] sm:$0xff]
    %v426 = vld [vmem:[#allocation5 + $0x110] sm:$0xff]
    %v427 = vld [vmem:[#allocation5 + $0x118] sm:$0xff]
    %v428 = vld [vmem:[#allocation5 + $0x120] sm:$0xff]
    %v429 = vld [vmem:[#allocation5 + $0x128] sm:$0xff]
    %v430 = vld [vmem:[#allocation5 + $0x130] sm:$0xff]
    %v431 = vld [vmem:[#allocation5 + $0x138] sm:$0xff]
    %v432 = vld [vmem:[#allocation5 + $0x140] sm:$0xff]
    %v433 = vld [vmem:[#allocation5 + $0x148] sm:$0xff]
    %v434 = vld [vmem:[#allocation5 + $0x150] sm:$0xff]
    %v435 = vld [vmem:[#allocation5 + $0x158] sm:$0xff]
    %v436 = vld [vmem:[#allocation5 + $0x160] sm:$0xff]
    %v437 = vld [vmem:[#allocation5 + $0x168] sm:$0xff]
    %v438 = vld [vmem:[#allocation5 + $0x170] sm:$0xff]
    %v439 = vld [vmem:[#allocation5 + $0x178] sm:$0xff]
    %v440 = vld [vmem:[#allocation7] sm:$0x7]
    %v442 = vlaneseq
    %v443 = vshrl.u32 %v442, 7
    %v444 = vsub.s32 0, %v443
    %v445 = vrot.slane %v440, %v444
    %v446 = vlaneseq
    %v447 = vshrl.u32 %v446, 7
    %v448 = vsub.s32 1, %v447
    %v449 = vrot.slane %v440, %v448
    %v450 = vlaneseq
    %v451 = vshrl.u32 %v450, 7
    %v452 = vsub.s32 2, %v451
    %v453 = vrot.slane %v440, %v452
    %457 = vmatprep.subr.mxu0 %v393
    %458 = vmatpush1.msra.mxu0 %v392
    %459 = vmatprep.subr.mxu0 %v396
    %460 = vmatpush1.msra.mxu0 %v395
    %461 = vmatprep.subr.mxu0 %v399
    %462 = vmatpush1.msra.mxu0 %v398
    %463 = vmatprep.subr.mxu0 %v402
    %464 = vmatpush1.msra.mxu0 %v401
    %465 = vmatprep.subr.mxu0 %v405
    %466 = vmatpush1.msra.mxu0 %v404
    %467 = vmatprep.subr.mxu0 %v408
    %468 = vmatpush1.msra.mxu0 %v407
    %469 = vmatprep.subr.mxu0 %v411
    %470 = vmatpush1.msra.mxu0 %v410
    %471 = vmatprep.subr.mxu0 %v414
    %472 = vmatpush1.msra.mxu0 %v413
    %473 = vmatprep.subr.mxu0 %v417
    %474 = vmatpush1.msra.mxu0 %v416
    %475 = vmatprep.subr.mxu0 %v420
    %476 = vmatpush1.msra.mxu0 %v419
    %477 = vmatprep.subr.mxu0 %v423
    %478 = vmatpush1.msra.mxu0 %v422
    %479 = vmatprep.subr.mxu0 %v426
    %480 = vmatpush1.msra.mxu0 %v425
    %481 = vmatprep.subr.mxu0 %v429
    %482 = vmatpush1.msra.mxu0 %v428
    %483 = vmatprep.subr.mxu0 %v432
    %484 = vmatpush1.msra.mxu0 %v431
    %485 = vmatprep.subr.mxu0 %v435
    %486 = vmatpush1.msra.mxu0 %v434
    %487 = vmatprep.subr.mxu0 %v438
    %488 = vmatpush1.msra.mxu0 %v437
    %489 = vmatprep.subr.mxu0 0.0
    %490 = vmatpush1.msra.mxu0 0.0
    %491 = vmatprep.subr.mxu0 0.0
    %492 = vmatpush1.msra.mxu0 0.0
    %493 = vmatprep.subr.mxu0 0.0
    %494 = vmatpush1.msra.mxu0 0.0
    %495 = vmatprep.subr.mxu0 0.0
    %496 = vmatpush1.msra.mxu0 0.0
    %497 = vmatprep.subr.mxu0 0.0
    %498 = vmatpush1.msra.mxu0 0.0
    %499 = vmatprep.subr.mxu0 0.0
    %500 = vmatpush1.msra.mxu0 0.0
    %501 = vmatprep.subr.mxu0 0.0
    %502 = vmatpush1.msra.mxu0 0.0
    %503 = vmatprep.subr.mxu0 0.0
    %504 = vmatpush1.msra.mxu0 0.0
    %505 = vmatprep.subr.mxu0 0.0
    %506 = vmatpush1.msra.mxu0 0.0
    %507 = vmatprep.subr.mxu0 0.0
    %508 = vmatpush1.msra.mxu0 0.0
    %509 = vmatprep.subr.mxu0 0.0
    %510 = vmatpush1.msra.mxu0 0.0
    %511 = vmatprep.subr.mxu0 0.0
    %512 = vmatpush1.msra.mxu0 0.0
    %513 = vmatprep.subr.mxu0 0.0
    %514 = vmatpush1.msra.mxu0 0.0
    %515 = vmatprep.subr.mxu0 0.0
    %516 = vmatpush1.msra.mxu0 0.0
    %517 = vmatprep.subr.mxu0 0.0
    %518 = vmatpush1.msra.mxu0 0.0
    %519 = vmatprep.subr.mxu0 0.0
    %520 = vmatpush1.msra.mxu0 0.0
    %521 = vmatprep.mubr.f32.mxu0 0.0
    %522 = vmatmul.mubr.f32.gmra.mrb[0].mxu0 %v388
    %v523 = vpop.f32.mrb[0].mxu0
    %v524 = vadd.f32 %v445, %v523
    %v525 = vpop.f32.mrb[0].mxu0
    %v526 = vadd.f32 %v449, %v525
    %527 = vmatprep.mubr.f32.mxu0 0.0
    %528 = vmatmul.mubr.f32.gmra.mrb[0].mxu0 %v389
    %v529 = vpop.f32.mrb[0].mxu0
    %v530 = vadd.f32 %v445, %v529
    %v531 = vpop.f32.mrb[0].mxu0
    %v532 = vadd.f32 %v449, %v531
    %533 = vmatprep.mubr.f32.mxu0 0.0
    %534 = vmatmul.mubr.f32.gmra.mrb[0].mxu0 %v390
    %v535 = vpop.f32.mrb[0].mxu0
    %v536 = vadd.f32 %v445, %v535
    %v537 = vpop.f32.mrb[0].mxu0
    %v538 = vadd.f32 %v449, %v537
    %539 = vmatprep.mubr.f32.mxu0 0.0
    %540 = vmatmul.mubr.f32.gmra.mrb[0].mxu0 %v391
    %v541 = vpop.f32.mrb[0].mxu0
    %v542 = vadd.f32 %v445, %v541
    %v543 = vpop.f32.mrb[0].mxu0
    %v544 = vadd.f32 %v449, %v543
    %545 = vdwg.mxu0
    %546 = vmatprep.subr.mxu0 0.0
    %547 = vmatpush1.msra.mxu0 %v394
    %548 = vmatprep.subr.mxu0 0.0
    %549 = vmatpush1.msra.mxu0 %v397
    %550 = vmatprep.subr.mxu0 0.0
    %551 = vmatpush1.msra.mxu0 %v400
    %552 = vmatprep.subr.mxu0 0.0
    %553 = vmatpush1.msra.mxu0 %v403
    %554 = vmatprep.subr.mxu0 0.0
    %555 = vmatpush1.msra.mxu0 %v406
    %556 = vmatprep.subr.mxu0 0.0
    %557 = vmatpush1.msra.mxu0 %v409
    %558 = vmatprep.subr.mxu0 0.0
    %559 = vmatpush1.msra.mxu0 %v412
    %560 = vmatprep.subr.mxu0 0.0
    %561 = vmatpush1.msra.mxu0 %v415
    %562 = vmatprep.subr.mxu0 0.0
    %563 = vmatpush1.msra.mxu0 %v418
    %564 = vmatprep.subr.mxu0 0.0
    %565 = vmatpush1.msra.mxu0 %v421
    %566 = vmatprep.subr.mxu0 0.0
    %567 = vmatpush1.msra.mxu0 %v424
    %568 = vmatprep.subr.mxu0 0.0
    %569 = vmatpush1.msra.mxu0 %v427
    %570 = vmatprep.subr.mxu0 0.0
    %571 = vmatpush1.msra.mxu0 %v430
    %572 = vmatprep.subr.mxu0 0.0
    %573 = vmatpush1.msra.mxu0 %v433
    %574 = vmatprep.subr.mxu0 0.0
    %575 = vmatpush1.msra.mxu0 %v436
    %576 = vmatprep.subr.mxu0 0.0
    %577 = vmatpush1.msra.mxu0 %v439
    %578 = vmatprep.subr.mxu0 0.0
    %579 = vmatpush1.msra.mxu0 0.0
    %580 = vmatprep.subr.mxu0 0.0
    %581 = vmatpush1.msra.mxu0 0.0
    %582 = vmatprep.subr.mxu0 0.0
    %583 = vmatpush1.msra.mxu0 0.0
    %584 = vmatprep.subr.mxu0 0.0
    %585 = vmatpush1.msra.mxu0 0.0
    %586 = vmatprep.subr.mxu0 0.0
    %587 = vmatpush1.msra.mxu0 0.0
    %588 = vmatprep.subr.mxu0 0.0
    %589 = vmatpush1.msra.mxu0 0.0
    %590 = vmatprep.subr.mxu0 0.0
    %591 = vmatpush1.msra.mxu0 0.0
    %592 = vmatprep.subr.mxu0 0.0
    %593 = vmatpush1.msra.mxu0 0.0
    %594 = vmatprep.subr.mxu0 0.0
    %595 = vmatpush1.msra.mxu0 0.0
    %596 = vmatprep.subr.mxu0 0.0
    %597 = vmatpush1.msra.mxu0 0.0
    %598 = vmatprep.subr.mxu0 0.0
    %599 = vmatpush1.msra.mxu0 0.0
    %600 = vmatprep.subr.mxu0 0.0
    %601 = vmatpush1.msra.mxu0 0.0
    %602 = vmatprep.subr.mxu0 0.0
    %603 = vmatpush1.msra.mxu0 0.0
    %604 = vmatprep.subr.mxu0 0.0
    %605 = vmatpush1.msra.mxu0 0.0
    %606 = vmatprep.subr.mxu0 0.0
    %607 = vmatpush1.msra.mxu0 0.0
    %608 = vmatprep.subr.mxu0 0.0
    %609 = vmatpush1.msra.mxu0 0.0
    %610 = vmatprep.mubr.f32.mxu0 0.0
    %611 = vmatmul.mubr.f32.gmra.mrb[0].mxu0 %v388
    %v612 = vpop.f32.mrb[0].mxu0
    %v613 = vadd.f32 %v453, %v612
    %v614 = vpop.f32.mrb[0].mxu0
    %615 = vmatprep.mubr.f32.mxu0 0.0
    %616 = vmatmul.mubr.f32.gmra.mrb[0].mxu0 %v389
    %v617 = vpop.f32.mrb[0].mxu0
    %v618 = vadd.f32 %v453, %v617
    %v619 = vpop.f32.mrb[0].mxu0
    %620 = vmatprep.mubr.f32.mxu0 0.0
    %621 = vmatmul.mubr.f32.gmra.mrb[0].mxu0 %v390
    %v622 = vpop.f32.mrb[0].mxu0
    %v623 = vadd.f32 %v453, %v622
    %v624 = vpop.f32.mrb[0].mxu0
    %625 = vmatprep.mubr.f32.mxu0 0.0
    %626 = vmatmul.mubr.f32.gmra.mrb[0].mxu0 %v391
    %v627 = vpop.f32.mrb[0].mxu0
    %v628 = vadd.f32 %v453, %v627
    %v629 = vpop.f32.mrb[0].mxu0
    %630 = vdwg.mxu0
    %v631 = vld [vmem:[#allocation8] sm:$0xff]
    %v632 = vld [vmem:[#allocation8 + $0x8] sm:$0xff]
    %v633 = vld [vmem:[#allocation8 + $0x10] sm:$0xff]
    %v634 = vld [vmem:[#allocation8 + $0x18] sm:$0xff]
    %v635 = vld [vmem:[#allocation8 + $0x20] sm:$0xff]
    %v636 = vld [vmem:[#allocation8 + $0x28] sm:$0xff]
    %v637 = vld [vmem:[#allocation8 + $0x30] sm:$0xff]
    %v638 = vld [vmem:[#allocation8 + $0x38] sm:$0xff]
    %v639 = vld [vmem:[#allocation8 + $0x40] sm:$0xff]
    %v640 = vld [vmem:[#allocation8 + $0x48] sm:$0xff]
    %v641 = vld [vmem:[#allocation8 + $0x50] sm:$0xff]
    %v642 = vld [vmem:[#allocation8 + $0x58] sm:$0xff]
    %v643 = vld [vmem:[#allocation8 + $0x60] sm:$0xff]
    %v644 = vld [vmem:[#allocation8 + $0x68] sm:$0xff]
    %v645 = vld [vmem:[#allocation8 + $0x70] sm:$0xff]
    %v646 = vld [vmem:[#allocation8 + $0x78] sm:$0xff]
    %vm647 = vcmask 261120
    %v649 = vsel %vm647, %v524, 0
    %v652 = vsel %vm647, %v530, 0
    %v655 = vsel %vm647, %v526, 0
    %v658 = vsel %vm647, %v532, 0
    %660 = vmatprep.subr.mxu0 0.0
    %661 = vmatpush1.xpose.msra.mxu0 %v655
    %662 = vmatprep.subr.mxu0 0.0
    %663 = vmatpush1.xpose.msra.mxu0 %v658
    %664 = vmatprep.subr.mxu0 0.0
    %665 = vmatpush1.xpose.msra.mxu0 0.0
    %666 = vmatprep.subr.mxu0 0.0
    %667 = vmatpush1.xpose.msra.mxu0 0.0
    %668 = vmatprep.subr.mxu0 0.0
    %669 = vmatpush1.xpose.msra.mxu0 0.0
    %670 = vmatprep.subr.mxu0 0.0
    %671 = vmatpush1.xpose.msra.mxu0 0.0
    %672 = vmatprep.subr.mxu0 0.0
    %673 = vmatpush1.xpose.msra.mxu0 0.0
    %674 = vmatprep.subr.mxu0 0.0
    %675 = vmatpush1.xpose.msra.mxu0 0.0
    %676 = vmatprep.subr.mxu0 0.0
    %677 = vmatpush1.xpose.msra.mxu0 0.0
    %678 = vmatprep.subr.mxu0 0.0
    %679 = vmatpush1.xpose.msra.mxu0 0.0
    %680 = vmatprep.subr.mxu0 0.0
    %681 = vmatpush1.xpose.msra.mxu0 0.0
    %682 = vmatprep.subr.mxu0 0.0
    %683 = vmatpush1.xpose.msra.mxu0 0.0
    %684 = vmatprep.subr.mxu0 0.0
    %685 = vmatpush1.xpose.msra.mxu0 0.0
    %686 = vmatprep.subr.mxu0 0.0
    %687 = vmatpush1.xpose.msra.mxu0 0.0
    %688 = vmatprep.subr.mxu0 0.0
    %689 = vmatpush1.xpose.msra.mxu0 0.0
    %690 = vmatprep.subr.mxu0 0.0
    %691 = vmatpush1.xpose.msra.mxu0 0.0
    %692 = vmatprep.subr.mxu0 0.0
    %693 = vmatpush1.xpose.msra.mxu0 0.0
    %694 = vmatprep.subr.mxu0 0.0
    %695 = vmatpush1.xpose.msra.mxu0 0.0
    %696 = vmatprep.subr.mxu0 0.0
    %697 = vmatpush1.xpose.msra.mxu0 0.0
    %698 = vmatprep.subr.mxu0 0.0
    %699 = vmatpush1.xpose.msra.mxu0 0.0
    %700 = vmatprep.subr.mxu0 0.0
    %701 = vmatpush1.xpose.msra.mxu0 0.0
    %702 = vmatprep.subr.mxu0 0.0
    %703 = vmatpush1.xpose.msra.mxu0 0.0
    %704 = vmatprep.subr.mxu0 0.0
    %705 = vmatpush1.xpose.msra.mxu0 0.0
    %706 = vmatprep.subr.mxu0 0.0
    %707 = vmatpush1.xpose.msra.mxu0 0.0
    %708 = vmatprep.subr.mxu0 0.0
    %709 = vmatpush1.xpose.msra.mxu0 0.0
    %710 = vmatprep.subr.mxu0 0.0
    %711 = vmatpush1.xpose.msra.mxu0 0.0
    %712 = vmatprep.subr.mxu0 0.0
    %713 = vmatpush1.xpose.msra.mxu0 0.0
    %714 = vmatprep.subr.mxu0 0.0
    %715 = vmatpush1.xpose.msra.mxu0 0.0
    %716 = vmatprep.subr.mxu0 0.0
    %717 = vmatpush1.xpose.msra.mxu0 0.0
    %718 = vmatprep.subr.mxu0 0.0
    %719 = vmatpush1.xpose.msra.mxu0 0.0
    %720 = vmatprep.subr.mxu0 0.0
    %721 = vmatpush1.xpose.msra.mxu0 0.0
    %722 = vmatprep.subr.mxu0 0.0
    %723 = vmatpush1.xpose.msra.mxu0 0.0
    %724 = vmatprep.mubr.f32.mxu0 0.0
    %725 = vmatmul.mubr.f32.gmra.mrb[0].mxu0 %v649
    %v726 = vpop.f32.mrb[0].mxu0
    %v727 = vadd.f32 0.0, %v726
    %v728 = vpop.f32.mrb[0].mxu0
    %729 = vmatprep.mubr.f32.mxu0 0.0
    %730 = vmatmul.mubr.f32.gmra.mrb[0].mxu0 %v652
    %v731 = vpop.f32.mrb[0].mxu0
    %v732 = vadd.f32 0.0, %v731
    %v733 = vpop.f32.mrb[0].mxu0
    %734 = vdwg.mxu0
    %v735 = vmul.f32 %v727, 0.17677669
    %v736 = vmul.f32 %v732, 0.17677669
    %vm737 = vcmask 130048
    %v738 = vsel %vm737, %v735, -inf
    %739 = vmax.xlane.f32.xlu0 %v738
    %v740 = vpop.xlane.xlu0 %739
    %v741 = vsel %vm737, %v736, -inf
    %742 = vmax.xlane.f32.xlu0 %v741
    %v743 = vpop.xlane.xlu0 %742
    %v744 = vsub.f32 %v735, %v740
    %v745 = vsub.f32 %v736, %v743
    %v746 = vmul.f32 %v744, 1.442695
    %v747 = vpow.pop %v746
    %v748 = vmul.f32 %v745, 1.442695
    %v749 = vpow.pop %v748
    %v750 = vsel %vm737, %v747, 0.0
    %751 = vadd.xlane.f32.xlu0 %v750
    %v752 = vpop.xlane.xlu0 %751
    %v753 = vsel %vm737, %v749, 0.0
    %754 = vadd.xlane.f32.xlu0 %v753
    %v755 = vpop.xlane.xlu0 %754
    %v756 = vrcp.pop %v752
    %v757 = vmul.f32 1.0, %v756
    %v758 = vrcp.pop %v755
    %v759 = vmul.f32 1.0, %v758
    %v760 = vmul.f32 %v747, %v757
    %v761 = vmul.f32 %v749, %v759
    %v763 = vsel %vm737, %v760, 0
    %v766 = vsel %vm737, %v761, 0
    %768 = vmatprep.subr.mxu0 0.0
    %769 = vmatpush1.msra.mxu0 %v613
    %770 = vmatprep.subr.mxu0 0.0
    %771 = vmatpush1.msra.mxu0 %v618
    %772 = vmatprep.subr.mxu0 0.0
    %773 = vmatpush1.msra.mxu0 0.0
    %774 = vmatprep.subr.mxu0 0.0
    %775 = vmatpush1.msra.mxu0 0.0
    %776 = vmatprep.subr.mxu0 0.0
    %777 = vmatpush1.msra.mxu0 0.0
    %778 = vmatprep.subr.mxu0 0.0
    %779 = vmatpush1.msra.mxu0 0.0
    %780 = vmatprep.subr.mxu0 0.0
    %781 = vmatpush1.msra.mxu0 0.0
    %782 = vmatprep.subr.mxu0 0.0
    %783 = vmatpush1.msra.mxu0 0.0
    %784 = vmatprep.subr.mxu0 0.0
    %785 = vmatpush1.msra.mxu0 0.0
    %786 = vmatprep.subr.mxu0 0.0
    %787 = vmatpush1.msra.mxu0 0.0
    %788 = vmatprep.subr.mxu0 0.0
    %789 = vmatpush1.msra.mxu0 0.0
    %790 = vmatprep.subr.mxu0 0.0
    %791 = vmatpush1.msra.mxu0 0.0
    %792 = vmatprep.subr.mxu0 0.0
    %793 = vmatpush1.msra.mxu0 0.0
    %794 = vmatprep.subr.mxu0 0.0
    %795 = vmatpush1.msra.mxu0 0.0
    %796 = vmatprep.subr.mxu0 0.0
    %797 = vmatpush1.msra.mxu0 0.0
    %798 = vmatprep.subr.mxu0 0.0
    %799 = vmatpush1.msra.mxu0 0.0
    %800 = vmatprep.subr.mxu0 0.0
    %801 = vmatpush1.msra.mxu0 0.0
    %802 = vmatprep.subr.mxu0 0.0
    %803 = vmatpush1.msra.mxu0 0.0
    %804 = vmatprep.subr.mxu0 0.0
    %805 = vmatpush1.msra.mxu0 0.0
    %806 = vmatprep.subr.mxu0 0.0
    %807 = vmatpush1.msra.mxu0 0.0
    %808 = vmatprep.subr.mxu0 0.0
    %809 = vmatpush1.msra.mxu0 0.0
    %810 = vmatprep.subr.mxu0 0.0
    %811 = vmatpush1.msra.mxu0 0.0
    %812 = vmatprep.subr.mxu0 0.0
    %813 = vmatpush1.msra.mxu0 0.0
    %814 = vmatprep.subr.mxu0 0.0
    %815 = vmatpush1.msra.mxu0 0.0
    %816 = vmatprep.subr.mxu0 0.0
    %817 = vmatpush1.msra.mxu0 0.0
    %818 = vmatprep.subr.mxu0 0.0
    %819 = vmatpush1.msra.mxu0 0.0
    %820 = vmatprep.subr.mxu0 0.0
    %821 = vmatpush1.msra.mxu0 0.0
    %822 = vmatprep.subr.mxu0 0.0
    %823 = vmatpush1.msra.mxu0 0.0
    %824 = vmatprep.subr.mxu0 0.0
    %825 = vmatpush1.msra.mxu0 0.0
    %826 = vmatprep.subr.mxu0 0.0
    %827 = vmatpush1.msra.mxu0 0.0
    %828 = vmatprep.subr.mxu0 0.0
    %829 = vmatpush1.msra.mxu0 0.0
    %830 = vmatprep.subr.mxu0 0.0
    %831 = vmatpush1.msra.mxu0 0.0
    %832 = vmatprep.mubr.f32.mxu0 0.0
    %833 = vmatmul.mubr.f32.gmra.mrb[0].mxu0 %v763
    %v834 = vpop.f32.mrb[0].mxu0
    %v835 = vadd.f32 0.0, %v834
    %v836 = vpop.f32.mrb[0].mxu0
    %837 = vmatprep.mubr.f32.mxu0 0.0
    %838 = vmatmul.mubr.f32.gmra.mrb[0].mxu0 %v766
    %v839 = vpop.f32.mrb[0].mxu0
    %v840 = vadd.f32 0.0, %v839
    %v841 = vpop.f32.mrb[0].mxu0
    %842 = vdwg.mxu0
    %843 = vrot.lane.b32.xlu0 %v524, 96
    %v844 = vpop.permute.xlu0 %843
    %845 = vrot.lane.b32.xlu0 %v530, 96
    %v846 = vpop.permute.xlu0 %845
    %847 = vrot.lane.b32.xlu0 %v526, 96
    %v848 = vpop.permute.xlu0 %847
    %849 = vrot.lane.b32.xlu0 %v532, 96
    %v850 = vpop.permute.xlu0 %849
    %v851 = vsel %vm647, %v844, 0
    %v853 = vsel %vm647, %v846, 0
    %v855 = vsel %vm647, %v848, 0
    %v857 = vsel %vm647, %v850, 0
    %859 = vmatprep.subr.mxu0 0.0
    %860 = vmatpush1.xpose.msra.mxu0 %v855
    %861 = vmatprep.subr.mxu0 0.0
    %862 = vmatpush1.xpose.msra.mxu0 %v857
    %863 = vmatprep.subr.mxu0 0.0
    %864 = vmatpush1.xpose.msra.mxu0 0.0
    %865 = vmatprep.subr.mxu0 0.0
    %866 = vmatpush1.xpose.msra.mxu0 0.0
    %867 = vmatprep.subr.mxu0 0.0
    %868 = vmatpush1.xpose.msra.mxu0 0.0
    %869 = vmatprep.subr.mxu0 0.0
    %870 = vmatpush1.xpose.msra.mxu0 0.0
    %871 = vmatprep.subr.mxu0 0.0
    %872 = vmatpush1.xpose.msra.mxu0 0.0
    %873 = vmatprep.subr.mxu0 0.0
    %874 = vmatpush1.xpose.msra.mxu0 0.0
    %875 = vmatprep.subr.mxu0 0.0
    %876 = vmatpush1.xpose.msra.mxu0 0.0
    %877 = vmatprep.subr.mxu0 0.0
    %878 = vmatpush1.xpose.msra.mxu0 0.0
    %879 = vmatprep.subr.mxu0 0.0
    %880 = vmatpush1.xpose.msra.mxu0 0.0
    %881 = vmatprep.subr.mxu0 0.0
    %882 = vmatpush1.xpose.msra.mxu0 0.0
    %883 = vmatprep.subr.mxu0 0.0
    %884 = vmatpush1.xpose.msra.mxu0 0.0
    %885 = vmatprep.subr.mxu0 0.0
    %886 = vmatpush1.xpose.msra.mxu0 0.0
    %887 = vmatprep.subr.mxu0 0.0
    %888 = vmatpush1.xpose.msra.mxu0 0.0
    %889 = vmatprep.subr.mxu0 0.0
    %890 = vmatpush1.xpose.msra.mxu0 0.0
    %891 = vmatprep.subr.mxu0 0.0
    %892 = vmatpush1.xpose.msra.mxu0 0.0
    %893 = vmatprep.subr.mxu0 0.0
    %894 = vmatpush1.xpose.msra.mxu0 0.0
    %895 = vmatprep.subr.mxu0 0.0
    %896 = vmatpush1.xpose.msra.mxu0 0.0
    %897 = vmatprep.subr.mxu0 0.0
    %898 = vmatpush1.xpose.msra.mxu0 0.0
    %899 = vmatprep.subr.mxu0 0.0
    %900 = vmatpush1.xpose.msra.mxu0 0.0
    %901 = vmatprep.subr.mxu0 0.0
    %902 = vmatpush1.xpose.msra.mxu0 0.0
    %903 = vmatprep.subr.mxu0 0.0
    %904 = vmatpush1.xpose.msra.mxu0 0.0
    %905 = vmatprep.subr.mxu0 0.0
    %906 = vmatpush1.xpose.msra.mxu0 0.0
    %907 = vmatprep.subr.mxu0 0.0
    %908 = vmatpush1.xpose.msra.mxu0 0.0
    %909 = vmatprep.subr.mxu0 0.0
    %910 = vmatpush1.xpose.msra.mxu0 0.0
    %911 = vmatprep.subr.mxu0 0.0
    %912 = vmatpush1.xpose.msra.mxu0 0.0
    %913 = vmatprep.subr.mxu0 0.0
    %914 = vmatpush1.xpose.msra.mxu0 0.0
    %915 = vmatprep.subr.mxu0 0.0
    %916 = vmatpush1.xpose.msra.mxu0 0.0
    %917 = vmatprep.subr.mxu0 0.0
    %918 = vmatpush1.xpose.msra.mxu0 0.0
    %919 = vmatprep.subr.mxu0 0.0
    %920 = vmatpush1.xpose.msra.mxu0 0.0
    %921 = vmatprep.subr.mxu0 0.0
    %922 = vmatpush1.xpose.msra.mxu0 0.0
    %923 = vmatprep.mubr.f32.mxu0 0.0
    %924 = vmatmul.mubr.f32.gmra.mrb[0].mxu0 %v851
    %v925 = vpop.f32.mrb[0].mxu0
    %v926 = vadd.f32 0.0, %v925
    %v927 = vpop.f32.mrb[0].mxu0
    %928 = vmatprep.mubr.f32.mxu0 0.0
    %929 = vmatmul.mubr.f32.gmra.mrb[0].mxu0 %v853
    %v930 = vpop.f32.mrb[0].mxu0
    %v931 = vadd.f32 0.0, %v930
    %v932 = vpop.f32.mrb[0].mxu0
    %933 = vdwg.mxu0
    %v934 = vmul.f32 %v926, 0.17677669
    %v935 = vmul.f32 %v931, 0.17677669
    %v936 = vsel %vm737, %v934, -inf
    %937 = vmax.xlane.f32.xlu0 %v936
    %v938 = vpop.xlane.xlu0 %937
    %v939 = vsel %vm737, %v935, -inf
    %940 = vmax.xlane.f32.xlu0 %v939
    %v941 = vpop.xlane.xlu0 %940
    %v942 = vsub.f32 %v934, %v938
    %v943 = vsub.f32 %v935, %v941
    %v944 = vmul.f32 %v942, 1.442695
    %v945 = vpow.pop %v944
    %v946 = vmul.f32 %v943, 1.442695
    %v947 = vpow.pop %v946
    %v948 = vsel %vm737, %v945, 0.0
    %949 = vadd.xlane.f32.xlu0 %v948
    %v950 = vpop.xlane.xlu0 %949
    %v951 = vsel %vm737, %v947, 0.0
    %952 = vadd.xlane.f32.xlu0 %v951
    %v953 = vpop.xlane.xlu0 %952
    %v954 = vrcp.pop %v950
    %v955 = vmul.f32 1.0, %v954
    %v956 = vrcp.pop %v953
    %v957 = vmul.f32 1.0, %v956
    %v958 = vmul.f32 %v945, %v955
    %v959 = vmul.f32 %v947, %v957
    %962 = vrot.lane.b32.xlu0 %v613, 96
    %v963 = vpop.permute.xlu0 %962
    %964 = vrot.lane.b32.xlu0 %v618, 96
    %v965 = vpop.permute.xlu0 %964
    %v969 = vsel %vm737, %v958, 0
    %v972 = vsel %vm737, %v959, 0
    %974 = vmatprep.subr.mxu0 0.0
    %975 = vmatpush1.msra.mxu0 %v963
    %976 = vmatprep.subr.mxu0 0.0
    %977 = vmatpush1.msra.mxu0 %v965
    %978 = vmatprep.subr.mxu0 0.0
    %979 = vmatpush1.msra.mxu0 0.0
    %980 = vmatprep.subr.mxu0 0.0
    %981 = vmatpush1.msra.mxu0 0.0
    %982 = vmatprep.subr.mxu0 0.0
    %983 = vmatpush1.msra.mxu0 0.0
    %984 = vmatprep.subr.mxu0 0.0
    %985 = vmatpush1.msra.mxu0 0.0
    %986 = vmatprep.subr.mxu0 0.0
    %987 = vmatpush1.msra.mxu0 0.0
    %988 = vmatprep.subr.mxu0 0.0
    %989 = vmatpush1.msra.mxu0 0.0
    %990 = vmatprep.subr.mxu0 0.0
    %991 = vmatpush1.msra.mxu0 0.0
    %992 = vmatprep.subr.mxu0 0.0
    %993 = vmatpush1.msra.mxu0 0.0
    %994 = vmatprep.subr.mxu0 0.0
    %995 = vmatpush1.msra.mxu0 0.0
    %996 = vmatprep.subr.mxu0 0.0
    %997 = vmatpush1.msra.mxu0 0.0
    %998 = vmatprep.subr.mxu0 0.0
    %999 = vmatpush1.msra.mxu0 0.0
    %1000 = vmatprep.subr.mxu0 0.0
    %1001 = vmatpush1.msra.mxu0 0.0
    %1002 = vmatprep.subr.mxu0 0.0
    %1003 = vmatpush1.msra.mxu0 0.0
    %1004 = vmatprep.subr.mxu0 0.0
    %1005 = vmatpush1.msra.mxu0 0.0
    %1006 = vmatprep.subr.mxu0 0.0
    %1007 = vmatpush1.msra.mxu0 0.0
    %1008 = vmatprep.subr.mxu0 0.0
    %1009 = vmatpush1.msra.mxu0 0.0
    %1010 = vmatprep.subr.mxu0 0.0
    %1011 = vmatpush1.msra.mxu0 0.0
    %1012 = vmatprep.subr.mxu0 0.0
    %1013 = vmatpush1.msra.mxu0 0.0
    %1014 = vmatprep.subr.mxu0 0.0
    %1015 = vmatpush1.msra.mxu0 0.0
    %1016 = vmatprep.subr.mxu0 0.0
    %1017 = vmatpush1.msra.mxu0 0.0
    %1018 = vmatprep.subr.mxu0 0.0
    %1019 = vmatpush1.msra.mxu0 0.0
    %1020 = vmatprep.subr.mxu0 0.0
    %1021 = vmatpush1.msra.mxu0 0.0
    %1022 = vmatprep.subr.mxu0 0.0
    %1023 = vmatpush1.msra.mxu0 0.0
    %1024 = vmatprep.subr.mxu0 0.0
    %1025 = vmatpush1.msra.mxu0 0.0
    %1026 = vmatprep.subr.mxu0 0.0
    %1027 = vmatpush1.msra.mxu0 0.0
    %1028 = vmatprep.subr.mxu0 0.0
    %1029 = vmatpush1.msra.mxu0 0.0
    %1030 = vmatprep.subr.mxu0 0.0
    %1031 = vmatpush1.msra.mxu0 0.0
    %1032 = vmatprep.subr.mxu0 0.0
    %1033 = vmatpush1.msra.mxu0 0.0
    %1034 = vmatprep.subr.mxu0 0.0
    %1035 = vmatpush1.msra.mxu0 0.0
    %1036 = vmatprep.subr.mxu0 0.0
    %1037 = vmatpush1.msra.mxu0 0.0
    %1038 = vmatprep.mubr.f32.mxu0 0.0
    %1039 = vmatmul.mubr.f32.gmra.mrb[0].mxu0 %v969
    %v1040 = vpop.f32.mrb[0].mxu0
    %v1041 = vadd.f32 0.0, %v1040
    %v1042 = vpop.f32.mrb[0].mxu0
    %1043 = vmatprep.mubr.f32.mxu0 0.0
    %1044 = vmatmul.mubr.f32.gmra.mrb[0].mxu0 %v972
    %v1045 = vpop.f32.mrb[0].mxu0
    %v1046 = vadd.f32 0.0, %v1045
    %v1047 = vpop.f32.mrb[0].mxu0
    %1048 = vdwg.mxu0
    %v1050 = vsel %vm647, %v1041, 0
    %v1053 = vsel %vm647, %v1046, 0
    %1055 = vmatprep.subr.mxu0 0.0
    %1056 = vmatpush1.msra.mxu0 %v635
    %1057 = vmatprep.subr.mxu0 0.0
    %1058 = vmatpush1.msra.mxu0 %v636
    %1059 = vmatprep.subr.mxu0 0.0
    %1060 = vmatpush1.msra.mxu0 %v637
    %1061 = vmatprep.subr.mxu0 0.0
    %1062 = vmatpush1.msra.mxu0 %v638
    %1063 = vmatprep.subr.mxu0 0.0
    %1064 = vmatpush1.msra.mxu0 0.0
    %1065 = vmatprep.subr.mxu0 0.0
    %1066 = vmatpush1.msra.mxu0 0.0
    %1067 = vmatprep.subr.mxu0 0.0
    %1068 = vmatpush1.msra.mxu0 0.0
    %1069 = vmatprep.subr.mxu0 0.0
    %1070 = vmatpush1.msra.mxu0 0.0
    %1071 = vmatprep.subr.mxu0 0.0
    %1072 = vmatpush1.msra.mxu0 0.0
    %1073 = vmatprep.subr.mxu0 0.0
    %1074 = vmatpush1.msra.mxu0 0.0
    %1075 = vmatprep.subr.mxu0 0.0
    %1076 = vmatpush1.msra.mxu0 0.0
    %1077 = vmatprep.subr.mxu0 0.0
    %1078 = vmatpush1.msra.mxu0 0.0
    %1079 = vmatprep.subr.mxu0 0.0
    %1080 = vmatpush1.msra.mxu0 0.0
    %1081 = vmatprep.subr.mxu0 0.0
    %1082 = vmatpush1.msra.mxu0 0.0
    %1083 = vmatprep.subr.mxu0 0.0
    %1084 = vmatpush1.msra.mxu0 0.0
    %1085 = vmatprep.subr.mxu0 0.0
    %1086 = vmatpush1.msra.mxu0 0.0
    %1087 = vmatprep.subr.mxu0 0.0
    %1088 = vmatpush1.msra.mxu0 0.0
    %1089 = vmatprep.subr.mxu0 0.0
    %1090 = vmatpush1.msra.mxu0 0.0
    %1091 = vmatprep.subr.mxu0 0.0
    %1092 = vmatpush1.msra.mxu0 0.0
    %1093 = vmatprep.subr.mxu0 0.0
    %1094 = vmatpush1.msra.mxu0 0.0
    %1095 = vmatprep.subr.mxu0 0.0
    %1096 = vmatpush1.msra.mxu0 0.0
    %1097 = vmatprep.subr.mxu0 0.0
    %1098 = vmatpush1.msra.mxu0 0.0
    %1099 = vmatprep.subr.mxu0 0.0
    %1100 = vmatpush1.msra.mxu0 0.0
    %1101 = vmatprep.subr.mxu0 0.0
    %1102 = vmatpush1.msra.mxu0 0.0
    %1103 = vmatprep.subr.mxu0 0.0
    %1104 = vmatpush1.msra.mxu0 0.0
    %1105 = vmatprep.subr.mxu0 0.0
    %1106 = vmatpush1.msra.mxu0 0.0
    %1107 = vmatprep.subr.mxu0 0.0
    %1108 = vmatpush1.msra.mxu0 0.0
    %1109 = vmatprep.subr.mxu0 0.0
    %1110 = vmatpush1.msra.mxu0 0.0
    %1111 = vmatprep.subr.mxu0 0.0
    %1112 = vmatpush1.msra.mxu0 0.0
    %1113 = vmatprep.subr.mxu0 0.0
    %1114 = vmatpush1.msra.mxu0 0.0
    %1115 = vmatprep.subr.mxu0 0.0
    %1116 = vmatpush1.msra.mxu0 0.0
    %1117 = vmatprep.subr.mxu0 0.0
    %1118 = vmatpush1.msra.mxu0 0.0
    %1119 = vmatprep.mubr.f32.mxu0 0.0
    %1120 = vmatmul.mubr.f32.gmra.mrb[0].mxu0 %v1050
    %v1121 = vpop.f32.mrb[0].mxu0
    %v1122 = vadd.f32 0.0, %v1121
    %v1123 = vpop.f32.mrb[0].mxu0
    %1124 = vmatprep.mubr.f32.mxu0 0.0
    %1125 = vmatmul.mubr.f32.gmra.mrb[0].mxu0 %v1053
    %v1126 = vpop.f32.mrb[0].mxu0
    %v1127 = vadd.f32 0.0, %v1126
    %v1128 = vpop.f32.mrb[0].mxu0
    %1129 = vdwg.mxu0
    %v1131 = vsel %vm647, %v835, 0
    %v1134 = vsel %vm647, %v840, 0
    %1136 = vmatprep.subr.mxu0 0.0
    %1137 = vmatpush1.msra.mxu0 %v631
    %1138 = vmatprep.subr.mxu0 0.0
    %1139 = vmatpush1.msra.mxu0 %v632
    %1140 = vmatprep.subr.mxu0 0.0
    %1141 = vmatpush1.msra.mxu0 %v633
    %1142 = vmatprep.subr.mxu0 0.0
    %1143 = vmatpush1.msra.mxu0 %v634
    %1144 = vmatprep.subr.mxu0 0.0
    %1145 = vmatpush1.msra.mxu0 0.0
    %1146 = vmatprep.subr.mxu0 0.0
    %1147 = vmatpush1.msra.mxu0 0.0
    %1148 = vmatprep.subr.mxu0 0.0
    %1149 = vmatpush1.msra.mxu0 0.0
    %1150 = vmatprep.subr.mxu0 0.0
    %1151 = vmatpush1.msra.mxu0 0.0
    %1152 = vmatprep.subr.mxu0 0.0
    %1153 = vmatpush1.msra.mxu0 0.0
    %1154 = vmatprep.subr.mxu0 0.0
    %1155 = vmatpush1.msra.mxu0 0.0
    %1156 = vmatprep.subr.mxu0 0.0
    %1157 = vmatpush1.msra.mxu0 0.0
    %1158 = vmatprep.subr.mxu0 0.0
    %1159 = vmatpush1.msra.mxu0 0.0
    %1160 = vmatprep.subr.mxu0 0.0
    %1161 = vmatpush1.msra.mxu0 0.0
    %1162 = vmatprep.subr.mxu0 0.0
    %1163 = vmatpush1.msra.mxu0 0.0
    %1164 = vmatprep.subr.mxu0 0.0
    %1165 = vmatpush1.msra.mxu0 0.0
    %1166 = vmatprep.subr.mxu0 0.0
    %1167 = vmatpush1.msra.mxu0 0.0
    %1168 = vmatprep.subr.mxu0 0.0
    %1169 = vmatpush1.msra.mxu0 0.0
    %1170 = vmatprep.subr.mxu0 0.0
    %1171 = vmatpush1.msra.mxu0 0.0
    %1172 = vmatprep.subr.mxu0 0.0
    %1173 = vmatpush1.msra.mxu0 0.0
    %1174 = vmatprep.subr.mxu0 0.0
    %1175 = vmatpush1.msra.mxu0 0.0
    %1176 = vmatprep.subr.mxu0 0.0
    %1177 = vmatpush1.msra.mxu0 0.0
    %1178 = vmatprep.subr.mxu0 0.0
    %1179 = vmatpush1.msra.mxu0 0.0
    %1180 = vmatprep.subr.mxu0 0.0
    %1181 = vmatpush1.msra.mxu0 0.0
    %1182 = vmatprep.subr.mxu0 0.0
    %1183 = vmatpush1.msra.mxu0 0.0
    %1184 = vmatprep.subr.mxu0 0.0
    %1185 = vmatpush1.msra.mxu0 0.0
    %1186 = vmatprep.subr.mxu0 0.0
    %1187 = vmatpush1.msra.mxu0 0.0
    %1188 = vmatprep.subr.mxu0 0.0
    %1189 = vmatpush1.msra.mxu0 0.0
    %1190 = vmatprep.subr.mxu0 0.0
    %1191 = vmatpush1.msra.mxu0 0.0
    %1192 = vmatprep.subr.mxu0 0.0
    %1193 = vmatpush1.msra.mxu0 0.0
    %1194 = vmatprep.subr.mxu0 0.0
    %1195 = vmatpush1.msra.mxu0 0.0
    %1196 = vmatprep.subr.mxu0 0.0
    %1197 = vmatpush1.msra.mxu0 0.0
    %1198 = vmatprep.subr.mxu0 0.0
    %1199 = vmatpush1.msra.mxu0 0.0
    %1200 = vmatprep.mubr.f32.mxu0 0.0
    %1201 = vmatmul.mubr.f32.gmra.mrb[0].mxu0 %v1131
    %v1202 = vpop.f32.mrb[0].mxu0
    %v1203 = vadd.f32 %v1122, %v1202
    %v1204 = vpop.f32.mrb[0].mxu0
    %1205 = vmatprep.mubr.f32.mxu0 0.0
    %1206 = vmatmul.mubr.f32.gmra.mrb[0].mxu0 %v1134
    %v1207 = vpop.f32.mrb[0].mxu0
    %v1208 = vadd.f32 %v1127, %v1207
    %v1209 = vpop.f32.mrb[0].mxu0
    %1210 = vdwg.mxu0
    %1211 = vrot.lane.b32.xlu0 %v524, 64
    %v1212 = vpop.permute.xlu0 %1211
    %1213 = vrot.lane.b32.xlu0 %v530, 64
    %v1214 = vpop.permute.xlu0 %1213
    %1215 = vrot.lane.b32.xlu0 %v526, 64
    %v1216 = vpop.permute.xlu0 %1215
    %1217 = vrot.lane.b32.xlu0 %v532, 64
    %v1218 = vpop.permute.xlu0 %1217
    %v1219 = vsel %vm647, %v1212, 0
    %v1221 = vsel %vm647, %v1214, 0
    %v1223 = vsel %vm647, %v1216, 0
    %v1225 = vsel %vm647, %v1218, 0
    %1227 = vmatprep.subr.mxu0 0.0
    %1228 = vmatpush1.xpose.msra.mxu0 %v1223
    %1229 = vmatprep.subr.mxu0 0.0
    %1230 = vmatpush1.xpose.msra.mxu0 %v1225
    %1231 = vmatprep.subr.mxu0 0.0
    %1232 = vmatpush1.xpose.msra.mxu0 0.0
    %1233 = vmatprep.subr.mxu0 0.0
    %1234 = vmatpush1.xpose.msra.mxu0 0.0
    %1235 = vmatprep.subr.mxu0 0.0
    %1236 = vmatpush1.xpose.msra.mxu0 0.0
    %1237 = vmatprep.subr.mxu0 0.0
    %1238 = vmatpush1.xpose.msra.mxu0 0.0
    %1239 = vmatprep.subr.mxu0 0.0
    %1240 = vmatpush1.xpose.msra.mxu0 0.0
    %1241 = vmatprep.subr.mxu0 0.0
    %1242 = vmatpush1.xpose.msra.mxu0 0.0
    %1243 = vmatprep.subr.mxu0 0.0
    %1244 = vmatpush1.xpose.msra.mxu0 0.0
    %1245 = vmatprep.subr.mxu0 0.0
    %1246 = vmatpush1.xpose.msra.mxu0 0.0
    %1247 = vmatprep.subr.mxu0 0.0
    %1248 = vmatpush1.xpose.msra.mxu0 0.0
    %1249 = vmatprep.subr.mxu0 0.0
    %1250 = vmatpush1.xpose.msra.mxu0 0.0
    %1251 = vmatprep.subr.mxu0 0.0
    %1252 = vmatpush1.xpose.msra.mxu0 0.0
    %1253 = vmatprep.subr.mxu0 0.0
    %1254 = vmatpush1.xpose.msra.mxu0 0.0
    %1255 = vmatprep.subr.mxu0 0.0
    %1256 = vmatpush1.xpose.msra.mxu0 0.0
    %1257 = vmatprep.subr.mxu0 0.0
    %1258 = vmatpush1.xpose.msra.mxu0 0.0
    %1259 = vmatprep.subr.mxu0 0.0
    %1260 = vmatpush1.xpose.msra.mxu0 0.0
    %1261 = vmatprep.subr.mxu0 0.0
    %1262 = vmatpush1.xpose.msra.mxu0 0.0
    %1263 = vmatprep.subr.mxu0 0.0
    %1264 = vmatpush1.xpose.msra.mxu0 0.0
    %1265 = vmatprep.subr.mxu0 0.0
    %1266 = vmatpush1.xpose.msra.mxu0 0.0
    %1267 = vmatprep.subr.mxu0 0.0
    %1268 = vmatpush1.xpose.msra.mxu0 0.0
    %1269 = vmatprep.subr.mxu0 0.0
    %1270 = vmatpush1.xpose.msra.mxu0 0.0
    %1271 = vmatprep.subr.mxu0 0.0
    %1272 = vmatpush1.xpose.msra.mxu0 0.0
    %1273 = vmatprep.subr.mxu0 0.0
    %1274 = vmatpush1.xpose.msra.mxu0 0.0
    %1275 = vmatprep.subr.mxu0 0.0
    %1276 = vmatpush1.xpose.msra.mxu0 0.0
    %1277 = vmatprep.subr.mxu0 0.0
    %1278 = vmatpush1.xpose.msra.mxu0 0.0
    %1279 = vmatprep.subr.mxu0 0.0
    %1280 = vmatpush1.xpose.msra.mxu0 0.0
    %1281 = vmatprep.subr.mxu0 0.0
    %1282 = vmatpush1.xpose.msra.mxu0 0.0
    %1283 = vmatprep.subr.mxu0 0.0
    %1284 = vmatpush1.xpose.msra.mxu0 0.0
    %1285 = vmatprep.subr.mxu0 0.0
    %1286 = vmatpush1.xpose.msra.mxu0 0.0
    %1287 = vmatprep.subr.mxu0 0.0
    %1288 = vmatpush1.xpose.msra.mxu0 0.0
    %1289 = vmatprep.subr.mxu0 0.0
    %1290 = vmatpush1.xpose.msra.mxu0 0.0
    %1291 = vmatprep.mubr.f32.mxu0 0.0
    %1292 = vmatmul.mubr.f32.gmra.mrb[0].mxu0 %v1219
    %v1293 = vpop.f32.mrb[0].mxu0
    %v1294 = vadd.f32 0.0, %v1293
    %v1295 = vpop.f32.mrb[0].mxu0
    %1296 = vmatprep.mubr.f32.mxu0 0.0
    %1297 = vmatmul.mubr.f32.gmra.mrb[0].mxu0 %v1221
    %v1298 = vpop.f32.mrb[0].mxu0
    %v1299 = vadd.f32 0.0, %v1298
    %v1300 = vpop.f32.mrb[0].mxu0
    %1301 = vdwg.mxu0
    %v1302 = vmul.f32 %v1294, 0.17677669
    %v1303 = vmul.f32 %v1299, 0.17677669
    %v1304 = vsel %vm737, %v1302, -inf
    %1305 = vmax.xlane.f32.xlu0 %v1304
    %v1306 = vpop.xlane.xlu0 %1305
    %v1307 = vsel %vm737, %v1303, -inf
    %1308 = vmax.xlane.f32.xlu0 %v1307
    %v1309 = vpop.xlane.xlu0 %1308
    %v1310 = vsub.f32 %v1302, %v1306
    %v1311 = vsub.f32 %v1303, %v1309
    %v1312 = vmul.f32 %v1310, 1.442695
    %v1313 = vpow.pop %v1312
    %v1314 = vmul.f32 %v1311, 1.442695
    %v1315 = vpow.pop %v1314
    %v1316 = vsel %vm737, %v1313, 0.0
    %1317 = vadd.xlane.f32.xlu0 %v1316
    %v1318 = vpop.xlane.xlu0 %1317
    %v1319 = vsel %vm737, %v1315, 0.0
    %1320 = vadd.xlane.f32.xlu0 %v1319
    %v1321 = vpop.xlane.xlu0 %1320
    %v1322 = vrcp.pop %v1318
    %v1323 = vmul.f32 1.0, %v1322
    %v1324 = vrcp.pop %v1321
    %v1325 = vmul.f32 1.0, %v1324
    %v1326 = vmul.f32 %v1313, %v1323
    %v1327 = vmul.f32 %v1315, %v1325
    %1328 = vrot.lane.b32.xlu0 %v613, 64
    %v1329 = vpop.permute.xlu0 %1328
    %1330 = vrot.lane.b32.xlu0 %v618, 64
    %v1331 = vpop.permute.xlu0 %1330
    %v1335 = vsel %vm737, %v1326, 0
    %v1338 = vsel %vm737, %v1327, 0
    %1340 = vmatprep.subr.mxu0 0.0
    %1341 = vmatpush1.msra.mxu0 %v1329
    %1342 = vmatprep.subr.mxu0 0.0
    %1343 = vmatpush1.msra.mxu0 %v1331
    %1344 = vmatprep.subr.mxu0 0.0
    %1345 = vmatpush1.msra.mxu0 0.0
    %1346 = vmatprep.subr.mxu0 0.0
    %1347 = vmatpush1.msra.mxu0 0.0
    %1348 = vmatprep.subr.mxu0 0.0
    %1349 = vmatpush1.msra.mxu0 0.0
    %1350 = vmatprep.subr.mxu0 0.0
    %1351 = vmatpush1.msra.mxu0 0.0
    %1352 = vmatprep.subr.mxu0 0.0
    %1353 = vmatpush1.msra.mxu0 0.0
    %1354 = vmatprep.subr.mxu0 0.0
    %1355 = vmatpush1.msra.mxu0 0.0
    %1356 = vmatprep.subr.mxu0 0.0
    %1357 = vmatpush1.msra.mxu0 0.0
    %1358 = vmatprep.subr.mxu0 0.0
    %1359 = vmatpush1.msra.mxu0 0.0
    %1360 = vmatprep.subr.mxu0 0.0
    %1361 = vmatpush1.msra.mxu0 0.0
    %1362 = vmatprep.subr.mxu0 0.0
    %1363 = vmatpush1.msra.mxu0 0.0
    %1364 = vmatprep.subr.mxu0 0.0
    %1365 = vmatpush1.msra.mxu0 0.0
    %1366 = vmatprep.subr.mxu0 0.0
    %1367 = vmatpush1.msra.mxu0 0.0
    %1368 = vmatprep.subr.mxu0 0.0
    %1369 = vmatpush1.msra.mxu0 0.0
    %1370 = vmatprep.subr.mxu0 0.0
    %1371 = vmatpush1.msra.mxu0 0.0
    %1372 = vmatprep.subr.mxu0 0.0
    %1373 = vmatpush1.msra.mxu0 0.0
    %1374 = vmatprep.subr.mxu0 0.0
    %1375 = vmatpush1.msra.mxu0 0.0
    %1376 = vmatprep.subr.mxu0 0.0
    %1377 = vmatpush1.msra.mxu0 0.0
    %1378 = vmatprep.subr.mxu0 0.0
    %1379 = vmatpush1.msra.mxu0 0.0
    %1380 = vmatprep.subr.mxu0 0.0
    %1381 = vmatpush1.msra.mxu0 0.0
    %1382 = vmatprep.subr.mxu0 0.0
    %1383 = vmatpush1.msra.mxu0 0.0
    %1384 = vmatprep.subr.mxu0 0.0
    %1385 = vmatpush1.msra.mxu0 0.0
    %1386 = vmatprep.subr.mxu0 0.0
    %1387 = vmatpush1.msra.mxu0 0.0
    %1388 = vmatprep.subr.mxu0 0.0
    %1389 = vmatpush1.msra.mxu0 0.0
    %1390 = vmatprep.subr.mxu0 0.0
    %1391 = vmatpush1.msra.mxu0 0.0
    %1392 = vmatprep.subr.mxu0 0.0
    %1393 = vmatpush1.msra.mxu0 0.0
    %1394 = vmatprep.subr.mxu0 0.0
    %1395 = vmatpush1.msra.mxu0 0.0
    %1396 = vmatprep.subr.mxu0 0.0
    %1397 = vmatpush1.msra.mxu0 0.0
    %1398 = vmatprep.subr.mxu0 0.0
    %1399 = vmatpush1.msra.mxu0 0.0
    %1400 = vmatprep.subr.mxu0 0.0
    %1401 = vmatpush1.msra.mxu0 0.0
    %1402 = vmatprep.subr.mxu0 0.0
    %1403 = vmatpush1.msra.mxu0 0.0
    %1404 = vmatprep.mubr.f32.mxu0 0.0
    %1405 = vmatmul.mubr.f32.gmra.mrb[0].mxu0 %v1335
    %v1406 = vpop.f32.mrb[0].mxu0
    %v1407 = vadd.f32 0.0, %v1406
    %v1408 = vpop.f32.mrb[0].mxu0
    %1409 = vmatprep.mubr.f32.mxu0 0.0
    %1410 = vmatmul.mubr.f32.gmra.mrb[0].mxu0 %v1338
    %v1411 = vpop.f32.mrb[0].mxu0
    %v1412 = vadd.f32 0.0, %v1411
    %v1413 = vpop.f32.mrb[0].mxu0
    %1414 = vdwg.mxu0
    %v1416 = vsel %vm647, %v1407, 0
    %v1419 = vsel %vm647, %v1412, 0
    %1421 = vmatprep.subr.mxu0 0.0
    %1422 = vmatpush1.msra.mxu0 %v639
    %1423 = vmatprep.subr.mxu0 0.0
    %1424 = vmatpush1.msra.mxu0 %v640
    %1425 = vmatprep.subr.mxu0 0.0
    %1426 = vmatpush1.msra.mxu0 %v641
    %1427 = vmatprep.subr.mxu0 0.0
    %1428 = vmatpush1.msra.mxu0 %v642
    %1429 = vmatprep.subr.mxu0 0.0
    %1430 = vmatpush1.msra.mxu0 0.0
    %1431 = vmatprep.subr.mxu0 0.0
    %1432 = vmatpush1.msra.mxu0 0.0
    %1433 = vmatprep.subr.mxu0 0.0
    %1434 = vmatpush1.msra.mxu0 0.0
    %1435 = vmatprep.subr.mxu0 0.0
    %1436 = vmatpush1.msra.mxu0 0.0
    %1437 = vmatprep.subr.mxu0 0.0
    %1438 = vmatpush1.msra.mxu0 0.0
    %1439 = vmatprep.subr.mxu0 0.0
    %1440 = vmatpush1.msra.mxu0 0.0
    %1441 = vmatprep.subr.mxu0 0.0
    %1442 = vmatpush1.msra.mxu0 0.0
    %1443 = vmatprep.subr.mxu0 0.0
    %1444 = vmatpush1.msra.mxu0 0.0
    %1445 = vmatprep.subr.mxu0 0.0
    %1446 = vmatpush1.msra.mxu0 0.0
    %1447 = vmatprep.subr.mxu0 0.0
    %1448 = vmatpush1.msra.mxu0 0.0
    %1449 = vmatprep.subr.mxu0 0.0
    %1450 = vmatpush1.msra.mxu0 0.0
    %1451 = vmatprep.subr.mxu0 0.0
    %1452 = vmatpush1.msra.mxu0 0.0
    %1453 = vmatprep.subr.mxu0 0.0
    %1454 = vmatpush1.msra.mxu0 0.0
    %1455 = vmatprep.subr.mxu0 0.0
    %1456 = vmatpush1.msra.mxu0 0.0
    %1457 = vmatprep.subr.mxu0 0.0
    %1458 = vmatpush1.msra.mxu0 0.0
    %1459 = vmatprep.subr.mxu0 0.0
    %1460 = vmatpush1.msra.mxu0 0.0
    %1461 = vmatprep.subr.mxu0 0.0
    %1462 = vmatpush1.msra.mxu0 0.0
    %1463 = vmatprep.subr.mxu0 0.0
    %1464 = vmatpush1.msra.mxu0 0.0
    %1465 = vmatprep.subr.mxu0 0.0
    %1466 = vmatpush1.msra.mxu0 0.0
    %1467 = vmatprep.subr.mxu0 0.0
    %1468 = vmatpush1.msra.mxu0 0.0
    %1469 = vmatprep.subr.mxu0 0.0
    %1470 = vmatpush1.msra.mxu0 0.0
    %1471 = vmatprep.subr.mxu0 0.0
    %1472 = vmatpush1.msra.mxu0 0.0
    %1473 = vmatprep.subr.mxu0 0.0
    %1474 = vmatpush1.msra.mxu0 0.0
    %1475 = vmatprep.subr.mxu0 0.0
    %1476 = vmatpush1.msra.mxu0 0.0
    %1477 = vmatprep.subr.mxu0 0.0
    %1478 = vmatpush1.msra.mxu0 0.0
    %1479 = vmatprep.subr.mxu0 0.0
    %1480 = vmatpush1.msra.mxu0 0.0
    %1481 = vmatprep.subr.mxu0 0.0
    %1482 = vmatpush1.msra.mxu0 0.0
    %1483 = vmatprep.subr.mxu0 0.0
    %1484 = vmatpush1.msra.mxu0 0.0
    %1485 = vmatprep.mubr.f32.mxu0 0.0
    %1486 = vmatmul.mubr.f32.gmra.mrb[0].mxu0 %v1416
    %v1487 = vpop.f32.mrb[0].mxu0
    %v1488 = vadd.f32 0.0, %v1487
    %v1489 = vpop.f32.mrb[0].mxu0
    %1490 = vmatprep.mubr.f32.mxu0 0.0
    %1491 = vmatmul.mubr.f32.gmra.mrb[0].mxu0 %v1419
    %v1492 = vpop.f32.mrb[0].mxu0
    %v1493 = vadd.f32 0.0, %v1492
    %v1494 = vpop.f32.mrb[0].mxu0
    %1495 = vdwg.mxu0
    %v1496 = vadd.f32 %v1203, %v1488
    %v1497 = vadd.f32 %v1208, %v1493
    %1498 = vrot.lane.b32.xlu0 %v524, 32
    %v1499 = vpop.permute.xlu0 %1498
    %1500 = vrot.lane.b32.xlu0 %v530, 32
    %v1501 = vpop.permute.xlu0 %1500
    %1502 = vrot.lane.b32.xlu0 %v526, 32
    %v1503 = vpop.permute.xlu0 %1502
    %1504 = vrot.lane.b32.xlu0 %v532, 32
    %v1505 = vpop.permute.xlu0 %1504
    %v1506 = vsel %vm647, %v1499, 0
    %v1508 = vsel %vm647, %v1501, 0
    %v1510 = vsel %vm647, %v1503, 0
    %v1512 = vsel %vm647, %v1505, 0
    %1514 = vmatprep.subr.mxu0 0.0
    %1515 = vmatpush1.xpose.msra.mxu0 %v1510
    %1516 = vmatprep.subr.mxu0 0.0
    %1517 = vmatpush1.xpose.msra.mxu0 %v1512
    %1518 = vmatprep.subr.mxu0 0.0
    %1519 = vmatpush1.xpose.msra.mxu0 0.0
    %1520 = vmatprep.subr.mxu0 0.0
    %1521 = vmatpush1.xpose.msra.mxu0 0.0
    %1522 = vmatprep.subr.mxu0 0.0
    %1523 = vmatpush1.xpose.msra.mxu0 0.0
    %1524 = vmatprep.subr.mxu0 0.0
    %1525 = vmatpush1.xpose.msra.mxu0 0.0
    %1526 = vmatprep.subr.mxu0 0.0
    %1527 = vmatpush1.xpose.msra.mxu0 0.0
    %1528 = vmatprep.subr.mxu0 0.0
    %1529 = vmatpush1.xpose.msra.mxu0 0.0
    %1530 = vmatprep.subr.mxu0 0.0
    %1531 = vmatpush1.xpose.msra.mxu0 0.0
    %1532 = vmatprep.subr.mxu0 0.0
    %1533 = vmatpush1.xpose.msra.mxu0 0.0
    %1534 = vmatprep.subr.mxu0 0.0
    %1535 = vmatpush1.xpose.msra.mxu0 0.0
    %1536 = vmatprep.subr.mxu0 0.0
    %1537 = vmatpush1.xpose.msra.mxu0 0.0
    %1538 = vmatprep.subr.mxu0 0.0
    %1539 = vmatpush1.xpose.msra.mxu0 0.0
    %1540 = vmatprep.subr.mxu0 0.0
    %1541 = vmatpush1.xpose.msra.mxu0 0.0
    %1542 = vmatprep.subr.mxu0 0.0
    %1543 = vmatpush1.xpose.msra.mxu0 0.0
    %1544 = vmatprep.subr.mxu0 0.0
    %1545 = vmatpush1.xpose.msra.mxu0 0.0
    %1546 = vmatprep.subr.mxu0 0.0
    %1547 = vmatpush1.xpose.msra.mxu0 0.0
    %1548 = vmatprep.subr.mxu0 0.0
    %1549 = vmatpush1.xpose.msra.mxu0 0.0
    %1550 = vmatprep.subr.mxu0 0.0
    %1551 = vmatpush1.xpose.msra.mxu0 0.0
    %1552 = vmatprep.subr.mxu0 0.0
    %1553 = vmatpush1.xpose.msra.mxu0 0.0
    %1554 = vmatprep.subr.mxu0 0.0
    %1555 = vmatpush1.xpose.msra.mxu0 0.0
    %1556 = vmatprep.subr.mxu0 0.0
    %1557 = vmatpush1.xpose.msra.mxu0 0.0
    %1558 = vmatprep.subr.mxu0 0.0
    %1559 = vmatpush1.xpose.msra.mxu0 0.0
    %1560 = vmatprep.subr.mxu0 0.0
    %1561 = vmatpush1.xpose.msra.mxu0 0.0
    %1562 = vmatprep.subr.mxu0 0.0
    %1563 = vmatpush1.xpose.msra.mxu0 0.0
    %1564 = vmatprep.subr.mxu0 0.0
    %1565 = vmatpush1.xpose.msra.mxu0 0.0
    %1566 = vmatprep.subr.mxu0 0.0
    %1567 = vmatpush1.xpose.msra.mxu0 0.0
    %1568 = vmatprep.subr.mxu0 0.0
    %1569 = vmatpush1.xpose.msra.mxu0 0.0
    %1570 = vmatprep.subr.mxu0 0.0
    %1571 = vmatpush1.xpose.msra.mxu0 0.0
    %1572 = vmatprep.subr.mxu0 0.0
    %1573 = vmatpush1.xpose.msra.mxu0 0.0
    %1574 = vmatprep.subr.mxu0 0.0
    %1575 = vmatpush1.xpose.msra.mxu0 0.0
    %1576 = vmatprep.subr.mxu0 0.0
    %1577 = vmatpush1.xpose.msra.mxu0 0.0
    %1578 = vmatprep.mubr.f32.mxu0 0.0
    %1579 = vmatmul.mubr.f32.gmra.mrb[0].mxu0 %v1506
    %v1580 = vpop.f32.mrb[0].mxu0
    %v1581 = vadd.f32 0.0, %v1580
    %v1582 = vpop.f32.mrb[0].mxu0
    %1583 = vmatprep.mubr.f32.mxu0 0.0
    %1584 = vmatmul.mubr.f32.gmra.mrb[0].mxu0 %v1508
    %v1585 = vpop.f32.mrb[0].mxu0
    %v1586 = vadd.f32 0.0, %v1585
    %v1587 = vpop.f32.mrb[0].mxu0
    %1588 = vdwg.mxu0
    %v1589 = vmul.f32 %v1581, 0.17677669
    %v1590 = vmul.f32 %v1586, 0.17677669
    %v1591 = vsel %vm737, %v1589, -inf
    %1592 = vmax.xlane.f32.xlu0 %v1591
    %v1593 = vpop.xlane.xlu0 %1592
    %v1594 = vsel %vm737, %v1590, -inf
    %1595 = vmax.xlane.f32.xlu0 %v1594
    %v1596 = vpop.xlane.xlu0 %1595
    %v1597 = vsub.f32 %v1589, %v1593
    %v1598 = vsub.f32 %v1590, %v1596
    %v1599 = vmul.f32 %v1597, 1.442695
    %v1600 = vpow.pop %v1599
    %v1601 = vmul.f32 %v1598, 1.442695
    %v1602 = vpow.pop %v1601
    %v1603 = vsel %vm737, %v1600, 0.0
    %1604 = vadd.xlane.f32.xlu0 %v1603
    %v1605 = vpop.xlane.xlu0 %1604
    %v1606 = vsel %vm737, %v1602, 0.0
    %1607 = vadd.xlane.f32.xlu0 %v1606
    %v1608 = vpop.xlane.xlu0 %1607
    %v1609 = vrcp.pop %v1605
    %v1610 = vmul.f32 1.0, %v1609
    %v1611 = vrcp.pop %v1608
    %v1612 = vmul.f32 1.0, %v1611
    %v1613 = vmul.f32 %v1600, %v1610
    %v1614 = vmul.f32 %v1602, %v1612
    %1615 = vrot.lane.b32.xlu0 %v613, 32
    %v1616 = vpop.permute.xlu0 %1615
    %1617 = vrot.lane.b32.xlu0 %v618, 32
    %v1618 = vpop.permute.xlu0 %1617
    %v1622 = vsel %vm737, %v1613, 0
    %v1625 = vsel %vm737, %v1614, 0
    %1627 = vmatprep.subr.mxu0 0.0
    %1628 = vmatpush1.msra.mxu0 %v1616
    %1629 = vmatprep.subr.mxu0 0.0
    %1630 = vmatpush1.msra.mxu0 %v1618
    %1631 = vmatprep.subr.mxu0 0.0
    %1632 = vmatpush1.msra.mxu0 0.0
    %1633 = vmatprep.subr.mxu0 0.0
    %1634 = vmatpush1.msra.mxu0 0.0
    %1635 = vmatprep.subr.mxu0 0.0
    %1636 = vmatpush1.msra.mxu0 0.0
    %1637 = vmatprep.subr.mxu0 0.0
    %1638 = vmatpush1.msra.mxu0 0.0
    %1639 = vmatprep.subr.mxu0 0.0
    %1640 = vmatpush1.msra.mxu0 0.0
    %1641 = vmatprep.subr.mxu0 0.0
    %1642 = vmatpush1.msra.mxu0 0.0
    %1643 = vmatprep.subr.mxu0 0.0
    %1644 = vmatpush1.msra.mxu0 0.0
    %1645 = vmatprep.subr.mxu0 0.0
    %1646 = vmatpush1.msra.mxu0 0.0
    %1647 = vmatprep.subr.mxu0 0.0
    %1648 = vmatpush1.msra.mxu0 0.0
    %1649 = vmatprep.subr.mxu0 0.0
    %1650 = vmatpush1.msra.mxu0 0.0
    %1651 = vmatprep.subr.mxu0 0.0
    %1652 = vmatpush1.msra.mxu0 0.0
    %1653 = vmatprep.subr.mxu0 0.0
    %1654 = vmatpush1.msra.mxu0 0.0
    %1655 = vmatprep.subr.mxu0 0.0
    %1656 = vmatpush1.msra.mxu0 0.0
    %1657 = vmatprep.subr.mxu0 0.0
    %1658 = vmatpush1.msra.mxu0 0.0
    %1659 = vmatprep.subr.mxu0 0.0
    %1660 = vmatpush1.msra.mxu0 0.0
    %1661 = vmatprep.subr.mxu0 0.0
    %1662 = vmatpush1.msra.mxu0 0.0
    %1663 = vmatprep.subr.mxu0 0.0
    %1664 = vmatpush1.msra.mxu0 0.0
    %1665 = vmatprep.subr.mxu0 0.0
    %1666 = vmatpush1.msra.mxu0 0.0
    %1667 = vmatprep.subr.mxu0 0.0
    %1668 = vmatpush1.msra.mxu0 0.0
    %1669 = vmatprep.subr.mxu0 0.0
    %1670 = vmatpush1.msra.mxu0 0.0
    %1671 = vmatprep.subr.mxu0 0.0
    %1672 = vmatpush1.msra.mxu0 0.0
    %1673 = vmatprep.subr.mxu0 0.0
    %1674 = vmatpush1.msra.mxu0 0.0
    %1675 = vmatprep.subr.mxu0 0.0
    %1676 = vmatpush1.msra.mxu0 0.0
    %1677 = vmatprep.subr.mxu0 0.0
    %1678 = vmatpush1.msra.mxu0 0.0
    %1679 = vmatprep.subr.mxu0 0.0
    %1680 = vmatpush1.msra.mxu0 0.0
    %1681 = vmatprep.subr.mxu0 0.0
    %1682 = vmatpush1.msra.mxu0 0.0
    %1683 = vmatprep.subr.mxu0 0.0
    %1684 = vmatpush1.msra.mxu0 0.0
    %1685 = vmatprep.subr.mxu0 0.0
    %1686 = vmatpush1.msra.mxu0 0.0
    %1687 = vmatprep.subr.mxu0 0.0
    %1688 = vmatpush1.msra.mxu0 0.0
    %1689 = vmatprep.subr.mxu0 0.0
    %1690 = vmatpush1.msra.mxu0 0.0
    %1691 = vmatprep.mubr.f32.mxu0 0.0
    %1692 = vmatmul.mubr.f32.gmra.mrb[0].mxu0 %v1622
    %v1693 = vpop.f32.mrb[0].mxu0
    %v1694 = vadd.f32 0.0, %v1693
    %v1695 = vpop.f32.mrb[0].mxu0
    %1696 = vmatprep.mubr.f32.mxu0 0.0
    %1697 = vmatmul.mubr.f32.gmra.mrb[0].mxu0 %v1625
    %v1698 = vpop.f32.mrb[0].mxu0
    %v1699 = vadd.f32 0.0, %v1698
    %v1700 = vpop.f32.mrb[0].mxu0
    %1701 = vdwg.mxu0
    %v1703 = vsel %vm647, %v1694, 0
    %v1706 = vsel %vm647, %v1699, 0
    %1708 = vmatprep.subr.mxu0 0.0
    %1709 = vmatpush1.msra.mxu0 %v643
    %1710 = vmatprep.subr.mxu0 0.0
    %1711 = vmatpush1.msra.mxu0 %v644
    %1712 = vmatprep.subr.mxu0 0.0
    %1713 = vmatpush1.msra.mxu0 %v645
    %1714 = vmatprep.subr.mxu0 0.0
    %1715 = vmatpush1.msra.mxu0 %v646
    %1716 = vmatprep.subr.mxu0 0.0
    %1717 = vmatpush1.msra.mxu0 0.0
    %1718 = vmatprep.subr.mxu0 0.0
    %1719 = vmatpush1.msra.mxu0 0.0
    %1720 = vmatprep.subr.mxu0 0.0
    %1721 = vmatpush1.msra.mxu0 0.0
    %1722 = vmatprep.subr.mxu0 0.0
    %1723 = vmatpush1.msra.mxu0 0.0
    %1724 = vmatprep.subr.mxu0 0.0
    %1725 = vmatpush1.msra.mxu0 0.0
    %1726 = vmatprep.subr.mxu0 0.0
    %1727 = vmatpush1.msra.mxu0 0.0
    %1728 = vmatprep.subr.mxu0 0.0
    %1729 = vmatpush1.msra.mxu0 0.0
    %1730 = vmatprep.subr.mxu0 0.0
    %1731 = vmatpush1.msra.mxu0 0.0
    %1732 = vmatprep.subr.mxu0 0.0
    %1733 = vmatpush1.msra.mxu0 0.0
    %1734 = vmatprep.subr.mxu0 0.0
    %1735 = vmatpush1.msra.mxu0 0.0
    %1736 = vmatprep.subr.mxu0 0.0
    %1737 = vmatpush1.msra.mxu0 0.0
    %1738 = vmatprep.subr.mxu0 0.0
    %1739 = vmatpush1.msra.mxu0 0.0
    %1740 = vmatprep.subr.mxu0 0.0
    %1741 = vmatpush1.msra.mxu0 0.0
    %1742 = vmatprep.subr.mxu0 0.0
    %1743 = vmatpush1.msra.mxu0 0.0
    %1744 = vmatprep.subr.mxu0 0.0
    %1745 = vmatpush1.msra.mxu0 0.0
    %1746 = vmatprep.subr.mxu0 0.0
    %1747 = vmatpush1.msra.mxu0 0.0
    %1748 = vmatprep.subr.mxu0 0.0
    %1749 = vmatpush1.msra.mxu0 0.0
    %1750 = vmatprep.subr.mxu0 0.0
    %1751 = vmatpush1.msra.mxu0 0.0
    %1752 = vmatprep.subr.mxu0 0.0
    %1753 = vmatpush1.msra.mxu0 0.0
    %1754 = vmatprep.subr.mxu0 0.0
    %1755 = vmatpush1.msra.mxu0 0.0
    %1756 = vmatprep.subr.mxu0 0.0
    %1757 = vmatpush1.msra.mxu0 0.0
    %1758 = vmatprep.subr.mxu0 0.0
    %1759 = vmatpush1.msra.mxu0 0.0
    %1760 = vmatprep.subr.mxu0 0.0
    %1761 = vmatpush1.msra.mxu0 0.0
    %1762 = vmatprep.subr.mxu0 0.0
    %1763 = vmatpush1.msra.mxu0 0.0
    %1764 = vmatprep.subr.mxu0 0.0
    %1765 = vmatpush1.msra.mxu0 0.0
    %1766 = vmatprep.subr.mxu0 0.0
    %1767 = vmatpush1.msra.mxu0 0.0
    %1768 = vmatprep.subr.mxu0 0.0
    %1769 = vmatpush1.msra.mxu0 0.0
    %1770 = vmatprep.subr.mxu0 0.0
    %1771 = vmatpush1.msra.mxu0 0.0
    %1772 = vmatprep.mubr.f32.mxu0 0.0
    %1773 = vmatmul.mubr.f32.gmra.mrb[0].mxu0 %v1703
    %v1774 = vpop.f32.mrb[0].mxu0
    %v1775 = vadd.f32 0.0, %v1774
    %v1776 = vpop.f32.mrb[0].mxu0
    %1777 = vmatprep.mubr.f32.mxu0 0.0
    %1778 = vmatmul.mubr.f32.gmra.mrb[0].mxu0 %v1706
    %v1779 = vpop.f32.mrb[0].mxu0
    %v1780 = vadd.f32 0.0, %v1779
    %v1781 = vpop.f32.mrb[0].mxu0
    %1782 = vdwg.mxu0
    %v1783 = vadd.f32 %v1496, %v1775
    %v1784 = vadd.f32 %v1497, %v1780
    %v1786 = vsel %vm647, %v536, 0
    %v1789 = vsel %vm647, %v542, 0
    %v1792 = vsel %vm647, %v538, 0
    %v1795 = vsel %vm647, %v544, 0
    %1797 = vmatprep.subr.mxu0 0.0
    %1798 = vmatpush1.xpose.msra.mxu0 %v1792
    %1799 = vmatprep.subr.mxu0 0.0
    %1800 = vmatpush1.xpose.msra.mxu0 %v1795
    %1801 = vmatprep.subr.mxu0 0.0
    %1802 = vmatpush1.xpose.msra.mxu0 0.0
    %1803 = vmatprep.subr.mxu0 0.0
    %1804 = vmatpush1.xpose.msra.mxu0 0.0
    %1805 = vmatprep.subr.mxu0 0.0
    %1806 = vmatpush1.xpose.msra.mxu0 0.0
    %1807 = vmatprep.subr.mxu0 0.0
    %1808 = vmatpush1.xpose.msra.mxu0 0.0
    %1809 = vmatprep.subr.mxu0 0.0
    %1810 = vmatpush1.xpose.msra.mxu0 0.0
    %1811 = vmatprep.subr.mxu0 0.0
    %1812 = vmatpush1.xpose.msra.mxu0 0.0
    %1813 = vmatprep.subr.mxu0 0.0
    %1814 = vmatpush1.xpose.msra.mxu0 0.0
    %1815 = vmatprep.subr.mxu0 0.0
    %1816 = vmatpush1.xpose.msra.mxu0 0.0
    %1817 = vmatprep.subr.mxu0 0.0
    %1818 = vmatpush1.xpose.msra.mxu0 0.0
    %1819 = vmatprep.subr.mxu0 0.0
    %1820 = vmatpush1.xpose.msra.mxu0 0.0
    %1821 = vmatprep.subr.mxu0 0.0
    %1822 = vmatpush1.xpose.msra.mxu0 0.0
    %1823 = vmatprep.subr.mxu0 0.0
    %1824 = vmatpush1.xpose.msra.mxu0 0.0
    %1825 = vmatprep.subr.mxu0 0.0
    %1826 = vmatpush1.xpose.msra.mxu0 0.0
    %1827 = vmatprep.subr.mxu0 0.0
    %1828 = vmatpush1.xpose.msra.mxu0 0.0
    %1829 = vmatprep.subr.mxu0 0.0
    %1830 = vmatpush1.xpose.msra.mxu0 0.0
    %1831 = vmatprep.subr.mxu0 0.0
    %1832 = vmatpush1.xpose.msra.mxu0 0.0
    %1833 = vmatprep.subr.mxu0 0.0
    %1834 = vmatpush1.xpose.msra.mxu0 0.0
    %1835 = vmatprep.subr.mxu0 0.0
    %1836 = vmatpush1.xpose.msra.mxu0 0.0
    %1837 = vmatprep.subr.mxu0 0.0
    %1838 = vmatpush1.xpose.msra.mxu0 0.0
    %1839 = vmatprep.subr.mxu0 0.0
    %1840 = vmatpush1.xpose.msra.mxu0 0.0
    %1841 = vmatprep.subr.mxu0 0.0
    %1842 = vmatpush1.xpose.msra.mxu0 0.0
    %1843 = vmatprep.subr.mxu0 0.0
    %1844 = vmatpush1.xpose.msra.mxu0 0.0
    %1845 = vmatprep.subr.mxu0 0.0
    %1846 = vmatpush1.xpose.msra.mxu0 0.0
    %1847 = vmatprep.subr.mxu0 0.0
    %1848 = vmatpush1.xpose.msra.mxu0 0.0
    %1849 = vmatprep.subr.mxu0 0.0
    %1850 = vmatpush1.xpose.msra.mxu0 0.0
    %1851 = vmatprep.subr.mxu0 0.0
    %1852 = vmatpush1.xpose.msra.mxu0 0.0
    %1853 = vmatprep.subr.mxu0 0.0
    %1854 = vmatpush1.xpose.msra.mxu0 0.0
    %1855 = vmatprep.subr.mxu0 0.0
    %1856 = vmatpush1.xpose.msra.mxu0 0.0
    %1857 = vmatprep.subr.mxu0 0.0
    %1858 = vmatpush1.xpose.msra.mxu0 0.0
    %1859 = vmatprep.subr.mxu0 0.0
    %1860 = vmatpush1.xpose.msra.mxu0 0.0
    %1861 = vmatprep.mubr.f32.mxu0 0.0
    %1862 = vmatmul.mubr.f32.gmra.mrb[0].mxu0 %v1786
    %v1863 = vpop.f32.mrb[0].mxu0
    %v1864 = vadd.f32 0.0, %v1863
    %v1865 = vpop.f32.mrb[0].mxu0
    %1866 = vmatprep.mubr.f32.mxu0 0.0
    %1867 = vmatmul.mubr.f32.gmra.mrb[0].mxu0 %v1789
    %v1868 = vpop.f32.mrb[0].mxu0
    %v1869 = vadd.f32 0.0, %v1868
    %v1870 = vpop.f32.mrb[0].mxu0
    %1871 = vdwg.mxu0
    %v1872 = vmul.f32 %v1864, 0.17677669
    %v1873 = vmul.f32 %v1869, 0.17677669
    %v1874 = vsel %vm737, %v1872, -inf
    %1875 = vmax.xlane.f32.xlu0 %v1874
    %v1876 = vpop.xlane.xlu0 %1875
    %v1877 = vsel %vm737, %v1873, -inf
    %1878 = vmax.xlane.f32.xlu0 %v1877
    %v1879 = vpop.xlane.xlu0 %1878
    %v1880 = vsub.f32 %v1872, %v1876
    %v1881 = vsub.f32 %v1873, %v1879
    %v1882 = vmul.f32 %v1880, 1.442695
    %v1883 = vpow.pop %v1882
    %v1884 = vmul.f32 %v1881, 1.442695
    %v1885 = vpow.pop %v1884
    %v1886 = vsel %vm737, %v1883, 0.0
    %1887 = vadd.xlane.f32.xlu0 %v1886
    %v1888 = vpop.xlane.xlu0 %1887
    %v1889 = vsel %vm737, %v1885, 0.0
    %1890 = vadd.xlane.f32.xlu0 %v1889
    %v1891 = vpop.xlane.xlu0 %1890
    %v1892 = vrcp.pop %v1888
    %v1893 = vmul.f32 1.0, %v1892
    %v1894 = vrcp.pop %v1891
    %v1895 = vmul.f32 1.0, %v1894
    %v1896 = vmul.f32 %v1883, %v1893
    %v1897 = vmul.f32 %v1885, %v1895
    %v1899 = vsel %vm737, %v1896, 0
    %v1902 = vsel %vm737, %v1897, 0
    %1904 = vmatprep.subr.mxu0 0.0
    %1905 = vmatpush1.msra.mxu0 %v623
    %1906 = vmatprep.subr.mxu0 0.0
    %1907 = vmatpush1.msra.mxu0 %v628
    %1908 = vmatprep.subr.mxu0 0.0
    %1909 = vmatpush1.msra.mxu0 0.0
    %1910 = vmatprep.subr.mxu0 0.0
    %1911 = vmatpush1.msra.mxu0 0.0
    %1912 = vmatprep.subr.mxu0 0.0
    %1913 = vmatpush1.msra.mxu0 0.0
    %1914 = vmatprep.subr.mxu0 0.0
    %1915 = vmatpush1.msra.mxu0 0.0
    %1916 = vmatprep.subr.mxu0 0.0
    %1917 = vmatpush1.msra.mxu0 0.0
    %1918 = vmatprep.subr.mxu0 0.0
    %1919 = vmatpush1.msra.mxu0 0.0
    %1920 = vmatprep.subr.mxu0 0.0
    %1921 = vmatpush1.msra.mxu0 0.0
    %1922 = vmatprep.subr.mxu0 0.0
    %1923 = vmatpush1.msra.mxu0 0.0
    %1924 = vmatprep.subr.mxu0 0.0
    %1925 = vmatpush1.msra.mxu0 0.0
    %1926 = vmatprep.subr.mxu0 0.0
    %1927 = vmatpush1.msra.mxu0 0.0
    %1928 = vmatprep.subr.mxu0 0.0
    %1929 = vmatpush1.msra.mxu0 0.0
    %1930 = vmatprep.subr.mxu0 0.0
    %1931 = vmatpush1.msra.mxu0 0.0
    %1932 = vmatprep.subr.mxu0 0.0
    %1933 = vmatpush1.msra.mxu0 0.0
    %1934 = vmatprep.subr.mxu0 0.0
    %1935 = vmatpush1.msra.mxu0 0.0
    %1936 = vmatprep.subr.mxu0 0.0
    %1937 = vmatpush1.msra.mxu0 0.0
    %1938 = vmatprep.subr.mxu0 0.0
    %1939 = vmatpush1.msra.mxu0 0.0
    %1940 = vmatprep.subr.mxu0 0.0
    %1941 = vmatpush1.msra.mxu0 0.0
    %1942 = vmatprep.subr.mxu0 0.0
    %1943 = vmatpush1.msra.mxu0 0.0
    %1944 = vmatprep.subr.mxu0 0.0
    %1945 = vmatpush1.msra.mxu0 0.0
    %1946 = vmatprep.subr.mxu0 0.0
    %1947 = vmatpush1.msra.mxu0 0.0
    %1948 = vmatprep.subr.mxu0 0.0
    %1949 = vmatpush1.msra.mxu0 0.0
    %1950 = vmatprep.subr.mxu0 0.0
    %1951 = vmatpush1.msra.mxu0 0.0
    %1952 = vmatprep.subr.mxu0 0.0
    %1953 = vmatpush1.msra.mxu0 0.0
    %1954 = vmatprep.subr.mxu0 0.0
    %1955 = vmatpush1.msra.mxu0 0.0
    %1956 = vmatprep.subr.mxu0 0.0
    %1957 = vmatpush1.msra.mxu0 0.0
    %1958 = vmatprep.subr.mxu0 0.0
    %1959 = vmatpush1.msra.mxu0 0.0
    %1960 = vmatprep.subr.mxu0 0.0
    %1961 = vmatpush1.msra.mxu0 0.0
    %1962 = vmatprep.subr.mxu0 0.0
    %1963 = vmatpush1.msra.mxu0 0.0
    %1964 = vmatprep.subr.mxu0 0.0
    %1965 = vmatpush1.msra.mxu0 0.0
    %1966 = vmatprep.subr.mxu0 0.0
    %1967 = vmatpush1.msra.mxu0 0.0
    %1968 = vmatprep.mubr.f32.mxu0 0.0
    %1969 = vmatmul.mubr.f32.gmra.mrb[0].mxu0 %v1899
    %v1970 = vpop.f32.mrb[0].mxu0
    %v1971 = vadd.f32 0.0, %v1970
    %v1972 = vpop.f32.mrb[0].mxu0
    %1973 = vmatprep.mubr.f32.mxu0 0.0
    %1974 = vmatmul.mubr.f32.gmra.mrb[0].mxu0 %v1902
    %v1975 = vpop.f32.mrb[0].mxu0
    %v1976 = vadd.f32 0.0, %v1975
    %v1977 = vpop.f32.mrb[0].mxu0
    %1978 = vdwg.mxu0
    %1979 = vrot.lane.b32.xlu0 %v536, 96
    %v1980 = vpop.permute.xlu0 %1979
    %1981 = vrot.lane.b32.xlu0 %v542, 96
    %v1982 = vpop.permute.xlu0 %1981
    %1983 = vrot.lane.b32.xlu0 %v538, 96
    %v1984 = vpop.permute.xlu0 %1983
    %1985 = vrot.lane.b32.xlu0 %v544, 96
    %v1986 = vpop.permute.xlu0 %1985
    %v1987 = vsel %vm647, %v1980, 0
    %v1989 = vsel %vm647, %v1982, 0
    %v1991 = vsel %vm647, %v1984, 0
    %v1993 = vsel %vm647, %v1986, 0
    %1995 = vmatprep.subr.mxu0 0.0
    %1996 = vmatpush1.xpose.msra.mxu0 %v1991
    %1997 = vmatprep.subr.mxu0 0.0
    %1998 = vmatpush1.xpose.msra.mxu0 %v1993
    %1999 = vmatprep.subr.mxu0 0.0
    %2000 = vmatpush1.xpose.msra.mxu0 0.0
    %2001 = vmatprep.subr.mxu0 0.0
    %2002 = vmatpush1.xpose.msra.mxu0 0.0
    %2003 = vmatprep.subr.mxu0 0.0
    %2004 = vmatpush1.xpose.msra.mxu0 0.0
    %2005 = vmatprep.subr.mxu0 0.0
    %2006 = vmatpush1.xpose.msra.mxu0 0.0
    %2007 = vmatprep.subr.mxu0 0.0
    %2008 = vmatpush1.xpose.msra.mxu0 0.0
    %2009 = vmatprep.subr.mxu0 0.0
    %2010 = vmatpush1.xpose.msra.mxu0 0.0
    %2011 = vmatprep.subr.mxu0 0.0
    %2012 = vmatpush1.xpose.msra.mxu0 0.0
    %2013 = vmatprep.subr.mxu0 0.0
    %2014 = vmatpush1.xpose.msra.mxu0 0.0
    %2015 = vmatprep.subr.mxu0 0.0
    %2016 = vmatpush1.xpose.msra.mxu0 0.0
    %2017 = vmatprep.subr.mxu0 0.0
    %2018 = vmatpush1.xpose.msra.mxu0 0.0
    %2019 = vmatprep.subr.mxu0 0.0
    %2020 = vmatpush1.xpose.msra.mxu0 0.0
    %2021 = vmatprep.subr.mxu0 0.0
    %2022 = vmatpush1.xpose.msra.mxu0 0.0
    %2023 = vmatprep.subr.mxu0 0.0
    %2024 = vmatpush1.xpose.msra.mxu0 0.0
    %2025 = vmatprep.subr.mxu0 0.0
    %2026 = vmatpush1.xpose.msra.mxu0 0.0
    %2027 = vmatprep.subr.mxu0 0.0
    %2028 = vmatpush1.xpose.msra.mxu0 0.0
    %2029 = vmatprep.subr.mxu0 0.0
    %2030 = vmatpush1.xpose.msra.mxu0 0.0
    %2031 = vmatprep.subr.mxu0 0.0
    %2032 = vmatpush1.xpose.msra.mxu0 0.0
    %2033 = vmatprep.subr.mxu0 0.0
    %2034 = vmatpush1.xpose.msra.mxu0 0.0
    %2035 = vmatprep.subr.mxu0 0.0
    %2036 = vmatpush1.xpose.msra.mxu0 0.0
    %2037 = vmatprep.subr.mxu0 0.0
    %2038 = vmatpush1.xpose.msra.mxu0 0.0
    %2039 = vmatprep.subr.mxu0 0.0
    %2040 = vmatpush1.xpose.msra.mxu0 0.0
    %2041 = vmatprep.subr.mxu0 0.0
    %2042 = vmatpush1.xpose.msra.mxu0 0.0
    %2043 = vmatprep.subr.mxu0 0.0
    %2044 = vmatpush1.xpose.msra.mxu0 0.0
    %2045 = vmatprep.subr.mxu0 0.0
    %2046 = vmatpush1.xpose.msra.mxu0 0.0
    %2047 = vmatprep.subr.mxu0 0.0
    %2048 = vmatpush1.xpose.msra.mxu0 0.0
    %2049 = vmatprep.subr.mxu0 0.0
    %2050 = vmatpush1.xpose.msra.mxu0 0.0
    %2051 = vmatprep.subr.mxu0 0.0
    %2052 = vmatpush1.xpose.msra.mxu0 0.0
    %2053 = vmatprep.subr.mxu0 0.0
    %2054 = vmatpush1.xpose.msra.mxu0 0.0
    %2055 = vmatprep.subr.mxu0 0.0
    %2056 = vmatpush1.xpose.msra.mxu0 0.0
    %2057 = vmatprep.subr.mxu0 0.0
    %2058 = vmatpush1.xpose.msra.mxu0 0.0
    %2059 = vmatprep.mubr.f32.mxu0 0.0
    %2060 = vmatmul.mubr.f32.gmra.mrb[0].mxu0 %v1987
    %v2061 = vpop.f32.mrb[0].mxu0
    %v2062 = vadd.f32 0.0, %v2061
    %v2063 = vpop.f32.mrb[0].mxu0
    %2064 = vmatprep.mubr.f32.mxu0 0.0
    %2065 = vmatmul.mubr.f32.gmra.mrb[0].mxu0 %v1989
    %v2066 = vpop.f32.mrb[0].mxu0
    %v2067 = vadd.f32 0.0, %v2066
    %v2068 = vpop.f32.mrb[0].mxu0
    %2069 = vdwg.mxu0
    %v2070 = vmul.f32 %v2062, 0.17677669
    %v2071 = vmul.f32 %v2067, 0.17677669
    %v2072 = vsel %vm737, %v2070, -inf
    %2073 = vmax.xlane.f32.xlu0 %v2072
    %v2074 = vpop.xlane.xlu0 %2073
    %v2075 = vsel %vm737, %v2071, -inf
    %2076 = vmax.xlane.f32.xlu0 %v2075
    %v2077 = vpop.xlane.xlu0 %2076
    %v2078 = vsub.f32 %v2070, %v2074
    %v2079 = vsub.f32 %v2071, %v2077
    %v2080 = vmul.f32 %v2078, 1.442695
    %v2081 = vpow.pop %v2080
    %v2082 = vmul.f32 %v2079, 1.442695
    %v2083 = vpow.pop %v2082
    %v2084 = vsel %vm737, %v2081, 0.0
    %2085 = vadd.xlane.f32.xlu0 %v2084
    %v2086 = vpop.xlane.xlu0 %2085
    %v2087 = vsel %vm737, %v2083, 0.0
    %2088 = vadd.xlane.f32.xlu0 %v2087
    %v2089 = vpop.xlane.xlu0 %2088
    %v2090 = vrcp.pop %v2086
    %v2091 = vmul.f32 1.0, %v2090
    %v2092 = vrcp.pop %v2089
    %v2093 = vmul.f32 1.0, %v2092
    %v2094 = vmul.f32 %v2081, %v2091
    %v2095 = vmul.f32 %v2083, %v2093
    %2098 = vrot.lane.b32.xlu0 %v623, 96
    %v2099 = vpop.permute.xlu0 %2098
    %2100 = vrot.lane.b32.xlu0 %v628, 96
    %v2101 = vpop.permute.xlu0 %2100
    %v2105 = vsel %vm737, %v2094, 0
    %v2108 = vsel %vm737, %v2095, 0
    %2110 = vmatprep.subr.mxu0 0.0
    %2111 = vmatpush1.msra.mxu0 %v2099
    %2112 = vmatprep.subr.mxu0 0.0
    %2113 = vmatpush1.msra.mxu0 %v2101
    %2114 = vmatprep.subr.mxu0 0.0
    %2115 = vmatpush1.msra.mxu0 0.0
    %2116 = vmatprep.subr.mxu0 0.0
    %2117 = vmatpush1.msra.mxu0 0.0
    %2118 = vmatprep.subr.mxu0 0.0
    %2119 = vmatpush1.msra.mxu0 0.0
    %2120 = vmatprep.subr.mxu0 0.0
    %2121 = vmatpush1.msra.mxu0 0.0
    %2122 = vmatprep.subr.mxu0 0.0
    %2123 = vmatpush1.msra.mxu0 0.0
    %2124 = vmatprep.subr.mxu0 0.0
    %2125 = vmatpush1.msra.mxu0 0.0
    %2126 = vmatprep.subr.mxu0 0.0
    %2127 = vmatpush1.msra.mxu0 0.0
    %2128 = vmatprep.subr.mxu0 0.0
    %2129 = vmatpush1.msra.mxu0 0.0
    %2130 = vmatprep.subr.mxu0 0.0
    %2131 = vmatpush1.msra.mxu0 0.0
    %2132 = vmatprep.subr.mxu0 0.0
    %2133 = vmatpush1.msra.mxu0 0.0
    %2134 = vmatprep.subr.mxu0 0.0
    %2135 = vmatpush1.msra.mxu0 0.0
    %2136 = vmatprep.subr.mxu0 0.0
    %2137 = vmatpush1.msra.mxu0 0.0
    %2138 = vmatprep.subr.mxu0 0.0
    %2139 = vmatpush1.msra.mxu0 0.0
    %2140 = vmatprep.subr.mxu0 0.0
    %2141 = vmatpush1.msra.mxu0 0.0
    %2142 = vmatprep.subr.mxu0 0.0
    %2143 = vmatpush1.msra.mxu0 0.0
    %2144 = vmatprep.subr.mxu0 0.0
    %2145 = vmatpush1.msra.mxu0 0.0
    %2146 = vmatprep.subr.mxu0 0.0
    %2147 = vmatpush1.msra.mxu0 0.0
    %2148 = vmatprep.subr.mxu0 0.0
    %2149 = vmatpush1.msra.mxu0 0.0
    %2150 = vmatprep.subr.mxu0 0.0
    %2151 = vmatpush1.msra.mxu0 0.0
    %2152 = vmatprep.subr.mxu0 0.0
    %2153 = vmatpush1.msra.mxu0 0.0
    %2154 = vmatprep.subr.mxu0 0.0
    %2155 = vmatpush1.msra.mxu0 0.0
    %2156 = vmatprep.subr.mxu0 0.0
    %2157 = vmatpush1.msra.mxu0 0.0
    %2158 = vmatprep.subr.mxu0 0.0
    %2159 = vmatpush1.msra.mxu0 0.0
    %2160 = vmatprep.subr.mxu0 0.0
    %2161 = vmatpush1.msra.mxu0 0.0
    %2162 = vmatprep.subr.mxu0 0.0
    %2163 = vmatpush1.msra.mxu0 0.0
    %2164 = vmatprep.subr.mxu0 0.0
    %2165 = vmatpush1.msra.mxu0 0.0
    %2166 = vmatprep.subr.mxu0 0.0
    %2167 = vmatpush1.msra.mxu0 0.0
    %2168 = vmatprep.subr.mxu0 0.0
    %2169 = vmatpush1.msra.mxu0 0.0
    %2170 = vmatprep.subr.mxu0 0.0
    %2171 = vmatpush1.msra.mxu0 0.0
    %2172 = vmatprep.subr.mxu0 0.0
    %2173 = vmatpush1.msra.mxu0 0.0
    %2174 = vmatprep.mubr.f32.mxu0 0.0
    %2175 = vmatmul.mubr.f32.gmra.mrb[0].mxu0 %v2105
    %v2176 = vpop.f32.mrb[0].mxu0
    %v2177 = vadd.f32 0.0, %v2176
    %v2178 = vpop.f32.mrb[0].mxu0
    %2179 = vmatprep.mubr.f32.mxu0 0.0
    %2180 = vmatmul.mubr.f32.gmra.mrb[0].mxu0 %v2108
    %v2181 = vpop.f32.mrb[0].mxu0
    %v2182 = vadd.f32 0.0, %v2181
    %v2183 = vpop.f32.mrb[0].mxu0
    %2184 = vdwg.mxu0
    %v2186 = vsel %vm647, %v2177, 0
    %v2189 = vsel %vm647, %v2182, 0
    %2191 = vmatprep.subr.mxu0 0.0
    %2192 = vmatpush1.msra.mxu0 %v635
    %2193 = vmatprep.subr.mxu0 0.0
    %2194 = vmatpush1.msra.mxu0 %v636
    %2195 = vmatprep.subr.mxu0 0.0
    %2196 = vmatpush1.msra.mxu0 %v637
    %2197 = vmatprep.subr.mxu0 0.0
    %2198 = vmatpush1.msra.mxu0 %v638
    %2199 = vmatprep.subr.mxu0 0.0
    %2200 = vmatpush1.msra.mxu0 0.0
    %2201 = vmatprep.subr.mxu0 0.0
    %2202 = vmatpush1.msra.mxu0 0.0
    %2203 = vmatprep.subr.mxu0 0.0
    %2204 = vmatpush1.msra.mxu0 0.0
    %2205 = vmatprep.subr.mxu0 0.0
    %2206 = vmatpush1.msra.mxu0 0.0
    %2207 = vmatprep.subr.mxu0 0.0
    %2208 = vmatpush1.msra.mxu0 0.0
    %2209 = vmatprep.subr.mxu0 0.0
    %2210 = vmatpush1.msra.mxu0 0.0
    %2211 = vmatprep.subr.mxu0 0.0
    %2212 = vmatpush1.msra.mxu0 0.0
    %2213 = vmatprep.subr.mxu0 0.0
    %2214 = vmatpush1.msra.mxu0 0.0
    %2215 = vmatprep.subr.mxu0 0.0
    %2216 = vmatpush1.msra.mxu0 0.0
    %2217 = vmatprep.subr.mxu0 0.0
    %2218 = vmatpush1.msra.mxu0 0.0
    %2219 = vmatprep.subr.mxu0 0.0
    %2220 = vmatpush1.msra.mxu0 0.0
    %2221 = vmatprep.subr.mxu0 0.0
    %2222 = vmatpush1.msra.mxu0 0.0
    %2223 = vmatprep.subr.mxu0 0.0
    %2224 = vmatpush1.msra.mxu0 0.0
    %2225 = vmatprep.subr.mxu0 0.0
    %2226 = vmatpush1.msra.mxu0 0.0
    %2227 = vmatprep.subr.mxu0 0.0
    %2228 = vmatpush1.msra.mxu0 0.0
    %2229 = vmatprep.subr.mxu0 0.0
    %2230 = vmatpush1.msra.mxu0 0.0
    %2231 = vmatprep.subr.mxu0 0.0
    %2232 = vmatpush1.msra.mxu0 0.0
    %2233 = vmatprep.subr.mxu0 0.0
    %2234 = vmatpush1.msra.mxu0 0.0
    %2235 = vmatprep.subr.mxu0 0.0
    %2236 = vmatpush1.msra.mxu0 0.0
    %2237 = vmatprep.subr.mxu0 0.0
    %2238 = vmatpush1.msra.mxu0 0.0
    %2239 = vmatprep.subr.mxu0 0.0
    %2240 = vmatpush1.msra.mxu0 0.0
    %2241 = vmatprep.subr.mxu0 0.0
    %2242 = vmatpush1.msra.mxu0 0.0
    %2243 = vmatprep.subr.mxu0 0.0
    %2244 = vmatpush1.msra.mxu0 0.0
    %2245 = vmatprep.subr.mxu0 0.0
    %2246 = vmatpush1.msra.mxu0 0.0
    %2247 = vmatprep.subr.mxu0 0.0
    %2248 = vmatpush1.msra.mxu0 0.0
    %2249 = vmatprep.subr.mxu0 0.0
    %2250 = vmatpush1.msra.mxu0 0.0
    %2251 = vmatprep.subr.mxu0 0.0
    %2252 = vmatpush1.msra.mxu0 0.0
    %2253 = vmatprep.subr.mxu0 0.0
    %2254 = vmatpush1.msra.mxu0 0.0
    %2255 = vmatprep.mubr.f32.mxu0 0.0
    %2256 = vmatmul.mubr.f32.gmra.mrb[0].mxu0 %v2186
    %v2257 = vpop.f32.mrb[0].mxu0
    %v2258 = vadd.f32 0.0, %v2257
    %v2259 = vpop.f32.mrb[0].mxu0
    %2260 = vmatprep.mubr.f32.mxu0 0.0
    %2261 = vmatmul.mubr.f32.gmra.mrb[0].mxu0 %v2189
    %v2262 = vpop.f32.mrb[0].mxu0
    %v2263 = vadd.f32 0.0, %v2262
    %v2264 = vpop.f32.mrb[0].mxu0
    %2265 = vdwg.mxu0
    %v2267 = vsel %vm647, %v1971, 0
    %v2270 = vsel %vm647, %v1976, 0
    %2272 = vmatprep.subr.mxu0 0.0
    %2273 = vmatpush1.msra.mxu0 %v631
    %2274 = vmatprep.subr.mxu0 0.0
    %2275 = vmatpush1.msra.mxu0 %v632
    %2276 = vmatprep.subr.mxu0 0.0
    %2277 = vmatpush1.msra.mxu0 %v633
    %2278 = vmatprep.subr.mxu0 0.0
    %2279 = vmatpush1.msra.mxu0 %v634
    %2280 = vmatprep.subr.mxu0 0.0
    %2281 = vmatpush1.msra.mxu0 0.0
    %2282 = vmatprep.subr.mxu0 0.0
    %2283 = vmatpush1.msra.mxu0 0.0
    %2284 = vmatprep.subr.mxu0 0.0
    %2285 = vmatpush1.msra.mxu0 0.0
    %2286 = vmatprep.subr.mxu0 0.0
    %2287 = vmatpush1.msra.mxu0 0.0
    %2288 = vmatprep.subr.mxu0 0.0
    %2289 = vmatpush1.msra.mxu0 0.0
    %2290 = vmatprep.subr.mxu0 0.0
    %2291 = vmatpush1.msra.mxu0 0.0
    %2292 = vmatprep.subr.mxu0 0.0
    %2293 = vmatpush1.msra.mxu0 0.0
    %2294 = vmatprep.subr.mxu0 0.0
    %2295 = vmatpush1.msra.mxu0 0.0
    %2296 = vmatprep.subr.mxu0 0.0
    %2297 = vmatpush1.msra.mxu0 0.0
    %2298 = vmatprep.subr.mxu0 0.0
    %2299 = vmatpush1.msra.mxu0 0.0
    %2300 = vmatprep.subr.mxu0 0.0
    %2301 = vmatpush1.msra.mxu0 0.0
    %2302 = vmatprep.subr.mxu0 0.0
    %2303 = vmatpush1.msra.mxu0 0.0
    %2304 = vmatprep.subr.mxu0 0.0
    %2305 = vmatpush1.msra.mxu0 0.0
    %2306 = vmatprep.subr.mxu0 0.0
    %2307 = vmatpush1.msra.mxu0 0.0
    %2308 = vmatprep.subr.mxu0 0.0
    %2309 = vmatpush1.msra.mxu0 0.0
    %2310 = vmatprep.subr.mxu0 0.0
    %2311 = vmatpush1.msra.mxu0 0.0
    %2312 = vmatprep.subr.mxu0 0.0
    %2313 = vmatpush1.msra.mxu0 0.0
    %2314 = vmatprep.subr.mxu0 0.0
    %2315 = vmatpush1.msra.mxu0 0.0
    %2316 = vmatprep.subr.mxu0 0.0
    %2317 = vmatpush1.msra.mxu0 0.0
    %2318 = vmatprep.subr.mxu0 0.0
    %2319 = vmatpush1.msra.mxu0 0.0
    %2320 = vmatprep.subr.mxu0 0.0
    %2321 = vmatpush1.msra.mxu0 0.0
    %2322 = vmatprep.subr.mxu0 0.0
    %2323 = vmatpush1.msra.mxu0 0.0
    %2324 = vmatprep.subr.mxu0 0.0
    %2325 = vmatpush1.msra.mxu0 0.0
    %2326 = vmatprep.subr.mxu0 0.0
    %2327 = vmatpush1.msra.mxu0 0.0
    %2328 = vmatprep.subr.mxu0 0.0
    %2329 = vmatpush1.msra.mxu0 0.0
    %2330 = vmatprep.subr.mxu0 0.0
    %2331 = vmatpush1.msra.mxu0 0.0
    %2332 = vmatprep.subr.mxu0 0.0
    %2333 = vmatpush1.msra.mxu0 0.0
    %2334 = vmatprep.subr.mxu0 0.0
    %2335 = vmatpush1.msra.mxu0 0.0
    %2336 = vmatprep.mubr.f32.mxu0 0.0
    %2337 = vmatmul.mubr.f32.gmra.mrb[0].mxu0 %v2267
    %v2338 = vpop.f32.mrb[0].mxu0
    %v2339 = vadd.f32 %v2258, %v2338
    %v2340 = vpop.f32.mrb[0].mxu0
    %2341 = vmatprep.mubr.f32.mxu0 0.0
    %2342 = vmatmul.mubr.f32.gmra.mrb[0].mxu0 %v2270
    %v2343 = vpop.f32.mrb[0].mxu0
    %v2344 = vadd.f32 %v2263, %v2343
    %v2345 = vpop.f32.mrb[0].mxu0
    %2346 = vdwg.mxu0
    %2347 = vrot.lane.b32.xlu0 %v536, 64
    %v2348 = vpop.permute.xlu0 %2347
    %2349 = vrot.lane.b32.xlu0 %v542, 64
    %v2350 = vpop.permute.xlu0 %2349
    %2351 = vrot.lane.b32.xlu0 %v538, 64
    %v2352 = vpop.permute.xlu0 %2351
    %2353 = vrot.lane.b32.xlu0 %v544, 64
    %v2354 = vpop.permute.xlu0 %2353
    %v2355 = vsel %vm647, %v2348, 0
    %v2357 = vsel %vm647, %v2350, 0
    %v2359 = vsel %vm647, %v2352, 0
    %v2361 = vsel %vm647, %v2354, 0
    %2363 = vmatprep.subr.mxu0 0.0
    %2364 = vmatpush1.xpose.msra.mxu0 %v2359
    %2365 = vmatprep.subr.mxu0 0.0
    %2366 = vmatpush1.xpose.msra.mxu0 %v2361
    %2367 = vmatprep.subr.mxu0 0.0
    %2368 = vmatpush1.xpose.msra.mxu0 0.0
    %2369 = vmatprep.subr.mxu0 0.0
    %2370 = vmatpush1.xpose.msra.mxu0 0.0
    %2371 = vmatprep.subr.mxu0 0.0
    %2372 = vmatpush1.xpose.msra.mxu0 0.0
    %2373 = vmatprep.subr.mxu0 0.0
    %2374 = vmatpush1.xpose.msra.mxu0 0.0
    %2375 = vmatprep.subr.mxu0 0.0
    %2376 = vmatpush1.xpose.msra.mxu0 0.0
    %2377 = vmatprep.subr.mxu0 0.0
    %2378 = vmatpush1.xpose.msra.mxu0 0.0
    %2379 = vmatprep.subr.mxu0 0.0
    %2380 = vmatpush1.xpose.msra.mxu0 0.0
    %2381 = vmatprep.subr.mxu0 0.0
    %2382 = vmatpush1.xpose.msra.mxu0 0.0
    %2383 = vmatprep.subr.mxu0 0.0
    %2384 = vmatpush1.xpose.msra.mxu0 0.0
    %2385 = vmatprep.subr.mxu0 0.0
    %2386 = vmatpush1.xpose.msra.mxu0 0.0
    %2387 = vmatprep.subr.mxu0 0.0
    %2388 = vmatpush1.xpose.msra.mxu0 0.0
    %2389 = vmatprep.subr.mxu0 0.0
    %2390 = vmatpush1.xpose.msra.mxu0 0.0
    %2391 = vmatprep.subr.mxu0 0.0
    %2392 = vmatpush1.xpose.msra.mxu0 0.0
    %2393 = vmatprep.subr.mxu0 0.0
    %2394 = vmatpush1.xpose.msra.mxu0 0.0
    %2395 = vmatprep.subr.mxu0 0.0
    %2396 = vmatpush1.xpose.msra.mxu0 0.0
    %2397 = vmatprep.subr.mxu0 0.0
    %2398 = vmatpush1.xpose.msra.mxu0 0.0
    %2399 = vmatprep.subr.mxu0 0.0
    %2400 = vmatpush1.xpose.msra.mxu0 0.0
    %2401 = vmatprep.subr.mxu0 0.0
    %2402 = vmatpush1.xpose.msra.mxu0 0.0
    %2403 = vmatprep.subr.mxu0 0.0
    %2404 = vmatpush1.xpose.msra.mxu0 0.0
    %2405 = vmatprep.subr.mxu0 0.0
    %2406 = vmatpush1.xpose.msra.mxu0 0.0
    %2407 = vmatprep.subr.mxu0 0.0
    %2408 = vmatpush1.xpose.msra.mxu0 0.0
    %2409 = vmatprep.subr.mxu0 0.0
    %2410 = vmatpush1.xpose.msra.mxu0 0.0
    %2411 = vmatprep.subr.mxu0 0.0
    %2412 = vmatpush1.xpose.msra.mxu0 0.0
    %2413 = vmatprep.subr.mxu0 0.0
    %2414 = vmatpush1.xpose.msra.mxu0 0.0
    %2415 = vmatprep.subr.mxu0 0.0
    %2416 = vmatpush1.xpose.msra.mxu0 0.0
    %2417 = vmatprep.subr.mxu0 0.0
    %2418 = vmatpush1.xpose.msra.mxu0 0.0
    %2419 = vmatprep.subr.mxu0 0.0
    %2420 = vmatpush1.xpose.msra.mxu0 0.0
    %2421 = vmatprep.subr.mxu0 0.0
    %2422 = vmatpush1.xpose.msra.mxu0 0.0
    %2423 = vmatprep.subr.mxu0 0.0
    %2424 = vmatpush1.xpose.msra.mxu0 0.0
    %2425 = vmatprep.subr.mxu0 0.0
    %2426 = vmatpush1.xpose.msra.mxu0 0.0
    %2427 = vmatprep.mubr.f32.mxu0 0.0
    %2428 = vmatmul.mubr.f32.gmra.mrb[0].mxu0 %v2355
    %v2429 = vpop.f32.mrb[0].mxu0
    %v2430 = vadd.f32 0.0, %v2429
    %v2431 = vpop.f32.mrb[0].mxu0
    %2432 = vmatprep.mubr.f32.mxu0 0.0
    %2433 = vmatmul.mubr.f32.gmra.mrb[0].mxu0 %v2357
    %v2434 = vpop.f32.mrb[0].mxu0
    %v2435 = vadd.f32 0.0, %v2434
    %v2436 = vpop.f32.mrb[0].mxu0
    %2437 = vdwg.mxu0
    %v2438 = vmul.f32 %v2430, 0.17677669
    %v2439 = vmul.f32 %v2435, 0.17677669
    %v2440 = vsel %vm737, %v2438, -inf
    %2441 = vmax.xlane.f32.xlu0 %v2440
    %v2442 = vpop.xlane.xlu0 %2441
    %v2443 = vsel %vm737, %v2439, -inf
    %2444 = vmax.xlane.f32.xlu0 %v2443
    %v2445 = vpop.xlane.xlu0 %2444
    %v2446 = vsub.f32 %v2438, %v2442
    %v2447 = vsub.f32 %v2439, %v2445
    %v2448 = vmul.f32 %v2446, 1.442695
    %v2449 = vpow.pop %v2448
    %v2450 = vmul.f32 %v2447, 1.442695
    %v2451 = vpow.pop %v2450
    %v2452 = vsel %vm737, %v2449, 0.0
    %2453 = vadd.xlane.f32.xlu0 %v2452
    %v2454 = vpop.xlane.xlu0 %2453
    %v2455 = vsel %vm737, %v2451, 0.0
    %2456 = vadd.xlane.f32.xlu0 %v2455
    %v2457 = vpop.xlane.xlu0 %2456
    %v2458 = vrcp.pop %v2454
    %v2459 = vmul.f32 1.0, %v2458
    %v2460 = vrcp.pop %v2457
    %v2461 = vmul.f32 1.0, %v2460
    %v2462 = vmul.f32 %v2449, %v2459
    %v2463 = vmul.f32 %v2451, %v2461
    %2464 = vrot.lane.b32.xlu0 %v623, 64
    %v2465 = vpop.permute.xlu0 %2464
    %2466 = vrot.lane.b32.xlu0 %v628, 64
    %v2467 = vpop.permute.xlu0 %2466
    %v2471 = vsel %vm737, %v2462, 0
    %v2474 = vsel %vm737, %v2463, 0
    %2476 = vmatprep.subr.mxu0 0.0
    %2477 = vmatpush1.msra.mxu0 %v2465
    %2478 = vmatprep.subr.mxu0 0.0
    %2479 = vmatpush1.msra.mxu0 %v2467
    %2480 = vmatprep.subr.mxu0 0.0
    %2481 = vmatpush1.msra.mxu0 0.0
    %2482 = vmatprep.subr.mxu0 0.0
    %2483 = vmatpush1.msra.mxu0 0.0
    %2484 = vmatprep.subr.mxu0 0.0
    %2485 = vmatpush1.msra.mxu0 0.0
    %2486 = vmatprep.subr.mxu0 0.0
    %2487 = vmatpush1.msra.mxu0 0.0
    %2488 = vmatprep.subr.mxu0 0.0
    %2489 = vmatpush1.msra.mxu0 0.0
    %2490 = vmatprep.subr.mxu0 0.0
    %2491 = vmatpush1.msra.mxu0 0.0
    %2492 = vmatprep.subr.mxu0 0.0
    %2493 = vmatpush1.msra.mxu0 0.0
    %2494 = vmatprep.subr.mxu0 0.0
    %2495 = vmatpush1.msra.mxu0 0.0
    %2496 = vmatprep.subr.mxu0 0.0
    %2497 = vmatpush1.msra.mxu0 0.0
    %2498 = vmatprep.subr.mxu0 0.0
    %2499 = vmatpush1.msra.mxu0 0.0
    %2500 = vmatprep.subr.mxu0 0.0
    %2501 = vmatpush1.msra.mxu0 0.0
    %2502 = vmatprep.subr.mxu0 0.0
    %2503 = vmatpush1.msra.mxu0 0.0
    %2504 = vmatprep.subr.mxu0 0.0
    %2505 = vmatpush1.msra.mxu0 0.0
    %2506 = vmatprep.subr.mxu0 0.0
    %2507 = vmatpush1.msra.mxu0 0.0
    %2508 = vmatprep.subr.mxu0 0.0
    %2509 = vmatpush1.msra.mxu0 0.0
    %2510 = vmatprep.subr.mxu0 0.0
    %2511 = vmatpush1.msra.mxu0 0.0
    %2512 = vmatprep.subr.mxu0 0.0
    %2513 = vmatpush1.msra.mxu0 0.0
    %2514 = vmatprep.subr.mxu0 0.0
    %2515 = vmatpush1.msra.mxu0 0.0
    %2516 = vmatprep.subr.mxu0 0.0
    %2517 = vmatpush1.msra.mxu0 0.0
    %2518 = vmatprep.subr.mxu0 0.0
    %2519 = vmatpush1.msra.mxu0 0.0
    %2520 = vmatprep.subr.mxu0 0.0
    %2521 = vmatpush1.msra.mxu0 0.0
    %2522 = vmatprep.subr.mxu0 0.0
    %2523 = vmatpush1.msra.mxu0 0.0
    %2524 = vmatprep.subr.mxu0 0.0
    %2525 = vmatpush1.msra.mxu0 0.0
    %2526 = vmatprep.subr.mxu0 0.0
    %2527 = vmatpush1.msra.mxu0 0.0
    %2528 = vmatprep.subr.mxu0 0.0
    %2529 = vmatpush1.msra.mxu0 0.0
    %2530 = vmatprep.subr.mxu0 0.0
    %2531 = vmatpush1.msra.mxu0 0.0
    %2532 = vmatprep.subr.mxu0 0.0
    %2533 = vmatpush1.msra.mxu0 0.0
    %2534 = vmatprep.subr.mxu0 0.0
    %2535 = vmatpush1.msra.mxu0 0.0
    %2536 = vmatprep.subr.mxu0 0.0
    %2537 = vmatpush1.msra.mxu0 0.0
    %2538 = vmatprep.subr.mxu0 0.0
    %2539 = vmatpush1.msra.mxu0 0.0
    %2540 = vmatprep.mubr.f32.mxu0 0.0
    %2541 = vmatmul.mubr.f32.gmra.mrb[0].mxu0 %v2471
    %v2542 = vpop.f32.mrb[0].mxu0
    %v2543 = vadd.f32 0.0, %v2542
    %v2544 = vpop.f32.mrb[0].mxu0
    %2545 = vmatprep.mubr.f32.mxu0 0.0
    %2546 = vmatmul.mubr.f32.gmra.mrb[0].mxu0 %v2474
    %v2547 = vpop.f32.mrb[0].mxu0
    %v2548 = vadd.f32 0.0, %v2547
    %v2549 = vpop.f32.mrb[0].mxu0
    %2550 = vdwg.mxu0
    %v2552 = vsel %vm647, %v2543, 0
    %v2555 = vsel %vm647, %v2548, 0
    %2557 = vmatprep.subr.mxu0 0.0
    %2558 = vmatpush1.msra.mxu0 %v639
    %2559 = vmatprep.subr.mxu0 0.0
    %2560 = vmatpush1.msra.mxu0 %v640
    %2561 = vmatprep.subr.mxu0 0.0
    %2562 = vmatpush1.msra.mxu0 %v641
    %2563 = vmatprep.subr.mxu0 0.0
    %2564 = vmatpush1.msra.mxu0 %v642
    %2565 = vmatprep.subr.mxu0 0.0
    %2566 = vmatpush1.msra.mxu0 0.0
    %2567 = vmatprep.subr.mxu0 0.0
    %2568 = vmatpush1.msra.mxu0 0.0
    %2569 = vmatprep.subr.mxu0 0.0
    %2570 = vmatpush1.msra.mxu0 0.0
    %2571 = vmatprep.subr.mxu0 0.0
    %2572 = vmatpush1.msra.mxu0 0.0
    %2573 = vmatprep.subr.mxu0 0.0
    %2574 = vmatpush1.msra.mxu0 0.0
    %2575 = vmatprep.subr.mxu0 0.0
    %2576 = vmatpush1.msra.mxu0 0.0
    %2577 = vmatprep.subr.mxu0 0.0
    %2578 = vmatpush1.msra.mxu0 0.0
    %2579 = vmatprep.subr.mxu0 0.0
    %2580 = vmatpush1.msra.mxu0 0.0
    %2581 = vmatprep.subr.mxu0 0.0
    %2582 = vmatpush1.msra.mxu0 0.0
    %2583 = vmatprep.subr.mxu0 0.0
    %2584 = vmatpush1.msra.mxu0 0.0
    %2585 = vmatprep.subr.mxu0 0.0
    %2586 = vmatpush1.msra.mxu0 0.0
    %2587 = vmatprep.subr.mxu0 0.0
    %2588 = vmatpush1.msra.mxu0 0.0
    %2589 = vmatprep.subr.mxu0 0.0
    %2590 = vmatpush1.msra.mxu0 0.0
    %2591 = vmatprep.subr.mxu0 0.0
    %2592 = vmatpush1.msra.mxu0 0.0
    %2593 = vmatprep.subr.mxu0 0.0
    %2594 = vmatpush1.msra.mxu0 0.0
    %2595 = vmatprep.subr.mxu0 0.0
    %2596 = vmatpush1.msra.mxu0 0.0
    %2597 = vmatprep.subr.mxu0 0.0
    %2598 = vmatpush1.msra.mxu0 0.0
    %2599 = vmatprep.subr.mxu0 0.0
    %2600 = vmatpush1.msra.mxu0 0.0
    %2601 = vmatprep.subr.mxu0 0.0
    %2602 = vmatpush1.msra.mxu0 0.0
    %2603 = vmatprep.subr.mxu0 0.0
    %2604 = vmatpush1.msra.mxu0 0.0
    %2605 = vmatprep.subr.mxu0 0.0
    %2606 = vmatpush1.msra.mxu0 0.0
    %2607 = vmatprep.subr.mxu0 0.0
    %2608 = vmatpush1.msra.mxu0 0.0
    %2609 = vmatprep.subr.mxu0 0.0
    %2610 = vmatpush1.msra.mxu0 0.0
    %2611 = vmatprep.subr.mxu0 0.0
    %2612 = vmatpush1.msra.mxu0 0.0
    %2613 = vmatprep.subr.mxu0 0.0
    %2614 = vmatpush1.msra.mxu0 0.0
    %2615 = vmatprep.subr.mxu0 0.0
    %2616 = vmatpush1.msra.mxu0 0.0
    %2617 = vmatprep.subr.mxu0 0.0
    %2618 = vmatpush1.msra.mxu0 0.0
    %2619 = vmatprep.subr.mxu0 0.0
    %2620 = vmatpush1.msra.mxu0 0.0
    %2621 = vmatprep.mubr.f32.mxu0 0.0
    %2622 = vmatmul.mubr.f32.gmra.mrb[0].mxu0 %v2552
    %v2623 = vpop.f32.mrb[0].mxu0
    %v2624 = vadd.f32 0.0, %v2623
    %v2625 = vpop.f32.mrb[0].mxu0
    %2626 = vmatprep.mubr.f32.mxu0 0.0
    %2627 = vmatmul.mubr.f32.gmra.mrb[0].mxu0 %v2555
    %v2628 = vpop.f32.mrb[0].mxu0
    %v2629 = vadd.f32 0.0, %v2628
    %v2630 = vpop.f32.mrb[0].mxu0
    %2631 = vdwg.mxu0
    %v2632 = vadd.f32 %v2339, %v2624
    %v2633 = vadd.f32 %v2344, %v2629
    %2634 = vrot.lane.b32.xlu0 %v536, 32
    %v2635 = vpop.permute.xlu0 %2634
    %2636 = vrot.lane.b32.xlu0 %v542, 32
    %v2637 = vpop.permute.xlu0 %2636
    %2638 = vrot.lane.b32.xlu0 %v538, 32
    %v2639 = vpop.permute.xlu0 %2638
    %2640 = vrot.lane.b32.xlu0 %v544, 32
    %v2641 = vpop.permute.xlu0 %2640
    %v2642 = vsel %vm647, %v2635, 0
    %v2644 = vsel %vm647, %v2637, 0
    %v2646 = vsel %vm647, %v2639, 0
    %v2648 = vsel %vm647, %v2641, 0
    %2650 = vmatprep.subr.mxu0 0.0
    %2651 = vmatpush1.xpose.msra.mxu0 %v2646
    %2652 = vmatprep.subr.mxu0 0.0
    %2653 = vmatpush1.xpose.msra.mxu0 %v2648
    %2654 = vmatprep.subr.mxu0 0.0
    %2655 = vmatpush1.xpose.msra.mxu0 0.0
    %2656 = vmatprep.subr.mxu0 0.0
    %2657 = vmatpush1.xpose.msra.mxu0 0.0
    %2658 = vmatprep.subr.mxu0 0.0
    %2659 = vmatpush1.xpose.msra.mxu0 0.0
    %2660 = vmatprep.subr.mxu0 0.0
    %2661 = vmatpush1.xpose.msra.mxu0 0.0
    %2662 = vmatprep.subr.mxu0 0.0
    %2663 = vmatpush1.xpose.msra.mxu0 0.0
    %2664 = vmatprep.subr.mxu0 0.0
    %2665 = vmatpush1.xpose.msra.mxu0 0.0
    %2666 = vmatprep.subr.mxu0 0.0
    %2667 = vmatpush1.xpose.msra.mxu0 0.0
    %2668 = vmatprep.subr.mxu0 0.0
    %2669 = vmatpush1.xpose.msra.mxu0 0.0
    %2670 = vmatprep.subr.mxu0 0.0
    %2671 = vmatpush1.xpose.msra.mxu0 0.0
    %2672 = vmatprep.subr.mxu0 0.0
    %2673 = vmatpush1.xpose.msra.mxu0 0.0
    %2674 = vmatprep.subr.mxu0 0.0
    %2675 = vmatpush1.xpose.msra.mxu0 0.0
    %2676 = vmatprep.subr.mxu0 0.0
    %2677 = vmatpush1.xpose.msra.mxu0 0.0
    %2678 = vmatprep.subr.mxu0 0.0
    %2679 = vmatpush1.xpose.msra.mxu0 0.0
    %2680 = vmatprep.subr.mxu0 0.0
    %2681 = vmatpush1.xpose.msra.mxu0 0.0
    %2682 = vmatprep.subr.mxu0 0.0
    %2683 = vmatpush1.xpose.msra.mxu0 0.0
    %2684 = vmatprep.subr.mxu0 0.0
    %2685 = vmatpush1.xpose.msra.mxu0 0.0
    %2686 = vmatprep.subr.mxu0 0.0
    %2687 = vmatpush1.xpose.msra.mxu0 0.0
    %2688 = vmatprep.subr.mxu0 0.0
    %2689 = vmatpush1.xpose.msra.mxu0 0.0
    %2690 = vmatprep.subr.mxu0 0.0
    %2691 = vmatpush1.xpose.msra.mxu0 0.0
    %2692 = vmatprep.subr.mxu0 0.0
    %2693 = vmatpush1.xpose.msra.mxu0 0.0
    %2694 = vmatprep.subr.mxu0 0.0
    %2695 = vmatpush1.xpose.msra.mxu0 0.0
    %2696 = vmatprep.subr.mxu0 0.0
    %2697 = vmatpush1.xpose.msra.mxu0 0.0
    %2698 = vmatprep.subr.mxu0 0.0
    %2699 = vmatpush1.xpose.msra.mxu0 0.0
    %2700 = vmatprep.subr.mxu0 0.0
    %2701 = vmatpush1.xpose.msra.mxu0 0.0
    %2702 = vmatprep.subr.mxu0 0.0
    %2703 = vmatpush1.xpose.msra.mxu0 0.0
    %2704 = vmatprep.subr.mxu0 0.0
    %2705 = vmatpush1.xpose.msra.mxu0 0.0
    %2706 = vmatprep.subr.mxu0 0.0
    %2707 = vmatpush1.xpose.msra.mxu0 0.0
    %2708 = vmatprep.subr.mxu0 0.0
    %2709 = vmatpush1.xpose.msra.mxu0 0.0
    %2710 = vmatprep.subr.mxu0 0.0
    %2711 = vmatpush1.xpose.msra.mxu0 0.0
    %2712 = vmatprep.subr.mxu0 0.0
    %2713 = vmatpush1.xpose.msra.mxu0 0.0
    %2714 = vmatprep.mubr.f32.mxu0 0.0
    %2715 = vmatmul.mubr.f32.gmra.mrb[0].mxu0 %v2642
    %v2716 = vpop.f32.mrb[0].mxu0
    %v2717 = vadd.f32 0.0, %v2716
    %v2718 = vpop.f32.mrb[0].mxu0
    %2719 = vmatprep.mubr.f32.mxu0 0.0
    %2720 = vmatmul.mubr.f32.gmra.mrb[0].mxu0 %v2644
    %v2721 = vpop.f32.mrb[0].mxu0
    %v2722 = vadd.f32 0.0, %v2721
    %v2723 = vpop.f32.mrb[0].mxu0
    %2724 = vdwg.mxu0
    %v2725 = vmul.f32 %v2717, 0.17677669
    %v2726 = vmul.f32 %v2722, 0.17677669
    %v2727 = vsel %vm737, %v2725, -inf
    %2728 = vmax.xlane.f32.xlu0 %v2727
    %v2729 = vpop.xlane.xlu0 %2728
    %v2730 = vsel %vm737, %v2726, -inf
    %2731 = vmax.xlane.f32.xlu0 %v2730
    %v2732 = vpop.xlane.xlu0 %2731
    %v2733 = vsub.f32 %v2725, %v2729
    %v2734 = vsub.f32 %v2726, %v2732
    %v2735 = vmul.f32 %v2733, 1.442695
    %v2736 = vpow.pop %v2735
    %v2737 = vmul.f32 %v2734, 1.442695
    %v2738 = vpow.pop %v2737
    %v2739 = vsel %vm737, %v2736, 0.0
    %2740 = vadd.xlane.f32.xlu0 %v2739
    %v2741 = vpop.xlane.xlu0 %2740
    %v2742 = vsel %vm737, %v2738, 0.0
    %2743 = vadd.xlane.f32.xlu0 %v2742
    %v2744 = vpop.xlane.xlu0 %2743
    %v2745 = vrcp.pop %v2741
    %v2746 = vmul.f32 1.0, %v2745
    %v2747 = vrcp.pop %v2744
    %v2748 = vmul.f32 1.0, %v2747
    %v2749 = vmul.f32 %v2736, %v2746
    %v2750 = vmul.f32 %v2738, %v2748
    %2751 = vrot.lane.b32.xlu0 %v623, 32
    %v2752 = vpop.permute.xlu0 %2751
    %2753 = vrot.lane.b32.xlu0 %v628, 32
    %v2754 = vpop.permute.xlu0 %2753
    %v2758 = vsel %vm737, %v2749, 0
    %v2761 = vsel %vm737, %v2750, 0
    %2763 = vmatprep.subr.mxu0 0.0
    %2764 = vmatpush1.msra.mxu0 %v2752
    %2765 = vmatprep.subr.mxu0 0.0
    %2766 = vmatpush1.msra.mxu0 %v2754
    %2767 = vmatprep.subr.mxu0 0.0
    %2768 = vmatpush1.msra.mxu0 0.0
    %2769 = vmatprep.subr.mxu0 0.0
    %2770 = vmatpush1.msra.mxu0 0.0
    %2771 = vmatprep.subr.mxu0 0.0
    %2772 = vmatpush1.msra.mxu0 0.0
    %2773 = vmatprep.subr.mxu0 0.0
    %2774 = vmatpush1.msra.mxu0 0.0
    %2775 = vmatprep.subr.mxu0 0.0
    %2776 = vmatpush1.msra.mxu0 0.0
    %2777 = vmatprep.subr.mxu0 0.0
    %2778 = vmatpush1.msra.mxu0 0.0
    %2779 = vmatprep.subr.mxu0 0.0
    %2780 = vmatpush1.msra.mxu0 0.0
    %2781 = vmatprep.subr.mxu0 0.0
    %2782 = vmatpush1.msra.mxu0 0.0
    %2783 = vmatprep.subr.mxu0 0.0
    %2784 = vmatpush1.msra.mxu0 0.0
    %2785 = vmatprep.subr.mxu0 0.0
    %2786 = vmatpush1.msra.mxu0 0.0
    %2787 = vmatprep.subr.mxu0 0.0
    %2788 = vmatpush1.msra.mxu0 0.0
    %2789 = vmatprep.subr.mxu0 0.0
    %2790 = vmatpush1.msra.mxu0 0.0
    %2791 = vmatprep.subr.mxu0 0.0
    %2792 = vmatpush1.msra.mxu0 0.0
    %2793 = vmatprep.subr.mxu0 0.0
    %2794 = vmatpush1.msra.mxu0 0.0
    %2795 = vmatprep.subr.mxu0 0.0
    %2796 = vmatpush1.msra.mxu0 0.0
    %2797 = vmatprep.subr.mxu0 0.0
    %2798 = vmatpush1.msra.mxu0 0.0
    %2799 = vmatprep.subr.mxu0 0.0
    %2800 = vmatpush1.msra.mxu0 0.0
    %2801 = vmatprep.subr.mxu0 0.0
    %2802 = vmatpush1.msra.mxu0 0.0
    %2803 = vmatprep.subr.mxu0 0.0
    %2804 = vmatpush1.msra.mxu0 0.0
    %2805 = vmatprep.subr.mxu0 0.0
    %2806 = vmatpush1.msra.mxu0 0.0
    %2807 = vmatprep.subr.mxu0 0.0
    %2808 = vmatpush1.msra.mxu0 0.0
    %2809 = vmatprep.subr.mxu0 0.0
    %2810 = vmatpush1.msra.mxu0 0.0
    %2811 = vmatprep.subr.mxu0 0.0
    %2812 = vmatpush1.msra.mxu0 0.0
    %2813 = vmatprep.subr.mxu0 0.0
    %2814 = vmatpush1.msra.mxu0 0.0
    %2815 = vmatprep.subr.mxu0 0.0
    %2816 = vmatpush1.msra.mxu0 0.0
    %2817 = vmatprep.subr.mxu0 0.0
    %2818 = vmatpush1.msra.mxu0 0.0
    %2819 = vmatprep.subr.mxu0 0.0
    %2820 = vmatpush1.msra.mxu0 0.0
    %2821 = vmatprep.subr.mxu0 0.0
    %2822 = vmatpush1.msra.mxu0 0.0
    %2823 = vmatprep.subr.mxu0 0.0
    %2824 = vmatpush1.msra.mxu0 0.0
    %2825 = vmatprep.subr.mxu0 0.0
    %2826 = vmatpush1.msra.mxu0 0.0
    %2827 = vmatprep.mubr.f32.mxu0 0.0
    %2828 = vmatmul.mubr.f32.gmra.mrb[0].mxu0 %v2758
    %v2829 = vpop.f32.mrb[0].mxu0
    %v2830 = vadd.f32 0.0, %v2829
    %v2831 = vpop.f32.mrb[0].mxu0
    %2832 = vmatprep.mubr.f32.mxu0 0.0
    %2833 = vmatmul.mubr.f32.gmra.mrb[0].mxu0 %v2761
    %v2834 = vpop.f32.mrb[0].mxu0
    %v2835 = vadd.f32 0.0, %v2834
    %v2836 = vpop.f32.mrb[0].mxu0
    %2837 = vdwg.mxu0
    %v2839 = vsel %vm647, %v2830, 0
    %v2842 = vsel %vm647, %v2835, 0
    %2844 = vmatprep.subr.mxu0 0.0
    %2845 = vmatpush1.msra.mxu0 %v643
    %2846 = vmatprep.subr.mxu0 0.0
    %2847 = vmatpush1.msra.mxu0 %v644
    %2848 = vmatprep.subr.mxu0 0.0
    %2849 = vmatpush1.msra.mxu0 %v645
    %2850 = vmatprep.subr.mxu0 0.0
    %2851 = vmatpush1.msra.mxu0 %v646
    %2852 = vmatprep.subr.mxu0 0.0
    %2853 = vmatpush1.msra.mxu0 0.0
    %2854 = vmatprep.subr.mxu0 0.0
    %2855 = vmatpush1.msra.mxu0 0.0
    %2856 = vmatprep.subr.mxu0 0.0
    %2857 = vmatpush1.msra.mxu0 0.0
    %2858 = vmatprep.subr.mxu0 0.0
    %2859 = vmatpush1.msra.mxu0 0.0
    %2860 = vmatprep.subr.mxu0 0.0
    %2861 = vmatpush1.msra.mxu0 0.0
    %2862 = vmatprep.subr.mxu0 0.0
    %2863 = vmatpush1.msra.mxu0 0.0
    %2864 = vmatprep.subr.mxu0 0.0
    %2865 = vmatpush1.msra.mxu0 0.0
    %2866 = vmatprep.subr.mxu0 0.0
    %2867 = vmatpush1.msra.mxu0 0.0
    %2868 = vmatprep.subr.mxu0 0.0
    %2869 = vmatpush1.msra.mxu0 0.0
    %2870 = vmatprep.subr.mxu0 0.0
    %2871 = vmatpush1.msra.mxu0 0.0
    %2872 = vmatprep.subr.mxu0 0.0
    %2873 = vmatpush1.msra.mxu0 0.0
    %2874 = vmatprep.subr.mxu0 0.0
    %2875 = vmatpush1.msra.mxu0 0.0
    %2876 = vmatprep.subr.mxu0 0.0
    %2877 = vmatpush1.msra.mxu0 0.0
    %2878 = vmatprep.subr.mxu0 0.0
    %2879 = vmatpush1.msra.mxu0 0.0
    %2880 = vmatprep.subr.mxu0 0.0
    %2881 = vmatpush1.msra.mxu0 0.0
    %2882 = vmatprep.subr.mxu0 0.0
    %2883 = vmatpush1.msra.mxu0 0.0
    %2884 = vmatprep.subr.mxu0 0.0
    %2885 = vmatpush1.msra.mxu0 0.0
    %2886 = vmatprep.subr.mxu0 0.0
    %2887 = vmatpush1.msra.mxu0 0.0
    %2888 = vmatprep.subr.mxu0 0.0
    %2889 = vmatpush1.msra.mxu0 0.0
    %2890 = vmatprep.subr.mxu0 0.0
    %2891 = vmatpush1.msra.mxu0 0.0
    %2892 = vmatprep.subr.mxu0 0.0
    %2893 = vmatpush1.msra.mxu0 0.0
    %2894 = vmatprep.subr.mxu0 0.0
    %2895 = vmatpush1.msra.mxu0 0.0
    %2896 = vmatprep.subr.mxu0 0.0
    %2897 = vmatpush1.msra.mxu0 0.0
    %2898 = vmatprep.subr.mxu0 0.0
    %2899 = vmatpush1.msra.mxu0 0.0
    %2900 = vmatprep.subr.mxu0 0.0
    %2901 = vmatpush1.msra.mxu0 0.0
    %2902 = vmatprep.subr.mxu0 0.0
    %2903 = vmatpush1.msra.mxu0 0.0
    %2904 = vmatprep.subr.mxu0 0.0
    %2905 = vmatpush1.msra.mxu0 0.0
    %2906 = vmatprep.subr.mxu0 0.0
    %2907 = vmatpush1.msra.mxu0 0.0
    %2908 = vmatprep.mubr.f32.mxu0 0.0
    %2909 = vmatmul.mubr.f32.gmra.mrb[0].mxu0 %v2839
    %v2910 = vpop.f32.mrb[0].mxu0
    %v2911 = vadd.f32 0.0, %v2910
    %v2912 = vpop.f32.mrb[0].mxu0
    %2913 = vmatprep.mubr.f32.mxu0 0.0
    %2914 = vmatmul.mubr.f32.gmra.mrb[0].mxu0 %v2842
    %v2915 = vpop.f32.mrb[0].mxu0
    %v2916 = vadd.f32 0.0, %v2915
    %v2917 = vpop.f32.mrb[0].mxu0
    %2918 = vdwg.mxu0
    %v2919 = vadd.f32 %v2632, %v2911
    %v2920 = vadd.f32 %v2633, %v2916
    %v2921 = vadd.f32 %v289, %v1783
    %v2922 = vadd.f32 %v290, %v1784
    %v2923 = vadd.f32 %v291, %v2919
    %v2924 = vadd.f32 %v292, %v2920
    %v2925 = vld [vmem:[#allocation10] sm:$0x1]
    %v2927 = vlaneseq
    %v2928 = vshrl.u32 %v2927, 7
    %v2929 = vsub.s32 0, %v2928
    %v2930 = vrot.slane %v2925, %v2929
    %v2932 = vadd.f32 %v2921, %v2930
    %v2933 = vadd.f32 %v2922, %v2930
    %v2934 = vadd.f32 %v2923, %v2930
    %v2935 = vadd.f32 %v2924, %v2930
    %s2936 = scalar_lea.vmem [#allocation11], 1
    %v2937 = vld [vmem:[%s2936] sm:$0x1]
    %s2938 = scalar_lea.vmem [#allocation13], 1
    %v2939 = vld [vmem:[%s2938] sm:$0x1]
    %2940 = vadd.xlane.f32.xlu0 %v2932
    %v2941 = vpop.xlane.xlu0 %2940
    %2942 = vadd.xlane.f32.xlu0 %v2933
    %v2943 = vpop.xlane.xlu0 %2942
    %2944 = vadd.xlane.f32.xlu0 %v2934
    %v2945 = vpop.xlane.xlu0 %2944
    %2946 = vadd.xlane.f32.xlu0 %v2935
    %v2947 = vpop.xlane.xlu0 %2946
    %v2948 = vmul.f32 %v2941, %v303
    %v2949 = vmul.f32 %v2943, %v303
    %v2950 = vmul.f32 %v2945, %v303
    %v2951 = vmul.f32 %v2947, %v303
    %v2952 = vsub.f32 %v2932, %v2948
    %v2953 = vsub.f32 %v2933, %v2949
    %v2954 = vsub.f32 %v2934, %v2950
    %v2955 = vsub.f32 %v2935, %v2951
    %v2956 = vmul.f32 %v2952, %v2952
    %v2957 = vmul.f32 %v2953, %v2953
    %v2958 = vmul.f32 %v2954, %v2954
    %v2959 = vmul.f32 %v2955, %v2955
    %2960 = vadd.xlane.f32.xlu0 %v2956
    %v2961 = vpop.xlane.xlu0 %2960
    %2962 = vadd.xlane.f32.xlu0 %v2957
    %v2963 = vpop.xlane.xlu0 %2962
    %2964 = vadd.xlane.f32.xlu0 %v2958
    %v2965 = vpop.xlane.xlu0 %2964
    %2966 = vadd.xlane.f32.xlu0 %v2959
    %v2967 = vpop.xlane.xlu0 %2966
    %v2968 = vmul.f32 %v2961, 0.007874016
    %v2969 = vmul.f32 %v2963, 0.007874016
    %v2970 = vmul.f32 %v2965, 0.007874016
    %v2971 = vmul.f32 %v2967, 0.007874016
    %v2972 = vrsqrt.pop %v2968
    %v2973 = vmul.f32 %v2968, %v2972
    %vm2974 = vcmp.eq.f32.partialorder %v2968, inf
    %v2975 = vsel %vm2974, %v2968, %v2973
    %vm2976 = vcmp.eq.f32.partialorder %v2968, 0.0
    %v2977 = vand.u32 %v2968, 2147483648
    %v2978 = vsel %vm2976, %v2977, %v2975
    %v2979 = vrsqrt.pop %v2969
    %v2980 = vmul.f32 %v2969, %v2979
    %vm2981 = vcmp.eq.f32.partialorder %v2969, inf
    %v2982 = vsel %vm2981, %v2969, %v2980
    %vm2983 = vcmp.eq.f32.partialorder %v2969, 0.0
    %v2984 = vand.u32 %v2969, 2147483648
    %v2985 = vsel %vm2983, %v2984, %v2982
    %v2986 = vrsqrt.pop %v2970
    %v2987 = vmul.f32 %v2970, %v2986
    %vm2988 = vcmp.eq.f32.partialorder %v2970, inf
    %v2989 = vsel %vm2988, %v2970, %v2987
    %vm2990 = vcmp.eq.f32.partialorder %v2970, 0.0
    %v2991 = vand.u32 %v2970, 2147483648
    %v2992 = vsel %vm2990, %v2991, %v2989
    %v2993 = vrsqrt.pop %v2971
    %v2994 = vmul.f32 %v2971, %v2993
    %vm2995 = vcmp.eq.f32.partialorder %v2971, inf
    %v2996 = vsel %vm2995, %v2971, %v2994
    %vm2997 = vcmp.eq.f32.partialorder %v2971, 0.0
    %v2998 = vand.u32 %v2971, 2147483648
    %v2999 = vsel %vm2997, %v2998, %v2996
    %v3000 = vadd.f32 %v2978, 1e-06
    %v3001 = vadd.f32 %v2985, 1e-06
    %v3002 = vadd.f32 %v2992, 1e-06
    %v3003 = vadd.f32 %v2999, 1e-06
    %v3004 = vrcp.pop %v3000
    %v3005 = vmul.f32 1.0, %v3004
    %v3006 = vrcp.pop %v3001
    %v3007 = vmul.f32 1.0, %v3006
    %v3008 = vrcp.pop %v3002
    %v3009 = vmul.f32 1.0, %v3008
    %v3010 = vrcp.pop %v3003
    %v3011 = vmul.f32 1.0, %v3010
    %v3012 = vmul.f32 %v2952, %v3005
    %v3013 = vmul.f32 %v2953, %v3007
    %v3014 = vmul.f32 %v2954, %v3009
    %v3015 = vmul.f32 %v2955, %v3011
    %v3017 = vlaneseq
    %v3018 = vshrl.u32 %v3017, 7
    %v3019 = vsub.s32 0, %v3018
    %v3020 = vrot.slane %v2937, %v3019
    %v3022 = vmul.f32 %v3020, %v3012
    %v3023 = vmul.f32 %v3020, %v3013
    %v3024 = vmul.f32 %v3020, %v3014
    %v3025 = vmul.f32 %v3020, %v3015
    %v3027 = vlaneseq
    %v3028 = vshrl.u32 %v3027, 7
    %v3029 = vsub.s32 0, %v3028
    %v3030 = vrot.slane %v2939, %v3029
    %v3032 = vadd.f32 %v3022, %v3030
    %v3033 = vadd.f32 %v3023, %v3030
    %v3034 = vadd.f32 %v3024, %v3030
    %v3035 = vadd.f32 %v3025, %v3030
    %v3036 = vld [vmem:[#allocation17] sm:$0x1]
    %v3037 = vld [vmem:[#allocation19] sm:$0x1]
    %v3038 = vld [vmem:[#allocation14] sm:$0xff]
    %v3039 = vld [vmem:[#allocation14 + $0x8] sm:$0xff]
    %v3040 = vld [vmem:[#allocation14 + $0x10] sm:$0xff]
    %v3041 = vld [vmem:[#allocation14 + $0x18] sm:$0xff]
    %v3042 = vld [vmem:[#allocation14 + $0x20] sm:$0xff]
    %v3043 = vld [vmem:[#allocation14 + $0x28] sm:$0xff]
    %v3044 = vld [vmem:[#allocation14 + $0x30] sm:$0xff]
    %v3045 = vld [vmem:[#allocation14 + $0x38] sm:$0xff]
    %v3046 = vld [vmem:[#allocation14 + $0x40] sm:$0xff]
    %v3047 = vld [vmem:[#allocation14 + $0x48] sm:$0xff]
    %v3048 = vld [vmem:[#allocation14 + $0x50] sm:$0xff]
    %v3049 = vld [vmem:[#allocation14 + $0x58] sm:$0xff]
    %v3050 = vld [vmem:[#allocation14 + $0x60] sm:$0xff]
    %v3051 = vld [vmem:[#allocation14 + $0x68] sm:$0xff]
    %v3052 = vld [vmem:[#allocation14 + $0x70] sm:$0xff]
    %v3053 = vld [vmem:[#allocation14 + $0x78] sm:$0xff]
    %v3054 = vld [vmem:[#allocation16] sm:$0x1]
    %v3056 = vlaneseq
    %v3057 = vshrl.u32 %v3056, 7
    %v3058 = vsub.s32 0, %v3057
    %v3059 = vrot.slane %v3054, %v3058
    %3061 = vmatprep.subr.mxu0 0.0
    %3062 = vmatpush1.msra.mxu0 %v3038
    %3063 = vmatprep.subr.mxu0 0.0
    %3064 = vmatpush1.msra.mxu0 %v3039
    %3065 = vmatprep.subr.mxu0 0.0
    %3066 = vmatpush1.msra.mxu0 %v3040
    %3067 = vmatprep.subr.mxu0 0.0
    %3068 = vmatpush1.msra.mxu0 %v3041
    %3069 = vmatprep.subr.mxu0 0.0
    %3070 = vmatpush1.msra.mxu0 %v3042
    %3071 = vmatprep.subr.mxu0 0.0
    %3072 = vmatpush1.msra.mxu0 %v3043
    %3073 = vmatprep.subr.mxu0 0.0
    %3074 = vmatpush1.msra.mxu0 %v3044
    %3075 = vmatprep.subr.mxu0 0.0
    %3076 = vmatpush1.msra.mxu0 %v3045
    %3077 = vmatprep.subr.mxu0 0.0
    %3078 = vmatpush1.msra.mxu0 %v3046
    %3079 = vmatprep.subr.mxu0 0.0
    %3080 = vmatpush1.msra.mxu0 %v3047
    %3081 = vmatprep.subr.mxu0 0.0
    %3082 = vmatpush1.msra.mxu0 %v3048
    %3083 = vmatprep.subr.mxu0 0.0
    %3084 = vmatpush1.msra.mxu0 %v3049
    %3085 = vmatprep.subr.mxu0 0.0
    %3086 = vmatpush1.msra.mxu0 %v3050
    %3087 = vmatprep.subr.mxu0 0.0
    %3088 = vmatpush1.msra.mxu0 %v3051
    %3089 = vmatprep.subr.mxu0 0.0
    %3090 = vmatpush1.msra.mxu0 %v3052
    %3091 = vmatprep.subr.mxu0 0.0
    %3092 = vmatpush1.msra.mxu0 %v3053
    %3093 = vmatprep.subr.mxu0 0.0
    %3094 = vmatpush1.msra.mxu0 0.0
    %3095 = vmatprep.subr.mxu0 0.0
    %3096 = vmatpush1.msra.mxu0 0.0
    %3097 = vmatprep.subr.mxu0 0.0
    %3098 = vmatpush1.msra.mxu0 0.0
    %3099 = vmatprep.subr.mxu0 0.0
    %3100 = vmatpush1.msra.mxu0 0.0
    %3101 = vmatprep.subr.mxu0 0.0
    %3102 = vmatpush1.msra.mxu0 0.0
    %3103 = vmatprep.subr.mxu0 0.0
    %3104 = vmatpush1.msra.mxu0 0.0
    %3105 = vmatprep.subr.mxu0 0.0
    %3106 = vmatpush1.msra.mxu0 0.0
    %3107 = vmatprep.subr.mxu0 0.0
    %3108 = vmatpush1.msra.mxu0 0.0
    %3109 = vmatprep.subr.mxu0 0.0
    %3110 = vmatpush1.msra.mxu0 0.0
    %3111 = vmatprep.subr.mxu0 0.0
    %3112 = vmatpush1.msra.mxu0 0.0
    %3113 = vmatprep.subr.mxu0 0.0
    %3114 = vmatpush1.msra.mxu0 0.0
    %3115 = vmatprep.subr.mxu0 0.0
    %3116 = vmatpush1.msra.mxu0 0.0
    %3117 = vmatprep.subr.mxu0 0.0
    %3118 = vmatpush1.msra.mxu0 0.0
    %3119 = vmatprep.subr.mxu0 0.0
    %3120 = vmatpush1.msra.mxu0 0.0
    %3121 = vmatprep.subr.mxu0 0.0
    %3122 = vmatpush1.msra.mxu0 0.0
    %3123 = vmatprep.subr.mxu0 0.0
    %3124 = vmatpush1.msra.mxu0 0.0
    %3125 = vmatprep.mubr.f32.mxu0 0.0
    %3126 = vmatmul.mubr.f32.gmra.mrb[0].mxu0 %v3032
    %v3127 = vpop.f32.mrb[0].mxu0
    %v3128 = vadd.f32 %v3059, %v3127
    %v3129 = vpop.f32.mrb[0].mxu0
    %3130 = vmatprep.mubr.f32.mxu0 0.0
    %3131 = vmatmul.mubr.f32.gmra.mrb[0].mxu0 %v3033
    %v3132 = vpop.f32.mrb[0].mxu0
    %v3133 = vadd.f32 %v3059, %v3132
    %v3134 = vpop.f32.mrb[0].mxu0
    %3135 = vmatprep.mubr.f32.mxu0 0.0
    %3136 = vmatmul.mubr.f32.gmra.mrb[0].mxu0 %v3034
    %v3137 = vpop.f32.mrb[0].mxu0
    %v3138 = vadd.f32 %v3059, %v3137
    %v3139 = vpop.f32.mrb[0].mxu0
    %3140 = vmatprep.mubr.f32.mxu0 0.0
    %3141 = vmatmul.mubr.f32.gmra.mrb[0].mxu0 %v3035
    %v3142 = vpop.f32.mrb[0].mxu0
    %v3143 = vadd.f32 %v3059, %v3142
    %v3144 = vpop.f32.mrb[0].mxu0
    %3145 = vdwg.mxu0
    %v3147 = vlaneseq
    %v3148 = vshrl.u32 %v3147, 7
    %v3149 = vsub.s32 0, %v3148
    %v3150 = vrot.slane %v3036, %v3149
    %v3152 = vmul.f32 %v3128, %v3150
    %v3153 = vmul.f32 %v3133, %v3150
    %v3154 = vmul.f32 %v3138, %v3150
    %v3155 = vmul.f32 %v3143, %v3150
    %v3157 = vlaneseq
    %v3158 = vshrl.u32 %v3157, 7
    %v3159 = vsub.s32 0, %v3158
    %v3160 = vrot.slane %v3037, %v3159
    %v3162 = vadd.f32 %v3152, %v3160
    %v3163 = vadd.f32 %v3153, %v3160
    %v3164 = vadd.f32 %v3154, %v3160
    %v3165 = vadd.f32 %v3155, %v3160
    %v3166 = vmax.f32 %v3162, 0.0
    %v3167 = vmax.f32 %v3163, 0.0
    %v3168 = vmax.f32 %v3164, 0.0
    %v3169 = vmax.f32 %v3165, 0.0
    %v3170 = vadd.f32 %v3166, 0.0
    %v3171 = vadd.f32 %v3167, 0.0
    %v3172 = vadd.f32 %v3168, 0.0
    %v3173 = vadd.f32 %v3169, 0.0
    %s3174 = scalar_lea.vmem [#allocation14], 128
    %v3175 = vld [vmem:[%s3174] sm:$0xff]
    %v3176 = vld [vmem:[%s3174 + $0x8] sm:$0xff]
    %v3177 = vld [vmem:[%s3174 + $0x10] sm:$0xff]
    %v3178 = vld [vmem:[%s3174 + $0x18] sm:$0xff]
    %v3179 = vld [vmem:[%s3174 + $0x20] sm:$0xff]
    %v3180 = vld [vmem:[%s3174 + $0x28] sm:$0xff]
    %v3181 = vld [vmem:[%s3174 + $0x30] sm:$0xff]
    %v3182 = vld [vmem:[%s3174 + $0x38] sm:$0xff]
    %v3183 = vld [vmem:[%s3174 + $0x40] sm:$0xff]
    %v3184 = vld [vmem:[%s3174 + $0x48] sm:$0xff]
    %v3185 = vld [vmem:[%s3174 + $0x50] sm:$0xff]
    %v3186 = vld [vmem:[%s3174 + $0x58] sm:$0xff]
    %v3187 = vld [vmem:[%s3174 + $0x60] sm:$0xff]
    %v3188 = vld [vmem:[%s3174 + $0x68] sm:$0xff]
    %v3189 = vld [vmem:[%s3174 + $0x70] sm:$0xff]
    %v3190 = vld [vmem:[%s3174 + $0x78] sm:$0xff]
    %3191 = vmatprep.subr.mxu0 0.0
    %3192 = vmatpush1.msra.mxu0 %v3175
    %3193 = vmatprep.subr.mxu0 0.0
    %3194 = vmatpush1.msra.mxu0 %v3176
    %3195 = vmatprep.subr.mxu0 0.0
    %3196 = vmatpush1.msra.mxu0 %v3177
    %3197 = vmatprep.subr.mxu0 0.0
    %3198 = vmatpush1.msra.mxu0 %v3178
    %3199 = vmatprep.subr.mxu0 0.0
    %3200 = vmatpush1.msra.mxu0 %v3179
    %3201 = vmatprep.subr.mxu0 0.0
    %3202 = vmatpush1.msra.mxu0 %v3180
    %3203 = vmatprep.subr.mxu0 0.0
    %3204 = vmatpush1.msra.mxu0 %v3181
    %3205 = vmatprep.subr.mxu0 0.0
    %3206 = vmatpush1.msra.mxu0 %v3182
    %3207 = vmatprep.subr.mxu0 0.0
    %3208 = vmatpush1.msra.mxu0 %v3183
    %3209 = vmatprep.subr.mxu0 0.0
    %3210 = vmatpush1.msra.mxu0 %v3184
    %3211 = vmatprep.subr.mxu0 0.0
    %3212 = vmatpush1.msra.mxu0 %v3185
    %3213 = vmatprep.subr.mxu0 0.0
    %3214 = vmatpush1.msra.mxu0 %v3186
    %3215 = vmatprep.subr.mxu0 0.0
    %3216 = vmatpush1.msra.mxu0 %v3187
    %3217 = vmatprep.subr.mxu0 0.0
    %3218 = vmatpush1.msra.mxu0 %v3188
    %3219 = vmatprep.subr.mxu0 0.0
    %3220 = vmatpush1.msra.mxu0 %v3189
    %3221 = vmatprep.subr.mxu0 0.0
    %3222 = vmatpush1.msra.mxu0 %v3190
    %3223 = vmatprep.subr.mxu0 0.0
    %3224 = vmatpush1.msra.mxu0 0.0
    %3225 = vmatprep.subr.mxu0 0.0
    %3226 = vmatpush1.msra.mxu0 0.0
    %3227 = vmatprep.subr.mxu0 0.0
    %3228 = vmatpush1.msra.mxu0 0.0
    %3229 = vmatprep.subr.mxu0 0.0
    %3230 = vmatpush1.msra.mxu0 0.0
    %3231 = vmatprep.subr.mxu0 0.0
    %3232 = vmatpush1.msra.mxu0 0.0
    %3233 = vmatprep.subr.mxu0 0.0
    %3234 = vmatpush1.msra.mxu0 0.0
    %3235 = vmatprep.subr.mxu0 0.0
    %3236 = vmatpush1.msra.mxu0 0.0
    %3237 = vmatprep.subr.mxu0 0.0
    %3238 = vmatpush1.msra.mxu0 0.0
    %3239 = vmatprep.subr.mxu0 0.0
    %3240 = vmatpush1.msra.mxu0 0.0
    %3241 = vmatprep.subr.mxu0 0.0
    %3242 = vmatpush1.msra.mxu0 0.0
    %3243 = vmatprep.subr.mxu0 0.0
    %3244 = vmatpush1.msra.mxu0 0.0
    %3245 = vmatprep.subr.mxu0 0.0
    %3246 = vmatpush1.msra.mxu0 0.0
    %3247 = vmatprep.subr.mxu0 0.0
    %3248 = vmatpush1.msra.mxu0 0.0
    %3249 = vmatprep.subr.mxu0 0.0
    %3250 = vmatpush1.msra.mxu0 0.0
    %3251 = vmatprep.subr.mxu0 0.0
    %3252 = vmatpush1.msra.mxu0 0.0
    %3253 = vmatprep.subr.mxu0 0.0
    %3254 = vmatpush1.msra.mxu0 0.0
    %3255 = vmatprep.mubr.f32.mxu0 0.0
    %3256 = vmatmul.mubr.f32.gmra.mrb[0].mxu0 %v3032
    %v3257 = vpop.f32.mrb[0].mxu0
    %v3258 = vadd.f32 0.0, %v3257
    %v3259 = vpop.f32.mrb[0].mxu0
    %3260 = vmatprep.mubr.f32.mxu0 0.0
    %3261 = vmatmul.mubr.f32.gmra.mrb[0].mxu0 %v3033
    %v3262 = vpop.f32.mrb[0].mxu0
    %v3263 = vadd.f32 0.0, %v3262
    %v3264 = vpop.f32.mrb[0].mxu0
    %3265 = vmatprep.mubr.f32.mxu0 0.0
    %3266 = vmatmul.mubr.f32.gmra.mrb[0].mxu0 %v3034
    %v3267 = vpop.f32.mrb[0].mxu0
    %v3268 = vadd.f32 0.0, %v3267
    %v3269 = vpop.f32.mrb[0].mxu0
    %3270 = vmatprep.mubr.f32.mxu0 0.0
    %3271 = vmatmul.mubr.f32.gmra.mrb[0].mxu0 %v3035
    %v3272 = vpop.f32.mrb[0].mxu0
    %v3273 = vadd.f32 0.0, %v3272
    %v3274 = vpop.f32.mrb[0].mxu0
    %3275 = vdwg.mxu0
    %v3276 = vrot.slane %v3258, 7
    %v3277 = vrot.slane %v3263, 7
    %v3278 = vrot.slane %v3268, 7
    %v3279 = vrot.slane %v3273, 7
    %vm3280 = vcmp.lt.s32.totalorder %v189, 1
    %v3281 = vsel %vm3280, %v3278, %v3279
    %v3282 = vsel %vm3280, %v3277, %v3278
    %v3283 = vsel %vm3280, %v3276, %v3277
    %v3284 = vsel %vm3280, %v3279, %v3276
    %v3285 = vmul.f32 %v3284, %v249
    %v3286 = vmul.f32 %v3283, %v250
    %v3287 = vmul.f32 %v3282, %v251
    %v3288 = vmul.f32 %v3281, %v252
    %v3289 = vadd.f32 %v3285, 0.0
    %v3290 = vadd.f32 %v3286, 0.0
    %v3291 = vadd.f32 %v3287, 0.0
    %v3292 = vadd.f32 %v3288, 0.0
    %s3293 = scalar_lea.vmem [#allocation14], 256
    %v3294 = vld [vmem:[%s3293] sm:$0xff]
    %v3295 = vld [vmem:[%s3293 + $0x8] sm:$0xff]
    %v3296 = vld [vmem:[%s3293 + $0x10] sm:$0xff]
    %v3297 = vld [vmem:[%s3293 + $0x18] sm:$0xff]
    %v3298 = vld [vmem:[%s3293 + $0x20] sm:$0xff]
    %v3299 = vld [vmem:[%s3293 + $0x28] sm:$0xff]
    %v3300 = vld [vmem:[%s3293 + $0x30] sm:$0xff]
    %v3301 = vld [vmem:[%s3293 + $0x38] sm:$0xff]
    %v3302 = vld [vmem:[%s3293 + $0x40] sm:$0xff]
    %v3303 = vld [vmem:[%s3293 + $0x48] sm:$0xff]
    %v3304 = vld [vmem:[%s3293 + $0x50] sm:$0xff]
    %v3305 = vld [vmem:[%s3293 + $0x58] sm:$0xff]
    %v3306 = vld [vmem:[%s3293 + $0x60] sm:$0xff]
    %v3307 = vld [vmem:[%s3293 + $0x68] sm:$0xff]
    %v3308 = vld [vmem:[%s3293 + $0x70] sm:$0xff]
    %v3309 = vld [vmem:[%s3293 + $0x78] sm:$0xff]
    %3310 = vmatprep.subr.mxu0 0.0
    %3311 = vmatpush1.msra.mxu0 %v3294
    %3312 = vmatprep.subr.mxu0 0.0
    %3313 = vmatpush1.msra.mxu0 %v3295
    %3314 = vmatprep.subr.mxu0 0.0
    %3315 = vmatpush1.msra.mxu0 %v3296
    %3316 = vmatprep.subr.mxu0 0.0
    %3317 = vmatpush1.msra.mxu0 %v3297
    %3318 = vmatprep.subr.mxu0 0.0
    %3319 = vmatpush1.msra.mxu0 %v3298
    %3320 = vmatprep.subr.mxu0 0.0
    %3321 = vmatpush1.msra.mxu0 %v3299
    %3322 = vmatprep.subr.mxu0 0.0
    %3323 = vmatpush1.msra.mxu0 %v3300
    %3324 = vmatprep.subr.mxu0 0.0
    %3325 = vmatpush1.msra.mxu0 %v3301
    %3326 = vmatprep.subr.mxu0 0.0
    %3327 = vmatpush1.msra.mxu0 %v3302
    %3328 = vmatprep.subr.mxu0 0.0
    %3329 = vmatpush1.msra.mxu0 %v3303
    %3330 = vmatprep.subr.mxu0 0.0
    %3331 = vmatpush1.msra.mxu0 %v3304
    %3332 = vmatprep.subr.mxu0 0.0
    %3333 = vmatpush1.msra.mxu0 %v3305
    %3334 = vmatprep.subr.mxu0 0.0
    %3335 = vmatpush1.msra.mxu0 %v3306
    %3336 = vmatprep.subr.mxu0 0.0
    %3337 = vmatpush1.msra.mxu0 %v3307
    %3338 = vmatprep.subr.mxu0 0.0
    %3339 = vmatpush1.msra.mxu0 %v3308
    %3340 = vmatprep.subr.mxu0 0.0
    %3341 = vmatpush1.msra.mxu0 %v3309
    %3342 = vmatprep.subr.mxu0 0.0
    %3343 = vmatpush1.msra.mxu0 0.0
    %3344 = vmatprep.subr.mxu0 0.0
    %3345 = vmatpush1.msra.mxu0 0.0
    %3346 = vmatprep.subr.mxu0 0.0
    %3347 = vmatpush1.msra.mxu0 0.0
    %3348 = vmatprep.subr.mxu0 0.0
    %3349 = vmatpush1.msra.mxu0 0.0
    %3350 = vmatprep.subr.mxu0 0.0
    %3351 = vmatpush1.msra.mxu0 0.0
    %3352 = vmatprep.subr.mxu0 0.0
    %3353 = vmatpush1.msra.mxu0 0.0
    %3354 = vmatprep.subr.mxu0 0.0
    %3355 = vmatpush1.msra.mxu0 0.0
    %3356 = vmatprep.subr.mxu0 0.0
    %3357 = vmatpush1.msra.mxu0 0.0
    %3358 = vmatprep.subr.mxu0 0.0
    %3359 = vmatpush1.msra.mxu0 0.0
    %3360 = vmatprep.subr.mxu0 0.0
    %3361 = vmatpush1.msra.mxu0 0.0
    %3362 = vmatprep.subr.mxu0 0.0
    %3363 = vmatpush1.msra.mxu0 0.0
    %3364 = vmatprep.subr.mxu0 0.0
    %3365 = vmatpush1.msra.mxu0 0.0
    %3366 = vmatprep.subr.mxu0 0.0
    %3367 = vmatpush1.msra.mxu0 0.0
    %3368 = vmatprep.subr.mxu0 0.0
    %3369 = vmatpush1.msra.mxu0 0.0
    %3370 = vmatprep.subr.mxu0 0.0
    %3371 = vmatpush1.msra.mxu0 0.0
    %3372 = vmatprep.subr.mxu0 0.0
    %3373 = vmatpush1.msra.mxu0 0.0
    %3374 = vmatprep.mubr.f32.mxu0 0.0
    %3375 = vmatmul.mubr.f32.gmra.mrb[0].mxu0 %v3032
    %v3376 = vpop.f32.mrb[0].mxu0
    %v3377 = vadd.f32 0.0, %v3376
    %v3378 = vpop.f32.mrb[0].mxu0
    %3379 = vmatprep.mubr.f32.mxu0 0.0
    %3380 = vmatmul.mubr.f32.gmra.mrb[0].mxu0 %v3033
    %v3381 = vpop.f32.mrb[0].mxu0
    %v3382 = vadd.f32 0.0, %v3381
    %v3383 = vpop.f32.mrb[0].mxu0
    %3384 = vmatprep.mubr.f32.mxu0 0.0
    %3385 = vmatmul.mubr.f32.gmra.mrb[0].mxu0 %v3034
    %v3386 = vpop.f32.mrb[0].mxu0
    %v3387 = vadd.f32 0.0, %v3386
    %v3388 = vpop.f32.mrb[0].mxu0
    %3389 = vmatprep.mubr.f32.mxu0 0.0
    %3390 = vmatmul.mubr.f32.gmra.mrb[0].mxu0 %v3035
    %v3391 = vpop.f32.mrb[0].mxu0
    %v3392 = vadd.f32 0.0, %v3391
    %v3393 = vpop.f32.mrb[0].mxu0
    %3394 = vdwg.mxu0
    %v3395 = vadd.f32 %v3289, %v3377
    %v3396 = vadd.f32 %v3290, %v3382
    %v3397 = vadd.f32 %v3291, %v3387
    %v3398 = vadd.f32 %v3292, %v3392
    %s3399 = scalar_lea.vmem [#allocation14], 384
    %v3400 = vld [vmem:[%s3399] sm:$0xff]
    %v3401 = vld [vmem:[%s3399 + $0x8] sm:$0xff]
    %v3402 = vld [vmem:[%s3399 + $0x10] sm:$0xff]
    %v3403 = vld [vmem:[%s3399 + $0x18] sm:$0xff]
    %v3404 = vld [vmem:[%s3399 + $0x20] sm:$0xff]
    %v3405 = vld [vmem:[%s3399 + $0x28] sm:$0xff]
    %v3406 = vld [vmem:[%s3399 + $0x30] sm:$0xff]
    %v3407 = vld [vmem:[%s3399 + $0x38] sm:$0xff]
    %v3408 = vld [vmem:[%s3399 + $0x40] sm:$0xff]
    %v3409 = vld [vmem:[%s3399 + $0x48] sm:$0xff]
    %v3410 = vld [vmem:[%s3399 + $0x50] sm:$0xff]
    %v3411 = vld [vmem:[%s3399 + $0x58] sm:$0xff]
    %v3412 = vld [vmem:[%s3399 + $0x60] sm:$0xff]
    %v3413 = vld [vmem:[%s3399 + $0x68] sm:$0xff]
    %v3414 = vld [vmem:[%s3399 + $0x70] sm:$0xff]
    %v3415 = vld [vmem:[%s3399 + $0x78] sm:$0xff]
    %3416 = vmatprep.subr.mxu0 0.0
    %3417 = vmatpush1.msra.mxu0 %v3400
    %3418 = vmatprep.subr.mxu0 0.0
    %3419 = vmatpush1.msra.mxu0 %v3401
    %3420 = vmatprep.subr.mxu0 0.0
    %3421 = vmatpush1.msra.mxu0 %v3402
    %3422 = vmatprep.subr.mxu0 0.0
    %3423 = vmatpush1.msra.mxu0 %v3403
    %3424 = vmatprep.subr.mxu0 0.0
    %3425 = vmatpush1.msra.mxu0 %v3404
    %3426 = vmatprep.subr.mxu0 0.0
    %3427 = vmatpush1.msra.mxu0 %v3405
    %3428 = vmatprep.subr.mxu0 0.0
    %3429 = vmatpush1.msra.mxu0 %v3406
    %3430 = vmatprep.subr.mxu0 0.0
    %3431 = vmatpush1.msra.mxu0 %v3407
    %3432 = vmatprep.subr.mxu0 0.0
    %3433 = vmatpush1.msra.mxu0 %v3408
    %3434 = vmatprep.subr.mxu0 0.0
    %3435 = vmatpush1.msra.mxu0 %v3409
    %3436 = vmatprep.subr.mxu0 0.0
    %3437 = vmatpush1.msra.mxu0 %v3410
    %3438 = vmatprep.subr.mxu0 0.0
    %3439 = vmatpush1.msra.mxu0 %v3411
    %3440 = vmatprep.subr.mxu0 0.0
    %3441 = vmatpush1.msra.mxu0 %v3412
    %3442 = vmatprep.subr.mxu0 0.0
    %3443 = vmatpush1.msra.mxu0 %v3413
    %3444 = vmatprep.subr.mxu0 0.0
    %3445 = vmatpush1.msra.mxu0 %v3414
    %3446 = vmatprep.subr.mxu0 0.0
    %3447 = vmatpush1.msra.mxu0 %v3415
    %3448 = vmatprep.subr.mxu0 0.0
    %3449 = vmatpush1.msra.mxu0 0.0
    %3450 = vmatprep.subr.mxu0 0.0
    %3451 = vmatpush1.msra.mxu0 0.0
    %3452 = vmatprep.subr.mxu0 0.0
    %3453 = vmatpush1.msra.mxu0 0.0
    %3454 = vmatprep.subr.mxu0 0.0
    %3455 = vmatpush1.msra.mxu0 0.0
    %3456 = vmatprep.subr.mxu0 0.0
    %3457 = vmatpush1.msra.mxu0 0.0
    %3458 = vmatprep.subr.mxu0 0.0
    %3459 = vmatpush1.msra.mxu0 0.0
    %3460 = vmatprep.subr.mxu0 0.0
    %3461 = vmatpush1.msra.mxu0 0.0
    %3462 = vmatprep.subr.mxu0 0.0
    %3463 = vmatpush1.msra.mxu0 0.0
    %3464 = vmatprep.subr.mxu0 0.0
    %3465 = vmatpush1.msra.mxu0 0.0
    %3466 = vmatprep.subr.mxu0 0.0
    %3467 = vmatpush1.msra.mxu0 0.0
    %3468 = vmatprep.subr.mxu0 0.0
    %3469 = vmatpush1.msra.mxu0 0.0
    %3470 = vmatprep.subr.mxu0 0.0
    %3471 = vmatpush1.msra.mxu0 0.0
    %3472 = vmatprep.subr.mxu0 0.0
    %3473 = vmatpush1.msra.mxu0 0.0
    %3474 = vmatprep.subr.mxu0 0.0
    %3475 = vmatpush1.msra.mxu0 0.0
    %3476 = vmatprep.subr.mxu0 0.0
    %3477 = vmatpush1.msra.mxu0 0.0
    %3478 = vmatprep.subr.mxu0 0.0
    %3479 = vmatpush1.msra.mxu0 0.0
    %3480 = vmatprep.mubr.f32.mxu0 0.0
    %3481 = vmatmul.mubr.f32.gmra.mrb[0].mxu0 %v3032
    %v3482 = vpop.f32.mrb[0].mxu0
    %v3483 = vadd.f32 0.0, %v3482
    %v3484 = vpop.f32.mrb[0].mxu0
    %3485 = vmatprep.mubr.f32.mxu0 0.0
    %3486 = vmatmul.mubr.f32.gmra.mrb[0].mxu0 %v3033
    %v3487 = vpop.f32.mrb[0].mxu0
    %v3488 = vadd.f32 0.0, %v3487
    %v3489 = vpop.f32.mrb[0].mxu0
    %3490 = vmatprep.mubr.f32.mxu0 0.0
    %3491 = vmatmul.mubr.f32.gmra.mrb[0].mxu0 %v3034
    %v3492 = vpop.f32.mrb[0].mxu0
    %v3493 = vadd.f32 0.0, %v3492
    %v3494 = vpop.f32.mrb[0].mxu0
    %3495 = vmatprep.mubr.f32.mxu0 0.0
    %3496 = vmatmul.mubr.f32.gmra.mrb[0].mxu0 %v3035
    %v3497 = vpop.f32.mrb[0].mxu0
    %v3498 = vadd.f32 0.0, %v3497
    %v3499 = vpop.f32.mrb[0].mxu0
    %3500 = vdwg.mxu0
    %v3501 = vrot.slane %v3483, 1
    %v3502 = vrot.slane %v3488, 1
    %v3503 = vrot.slane %v3493, 1
    %v3504 = vrot.slane %v3498, 1
    %vm3505 = vcmp.lt.s32.totalorder %v189, 7
    %v3506 = vsel %vm3505, %v3503, %v3504
    %v3507 = vsel %vm3505, %v3502, %v3503
    %v3508 = vsel %vm3505, %v3501, %v3502
    %v3509 = vsel %vm3505, %v3504, %v3501
    %v3510 = vmul.f32 %v3508, %v261
    %v3511 = vmul.f32 %v3507, %v262
    %v3512 = vmul.f32 %v3506, %v263
    %v3513 = vmul.f32 %v3509, %v264
    %v3514 = vadd.f32 %v3395, %v3510
    %v3515 = vadd.f32 %v3396, %v3511
    %v3516 = vadd.f32 %v3397, %v3512
    %v3517 = vadd.f32 %v3398, %v3513
    %s3518 = scalar_lea.vmem [#allocation16], 1
    %v3519 = vld [vmem:[%s3518] sm:$0x1]
    %v3521 = vlaneseq
    %v3522 = vshrl.u32 %v3521, 7
    %v3523 = vsub.s32 0, %v3522
    %v3524 = vrot.slane %v3519, %v3523
    %v3526 = vadd.f32 %v3514, %v3524
    %v3527 = vadd.f32 %v3515, %v3524
    %v3528 = vadd.f32 %v3516, %v3524
    %v3529 = vadd.f32 %v3517, %v3524
    %v3530 = vmul.f32 %v3526, %v3150
    %v3531 = vmul.f32 %v3527, %v3150
    %v3532 = vmul.f32 %v3528, %v3150
    %v3533 = vmul.f32 %v3529, %v3150
    %v3534 = vadd.f32 %v3530, %v3160
    %v3535 = vadd.f32 %v3531, %v3160
    %v3536 = vadd.f32 %v3532, %v3160
    %v3537 = vadd.f32 %v3533, %v3160
    %v3538 = vmax.f32 %v3534, 0.0
    %v3539 = vmax.f32 %v3535, 0.0
    %v3540 = vmax.f32 %v3536, 0.0
    %v3541 = vmax.f32 %v3537, 0.0
    %v3542 = vadd.f32 %v3170, %v3538
    %v3543 = vadd.f32 %v3171, %v3539
    %v3544 = vadd.f32 %v3172, %v3540
    %v3545 = vadd.f32 %v3173, %v3541
    %s3546 = scalar_lea.vmem [#allocation14], 512
    %v3547 = vld [vmem:[%s3546] sm:$0xff]
    %v3548 = vld [vmem:[%s3546 + $0x8] sm:$0xff]
    %v3549 = vld [vmem:[%s3546 + $0x10] sm:$0xff]
    %v3550 = vld [vmem:[%s3546 + $0x18] sm:$0xff]
    %v3551 = vld [vmem:[%s3546 + $0x20] sm:$0xff]
    %v3552 = vld [vmem:[%s3546 + $0x28] sm:$0xff]
    %v3553 = vld [vmem:[%s3546 + $0x30] sm:$0xff]
    %v3554 = vld [vmem:[%s3546 + $0x38] sm:$0xff]
    %v3555 = vld [vmem:[%s3546 + $0x40] sm:$0xff]
    %v3556 = vld [vmem:[%s3546 + $0x48] sm:$0xff]
    %v3557 = vld [vmem:[%s3546 + $0x50] sm:$0xff]
    %v3558 = vld [vmem:[%s3546 + $0x58] sm:$0xff]
    %v3559 = vld [vmem:[%s3546 + $0x60] sm:$0xff]
    %v3560 = vld [vmem:[%s3546 + $0x68] sm:$0xff]
    %v3561 = vld [vmem:[%s3546 + $0x70] sm:$0xff]
    %v3562 = vld [vmem:[%s3546 + $0x78] sm:$0xff]
    %3563 = vmatprep.subr.mxu0 0.0
    %3564 = vmatpush1.msra.mxu0 %v3547
    %3565 = vmatprep.subr.mxu0 0.0
    %3566 = vmatpush1.msra.mxu0 %v3548
    %3567 = vmatprep.subr.mxu0 0.0
    %3568 = vmatpush1.msra.mxu0 %v3549
    %3569 = vmatprep.subr.mxu0 0.0
    %3570 = vmatpush1.msra.mxu0 %v3550
    %3571 = vmatprep.subr.mxu0 0.0
    %3572 = vmatpush1.msra.mxu0 %v3551
    %3573 = vmatprep.subr.mxu0 0.0
    %3574 = vmatpush1.msra.mxu0 %v3552
    %3575 = vmatprep.subr.mxu0 0.0
    %3576 = vmatpush1.msra.mxu0 %v3553
    %3577 = vmatprep.subr.mxu0 0.0
    %3578 = vmatpush1.msra.mxu0 %v3554
    %3579 = vmatprep.subr.mxu0 0.0
    %3580 = vmatpush1.msra.mxu0 %v3555
    %3581 = vmatprep.subr.mxu0 0.0
    %3582 = vmatpush1.msra.mxu0 %v3556
    %3583 = vmatprep.subr.mxu0 0.0
    %3584 = vmatpush1.msra.mxu0 %v3557
    %3585 = vmatprep.subr.mxu0 0.0
    %3586 = vmatpush1.msra.mxu0 %v3558
    %3587 = vmatprep.subr.mxu0 0.0
    %3588 = vmatpush1.msra.mxu0 %v3559
    %3589 = vmatprep.subr.mxu0 0.0
    %3590 = vmatpush1.msra.mxu0 %v3560
    %3591 = vmatprep.subr.mxu0 0.0
    %3592 = vmatpush1.msra.mxu0 %v3561
    %3593 = vmatprep.subr.mxu0 0.0
    %3594 = vmatpush1.msra.mxu0 %v3562
    %3595 = vmatprep.subr.mxu0 0.0
    %3596 = vmatpush1.msra.mxu0 0.0
    %3597 = vmatprep.subr.mxu0 0.0
    %3598 = vmatpush1.msra.mxu0 0.0
    %3599 = vmatprep.subr.mxu0 0.0
    %3600 = vmatpush1.msra.mxu0 0.0
    %3601 = vmatprep.subr.mxu0 0.0
    %3602 = vmatpush1.msra.mxu0 0.0
    %3603 = vmatprep.subr.mxu0 0.0
    %3604 = vmatpush1.msra.mxu0 0.0
    %3605 = vmatprep.subr.mxu0 0.0
    %3606 = vmatpush1.msra.mxu0 0.0
    %3607 = vmatprep.subr.mxu0 0.0
    %3608 = vmatpush1.msra.mxu0 0.0
    %3609 = vmatprep.subr.mxu0 0.0
    %3610 = vmatpush1.msra.mxu0 0.0
    %3611 = vmatprep.subr.mxu0 0.0
    %3612 = vmatpush1.msra.mxu0 0.0
    %3613 = vmatprep.subr.mxu0 0.0
    %3614 = vmatpush1.msra.mxu0 0.0
    %3615 = vmatprep.subr.mxu0 0.0
    %3616 = vmatpush1.msra.mxu0 0.0
    %3617 = vmatprep.subr.mxu0 0.0
    %3618 = vmatpush1.msra.mxu0 0.0
    %3619 = vmatprep.subr.mxu0 0.0
    %3620 = vmatpush1.msra.mxu0 0.0
    %3621 = vmatprep.subr.mxu0 0.0
    %3622 = vmatpush1.msra.mxu0 0.0
    %3623 = vmatprep.subr.mxu0 0.0
    %3624 = vmatpush1.msra.mxu0 0.0
    %3625 = vmatprep.subr.mxu0 0.0
    %3626 = vmatpush1.msra.mxu0 0.0
    %3627 = vmatprep.mubr.f32.mxu0 0.0
    %3628 = vmatmul.mubr.f32.gmra.mrb[0].mxu0 %v3032
    %v3629 = vpop.f32.mrb[0].mxu0
    %v3630 = vadd.f32 0.0, %v3629
    %v3631 = vpop.f32.mrb[0].mxu0
    %3632 = vmatprep.mubr.f32.mxu0 0.0
    %3633 = vmatmul.mubr.f32.gmra.mrb[0].mxu0 %v3033
    %v3634 = vpop.f32.mrb[0].mxu0
    %v3635 = vadd.f32 0.0, %v3634
    %v3636 = vpop.f32.mrb[0].mxu0
    %3637 = vmatprep.mubr.f32.mxu0 0.0
    %3638 = vmatmul.mubr.f32.gmra.mrb[0].mxu0 %v3034
    %v3639 = vpop.f32.mrb[0].mxu0
    %v3640 = vadd.f32 0.0, %v3639
    %v3641 = vpop.f32.mrb[0].mxu0
    %3642 = vmatprep.mubr.f32.mxu0 0.0
    %3643 = vmatmul.mubr.f32.gmra.mrb[0].mxu0 %v3035
    %v3644 = vpop.f32.mrb[0].mxu0
    %v3645 = vadd.f32 0.0, %v3644
    %v3646 = vpop.f32.mrb[0].mxu0
    %3647 = vdwg.mxu0
    %v3648 = vrot.slane %v3630, 6
    %v3649 = vrot.slane %v3635, 6
    %v3650 = vrot.slane %v3640, 6
    %v3651 = vrot.slane %v3645, 6
    %vm3652 = vcmp.lt.s32.totalorder %v189, 2
    %v3653 = vsel %vm3652, %v3650, %v3651
    %v3654 = vsel %vm3652, %v3649, %v3650
    %v3655 = vsel %vm3652, %v3648, %v3649
    %v3656 = vsel %vm3652, %v3651, %v3648
    %v3657 = vmul.f32 %v3656, %v273
    %v3658 = vmul.f32 %v3655, %v274
    %v3659 = vmul.f32 %v3654, %v275
    %v3660 = vmul.f32 %v3653, %v276
    %v3661 = vadd.f32 %v3657, 0.0
    %v3662 = vadd.f32 %v3658, 0.0
    %v3663 = vadd.f32 %v3659, 0.0
    %v3664 = vadd.f32 %v3660, 0.0
    %s3665 = scalar_lea.vmem [#allocation14], 640
    %v3666 = vld [vmem:[%s3665] sm:$0xff]
    %v3667 = vld [vmem:[%s3665 + $0x8] sm:$0xff]
    %v3668 = vld [vmem:[%s3665 + $0x10] sm:$0xff]
    %v3669 = vld [vmem:[%s3665 + $0x18] sm:$0xff]
    %v3670 = vld [vmem:[%s3665 + $0x20] sm:$0xff]
    %v3671 = vld [vmem:[%s3665 + $0x28] sm:$0xff]
    %v3672 = vld [vmem:[%s3665 + $0x30] sm:$0xff]
    %v3673 = vld [vmem:[%s3665 + $0x38] sm:$0xff]
    %v3674 = vld [vmem:[%s3665 + $0x40] sm:$0xff]
    %v3675 = vld [vmem:[%s3665 + $0x48] sm:$0xff]
    %v3676 = vld [vmem:[%s3665 + $0x50] sm:$0xff]
    %v3677 = vld [vmem:[%s3665 + $0x58] sm:$0xff]
    %v3678 = vld [vmem:[%s3665 + $0x60] sm:$0xff]
    %v3679 = vld [vmem:[%s3665 + $0x68] sm:$0xff]
    %v3680 = vld [vmem:[%s3665 + $0x70] sm:$0xff]
    %v3681 = vld [vmem:[%s3665 + $0x78] sm:$0xff]
    %3682 = vmatprep.subr.mxu0 0.0
    %3683 = vmatpush1.msra.mxu0 %v3666
    %3684 = vmatprep.subr.mxu0 0.0
    %3685 = vmatpush1.msra.mxu0 %v3667
    %3686 = vmatprep.subr.mxu0 0.0
    %3687 = vmatpush1.msra.mxu0 %v3668
    %3688 = vmatprep.subr.mxu0 0.0
    %3689 = vmatpush1.msra.mxu0 %v3669
    %3690 = vmatprep.subr.mxu0 0.0
    %3691 = vmatpush1.msra.mxu0 %v3670
    %3692 = vmatprep.subr.mxu0 0.0
    %3693 = vmatpush1.msra.mxu0 %v3671
    %3694 = vmatprep.subr.mxu0 0.0
    %3695 = vmatpush1.msra.mxu0 %v3672
    %3696 = vmatprep.subr.mxu0 0.0
    %3697 = vmatpush1.msra.mxu0 %v3673
    %3698 = vmatprep.subr.mxu0 0.0
    %3699 = vmatpush1.msra.mxu0 %v3674
    %3700 = vmatprep.subr.mxu0 0.0
    %3701 = vmatpush1.msra.mxu0 %v3675
    %3702 = vmatprep.subr.mxu0 0.0
    %3703 = vmatpush1.msra.mxu0 %v3676
    %3704 = vmatprep.subr.mxu0 0.0
    %3705 = vmatpush1.msra.mxu0 %v3677
    %3706 = vmatprep.subr.mxu0 0.0
    %3707 = vmatpush1.msra.mxu0 %v3678
    %3708 = vmatprep.subr.mxu0 0.0
    %3709 = vmatpush1.msra.mxu0 %v3679
    %3710 = vmatprep.subr.mxu0 0.0
    %3711 = vmatpush1.msra.mxu0 %v3680
    %3712 = vmatprep.subr.mxu0 0.0
    %3713 = vmatpush1.msra.mxu0 %v3681
    %3714 = vmatprep.subr.mxu0 0.0
    %3715 = vmatpush1.msra.mxu0 0.0
    %3716 = vmatprep.subr.mxu0 0.0
    %3717 = vmatpush1.msra.mxu0 0.0
    %3718 = vmatprep.subr.mxu0 0.0
    %3719 = vmatpush1.msra.mxu0 0.0
    %3720 = vmatprep.subr.mxu0 0.0
    %3721 = vmatpush1.msra.mxu0 0.0
    %3722 = vmatprep.subr.mxu0 0.0
    %3723 = vmatpush1.msra.mxu0 0.0
    %3724 = vmatprep.subr.mxu0 0.0
    %3725 = vmatpush1.msra.mxu0 0.0
    %3726 = vmatprep.subr.mxu0 0.0
    %3727 = vmatpush1.msra.mxu0 0.0
    %3728 = vmatprep.subr.mxu0 0.0
    %3729 = vmatpush1.msra.mxu0 0.0
    %3730 = vmatprep.subr.mxu0 0.0
    %3731 = vmatpush1.msra.mxu0 0.0
    %3732 = vmatprep.subr.mxu0 0.0
    %3733 = vmatpush1.msra.mxu0 0.0
    %3734 = vmatprep.subr.mxu0 0.0
    %3735 = vmatpush1.msra.mxu0 0.0
    %3736 = vmatprep.subr.mxu0 0.0
    %3737 = vmatpush1.msra.mxu0 0.0
    %3738 = vmatprep.subr.mxu0 0.0
    %3739 = vmatpush1.msra.mxu0 0.0
    %3740 = vmatprep.subr.mxu0 0.0
    %3741 = vmatpush1.msra.mxu0 0.0
    %3742 = vmatprep.subr.mxu0 0.0
    %3743 = vmatpush1.msra.mxu0 0.0
    %3744 = vmatprep.subr.mxu0 0.0
    %3745 = vmatpush1.msra.mxu0 0.0
    %3746 = vmatprep.mubr.f32.mxu0 0.0
    %3747 = vmatmul.mubr.f32.gmra.mrb[0].mxu0 %v3032
    %v3748 = vpop.f32.mrb[0].mxu0
    %v3749 = vadd.f32 0.0, %v3748
    %v3750 = vpop.f32.mrb[0].mxu0
    %3751 = vmatprep.mubr.f32.mxu0 0.0
    %3752 = vmatmul.mubr.f32.gmra.mrb[0].mxu0 %v3033
    %v3753 = vpop.f32.mrb[0].mxu0
    %v3754 = vadd.f32 0.0, %v3753
    %v3755 = vpop.f32.mrb[0].mxu0
    %3756 = vmatprep.mubr.f32.mxu0 0.0
    %3757 = vmatmul.mubr.f32.gmra.mrb[0].mxu0 %v3034
    %v3758 = vpop.f32.mrb[0].mxu0
    %v3759 = vadd.f32 0.0, %v3758
    %v3760 = vpop.f32.mrb[0].mxu0
    %3761 = vmatprep.mubr.f32.mxu0 0.0
    %3762 = vmatmul.mubr.f32.gmra.mrb[0].mxu0 %v3035
    %v3763 = vpop.f32.mrb[0].mxu0
    %v3764 = vadd.f32 0.0, %v3763
    %v3765 = vpop.f32.mrb[0].mxu0
    %3766 = vdwg.mxu0
    %v3767 = vrot.slane %v3749, 7
    %v3768 = vrot.slane %v3754, 7
    %v3769 = vrot.slane %v3759, 7
    %v3770 = vrot.slane %v3764, 7
    %v3771 = vsel %vm3280, %v3769, %v3770
    %v3772 = vsel %vm3280, %v3768, %v3769
    %v3773 = vsel %vm3280, %v3767, %v3768
    %v3774 = vsel %vm3280, %v3770, %v3767
    %v3775 = vmul.f32 %v3774, %v249
    %v3776 = vmul.f32 %v3773, %v250
    %v3777 = vmul.f32 %v3772, %v251
    %v3778 = vmul.f32 %v3771, %v252
    %v3779 = vadd.f32 %v3661, %v3775
    %v3780 = vadd.f32 %v3662, %v3776
    %v3781 = vadd.f32 %v3663, %v3777
    %v3782 = vadd.f32 %v3664, %v3778
    %s3783 = scalar_lea.vmem [#allocation14], 768
    %v3784 = vld [vmem:[%s3783] sm:$0xff]
    %v3785 = vld [vmem:[%s3783 + $0x8] sm:$0xff]
    %v3786 = vld [vmem:[%s3783 + $0x10] sm:$0xff]
    %v3787 = vld [vmem:[%s3783 + $0x18] sm:$0xff]
    %v3788 = vld [vmem:[%s3783 + $0x20] sm:$0xff]
    %v3789 = vld [vmem:[%s3783 + $0x28] sm:$0xff]
    %v3790 = vld [vmem:[%s3783 + $0x30] sm:$0xff]
    %v3791 = vld [vmem:[%s3783 + $0x38] sm:$0xff]
    %v3792 = vld [vmem:[%s3783 + $0x40] sm:$0xff]
    %v3793 = vld [vmem:[%s3783 + $0x48] sm:$0xff]
    %v3794 = vld [vmem:[%s3783 + $0x50] sm:$0xff]
    %v3795 = vld [vmem:[%s3783 + $0x58] sm:$0xff]
    %v3796 = vld [vmem:[%s3783 + $0x60] sm:$0xff]
    %v3797 = vld [vmem:[%s3783 + $0x68] sm:$0xff]
    %v3798 = vld [vmem:[%s3783 + $0x70] sm:$0xff]
    %v3799 = vld [vmem:[%s3783 + $0x78] sm:$0xff]
    %3800 = vmatprep.subr.mxu0 0.0
    %3801 = vmatpush1.msra.mxu0 %v3784
    %3802 = vmatprep.subr.mxu0 0.0
    %3803 = vmatpush1.msra.mxu0 %v3785
    %3804 = vmatprep.subr.mxu0 0.0
    %3805 = vmatpush1.msra.mxu0 %v3786
    %3806 = vmatprep.subr.mxu0 0.0
    %3807 = vmatpush1.msra.mxu0 %v3787
    %3808 = vmatprep.subr.mxu0 0.0
    %3809 = vmatpush1.msra.mxu0 %v3788
    %3810 = vmatprep.subr.mxu0 0.0
    %3811 = vmatpush1.msra.mxu0 %v3789
    %3812 = vmatprep.subr.mxu0 0.0
    %3813 = vmatpush1.msra.mxu0 %v3790
    %3814 = vmatprep.subr.mxu0 0.0
    %3815 = vmatpush1.msra.mxu0 %v3791
    %3816 = vmatprep.subr.mxu0 0.0
    %3817 = vmatpush1.msra.mxu0 %v3792
    %3818 = vmatprep.subr.mxu0 0.0
    %3819 = vmatpush1.msra.mxu0 %v3793
    %3820 = vmatprep.subr.mxu0 0.0
    %3821 = vmatpush1.msra.mxu0 %v3794
    %3822 = vmatprep.subr.mxu0 0.0
    %3823 = vmatpush1.msra.mxu0 %v3795
    %3824 = vmatprep.subr.mxu0 0.0
    %3825 = vmatpush1.msra.mxu0 %v3796
    %3826 = vmatprep.subr.mxu0 0.0
    %3827 = vmatpush1.msra.mxu0 %v3797
    %3828 = vmatprep.subr.mxu0 0.0
    %3829 = vmatpush1.msra.mxu0 %v3798
    %3830 = vmatprep.subr.mxu0 0.0
    %3831 = vmatpush1.msra.mxu0 %v3799
    %3832 = vmatprep.subr.mxu0 0.0
    %3833 = vmatpush1.msra.mxu0 0.0
    %3834 = vmatprep.subr.mxu0 0.0
    %3835 = vmatpush1.msra.mxu0 0.0
    %3836 = vmatprep.subr.mxu0 0.0
    %3837 = vmatpush1.msra.mxu0 0.0
    %3838 = vmatprep.subr.mxu0 0.0
    %3839 = vmatpush1.msra.mxu0 0.0
    %3840 = vmatprep.subr.mxu0 0.0
    %3841 = vmatpush1.msra.mxu0 0.0
    %3842 = vmatprep.subr.mxu0 0.0
    %3843 = vmatpush1.msra.mxu0 0.0
    %3844 = vmatprep.subr.mxu0 0.0
    %3845 = vmatpush1.msra.mxu0 0.0
    %3846 = vmatprep.subr.mxu0 0.0
    %3847 = vmatpush1.msra.mxu0 0.0
    %3848 = vmatprep.subr.mxu0 0.0
    %3849 = vmatpush1.msra.mxu0 0.0
    %3850 = vmatprep.subr.mxu0 0.0
    %3851 = vmatpush1.msra.mxu0 0.0
    %3852 = vmatprep.subr.mxu0 0.0
    %3853 = vmatpush1.msra.mxu0 0.0
    %3854 = vmatprep.subr.mxu0 0.0
    %3855 = vmatpush1.msra.mxu0 0.0
    %3856 = vmatprep.subr.mxu0 0.0
    %3857 = vmatpush1.msra.mxu0 0.0
    %3858 = vmatprep.subr.mxu0 0.0
    %3859 = vmatpush1.msra.mxu0 0.0
    %3860 = vmatprep.subr.mxu0 0.0
    %3861 = vmatpush1.msra.mxu0 0.0
    %3862 = vmatprep.subr.mxu0 0.0
    %3863 = vmatpush1.msra.mxu0 0.0
    %3864 = vmatprep.mubr.f32.mxu0 0.0
    %3865 = vmatmul.mubr.f32.gmra.mrb[0].mxu0 %v3032
    %v3866 = vpop.f32.mrb[0].mxu0
    %v3867 = vadd.f32 0.0, %v3866
    %v3868 = vpop.f32.mrb[0].mxu0
    %3869 = vmatprep.mubr.f32.mxu0 0.0
    %3870 = vmatmul.mubr.f32.gmra.mrb[0].mxu0 %v3033
    %v3871 = vpop.f32.mrb[0].mxu0
    %v3872 = vadd.f32 0.0, %v3871
    %v3873 = vpop.f32.mrb[0].mxu0
    %3874 = vmatprep.mubr.f32.mxu0 0.0
    %3875 = vmatmul.mubr.f32.gmra.mrb[0].mxu0 %v3034
    %v3876 = vpop.f32.mrb[0].mxu0
    %v3877 = vadd.f32 0.0, %v3876
    %v3878 = vpop.f32.mrb[0].mxu0
    %3879 = vmatprep.mubr.f32.mxu0 0.0
    %3880 = vmatmul.mubr.f32.gmra.mrb[0].mxu0 %v3035
    %v3881 = vpop.f32.mrb[0].mxu0
    %v3882 = vadd.f32 0.0, %v3881
    %v3883 = vpop.f32.mrb[0].mxu0
    %3884 = vdwg.mxu0
    %v3885 = vadd.f32 %v3779, %v3867
    %v3886 = vadd.f32 %v3780, %v3872
    %v3887 = vadd.f32 %v3781, %v3877
    %v3888 = vadd.f32 %v3782, %v3882
    %s3889 = scalar_lea.vmem [#allocation14], 896
    %v3890 = vld [vmem:[%s3889] sm:$0xff]
    %v3891 = vld [vmem:[%s3889 + $0x8] sm:$0xff]
    %v3892 = vld [vmem:[%s3889 + $0x10] sm:$0xff]
    %v3893 = vld [vmem:[%s3889 + $0x18] sm:$0xff]
    %v3894 = vld [vmem:[%s3889 + $0x20] sm:$0xff]
    %v3895 = vld [vmem:[%s3889 + $0x28] sm:$0xff]
    %v3896 = vld [vmem:[%s3889 + $0x30] sm:$0xff]
    %v3897 = vld [vmem:[%s3889 + $0x38] sm:$0xff]
    %v3898 = vld [vmem:[%s3889 + $0x40] sm:$0xff]
    %v3899 = vld [vmem:[%s3889 + $0x48] sm:$0xff]
    %v3900 = vld [vmem:[%s3889 + $0x50] sm:$0xff]
    %v3901 = vld [vmem:[%s3889 + $0x58] sm:$0xff]
    %v3902 = vld [vmem:[%s3889 + $0x60] sm:$0xff]
    %v3903 = vld [vmem:[%s3889 + $0x68] sm:$0xff]
    %v3904 = vld [vmem:[%s3889 + $0x70] sm:$0xff]
    %v3905 = vld [vmem:[%s3889 + $0x78] sm:$0xff]
    %3906 = vmatprep.subr.mxu0 0.0
    %3907 = vmatpush1.msra.mxu0 %v3890
    %3908 = vmatprep.subr.mxu0 0.0
    %3909 = vmatpush1.msra.mxu0 %v3891
    %3910 = vmatprep.subr.mxu0 0.0
    %3911 = vmatpush1.msra.mxu0 %v3892
    %3912 = vmatprep.subr.mxu0 0.0
    %3913 = vmatpush1.msra.mxu0 %v3893
    %3914 = vmatprep.subr.mxu0 0.0
    %3915 = vmatpush1.msra.mxu0 %v3894
    %3916 = vmatprep.subr.mxu0 0.0
    %3917 = vmatpush1.msra.mxu0 %v3895
    %3918 = vmatprep.subr.mxu0 0.0
    %3919 = vmatpush1.msra.mxu0 %v3896
    %3920 = vmatprep.subr.mxu0 0.0
    %3921 = vmatpush1.msra.mxu0 %v3897
    %3922 = vmatprep.subr.mxu0 0.0
    %3923 = vmatpush1.msra.mxu0 %v3898
    %3924 = vmatprep.subr.mxu0 0.0
    %3925 = vmatpush1.msra.mxu0 %v3899
    %3926 = vmatprep.subr.mxu0 0.0
    %3927 = vmatpush1.msra.mxu0 %v3900
    %3928 = vmatprep.subr.mxu0 0.0
    %3929 = vmatpush1.msra.mxu0 %v3901
    %3930 = vmatprep.subr.mxu0 0.0
    %3931 = vmatpush1.msra.mxu0 %v3902
    %3932 = vmatprep.subr.mxu0 0.0
    %3933 = vmatpush1.msra.mxu0 %v3903
    %3934 = vmatprep.subr.mxu0 0.0
    %3935 = vmatpush1.msra.mxu0 %v3904
    %3936 = vmatprep.subr.mxu0 0.0
    %3937 = vmatpush1.msra.mxu0 %v3905
    %3938 = vmatprep.subr.mxu0 0.0
    %3939 = vmatpush1.msra.mxu0 0.0
    %3940 = vmatprep.subr.mxu0 0.0
    %3941 = vmatpush1.msra.mxu0 0.0
    %3942 = vmatprep.subr.mxu0 0.0
    %3943 = vmatpush1.msra.mxu0 0.0
    %3944 = vmatprep.subr.mxu0 0.0
    %3945 = vmatpush1.msra.mxu0 0.0
    %3946 = vmatprep.subr.mxu0 0.0
    %3947 = vmatpush1.msra.mxu0 0.0
    %3948 = vmatprep.subr.mxu0 0.0
    %3949 = vmatpush1.msra.mxu0 0.0
    %3950 = vmatprep.subr.mxu0 0.0
    %3951 = vmatpush1.msra.mxu0 0.0
    %3952 = vmatprep.subr.mxu0 0.0
    %3953 = vmatpush1.msra.mxu0 0.0
    %3954 = vmatprep.subr.mxu0 0.0
    %3955 = vmatpush1.msra.mxu0 0.0
    %3956 = vmatprep.subr.mxu0 0.0
    %3957 = vmatpush1.msra.mxu0 0.0
    %3958 = vmatprep.subr.mxu0 0.0
    %3959 = vmatpush1.msra.mxu0 0.0
    %3960 = vmatprep.subr.mxu0 0.0
    %3961 = vmatpush1.msra.mxu0 0.0
    %3962 = vmatprep.subr.mxu0 0.0
    %3963 = vmatpush1.msra.mxu0 0.0
    %3964 = vmatprep.subr.mxu0 0.0
    %3965 = vmatpush1.msra.mxu0 0.0
    %3966 = vmatprep.subr.mxu0 0.0
    %3967 = vmatpush1.msra.mxu0 0.0
    %3968 = vmatprep.subr.mxu0 0.0
    %3969 = vmatpush1.msra.mxu0 0.0
    %3970 = vmatprep.mubr.f32.mxu0 0.0
    %3971 = vmatmul.mubr.f32.gmra.mrb[0].mxu0 %v3032
    %v3972 = vpop.f32.mrb[0].mxu0
    %v3973 = vadd.f32 0.0, %v3972
    %v3974 = vpop.f32.mrb[0].mxu0
    %3975 = vmatprep.mubr.f32.mxu0 0.0
    %3976 = vmatmul.mubr.f32.gmra.mrb[0].mxu0 %v3033
    %v3977 = vpop.f32.mrb[0].mxu0
    %v3978 = vadd.f32 0.0, %v3977
    %v3979 = vpop.f32.mrb[0].mxu0
    %3980 = vmatprep.mubr.f32.mxu0 0.0
    %3981 = vmatmul.mubr.f32.gmra.mrb[0].mxu0 %v3034
    %v3982 = vpop.f32.mrb[0].mxu0
    %v3983 = vadd.f32 0.0, %v3982
    %v3984 = vpop.f32.mrb[0].mxu0
    %3985 = vmatprep.mubr.f32.mxu0 0.0
    %3986 = vmatmul.mubr.f32.gmra.mrb[0].mxu0 %v3035
    %v3987 = vpop.f32.mrb[0].mxu0
    %v3988 = vadd.f32 0.0, %v3987
    %v3989 = vpop.f32.mrb[0].mxu0
    %3990 = vdwg.mxu0
    %v3991 = vrot.slane %v3973, 1
    %v3992 = vrot.slane %v3978, 1
    %v3993 = vrot.slane %v3983, 1
    %v3994 = vrot.slane %v3988, 1
    %v3995 = vsel %vm3505, %v3993, %v3994
    %v3996 = vsel %vm3505, %v3992, %v3993
    %v3997 = vsel %vm3505, %v3991, %v3992
    %v3998 = vsel %vm3505, %v3994, %v3991
    %v3999 = vmul.f32 %v3997, %v261
    %v4000 = vmul.f32 %v3996, %v262
    %v4001 = vmul.f32 %v3995, %v263
    %v4002 = vmul.f32 %v3998, %v264
    %v4003 = vadd.f32 %v3885, %v3999
    %v4004 = vadd.f32 %v3886, %v4000
    %v4005 = vadd.f32 %v3887, %v4001
    %v4006 = vadd.f32 %v3888, %v4002
    %s4007 = scalar_lea.vmem [#allocation14], 1024
    %v4008 = vld [vmem:[%s4007] sm:$0xff]
    %v4009 = vld [vmem:[%s4007 + $0x8] sm:$0xff]
    %v4010 = vld [vmem:[%s4007 + $0x10] sm:$0xff]
    %v4011 = vld [vmem:[%s4007 + $0x18] sm:$0xff]
    %v4012 = vld [vmem:[%s4007 + $0x20] sm:$0xff]
    %v4013 = vld [vmem:[%s4007 + $0x28] sm:$0xff]
    %v4014 = vld [vmem:[%s4007 + $0x30] sm:$0xff]
    %v4015 = vld [vmem:[%s4007 + $0x38] sm:$0xff]
    %v4016 = vld [vmem:[%s4007 + $0x40] sm:$0xff]
    %v4017 = vld [vmem:[%s4007 + $0x48] sm:$0xff]
    %v4018 = vld [vmem:[%s4007 + $0x50] sm:$0xff]
    %v4019 = vld [vmem:[%s4007 + $0x58] sm:$0xff]
    %v4020 = vld [vmem:[%s4007 + $0x60] sm:$0xff]
    %v4021 = vld [vmem:[%s4007 + $0x68] sm:$0xff]
    %v4022 = vld [vmem:[%s4007 + $0x70] sm:$0xff]
    %v4023 = vld [vmem:[%s4007 + $0x78] sm:$0xff]
    %4024 = vmatprep.subr.mxu0 0.0
    %4025 = vmatpush1.msra.mxu0 %v4008
    %4026 = vmatprep.subr.mxu0 0.0
    %4027 = vmatpush1.msra.mxu0 %v4009
    %4028 = vmatprep.subr.mxu0 0.0
    %4029 = vmatpush1.msra.mxu0 %v4010
    %4030 = vmatprep.subr.mxu0 0.0
    %4031 = vmatpush1.msra.mxu0 %v4011
    %4032 = vmatprep.subr.mxu0 0.0
    %4033 = vmatpush1.msra.mxu0 %v4012
    %4034 = vmatprep.subr.mxu0 0.0
    %4035 = vmatpush1.msra.mxu0 %v4013
    %4036 = vmatprep.subr.mxu0 0.0
    %4037 = vmatpush1.msra.mxu0 %v4014
    %4038 = vmatprep.subr.mxu0 0.0
    %4039 = vmatpush1.msra.mxu0 %v4015
    %4040 = vmatprep.subr.mxu0 0.0
    %4041 = vmatpush1.msra.mxu0 %v4016
    %4042 = vmatprep.subr.mxu0 0.0
    %4043 = vmatpush1.msra.mxu0 %v4017
    %4044 = vmatprep.subr.mxu0 0.0
    %4045 = vmatpush1.msra.mxu0 %v4018
    %4046 = vmatprep.subr.mxu0 0.0
    %4047 = vmatpush1.msra.mxu0 %v4019
    %4048 = vmatprep.subr.mxu0 0.0
    %4049 = vmatpush1.msra.mxu0 %v4020
    %4050 = vmatprep.subr.mxu0 0.0
    %4051 = vmatpush1.msra.mxu0 %v4021
    %4052 = vmatprep.subr.mxu0 0.0
    %4053 = vmatpush1.msra.mxu0 %v4022
    %4054 = vmatprep.subr.mxu0 0.0
    %4055 = vmatpush1.msra.mxu0 %v4023
    %4056 = vmatprep.subr.mxu0 0.0
    %4057 = vmatpush1.msra.mxu0 0.0
    %4058 = vmatprep.subr.mxu0 0.0
    %4059 = vmatpush1.msra.mxu0 0.0
    %4060 = vmatprep.subr.mxu0 0.0
    %4061 = vmatpush1.msra.mxu0 0.0
    %4062 = vmatprep.subr.mxu0 0.0
    %4063 = vmatpush1.msra.mxu0 0.0
    %4064 = vmatprep.subr.mxu0 0.0
    %4065 = vmatpush1.msra.mxu0 0.0
    %4066 = vmatprep.subr.mxu0 0.0
    %4067 = vmatpush1.msra.mxu0 0.0
    %4068 = vmatprep.subr.mxu0 0.0
    %4069 = vmatpush1.msra.mxu0 0.0
    %4070 = vmatprep.subr.mxu0 0.0
    %4071 = vmatpush1.msra.mxu0 0.0
    %4072 = vmatprep.subr.mxu0 0.0
    %4073 = vmatpush1.msra.mxu0 0.0
    %4074 = vmatprep.subr.mxu0 0.0
    %4075 = vmatpush1.msra.mxu0 0.0
    %4076 = vmatprep.subr.mxu0 0.0
    %4077 = vmatpush1.msra.mxu0 0.0
    %4078 = vmatprep.subr.mxu0 0.0
    %4079 = vmatpush1.msra.mxu0 0.0
    %4080 = vmatprep.subr.mxu0 0.0
    %4081 = vmatpush1.msra.mxu0 0.0
    %4082 = vmatprep.subr.mxu0 0.0
    %4083 = vmatpush1.msra.mxu0 0.0
    %4084 = vmatprep.subr.mxu0 0.0
    %4085 = vmatpush1.msra.mxu0 0.0
    %4086 = vmatprep.subr.mxu0 0.0
    %4087 = vmatpush1.msra.mxu0 0.0
    %4088 = vmatprep.mubr.f32.mxu0 0.0
    %4089 = vmatmul.mubr.f32.gmra.mrb[0].mxu0 %v3032
    %v4090 = vpop.f32.mrb[0].mxu0
    %v4091 = vadd.f32 0.0, %v4090
    %v4092 = vpop.f32.mrb[0].mxu0
    %4093 = vmatprep.mubr.f32.mxu0 0.0
    %4094 = vmatmul.mubr.f32.gmra.mrb[0].mxu0 %v3033
    %v4095 = vpop.f32.mrb[0].mxu0
    %v4096 = vadd.f32 0.0, %v4095
    %v4097 = vpop.f32.mrb[0].mxu0
    %4098 = vmatprep.mubr.f32.mxu0 0.0
    %4099 = vmatmul.mubr.f32.gmra.mrb[0].mxu0 %v3034
    %v4100 = vpop.f32.mrb[0].mxu0
    %v4101 = vadd.f32 0.0, %v4100
    %v4102 = vpop.f32.mrb[0].mxu0
    %4103 = vmatprep.mubr.f32.mxu0 0.0
    %4104 = vmatmul.mubr.f32.gmra.mrb[0].mxu0 %v3035
    %v4105 = vpop.f32.mrb[0].mxu0
    %v4106 = vadd.f32 0.0, %v4105
    %v4107 = vpop.f32.mrb[0].mxu0
    %4108 = vdwg.mxu0
    %v4109 = vrot.slane %v4091, 2
    %v4110 = vrot.slane %v4096, 2
    %v4111 = vrot.slane %v4101, 2
    %v4112 = vrot.slane %v4106, 2
    %vm4113 = vcmp.lt.s32.totalorder %v189, 6
    %v4114 = vsel %vm4113, %v4111, %v4112
    %v4115 = vsel %vm4113, %v4110, %v4111
    %v4116 = vsel %vm4113, %v4109, %v4110
    %v4117 = vsel %vm4113, %v4112, %v4109
    %v4118 = vmul.f32 %v4116, %v285
    %v4119 = vmul.f32 %v4115, %v286
    %v4120 = vmul.f32 %v4114, %v287
    %v4121 = vmul.f32 %v4117, %v288
    %v4122 = vadd.f32 %v4003, %v4118
    %v4123 = vadd.f32 %v4004, %v4119
    %v4124 = vadd.f32 %v4005, %v4120
    %v4125 = vadd.f32 %v4006, %v4121
    %s4126 = scalar_lea.vmem [#allocation16], 2
    %v4127 = vld [vmem:[%s4126] sm:$0x1]
    %v4129 = vlaneseq
    %v4130 = vshrl.u32 %v4129, 7
    %v4131 = vsub.s32 0, %v4130
    %v4132 = vrot.slane %v4127, %v4131
    %v4134 = vadd.f32 %v4122, %v4132
    %v4135 = vadd.f32 %v4123, %v4132
    %v4136 = vadd.f32 %v4124, %v4132
    %v4137 = vadd.f32 %v4125, %v4132
    %v4138 = vmul.f32 %v4134, %v3150
    %v4139 = vmul.f32 %v4135, %v3150
    %v4140 = vmul.f32 %v4136, %v3150
    %v4141 = vmul.f32 %v4137, %v3150
    %v4142 = vadd.f32 %v4138, %v3160
    %v4143 = vadd.f32 %v4139, %v3160
    %v4144 = vadd.f32 %v4140, %v3160
    %v4145 = vadd.f32 %v4141, %v3160
    %v4146 = vmax.f32 %v4142, 0.0
    %v4147 = vmax.f32 %v4143, 0.0
    %v4148 = vmax.f32 %v4144, 0.0
    %v4149 = vmax.f32 %v4145, 0.0
    %v4150 = vadd.f32 %v3542, %v4146
    %v4151 = vadd.f32 %v3543, %v4147
    %v4152 = vadd.f32 %v3544, %v4148
    %v4153 = vadd.f32 %v3545, %v4149
    %v4154 = vmul.f32 %v4150, 0.33333334
    %v4155 = vmul.f32 %v4151, 0.33333334
    %v4156 = vmul.f32 %v4152, 0.33333334
    %v4157 = vmul.f32 %v4153, 0.33333334
    %v4158 = vadd.f32 %v2932, %v4154
    %v4159 = vadd.f32 %v2933, %v4155
    %v4160 = vadd.f32 %v2934, %v4156
    %v4161 = vadd.f32 %v2935, %v4157
    %s4162 = scalar_lea.vmem [#allocation11], 2
    %v4163 = vld [vmem:[%s4162] sm:$0x1]
    %s4164 = scalar_lea.vmem [#allocation13], 2
    %v4165 = vld [vmem:[%s4164] sm:$0x1]
    %4166 = vadd.xlane.f32.xlu0 %v4158
    %v4167 = vpop.xlane.xlu0 %4166
    %4168 = vadd.xlane.f32.xlu0 %v4159
    %v4169 = vpop.xlane.xlu0 %4168
    %4170 = vadd.xlane.f32.xlu0 %v4160
    %v4171 = vpop.xlane.xlu0 %4170
    %4172 = vadd.xlane.f32.xlu0 %v4161
    %v4173 = vpop.xlane.xlu0 %4172
    %v4174 = vmul.f32 %v4167, %v303
    %v4175 = vmul.f32 %v4169, %v303
    %v4176 = vmul.f32 %v4171, %v303
    %v4177 = vmul.f32 %v4173, %v303
    %v4178 = vsub.f32 %v4158, %v4174
    %v4179 = vsub.f32 %v4159, %v4175
    %v4180 = vsub.f32 %v4160, %v4176
    %v4181 = vsub.f32 %v4161, %v4177
    %v4182 = vmul.f32 %v4178, %v4178
    %v4183 = vmul.f32 %v4179, %v4179
    %v4184 = vmul.f32 %v4180, %v4180
    %v4185 = vmul.f32 %v4181, %v4181
    %4186 = vadd.xlane.f32.xlu0 %v4182
    %v4187 = vpop.xlane.xlu0 %4186
    %4188 = vadd.xlane.f32.xlu0 %v4183
    %v4189 = vpop.xlane.xlu0 %4188
    %4190 = vadd.xlane.f32.xlu0 %v4184
    %v4191 = vpop.xlane.xlu0 %4190
    %4192 = vadd.xlane.f32.xlu0 %v4185
    %v4193 = vpop.xlane.xlu0 %4192
    %v4194 = vmul.f32 %v4187, 0.007874016
    %v4195 = vmul.f32 %v4189, 0.007874016
    %v4196 = vmul.f32 %v4191, 0.007874016
    %v4197 = vmul.f32 %v4193, 0.007874016
    %v4198 = vrsqrt.pop %v4194
    %v4199 = vmul.f32 %v4194, %v4198
    %vm4200 = vcmp.eq.f32.partialorder %v4194, inf
    %v4201 = vsel %vm4200, %v4194, %v4199
    %vm4202 = vcmp.eq.f32.partialorder %v4194, 0.0
    %v4203 = vand.u32 %v4194, 2147483648
    %v4204 = vsel %vm4202, %v4203, %v4201
    %v4205 = vrsqrt.pop %v4195
    %v4206 = vmul.f32 %v4195, %v4205
    %vm4207 = vcmp.eq.f32.partialorder %v4195, inf
    %v4208 = vsel %vm4207, %v4195, %v4206
    %vm4209 = vcmp.eq.f32.partialorder %v4195, 0.0
    %v4210 = vand.u32 %v4195, 2147483648
    %v4211 = vsel %vm4209, %v4210, %v4208
    %v4212 = vrsqrt.pop %v4196
    %v4213 = vmul.f32 %v4196, %v4212
    %vm4214 = vcmp.eq.f32.partialorder %v4196, inf
    %v4215 = vsel %vm4214, %v4196, %v4213
    %vm4216 = vcmp.eq.f32.partialorder %v4196, 0.0
    %v4217 = vand.u32 %v4196, 2147483648
    %v4218 = vsel %vm4216, %v4217, %v4215
    %v4219 = vrsqrt.pop %v4197
    %v4220 = vmul.f32 %v4197, %v4219
    %vm4221 = vcmp.eq.f32.partialorder %v4197, inf
    %v4222 = vsel %vm4221, %v4197, %v4220
    %vm4223 = vcmp.eq.f32.partialorder %v4197, 0.0
    %v4224 = vand.u32 %v4197, 2147483648
    %v4225 = vsel %vm4223, %v4224, %v4222
    %v4226 = vadd.f32 %v4204, 1e-06
    %v4227 = vadd.f32 %v4211, 1e-06
    %v4228 = vadd.f32 %v4218, 1e-06
    %v4229 = vadd.f32 %v4225, 1e-06
    %v4230 = vrcp.pop %v4226
    %v4231 = vmul.f32 1.0, %v4230
    %v4232 = vrcp.pop %v4227
    %v4233 = vmul.f32 1.0, %v4232
    %v4234 = vrcp.pop %v4228
    %v4235 = vmul.f32 1.0, %v4234
    %v4236 = vrcp.pop %v4229
    %v4237 = vmul.f32 1.0, %v4236
    %v4238 = vmul.f32 %v4178, %v4231
    %v4239 = vmul.f32 %v4179, %v4233
    %v4240 = vmul.f32 %v4180, %v4235
    %v4241 = vmul.f32 %v4181, %v4237
    %v4243 = vlaneseq
    %v4244 = vshrl.u32 %v4243, 7
    %v4245 = vsub.s32 0, %v4244
    %v4246 = vrot.slane %v4163, %v4245
    %v4248 = vmul.f32 %v4246, %v4238
    %v4249 = vmul.f32 %v4246, %v4239
    %v4250 = vmul.f32 %v4246, %v4240
    %v4251 = vmul.f32 %v4246, %v4241
    %v4253 = vlaneseq
    %v4254 = vshrl.u32 %v4253, 7
    %v4255 = vsub.s32 0, %v4254
    %v4256 = vrot.slane %v4165, %v4255
    %v4258 = vadd.f32 %v4248, %v4256
    %v4259 = vadd.f32 %v4249, %v4256
    %v4260 = vadd.f32 %v4250, %v4256
    %v4261 = vadd.f32 %v4251, %v4256
    %s4262 = scalar_lea.vmem [#allocation5], 384
    %v4263 = vld [vmem:[%s4262] sm:$0xff]
    %v4264 = vld [vmem:[%s4262 + $0x8] sm:$0xff]
    %v4265 = vld [vmem:[%s4262 + $0x10] sm:$0xff]
    %v4266 = vld [vmem:[%s4262 + $0x18] sm:$0xff]
    %v4267 = vld [vmem:[%s4262 + $0x20] sm:$0xff]
    %v4268 = vld [vmem:[%s4262 + $0x28] sm:$0xff]
    %v4269 = vld [vmem:[%s4262 + $0x30] sm:$0xff]
    %v4270 = vld [vmem:[%s4262 + $0x38] sm:$0xff]
    %v4271 = vld [vmem:[%s4262 + $0x40] sm:$0xff]
    %v4272 = vld [vmem:[%s4262 + $0x48] sm:$0xff]
    %v4273 = vld [vmem:[%s4262 + $0x50] sm:$0xff]
    %v4274 = vld [vmem:[%s4262 + $0x58] sm:$0xff]
    %v4275 = vld [vmem:[%s4262 + $0x60] sm:$0xff]
    %v4276 = vld [vmem:[%s4262 + $0x68] sm:$0xff]
    %v4277 = vld [vmem:[%s4262 + $0x70] sm:$0xff]
    %v4278 = vld [vmem:[%s4262 + $0x78] sm:$0xff]
    %v4279 = vld [vmem:[%s4262 + $0x80] sm:$0xff]
    %v4280 = vld [vmem:[%s4262 + $0x88] sm:$0xff]
    %v4281 = vld [vmem:[%s4262 + $0x90] sm:$0xff]
    %v4282 = vld [vmem:[%s4262 + $0x98] sm:$0xff]
    %v4283 = vld [vmem:[%s4262 + $0xa0] sm:$0xff]
    %v4284 = vld [vmem:[%s4262 + $0xa8] sm:$0xff]
    %v4285 = vld [vmem:[%s4262 + $0xb0] sm:$0xff]
    %v4286 = vld [vmem:[%s4262 + $0xb8] sm:$0xff]
    %v4287 = vld [vmem:[%s4262 + $0xc0] sm:$0xff]
    %v4288 = vld [vmem:[%s4262 + $0xc8] sm:$0xff]
    %v4289 = vld [vmem:[%s4262 + $0xd0] sm:$0xff]
    %v4290 = vld [vmem:[%s4262 + $0xd8] sm:$0xff]
    %v4291 = vld [vmem:[%s4262 + $0xe0] sm:$0xff]
    %v4292 = vld [vmem:[%s4262 + $0xe8] sm:$0xff]
    %v4293 = vld [vmem:[%s4262 + $0xf0] sm:$0xff]
    %v4294 = vld [vmem:[%s4262 + $0xf8] sm:$0xff]
    %v4295 = vld [vmem:[%s4262 + $0x100] sm:$0xff]
    %v4296 = vld [vmem:[%s4262 + $0x108] sm:$0xff]
    %v4297 = vld [vmem:[%s4262 + $0x110] sm:$0xff]
    %v4298 = vld [vmem:[%s4262 + $0x118] sm:$0xff]
    %v4299 = vld [vmem:[%s4262 + $0x120] sm:$0xff]
    %v4300 = vld [vmem:[%s4262 + $0x128] sm:$0xff]
    %v4301 = vld [vmem:[%s4262 + $0x130] sm:$0xff]
    %v4302 = vld [vmem:[%s4262 + $0x138] sm:$0xff]
    %v4303 = vld [vmem:[%s4262 + $0x140] sm:$0xff]
    %v4304 = vld [vmem:[%s4262 + $0x148] sm:$0xff]
    %v4305 = vld [vmem:[%s4262 + $0x150] sm:$0xff]
    %v4306 = vld [vmem:[%s4262 + $0x158] sm:$0xff]
    %v4307 = vld [vmem:[%s4262 + $0x160] sm:$0xff]
    %v4308 = vld [vmem:[%s4262 + $0x168] sm:$0xff]
    %v4309 = vld [vmem:[%s4262 + $0x170] sm:$0xff]
    %v4310 = vld [vmem:[%s4262 + $0x178] sm:$0xff]
    %s4311 = scalar_lea.vmem [#allocation7], 3
    %v4312 = vld [vmem:[%s4311] sm:$0x7]
    %v4314 = vlaneseq
    %v4315 = vshrl.u32 %v4314, 7
    %v4316 = vsub.s32 0, %v4315
    %v4317 = vrot.slane %v4312, %v4316
    %v4318 = vlaneseq
    %v4319 = vshrl.u32 %v4318, 7
    %v4320 = vsub.s32 1, %v4319
    %v4321 = vrot.slane %v4312, %v4320
    %v4322 = vlaneseq
    %v4323 = vshrl.u32 %v4322, 7
    %v4324 = vsub.s32 2, %v4323
    %v4325 = vrot.slane %v4312, %v4324
    %4329 = vmatprep.subr.mxu0 %v4264
    %4330 = vmatpush1.msra.mxu0 %v4263
    %4331 = vmatprep.subr.mxu0 %v4267
    %4332 = vmatpush1.msra.mxu0 %v4266
    %4333 = vmatprep.subr.mxu0 %v4270
    %4334 = vmatpush1.msra.mxu0 %v4269
    %4335 = vmatprep.subr.mxu0 %v4273
    %4336 = vmatpush1.msra.mxu0 %v4272
    %4337 = vmatprep.subr.mxu0 %v4276
    %4338 = vmatpush1.msra.mxu0 %v4275
    %4339 = vmatprep.subr.mxu0 %v4279
    %4340 = vmatpush1.msra.mxu0 %v4278
    %4341 = vmatprep.subr.mxu0 %v4282
    %4342 = vmatpush1.msra.mxu0 %v4281
    %4343 = vmatprep.subr.mxu0 %v4285
    %4344 = vmatpush1.msra.mxu0 %v4284
    %4345 = vmatprep.subr.mxu0 %v4288
    %4346 = vmatpush1.msra.mxu0 %v4287
    %4347 = vmatprep.subr.mxu0 %v4291
    %4348 = vmatpush1.msra.mxu0 %v4290
    %4349 = vmatprep.subr.mxu0 %v4294
    %4350 = vmatpush1.msra.mxu0 %v4293
    %4351 = vmatprep.subr.mxu0 %v4297
    %4352 = vmatpush1.msra.mxu0 %v4296
    %4353 = vmatprep.subr.mxu0 %v4300
    %4354 = vmatpush1.msra.mxu0 %v4299
    %4355 = vmatprep.subr.mxu0 %v4303
    %4356 = vmatpush1.msra.mxu0 %v4302
    %4357 = vmatprep.subr.mxu0 %v4306
    %4358 = vmatpush1.msra.mxu0 %v4305
    %4359 = vmatprep.subr.mxu0 %v4309
    %4360 = vmatpush1.msra.mxu0 %v4308
    %4361 = vmatprep.subr.mxu0 0.0
    %4362 = vmatpush1.msra.mxu0 0.0
    %4363 = vmatprep.subr.mxu0 0.0
    %4364 = vmatpush1.msra.mxu0 0.0
    %4365 = vmatprep.subr.mxu0 0.0
    %4366 = vmatpush1.msra.mxu0 0.0
    %4367 = vmatprep.subr.mxu0 0.0
    %4368 = vmatpush1.msra.mxu0 0.0
    %4369 = vmatprep.subr.mxu0 0.0
    %4370 = vmatpush1.msra.mxu0 0.0
    %4371 = vmatprep.subr.mxu0 0.0
    %4372 = vmatpush1.msra.mxu0 0.0
    %4373 = vmatprep.subr.mxu0 0.0
    %4374 = vmatpush1.msra.mxu0 0.0
    %4375 = vmatprep.subr.mxu0 0.0
    %4376 = vmatpush1.msra.mxu0 0.0
    %4377 = vmatprep.subr.mxu0 0.0
    %4378 = vmatpush1.msra.mxu0 0.0
    %4379 = vmatprep.subr.mxu0 0.0
    %4380 = vmatpush1.msra.mxu0 0.0
    %4381 = vmatprep.subr.mxu0 0.0
    %4382 = vmatpush1.msra.mxu0 0.0
    %4383 = vmatprep.subr.mxu0 0.0
    %4384 = vmatpush1.msra.mxu0 0.0
    %4385 = vmatprep.subr.mxu0 0.0
    %4386 = vmatpush1.msra.mxu0 0.0
    %4387 = vmatprep.subr.mxu0 0.0
    %4388 = vmatpush1.msra.mxu0 0.0
    %4389 = vmatprep.subr.mxu0 0.0
    %4390 = vmatpush1.msra.mxu0 0.0
    %4391 = vmatprep.subr.mxu0 0.0
    %4392 = vmatpush1.msra.mxu0 0.0
    %4393 = vmatprep.mubr.f32.mxu0 0.0
    %4394 = vmatmul.mubr.f32.gmra.mrb[0].mxu0 %v4258
    %v4395 = vpop.f32.mrb[0].mxu0
    %v4396 = vadd.f32 %v4317, %v4395
    %v4397 = vpop.f32.mrb[0].mxu0
    %v4398 = vadd.f32 %v4321, %v4397
    %4399 = vmatprep.mubr.f32.mxu0 0.0
    %4400 = vmatmul.mubr.f32.gmra.mrb[0].mxu0 %v4259
    %v4401 = vpop.f32.mrb[0].mxu0
    %v4402 = vadd.f32 %v4317, %v4401
    %v4403 = vpop.f32.mrb[0].mxu0
    %v4404 = vadd.f32 %v4321, %v4403
    %4405 = vmatprep.mubr.f32.mxu0 0.0
    %4406 = vmatmul.mubr.f32.gmra.mrb[0].mxu0 %v4260
    %v4407 = vpop.f32.mrb[0].mxu0
    %v4408 = vadd.f32 %v4317, %v4407
    %v4409 = vpop.f32.mrb[0].mxu0
    %v4410 = vadd.f32 %v4321, %v4409
    %4411 = vmatprep.mubr.f32.mxu0 0.0
    %4412 = vmatmul.mubr.f32.gmra.mrb[0].mxu0 %v4261
    %v4413 = vpop.f32.mrb[0].mxu0
    %v4414 = vadd.f32 %v4317, %v4413
    %v4415 = vpop.f32.mrb[0].mxu0
    %v4416 = vadd.f32 %v4321, %v4415
    %4417 = vdwg.mxu0
    %4418 = vmatprep.subr.mxu0 0.0
    %4419 = vmatpush1.msra.mxu0 %v4265
    %4420 = vmatprep.subr.mxu0 0.0
    %4421 = vmatpush1.msra.mxu0 %v4268
    %4422 = vmatprep.subr.mxu0 0.0
    %4423 = vmatpush1.msra.mxu0 %v4271
    %4424 = vmatprep.subr.mxu0 0.0
    %4425 = vmatpush1.msra.mxu0 %v4274
    %4426 = vmatprep.subr.mxu0 0.0
    %4427 = vmatpush1.msra.mxu0 %v4277
    %4428 = vmatprep.subr.mxu0 0.0
    %4429 = vmatpush1.msra.mxu0 %v4280
    %4430 = vmatprep.subr.mxu0 0.0
    %4431 = vmatpush1.msra.mxu0 %v4283
    %4432 = vmatprep.subr.mxu0 0.0
    %4433 = vmatpush1.msra.mxu0 %v4286
    %4434 = vmatprep.subr.mxu0 0.0
    %4435 = vmatpush1.msra.mxu0 %v4289
    %4436 = vmatprep.subr.mxu0 0.0
    %4437 = vmatpush1.msra.mxu0 %v4292
    %4438 = vmatprep.subr.mxu0 0.0
    %4439 = vmatpush1.msra.mxu0 %v4295
    %4440 = vmatprep.subr.mxu0 0.0
    %4441 = vmatpush1.msra.mxu0 %v4298
    %4442 = vmatprep.subr.mxu0 0.0
    %4443 = vmatpush1.msra.mxu0 %v4301
    %4444 = vmatprep.subr.mxu0 0.0
    %4445 = vmatpush1.msra.mxu0 %v4304
    %4446 = vmatprep.subr.mxu0 0.0
    %4447 = vmatpush1.msra.mxu0 %v4307
    %4448 = vmatprep.subr.mxu0 0.0
    %4449 = vmatpush1.msra.mxu0 %v4310
    %4450 = vmatprep.subr.mxu0 0.0
    %4451 = vmatpush1.msra.mxu0 0.0
    %4452 = vmatprep.subr.mxu0 0.0
    %4453 = vmatpush1.msra.mxu0 0.0
    %4454 = vmatprep.subr.mxu0 0.0
    %4455 = vmatpush1.msra.mxu0 0.0
    %4456 = vmatprep.subr.mxu0 0.0
    %4457 = vmatpush1.msra.mxu0 0.0
    %4458 = vmatprep.subr.mxu0 0.0
    %4459 = vmatpush1.msra.mxu0 0.0
    %4460 = vmatprep.subr.mxu0 0.0
    %4461 = vmatpush1.msra.mxu0 0.0
    %4462 = vmatprep.subr.mxu0 0.0
    %4463 = vmatpush1.msra.mxu0 0.0
    %4464 = vmatprep.subr.mxu0 0.0
    %4465 = vmatpush1.msra.mxu0 0.0
    %4466 = vmatprep.subr.mxu0 0.0
    %4467 = vmatpush1.msra.mxu0 0.0
    %4468 = vmatprep.subr.mxu0 0.0
    %4469 = vmatpush1.msra.mxu0 0.0
    %4470 = vmatprep.subr.mxu0 0.0
    %4471 = vmatpush1.msra.mxu0 0.0
    %4472 = vmatprep.subr.mxu0 0.0
    %4473 = vmatpush1.msra.mxu0 0.0
    %4474 = vmatprep.subr.mxu0 0.0
    %4475 = vmatpush1.msra.mxu0 0.0
    %4476 = vmatprep.subr.mxu0 0.0
    %4477 = vmatpush1.msra.mxu0 0.0
    %4478 = vmatprep.subr.mxu0 0.0
    %4479 = vmatpush1.msra.mxu0 0.0
    %4480 = vmatprep.subr.mxu0 0.0
    %4481 = vmatpush1.msra.mxu0 0.0
    %4482 = vmatprep.mubr.f32.mxu0 0.0
    %4483 = vmatmul.mubr.f32.gmra.mrb[0].mxu0 %v4258
    %v4484 = vpop.f32.mrb[0].mxu0
    %v4485 = vadd.f32 %v4325, %v4484
    %v4486 = vpop.f32.mrb[0].mxu0
    %4487 = vmatprep.mubr.f32.mxu0 0.0
    %4488 = vmatmul.mubr.f32.gmra.mrb[0].mxu0 %v4259
    %v4489 = vpop.f32.mrb[0].mxu0
    %v4490 = vadd.f32 %v4325, %v4489
    %v4491 = vpop.f32.mrb[0].mxu0
    %4492 = vmatprep.mubr.f32.mxu0 0.0
    %4493 = vmatmul.mubr.f32.gmra.mrb[0].mxu0 %v4260
    %v4494 = vpop.f32.mrb[0].mxu0
    %v4495 = vadd.f32 %v4325, %v4494
    %v4496 = vpop.f32.mrb[0].mxu0
    %4497 = vmatprep.mubr.f32.mxu0 0.0
    %4498 = vmatmul.mubr.f32.gmra.mrb[0].mxu0 %v4261
    %v4499 = vpop.f32.mrb[0].mxu0
    %v4500 = vadd.f32 %v4325, %v4499
    %v4501 = vpop.f32.mrb[0].mxu0
    %4502 = vdwg.mxu0
    %s4503 = scalar_lea.vmem [#allocation8], 128
    %v4504 = vld [vmem:[%s4503] sm:$0xff]
    %v4505 = vld [vmem:[%s4503 + $0x8] sm:$0xff]
    %v4506 = vld [vmem:[%s4503 + $0x10] sm:$0xff]
    %v4507 = vld [vmem:[%s4503 + $0x18] sm:$0xff]
    %v4508 = vld [vmem:[%s4503 + $0x20] sm:$0xff]
    %v4509 = vld [vmem:[%s4503 + $0x28] sm:$0xff]
    %v4510 = vld [vmem:[%s4503 + $0x30] sm:$0xff]
    %v4511 = vld [vmem:[%s4503 + $0x38] sm:$0xff]
    %v4512 = vld [vmem:[%s4503 + $0x40] sm:$0xff]
    %v4513 = vld [vmem:[%s4503 + $0x48] sm:$0xff]
    %v4514 = vld [vmem:[%s4503 + $0x50] sm:$0xff]
    %v4515 = vld [vmem:[%s4503 + $0x58] sm:$0xff]
    %v4516 = vld [vmem:[%s4503 + $0x60] sm:$0xff]
    %v4517 = vld [vmem:[%s4503 + $0x68] sm:$0xff]
    %v4518 = vld [vmem:[%s4503 + $0x70] sm:$0xff]
    %v4519 = vld [vmem:[%s4503 + $0x78] sm:$0xff]
    %v4521 = vsel %vm647, %v4396, 0
    %v4524 = vsel %vm647, %v4402, 0
    %v4527 = vsel %vm647, %v4398, 0
    %v4530 = vsel %vm647, %v4404, 0
    %4532 = vmatprep.subr.mxu0 0.0
    %4533 = vmatpush1.xpose.msra.mxu0 %v4527
    %4534 = vmatprep.subr.mxu0 0.0
    %4535 = vmatpush1.xpose.msra.mxu0 %v4530
    %4536 = vmatprep.subr.mxu0 0.0
    %4537 = vmatpush1.xpose.msra.mxu0 0.0
    %4538 = vmatprep.subr.mxu0 0.0
    %4539 = vmatpush1.xpose.msra.mxu0 0.0
    %4540 = vmatprep.subr.mxu0 0.0
    %4541 = vmatpush1.xpose.msra.mxu0 0.0
    %4542 = vmatprep.subr.mxu0 0.0
    %4543 = vmatpush1.xpose.msra.mxu0 0.0
    %4544 = vmatprep.subr.mxu0 0.0
    %4545 = vmatpush1.xpose.msra.mxu0 0.0
    %4546 = vmatprep.subr.mxu0 0.0
    %4547 = vmatpush1.xpose.msra.mxu0 0.0
    %4548 = vmatprep.subr.mxu0 0.0
    %4549 = vmatpush1.xpose.msra.mxu0 0.0
    %4550 = vmatprep.subr.mxu0 0.0
    %4551 = vmatpush1.xpose.msra.mxu0 0.0
    %4552 = vmatprep.subr.mxu0 0.0
    %4553 = vmatpush1.xpose.msra.mxu0 0.0
    %4554 = vmatprep.subr.mxu0 0.0
    %4555 = vmatpush1.xpose.msra.mxu0 0.0
    %4556 = vmatprep.subr.mxu0 0.0
    %4557 = vmatpush1.xpose.msra.mxu0 0.0
    %4558 = vmatprep.subr.mxu0 0.0
    %4559 = vmatpush1.xpose.msra.mxu0 0.0
    %4560 = vmatprep.subr.mxu0 0.0
    %4561 = vmatpush1.xpose.msra.mxu0 0.0
    %4562 = vmatprep.subr.mxu0 0.0
    %4563 = vmatpush1.xpose.msra.mxu0 0.0
    %4564 = vmatprep.subr.mxu0 0.0
    %4565 = vmatpush1.xpose.msra.mxu0 0.0
    %4566 = vmatprep.subr.mxu0 0.0
    %4567 = vmatpush1.xpose.msra.mxu0 0.0
    %4568 = vmatprep.subr.mxu0 0.0
    %4569 = vmatpush1.xpose.msra.mxu0 0.0
    %4570 = vmatprep.subr.mxu0 0.0
    %4571 = vmatpush1.xpose.msra.mxu0 0.0
    %4572 = vmatprep.subr.mxu0 0.0
    %4573 = vmatpush1.xpose.msra.mxu0 0.0
    %4574 = vmatprep.subr.mxu0 0.0
    %4575 = vmatpush1.xpose.msra.mxu0 0.0
    %4576 = vmatprep.subr.mxu0 0.0
    %4577 = vmatpush1.xpose.msra.mxu0 0.0
    %4578 = vmatprep.subr.mxu0 0.0
    %4579 = vmatpush1.xpose.msra.mxu0 0.0
    %4580 = vmatprep.subr.mxu0 0.0
    %4581 = vmatpush1.xpose.msra.mxu0 0.0
    %4582 = vmatprep.subr.mxu0 0.0
    %4583 = vmatpush1.xpose.msra.mxu0 0.0
    %4584 = vmatprep.subr.mxu0 0.0
    %4585 = vmatpush1.xpose.msra.mxu0 0.0
    %4586 = vmatprep.subr.mxu0 0.0
    %4587 = vmatpush1.xpose.msra.mxu0 0.0
    %4588 = vmatprep.subr.mxu0 0.0
    %4589 = vmatpush1.xpose.msra.mxu0 0.0
    %4590 = vmatprep.subr.mxu0 0.0
    %4591 = vmatpush1.xpose.msra.mxu0 0.0
    %4592 = vmatprep.subr.mxu0 0.0
    %4593 = vmatpush1.xpose.msra.mxu0 0.0
    %4594 = vmatprep.subr.mxu0 0.0
    %4595 = vmatpush1.xpose.msra.mxu0 0.0
    %4596 = vmatprep.mubr.f32.mxu0 0.0
    %4597 = vmatmul.mubr.f32.gmra.mrb[0].mxu0 %v4521
    %v4598 = vpop.f32.mrb[0].mxu0
    %v4599 = vadd.f32 0.0, %v4598
    %v4600 = vpop.f32.mrb[0].mxu0
    %4601 = vmatprep.mubr.f32.mxu0 0.0
    %4602 = vmatmul.mubr.f32.gmra.mrb[0].mxu0 %v4524
    %v4603 = vpop.f32.mrb[0].mxu0
    %v4604 = vadd.f32 0.0, %v4603
    %v4605 = vpop.f32.mrb[0].mxu0
    %4606 = vdwg.mxu0
    %v4607 = vmul.f32 %v4599, 0.17677669
    %v4608 = vmul.f32 %v4604, 0.17677669
    %v4609 = vsel %vm737, %v4607, -inf
    %4610 = vmax.xlane.f32.xlu0 %v4609
    %v4611 = vpop.xlane.xlu0 %4610
    %v4612 = vsel %vm737, %v4608, -inf
    %4613 = vmax.xlane.f32.xlu0 %v4612
    %v4614 = vpop.xlane.xlu0 %4613
    %v4615 = vsub.f32 %v4607, %v4611
    %v4616 = vsub.f32 %v4608, %v4614
    %v4617 = vmul.f32 %v4615, 1.442695
    %v4618 = vpow.pop %v4617
    %v4619 = vmul.f32 %v4616, 1.442695
    %v4620 = vpow.pop %v4619
    %v4621 = vsel %vm737, %v4618, 0.0
    %4622 = vadd.xlane.f32.xlu0 %v4621
    %v4623 = vpop.xlane.xlu0 %4622
    %v4624 = vsel %vm737, %v4620, 0.0
    %4625 = vadd.xlane.f32.xlu0 %v4624
    %v4626 = vpop.xlane.xlu0 %4625
    %v4627 = vrcp.pop %v4623
    %v4628 = vmul.f32 1.0, %v4627
    %v4629 = vrcp.pop %v4626
    %v4630 = vmul.f32 1.0, %v4629
    %v4631 = vmul.f32 %v4618, %v4628
    %v4632 = vmul.f32 %v4620, %v4630
    %v4634 = vsel %vm737, %v4631, 0
    %v4637 = vsel %vm737, %v4632, 0
    %4639 = vmatprep.subr.mxu0 0.0
    %4640 = vmatpush1.msra.mxu0 %v4485
    %4641 = vmatprep.subr.mxu0 0.0
    %4642 = vmatpush1.msra.mxu0 %v4490
    %4643 = vmatprep.subr.mxu0 0.0
    %4644 = vmatpush1.msra.mxu0 0.0
    %4645 = vmatprep.subr.mxu0 0.0
    %4646 = vmatpush1.msra.mxu0 0.0
    %4647 = vmatprep.subr.mxu0 0.0
    %4648 = vmatpush1.msra.mxu0 0.0
    %4649 = vmatprep.subr.mxu0 0.0
    %4650 = vmatpush1.msra.mxu0 0.0
    %4651 = vmatprep.subr.mxu0 0.0
    %4652 = vmatpush1.msra.mxu0 0.0
    %4653 = vmatprep.subr.mxu0 0.0
    %4654 = vmatpush1.msra.mxu0 0.0
    %4655 = vmatprep.subr.mxu0 0.0
    %4656 = vmatpush1.msra.mxu0 0.0
    %4657 = vmatprep.subr.mxu0 0.0
    %4658 = vmatpush1.msra.mxu0 0.0
    %4659 = vmatprep.subr.mxu0 0.0
    %4660 = vmatpush1.msra.mxu0 0.0
    %4661 = vmatprep.subr.mxu0 0.0
    %4662 = vmatpush1.msra.mxu0 0.0
    %4663 = vmatprep.subr.mxu0 0.0
    %4664 = vmatpush1.msra.mxu0 0.0
    %4665 = vmatprep.subr.mxu0 0.0
    %4666 = vmatpush1.msra.mxu0 0.0
    %4667 = vmatprep.subr.mxu0 0.0
    %4668 = vmatpush1.msra.mxu0 0.0
    %4669 = vmatprep.subr.mxu0 0.0
    %4670 = vmatpush1.msra.mxu0 0.0
    %4671 = vmatprep.subr.mxu0 0.0
    %4672 = vmatpush1.msra.mxu0 0.0
    %4673 = vmatprep.subr.mxu0 0.0
    %4674 = vmatpush1.msra.mxu0 0.0
    %4675 = vmatprep.subr.mxu0 0.0
    %4676 = vmatpush1.msra.mxu0 0.0
    %4677 = vmatprep.subr.mxu0 0.0
    %4678 = vmatpush1.msra.mxu0 0.0
    %4679 = vmatprep.subr.mxu0 0.0
    %4680 = vmatpush1.msra.mxu0 0.0
    %4681 = vmatprep.subr.mxu0 0.0
    %4682 = vmatpush1.msra.mxu0 0.0
    %4683 = vmatprep.subr.mxu0 0.0
    %4684 = vmatpush1.msra.mxu0 0.0
    %4685 = vmatprep.subr.mxu0 0.0
    %4686 = vmatpush1.msra.mxu0 0.0
    %4687 = vmatprep.subr.mxu0 0.0
    %4688 = vmatpush1.msra.mxu0 0.0
    %4689 = vmatprep.subr.mxu0 0.0
    %4690 = vmatpush1.msra.mxu0 0.0
    %4691 = vmatprep.subr.mxu0 0.0
    %4692 = vmatpush1.msra.mxu0 0.0
    %4693 = vmatprep.subr.mxu0 0.0
    %4694 = vmatpush1.msra.mxu0 0.0
    %4695 = vmatprep.subr.mxu0 0.0
    %4696 = vmatpush1.msra.mxu0 0.0
    %4697 = vmatprep.subr.mxu0 0.0
    %4698 = vmatpush1.msra.mxu0 0.0
    %4699 = vmatprep.subr.mxu0 0.0
    %4700 = vmatpush1.msra.mxu0 0.0
    %4701 = vmatprep.subr.mxu0 0.0
    %4702 = vmatpush1.msra.mxu0 0.0
    %4703 = vmatprep.mubr.f32.mxu0 0.0
    %4704 = vmatmul.mubr.f32.gmra.mrb[0].mxu0 %v4634
    %v4705 = vpop.f32.mrb[0].mxu0
    %v4706 = vadd.f32 0.0, %v4705
    %v4707 = vpop.f32.mrb[0].mxu0
    %4708 = vmatprep.mubr.f32.mxu0 0.0
    %4709 = vmatmul.mubr.f32.gmra.mrb[0].mxu0 %v4637
    %v4710 = vpop.f32.mrb[0].mxu0
    %v4711 = vadd.f32 0.0, %v4710
    %v4712 = vpop.f32.mrb[0].mxu0
    %4713 = vdwg.mxu0
    %4714 = vrot.lane.b32.xlu0 %v4396, 96
    %v4715 = vpop.permute.xlu0 %4714
    %4716 = vrot.lane.b32.xlu0 %v4402, 96
    %v4717 = vpop.permute.xlu0 %4716
    %4718 = vrot.lane.b32.xlu0 %v4398, 96
    %v4719 = vpop.permute.xlu0 %4718
    %4720 = vrot.lane.b32.xlu0 %v4404, 96
    %v4721 = vpop.permute.xlu0 %4720
    %v4722 = vsel %vm647, %v4715, 0
    %v4724 = vsel %vm647, %v4717, 0
    %v4726 = vsel %vm647, %v4719, 0
    %v4728 = vsel %vm647, %v4721, 0
    %4730 = vmatprep.subr.mxu0 0.0
    %4731 = vmatpush1.xpose.msra.mxu0 %v4726
    %4732 = vmatprep.subr.mxu0 0.0
    %4733 = vmatpush1.xpose.msra.mxu0 %v4728
    %4734 = vmatprep.subr.mxu0 0.0
    %4735 = vmatpush1.xpose.msra.mxu0 0.0
    %4736 = vmatprep.subr.mxu0 0.0
    %4737 = vmatpush1.xpose.msra.mxu0 0.0
    %4738 = vmatprep.subr.mxu0 0.0
    %4739 = vmatpush1.xpose.msra.mxu0 0.0
    %4740 = vmatprep.subr.mxu0 0.0
    %4741 = vmatpush1.xpose.msra.mxu0 0.0
    %4742 = vmatprep.subr.mxu0 0.0
    %4743 = vmatpush1.xpose.msra.mxu0 0.0
    %4744 = vmatprep.subr.mxu0 0.0
    %4745 = vmatpush1.xpose.msra.mxu0 0.0
    %4746 = vmatprep.subr.mxu0 0.0
    %4747 = vmatpush1.xpose.msra.mxu0 0.0
    %4748 = vmatprep.subr.mxu0 0.0
    %4749 = vmatpush1.xpose.msra.mxu0 0.0
    %4750 = vmatprep.subr.mxu0 0.0
    %4751 = vmatpush1.xpose.msra.mxu0 0.0
    %4752 = vmatprep.subr.mxu0 0.0
    %4753 = vmatpush1.xpose.msra.mxu0 0.0
    %4754 = vmatprep.subr.mxu0 0.0
    %4755 = vmatpush1.xpose.msra.mxu0 0.0
    %4756 = vmatprep.subr.mxu0 0.0
    %4757 = vmatpush1.xpose.msra.mxu0 0.0
    %4758 = vmatprep.subr.mxu0 0.0
    %4759 = vmatpush1.xpose.msra.mxu0 0.0
    %4760 = vmatprep.subr.mxu0 0.0
    %4761 = vmatpush1.xpose.msra.mxu0 0.0
    %4762 = vmatprep.subr.mxu0 0.0
    %4763 = vmatpush1.xpose.msra.mxu0 0.0
    %4764 = vmatprep.subr.mxu0 0.0
    %4765 = vmatpush1.xpose.msra.mxu0 0.0
    %4766 = vmatprep.subr.mxu0 0.0
    %4767 = vmatpush1.xpose.msra.mxu0 0.0
    %4768 = vmatprep.subr.mxu0 0.0
    %4769 = vmatpush1.xpose.msra.mxu0 0.0
    %4770 = vmatprep.subr.mxu0 0.0
    %4771 = vmatpush1.xpose.msra.mxu0 0.0
    %4772 = vmatprep.subr.mxu0 0.0
    %4773 = vmatpush1.xpose.msra.mxu0 0.0
    %4774 = vmatprep.subr.mxu0 0.0
    %4775 = vmatpush1.xpose.msra.mxu0 0.0
    %4776 = vmatprep.subr.mxu0 0.0
    %4777 = vmatpush1.xpose.msra.mxu0 0.0
    %4778 = vmatprep.subr.mxu0 0.0
    %4779 = vmatpush1.xpose.msra.mxu0 0.0
    %4780 = vmatprep.subr.mxu0 0.0
    %4781 = vmatpush1.xpose.msra.mxu0 0.0
    %4782 = vmatprep.subr.mxu0 0.0
    %4783 = vmatpush1.xpose.msra.mxu0 0.0
    %4784 = vmatprep.subr.mxu0 0.0
    %4785 = vmatpush1.xpose.msra.mxu0 0.0
    %4786 = vmatprep.subr.mxu0 0.0
    %4787 = vmatpush1.xpose.msra.mxu0 0.0
    %4788 = vmatprep.subr.mxu0 0.0
    %4789 = vmatpush1.xpose.msra.mxu0 0.0
    %4790 = vmatprep.subr.mxu0 0.0
    %4791 = vmatpush1.xpose.msra.mxu0 0.0
    %4792 = vmatprep.subr.mxu0 0.0
    %4793 = vmatpush1.xpose.msra.mxu0 0.0
    %4794 = vmatprep.mubr.f32.mxu0 0.0
    %4795 = vmatmul.mubr.f32.gmra.mrb[0].mxu0 %v4722
    %v4796 = vpop.f32.mrb[0].mxu0
    %v4797 = vadd.f32 0.0, %v4796
    %v4798 = vpop.f32.mrb[0].mxu0
    %4799 = vmatprep.mubr.f32.mxu0 0.0
    %4800 = vmatmul.mubr.f32.gmra.mrb[0].mxu0 %v4724
    %v4801 = vpop.f32.mrb[0].mxu0
    %v4802 = vadd.f32 0.0, %v4801
    %v4803 = vpop.f32.mrb[0].mxu0
    %4804 = vdwg.mxu0
    %v4805 = vmul.f32 %v4797, 0.17677669
    %v4806 = vmul.f32 %v4802, 0.17677669
    %v4807 = vsel %vm737, %v4805, -inf
    %4808 = vmax.xlane.f32.xlu0 %v4807
    %v4809 = vpop.xlane.xlu0 %4808
    %v4810 = vsel %vm737, %v4806, -inf
    %4811 = vmax.xlane.f32.xlu0 %v4810
    %v4812 = vpop.xlane.xlu0 %4811
    %v4813 = vsub.f32 %v4805, %v4809
    %v4814 = vsub.f32 %v4806, %v4812
    %v4815 = vmul.f32 %v4813, 1.442695
    %v4816 = vpow.pop %v4815
    %v4817 = vmul.f32 %v4814, 1.442695
    %v4818 = vpow.pop %v4817
    %v4819 = vsel %vm737, %v4816, 0.0
    %4820 = vadd.xlane.f32.xlu0 %v4819
    %v4821 = vpop.xlane.xlu0 %4820
    %v4822 = vsel %vm737, %v4818, 0.0
    %4823 = vadd.xlane.f32.xlu0 %v4822
    %v4824 = vpop.xlane.xlu0 %4823
    %v4825 = vrcp.pop %v4821
    %v4826 = vmul.f32 1.0, %v4825
    %v4827 = vrcp.pop %v4824
    %v4828 = vmul.f32 1.0, %v4827
    %v4829 = vmul.f32 %v4816, %v4826
    %v4830 = vmul.f32 %v4818, %v4828
    %4833 = vrot.lane.b32.xlu0 %v4485, 96
    %v4834 = vpop.permute.xlu0 %4833
    %4835 = vrot.lane.b32.xlu0 %v4490, 96
    %v4836 = vpop.permute.xlu0 %4835
    %v4840 = vsel %vm737, %v4829, 0
    %v4843 = vsel %vm737, %v4830, 0
    %4845 = vmatprep.subr.mxu0 0.0
    %4846 = vmatpush1.msra.mxu0 %v4834
    %4847 = vmatprep.subr.mxu0 0.0
    %4848 = vmatpush1.msra.mxu0 %v4836
    %4849 = vmatprep.subr.mxu0 0.0
    %4850 = vmatpush1.msra.mxu0 0.0
    %4851 = vmatprep.subr.mxu0 0.0
    %4852 = vmatpush1.msra.mxu0 0.0
    %4853 = vmatprep.subr.mxu0 0.0
    %4854 = vmatpush1.msra.mxu0 0.0
    %4855 = vmatprep.subr.mxu0 0.0
    %4856 = vmatpush1.msra.mxu0 0.0
    %4857 = vmatprep.subr.mxu0 0.0
    %4858 = vmatpush1.msra.mxu0 0.0
    %4859 = vmatprep.subr.mxu0 0.0
    %4860 = vmatpush1.msra.mxu0 0.0
    %4861 = vmatprep.subr.mxu0 0.0
    %4862 = vmatpush1.msra.mxu0 0.0
    %4863 = vmatprep.subr.mxu0 0.0
    %4864 = vmatpush1.msra.mxu0 0.0
    %4865 = vmatprep.subr.mxu0 0.0
    %4866 = vmatpush1.msra.mxu0 0.0
    %4867 = vmatprep.subr.mxu0 0.0
    %4868 = vmatpush1.msra.mxu0 0.0
    %4869 = vmatprep.subr.mxu0 0.0
    %4870 = vmatpush1.msra.mxu0 0.0
    %4871 = vmatprep.subr.mxu0 0.0
    %4872 = vmatpush1.msra.mxu0 0.0
    %4873 = vmatprep.subr.mxu0 0.0
    %4874 = vmatpush1.msra.mxu0 0.0
    %4875 = vmatprep.subr.mxu0 0.0
    %4876 = vmatpush1.msra.mxu0 0.0
    %4877 = vmatprep.subr.mxu0 0.0
    %4878 = vmatpush1.msra.mxu0 0.0
    %4879 = vmatprep.subr.mxu0 0.0
    %4880 = vmatpush1.msra.mxu0 0.0
    %4881 = vmatprep.subr.mxu0 0.0
    %4882 = vmatpush1.msra.mxu0 0.0
    %4883 = vmatprep.subr.mxu0 0.0
    %4884 = vmatpush1.msra.mxu0 0.0
    %4885 = vmatprep.subr.mxu0 0.0
    %4886 = vmatpush1.msra.mxu0 0.0
    %4887 = vmatprep.subr.mxu0 0.0
    %4888 = vmatpush1.msra.mxu0 0.0
    %4889 = vmatprep.subr.mxu0 0.0
    %4890 = vmatpush1.msra.mxu0 0.0
    %4891 = vmatprep.subr.mxu0 0.0
    %4892 = vmatpush1.msra.mxu0 0.0
    %4893 = vmatprep.subr.mxu0 0.0
    %4894 = vmatpush1.msra.mxu0 0.0
    %4895 = vmatprep.subr.mxu0 0.0
    %4896 = vmatpush1.msra.mxu0 0.0
    %4897 = vmatprep.subr.mxu0 0.0
    %4898 = vmatpush1.msra.mxu0 0.0
    %4899 = vmatprep.subr.mxu0 0.0
    %4900 = vmatpush1.msra.mxu0 0.0
    %4901 = vmatprep.subr.mxu0 0.0
    %4902 = vmatpush1.msra.mxu0 0.0
    %4903 = vmatprep.subr.mxu0 0.0
    %4904 = vmatpush1.msra.mxu0 0.0
    %4905 = vmatprep.subr.mxu0 0.0
    %4906 = vmatpush1.msra.mxu0 0.0
    %4907 = vmatprep.subr.mxu0 0.0
    %4908 = vmatpush1.msra.mxu0 0.0
    %4909 = vmatprep.mubr.f32.mxu0 0.0
    %4910 = vmatmul.mubr.f32.gmra.mrb[0].mxu0 %v4840
    %v4911 = vpop.f32.mrb[0].mxu0
    %v4912 = vadd.f32 0.0, %v4911
    %v4913 = vpop.f32.mrb[0].mxu0
    %4914 = vmatprep.mubr.f32.mxu0 0.0
    %4915 = vmatmul.mubr.f32.gmra.mrb[0].mxu0 %v4843
    %v4916 = vpop.f32.mrb[0].mxu0
    %v4917 = vadd.f32 0.0, %v4916
    %v4918 = vpop.f32.mrb[0].mxu0
    %4919 = vdwg.mxu0
    %v4921 = vsel %vm647, %v4912, 0
    %v4924 = vsel %vm647, %v4917, 0
    %4926 = vmatprep.subr.mxu0 0.0
    %4927 = vmatpush1.msra.mxu0 %v4508
    %4928 = vmatprep.subr.mxu0 0.0
    %4929 = vmatpush1.msra.mxu0 %v4509
    %4930 = vmatprep.subr.mxu0 0.0
    %4931 = vmatpush1.msra.mxu0 %v4510
    %4932 = vmatprep.subr.mxu0 0.0
    %4933 = vmatpush1.msra.mxu0 %v4511
    %4934 = vmatprep.subr.mxu0 0.0
    %4935 = vmatpush1.msra.mxu0 0.0
    %4936 = vmatprep.subr.mxu0 0.0
    %4937 = vmatpush1.msra.mxu0 0.0
    %4938 = vmatprep.subr.mxu0 0.0
    %4939 = vmatpush1.msra.mxu0 0.0
    %4940 = vmatprep.subr.mxu0 0.0
    %4941 = vmatpush1.msra.mxu0 0.0
    %4942 = vmatprep.subr.mxu0 0.0
    %4943 = vmatpush1.msra.mxu0 0.0
    %4944 = vmatprep.subr.mxu0 0.0
    %4945 = vmatpush1.msra.mxu0 0.0
    %4946 = vmatprep.subr.mxu0 0.0
    %4947 = vmatpush1.msra.mxu0 0.0
    %4948 = vmatprep.subr.mxu0 0.0
    %4949 = vmatpush1.msra.mxu0 0.0
    %4950 = vmatprep.subr.mxu0 0.0
    %4951 = vmatpush1.msra.mxu0 0.0
    %4952 = vmatprep.subr.mxu0 0.0
    %4953 = vmatpush1.msra.mxu0 0.0
    %4954 = vmatprep.subr.mxu0 0.0
    %4955 = vmatpush1.msra.mxu0 0.0
    %4956 = vmatprep.subr.mxu0 0.0
    %4957 = vmatpush1.msra.mxu0 0.0
    %4958 = vmatprep.subr.mxu0 0.0
    %4959 = vmatpush1.msra.mxu0 0.0
    %4960 = vmatprep.subr.mxu0 0.0
    %4961 = vmatpush1.msra.mxu0 0.0
    %4962 = vmatprep.subr.mxu0 0.0
    %4963 = vmatpush1.msra.mxu0 0.0
    %4964 = vmatprep.subr.mxu0 0.0
    %4965 = vmatpush1.msra.mxu0 0.0
    %4966 = vmatprep.subr.mxu0 0.0
    %4967 = vmatpush1.msra.mxu0 0.0
    %4968 = vmatprep.subr.mxu0 0.0
    %4969 = vmatpush1.msra.mxu0 0.0
    %4970 = vmatprep.subr.mxu0 0.0
    %4971 = vmatpush1.msra.mxu0 0.0
    %4972 = vmatprep.subr.mxu0 0.0
    %4973 = vmatpush1.msra.mxu0 0.0
    %4974 = vmatprep.subr.mxu0 0.0
    %4975 = vmatpush1.msra.mxu0 0.0
    %4976 = vmatprep.subr.mxu0 0.0
    %4977 = vmatpush1.msra.mxu0 0.0
    %4978 = vmatprep.subr.mxu0 0.0
    %4979 = vmatpush1.msra.mxu0 0.0
    %4980 = vmatprep.subr.mxu0 0.0
    %4981 = vmatpush1.msra.mxu0 0.0
    %4982 = vmatprep.subr.mxu0 0.0
    %4983 = vmatpush1.msra.mxu0 0.0
    %4984 = vmatprep.subr.mxu0 0.0
    %4985 = vmatpush1.msra.mxu0 0.0
    %4986 = vmatprep.subr.mxu0 0.0
    %4987 = vmatpush1.msra.mxu0 0.0
    %4988 = vmatprep.subr.mxu0 0.0
    %4989 = vmatpush1.msra.mxu0 0.0
    %4990 = vmatprep.mubr.f32.mxu0 0.0
    %4991 = vmatmul.mubr.f32.gmra.mrb[0].mxu0 %v4921
    %v4992 = vpop.f32.mrb[0].mxu0
    %v4993 = vadd.f32 0.0, %v4992
    %v4994 = vpop.f32.mrb[0].mxu0
    %4995 = vmatprep.mubr.f32.mxu0 0.0
    %4996 = vmatmul.mubr.f32.gmra.mrb[0].mxu0 %v4924
    %v4997 = vpop.f32.mrb[0].mxu0
    %v4998 = vadd.f32 0.0, %v4997
    %v4999 = vpop.f32.mrb[0].mxu0
    %5000 = vdwg.mxu0
    %v5002 = vsel %vm647, %v4706, 0
    %v5005 = vsel %vm647, %v4711, 0
    %5007 = vmatprep.subr.mxu0 0.0
    %5008 = vmatpush1.msra.mxu0 %v4504
    %5009 = vmatprep.subr.mxu0 0.0
    %5010 = vmatpush1.msra.mxu0 %v4505
    %5011 = vmatprep.subr.mxu0 0.0
    %5012 = vmatpush1.msra.mxu0 %v4506
    %5013 = vmatprep.subr.mxu0 0.0
    %5014 = vmatpush1.msra.mxu0 %v4507
    %5015 = vmatprep.subr.mxu0 0.0
    %5016 = vmatpush1.msra.mxu0 0.0
    %5017 = vmatprep.subr.mxu0 0.0
    %5018 = vmatpush1.msra.mxu0 0.0
    %5019 = vmatprep.subr.mxu0 0.0
    %5020 = vmatpush1.msra.mxu0 0.0
    %5021 = vmatprep.subr.mxu0 0.0
    %5022 = vmatpush1.msra.mxu0 0.0
    %5023 = vmatprep.subr.mxu0 0.0
    %5024 = vmatpush1.msra.mxu0 0.0
    %5025 = vmatprep.subr.mxu0 0.0
    %5026 = vmatpush1.msra.mxu0 0.0
    %5027 = vmatprep.subr.mxu0 0.0
    %5028 = vmatpush1.msra.mxu0 0.0
    %5029 = vmatprep.subr.mxu0 0.0
    %5030 = vmatpush1.msra.mxu0 0.0
    %5031 = vmatprep.subr.mxu0 0.0
    %5032 = vmatpush1.msra.mxu0 0.0
    %5033 = vmatprep.subr.mxu0 0.0
    %5034 = vmatpush1.msra.mxu0 0.0
    %5035 = vmatprep.subr.mxu0 0.0
    %5036 = vmatpush1.msra.mxu0 0.0
    %5037 = vmatprep.subr.mxu0 0.0
    %5038 = vmatpush1.msra.mxu0 0.0
    %5039 = vmatprep.subr.mxu0 0.0
    %5040 = vmatpush1.msra.mxu0 0.0
    %5041 = vmatprep.subr.mxu0 0.0
    %5042 = vmatpush1.msra.mxu0 0.0
    %5043 = vmatprep.subr.mxu0 0.0
    %5044 = vmatpush1.msra.mxu0 0.0
    %5045 = vmatprep.subr.mxu0 0.0
    %5046 = vmatpush1.msra.mxu0 0.0
    %5047 = vmatprep.subr.mxu0 0.0
    %5048 = vmatpush1.msra.mxu0 0.0
    %5049 = vmatprep.subr.mxu0 0.0
    %5050 = vmatpush1.msra.mxu0 0.0
    %5051 = vmatprep.subr.mxu0 0.0
    %5052 = vmatpush1.msra.mxu0 0.0
    %5053 = vmatprep.subr.mxu0 0.0
    %5054 = vmatpush1.msra.mxu0 0.0
    %5055 = vmatprep.subr.mxu0 0.0
    %5056 = vmatpush1.msra.mxu0 0.0
    %5057 = vmatprep.subr.mxu0 0.0
    %5058 = vmatpush1.msra.mxu0 0.0
    %5059 = vmatprep.subr.mxu0 0.0
    %5060 = vmatpush1.msra.mxu0 0.0
    %5061 = vmatprep.subr.mxu0 0.0
    %5062 = vmatpush1.msra.mxu0 0.0
    %5063 = vmatprep.subr.mxu0 0.0
    %5064 = vmatpush1.msra.mxu0 0.0
    %5065 = vmatprep.subr.mxu0 0.0
    %5066 = vmatpush1.msra.mxu0 0.0
    %5067 = vmatprep.subr.mxu0 0.0
    %5068 = vmatpush1.msra.mxu0 0.0
    %5069 = vmatprep.subr.mxu0 0.0
    %5070 = vmatpush1.msra.mxu0 0.0
    %5071 = vmatprep.mubr.f32.mxu0 0.0
    %5072 = vmatmul.mubr.f32.gmra.mrb[0].mxu0 %v5002
    %v5073 = vpop.f32.mrb[0].mxu0
    %v5074 = vadd.f32 %v4993, %v5073
    %v5075 = vpop.f32.mrb[0].mxu0
    %5076 = vmatprep.mubr.f32.mxu0 0.0
    %5077 = vmatmul.mubr.f32.gmra.mrb[0].mxu0 %v5005
    %v5078 = vpop.f32.mrb[0].mxu0
    %v5079 = vadd.f32 %v4998, %v5078
    %v5080 = vpop.f32.mrb[0].mxu0
    %5081 = vdwg.mxu0
    %5082 = vrot.lane.b32.xlu0 %v4396, 64
    %v5083 = vpop.permute.xlu0 %5082
    %5084 = vrot.lane.b32.xlu0 %v4402, 64
    %v5085 = vpop.permute.xlu0 %5084
    %5086 = vrot.lane.b32.xlu0 %v4398, 64
    %v5087 = vpop.permute.xlu0 %5086
    %5088 = vrot.lane.b32.xlu0 %v4404, 64
    %v5089 = vpop.permute.xlu0 %5088
    %v5090 = vsel %vm647, %v5083, 0
    %v5092 = vsel %vm647, %v5085, 0
    %v5094 = vsel %vm647, %v5087, 0
    %v5096 = vsel %vm647, %v5089, 0
    %5098 = vmatprep.subr.mxu0 0.0
    %5099 = vmatpush1.xpose.msra.mxu0 %v5094
    %5100 = vmatprep.subr.mxu0 0.0
    %5101 = vmatpush1.xpose.msra.mxu0 %v5096
    %5102 = vmatprep.subr.mxu0 0.0
    %5103 = vmatpush1.xpose.msra.mxu0 0.0
    %5104 = vmatprep.subr.mxu0 0.0
    %5105 = vmatpush1.xpose.msra.mxu0 0.0
    %5106 = vmatprep.subr.mxu0 0.0
    %5107 = vmatpush1.xpose.msra.mxu0 0.0
    %5108 = vmatprep.subr.mxu0 0.0
    %5109 = vmatpush1.xpose.msra.mxu0 0.0
    %5110 = vmatprep.subr.mxu0 0.0
    %5111 = vmatpush1.xpose.msra.mxu0 0.0
    %5112 = vmatprep.subr.mxu0 0.0
    %5113 = vmatpush1.xpose.msra.mxu0 0.0
    %5114 = vmatprep.subr.mxu0 0.0
    %5115 = vmatpush1.xpose.msra.mxu0 0.0
    %5116 = vmatprep.subr.mxu0 0.0
    %5117 = vmatpush1.xpose.msra.mxu0 0.0
    %5118 = vmatprep.subr.mxu0 0.0
    %5119 = vmatpush1.xpose.msra.mxu0 0.0
    %5120 = vmatprep.subr.mxu0 0.0
    %5121 = vmatpush1.xpose.msra.mxu0 0.0
    %5122 = vmatprep.subr.mxu0 0.0
    %5123 = vmatpush1.xpose.msra.mxu0 0.0
    %5124 = vmatprep.subr.mxu0 0.0
    %5125 = vmatpush1.xpose.msra.mxu0 0.0
    %5126 = vmatprep.subr.mxu0 0.0
    %5127 = vmatpush1.xpose.msra.mxu0 0.0
    %5128 = vmatprep.subr.mxu0 0.0
    %5129 = vmatpush1.xpose.msra.mxu0 0.0
    %5130 = vmatprep.subr.mxu0 0.0
    %5131 = vmatpush1.xpose.msra.mxu0 0.0
    %5132 = vmatprep.subr.mxu0 0.0
    %5133 = vmatpush1.xpose.msra.mxu0 0.0
    %5134 = vmatprep.subr.mxu0 0.0
    %5135 = vmatpush1.xpose.msra.mxu0 0.0
    %5136 = vmatprep.subr.mxu0 0.0
    %5137 = vmatpush1.xpose.msra.mxu0 0.0
    %5138 = vmatprep.subr.mxu0 0.0
    %5139 = vmatpush1.xpose.msra.mxu0 0.0
    %5140 = vmatprep.subr.mxu0 0.0
    %5141 = vmatpush1.xpose.msra.mxu0 0.0
    %5142 = vmatprep.subr.mxu0 0.0
    %5143 = vmatpush1.xpose.msra.mxu0 0.0
    %5144 = vmatprep.subr.mxu0 0.0
    %5145 = vmatpush1.xpose.msra.mxu0 0.0
    %5146 = vmatprep.subr.mxu0 0.0
    %5147 = vmatpush1.xpose.msra.mxu0 0.0
    %5148 = vmatprep.subr.mxu0 0.0
    %5149 = vmatpush1.xpose.msra.mxu0 0.0
    %5150 = vmatprep.subr.mxu0 0.0
    %5151 = vmatpush1.xpose.msra.mxu0 0.0
    %5152 = vmatprep.subr.mxu0 0.0
    %5153 = vmatpush1.xpose.msra.mxu0 0.0
    %5154 = vmatprep.subr.mxu0 0.0
    %5155 = vmatpush1.xpose.msra.mxu0 0.0
    %5156 = vmatprep.subr.mxu0 0.0
    %5157 = vmatpush1.xpose.msra.mxu0 0.0
    %5158 = vmatprep.subr.mxu0 0.0
    %5159 = vmatpush1.xpose.msra.mxu0 0.0
    %5160 = vmatprep.subr.mxu0 0.0
    %5161 = vmatpush1.xpose.msra.mxu0 0.0
    %5162 = vmatprep.mubr.f32.mxu0 0.0
    %5163 = vmatmul.mubr.f32.gmra.mrb[0].mxu0 %v5090
    %v5164 = vpop.f32.mrb[0].mxu0
    %v5165 = vadd.f32 0.0, %v5164
    %v5166 = vpop.f32.mrb[0].mxu0
    %5167 = vmatprep.mubr.f32.mxu0 0.0
    %5168 = vmatmul.mubr.f32.gmra.mrb[0].mxu0 %v5092
    %v5169 = vpop.f32.mrb[0].mxu0
    %v5170 = vadd.f32 0.0, %v5169
    %v5171 = vpop.f32.mrb[0].mxu0
    %5172 = vdwg.mxu0
    %v5173 = vmul.f32 %v5165, 0.17677669
    %v5174 = vmul.f32 %v5170, 0.17677669
    %v5175 = vsel %vm737, %v5173, -inf
    %5176 = vmax.xlane.f32.xlu0 %v5175
    %v5177 = vpop.xlane.xlu0 %5176
    %v5178 = vsel %vm737, %v5174, -inf
    %5179 = vmax.xlane.f32.xlu0 %v5178
    %v5180 = vpop.xlane.xlu0 %5179
    %v5181 = vsub.f32 %v5173, %v5177
    %v5182 = vsub.f32 %v5174, %v5180
    %v5183 = vmul.f32 %v5181, 1.442695
    %v5184 = vpow.pop %v5183
    %v5185 = vmul.f32 %v5182, 1.442695
    %v5186 = vpow.pop %v5185
    %v5187 = vsel %vm737, %v5184, 0.0
    %5188 = vadd.xlane.f32.xlu0 %v5187
    %v5189 = vpop.xlane.xlu0 %5188
    %v5190 = vsel %vm737, %v5186, 0.0
    %5191 = vadd.xlane.f32.xlu0 %v5190
    %v5192 = vpop.xlane.xlu0 %5191
    %v5193 = vrcp.pop %v5189
    %v5194 = vmul.f32 1.0, %v5193
    %v5195 = vrcp.pop %v5192
    %v5196 = vmul.f32 1.0, %v5195
    %v5197 = vmul.f32 %v5184, %v5194
    %v5198 = vmul.f32 %v5186, %v5196
    %5199 = vrot.lane.b32.xlu0 %v4485, 64
    %v5200 = vpop.permute.xlu0 %5199
    %5201 = vrot.lane.b32.xlu0 %v4490, 64
    %v5202 = vpop.permute.xlu0 %5201
    %v5206 = vsel %vm737, %v5197, 0
    %v5209 = vsel %vm737, %v5198, 0
    %5211 = vmatprep.subr.mxu0 0.0
    %5212 = vmatpush1.msra.mxu0 %v5200
    %5213 = vmatprep.subr.mxu0 0.0
    %5214 = vmatpush1.msra.mxu0 %v5202
    %5215 = vmatprep.subr.mxu0 0.0
    %5216 = vmatpush1.msra.mxu0 0.0
    %5217 = vmatprep.subr.mxu0 0.0
    %5218 = vmatpush1.msra.mxu0 0.0
    %5219 = vmatprep.subr.mxu0 0.0
    %5220 = vmatpush1.msra.mxu0 0.0
    %5221 = vmatprep.subr.mxu0 0.0
    %5222 = vmatpush1.msra.mxu0 0.0
    %5223 = vmatprep.subr.mxu0 0.0
    %5224 = vmatpush1.msra.mxu0 0.0
    %5225 = vmatprep.subr.mxu0 0.0
    %5226 = vmatpush1.msra.mxu0 0.0
    %5227 = vmatprep.subr.mxu0 0.0
    %5228 = vmatpush1.msra.mxu0 0.0
    %5229 = vmatprep.subr.mxu0 0.0
    %5230 = vmatpush1.msra.mxu0 0.0
    %5231 = vmatprep.subr.mxu0 0.0
    %5232 = vmatpush1.msra.mxu0 0.0
    %5233 = vmatprep.subr.mxu0 0.0
    %5234 = vmatpush1.msra.mxu0 0.0
    %5235 = vmatprep.subr.mxu0 0.0
    %5236 = vmatpush1.msra.mxu0 0.0
    %5237 = vmatprep.subr.mxu0 0.0
    %5238 = vmatpush1.msra.mxu0 0.0
    %5239 = vmatprep.subr.mxu0 0.0
    %5240 = vmatpush1.msra.mxu0 0.0
    %5241 = vmatprep.subr.mxu0 0.0
    %5242 = vmatpush1.msra.mxu0 0.0
    %5243 = vmatprep.subr.mxu0 0.0
    %5244 = vmatpush1.msra.mxu0 0.0
    %5245 = vmatprep.subr.mxu0 0.0
    %5246 = vmatpush1.msra.mxu0 0.0
    %5247 = vmatprep.subr.mxu0 0.0
    %5248 = vmatpush1.msra.mxu0 0.0
    %5249 = vmatprep.subr.mxu0 0.0
    %5250 = vmatpush1.msra.mxu0 0.0
    %5251 = vmatprep.subr.mxu0 0.0
    %5252 = vmatpush1.msra.mxu0 0.0
    %5253 = vmatprep.subr.mxu0 0.0
    %5254 = vmatpush1.msra.mxu0 0.0
    %5255 = vmatprep.subr.mxu0 0.0
    %5256 = vmatpush1.msra.mxu0 0.0
    %5257 = vmatprep.subr.mxu0 0.0
    %5258 = vmatpush1.msra.mxu0 0.0
    %5259 = vmatprep.subr.mxu0 0.0
    %5260 = vmatpush1.msra.mxu0 0.0
    %5261 = vmatprep.subr.mxu0 0.0
    %5262 = vmatpush1.msra.mxu0 0.0
    %5263 = vmatprep.subr.mxu0 0.0
    %5264 = vmatpush1.msra.mxu0 0.0
    %5265 = vmatprep.subr.mxu0 0.0
    %5266 = vmatpush1.msra.mxu0 0.0
    %5267 = vmatprep.subr.mxu0 0.0
    %5268 = vmatpush1.msra.mxu0 0.0
    %5269 = vmatprep.subr.mxu0 0.0
    %5270 = vmatpush1.msra.mxu0 0.0
    %5271 = vmatprep.subr.mxu0 0.0
    %5272 = vmatpush1.msra.mxu0 0.0
    %5273 = vmatprep.subr.mxu0 0.0
    %5274 = vmatpush1.msra.mxu0 0.0
    %5275 = vmatprep.mubr.f32.mxu0 0.0
    %5276 = vmatmul.mubr.f32.gmra.mrb[0].mxu0 %v5206
    %v5277 = vpop.f32.mrb[0].mxu0
    %v5278 = vadd.f32 0.0, %v5277
    %v5279 = vpop.f32.mrb[0].mxu0
    %5280 = vmatprep.mubr.f32.mxu0 0.0
    %5281 = vmatmul.mubr.f32.gmra.mrb[0].mxu0 %v5209
    %v5282 = vpop.f32.mrb[0].mxu0
    %v5283 = vadd.f32 0.0, %v5282
    %v5284 = vpop.f32.mrb[0].mxu0
    %5285 = vdwg.mxu0
    %v5287 = vsel %vm647, %v5278, 0
    %v5290 = vsel %vm647, %v5283, 0
    %5292 = vmatprep.subr.mxu0 0.0
    %5293 = vmatpush1.msra.mxu0 %v4512
    %5294 = vmatprep.subr.mxu0 0.0
    %5295 = vmatpush1.msra.mxu0 %v4513
    %5296 = vmatprep.subr.mxu0 0.0
    %5297 = vmatpush1.msra.mxu0 %v4514
    %5298 = vmatprep.subr.mxu0 0.0
    %5299 = vmatpush1.msra.mxu0 %v4515
    %5300 = vmatprep.subr.mxu0 0.0
    %5301 = vmatpush1.msra.mxu0 0.0
    %5302 = vmatprep.subr.mxu0 0.0
    %5303 = vmatpush1.msra.mxu0 0.0
    %5304 = vmatprep.subr.mxu0 0.0
    %5305 = vmatpush1.msra.mxu0 0.0
    %5306 = vmatprep.subr.mxu0 0.0
    %5307 = vmatpush1.msra.mxu0 0.0
    %5308 = vmatprep.subr.mxu0 0.0
    %5309 = vmatpush1.msra.mxu0 0.0
    %5310 = vmatprep.subr.mxu0 0.0
    %5311 = vmatpush1.msra.mxu0 0.0
    %5312 = vmatprep.subr.mxu0 0.0
    %5313 = vmatpush1.msra.mxu0 0.0
    %5314 = vmatprep.subr.mxu0 0.0
    %5315 = vmatpush1.msra.mxu0 0.0
    %5316 = vmatprep.subr.mxu0 0.0
    %5317 = vmatpush1.msra.mxu0 0.0
    %5318 = vmatprep.subr.mxu0 0.0
    %5319 = vmatpush1.msra.mxu0 0.0
    %5320 = vmatprep.subr.mxu0 0.0
    %5321 = vmatpush1.msra.mxu0 0.0
    %5322 = vmatprep.subr.mxu0 0.0
    %5323 = vmatpush1.msra.mxu0 0.0
    %5324 = vmatprep.subr.mxu0 0.0
    %5325 = vmatpush1.msra.mxu0 0.0
    %5326 = vmatprep.subr.mxu0 0.0
    %5327 = vmatpush1.msra.mxu0 0.0
    %5328 = vmatprep.subr.mxu0 0.0
    %5329 = vmatpush1.msra.mxu0 0.0
    %5330 = vmatprep.subr.mxu0 0.0
    %5331 = vmatpush1.msra.mxu0 0.0
    %5332 = vmatprep.subr.mxu0 0.0
    %5333 = vmatpush1.msra.mxu0 0.0
    %5334 = vmatprep.subr.mxu0 0.0
    %5335 = vmatpush1.msra.mxu0 0.0
    %5336 = vmatprep.subr.mxu0 0.0
    %5337 = vmatpush1.msra.mxu0 0.0
    %5338 = vmatprep.subr.mxu0 0.0
    %5339 = vmatpush1.msra.mxu0 0.0
    %5340 = vmatprep.subr.mxu0 0.0
    %5341 = vmatpush1.msra.mxu0 0.0
    %5342 = vmatprep.subr.mxu0 0.0
    %5343 = vmatpush1.msra.mxu0 0.0
    %5344 = vmatprep.subr.mxu0 0.0
    %5345 = vmatpush1.msra.mxu0 0.0
    %5346 = vmatprep.subr.mxu0 0.0
    %5347 = vmatpush1.msra.mxu0 0.0
    %5348 = vmatprep.subr.mxu0 0.0
    %5349 = vmatpush1.msra.mxu0 0.0
    %5350 = vmatprep.subr.mxu0 0.0
    %5351 = vmatpush1.msra.mxu0 0.0
    %5352 = vmatprep.subr.mxu0 0.0
    %5353 = vmatpush1.msra.mxu0 0.0
    %5354 = vmatprep.subr.mxu0 0.0
    %5355 = vmatpush1.msra.mxu0 0.0
    %5356 = vmatprep.mubr.f32.mxu0 0.0
    %5357 = vmatmul.mubr.f32.gmra.mrb[0].mxu0 %v5287
    %v5358 = vpop.f32.mrb[0].mxu0
    %v5359 = vadd.f32 0.0, %v5358
    %v5360 = vpop.f32.mrb[0].mxu0
    %5361 = vmatprep.mubr.f32.mxu0 0.0
    %5362 = vmatmul.mubr.f32.gmra.mrb[0].mxu0 %v5290
    %v5363 = vpop.f32.mrb[0].mxu0
    %v5364 = vadd.f32 0.0, %v5363
    %v5365 = vpop.f32.mrb[0].mxu0
    %5366 = vdwg.mxu0
    %v5367 = vadd.f32 %v5074, %v5359
    %v5368 = vadd.f32 %v5079, %v5364
    %5369 = vrot.lane.b32.xlu0 %v4396, 32
    %v5370 = vpop.permute.xlu0 %5369
    %5371 = vrot.lane.b32.xlu0 %v4402, 32
    %v5372 = vpop.permute.xlu0 %5371
    %5373 = vrot.lane.b32.xlu0 %v4398, 32
    %v5374 = vpop.permute.xlu0 %5373
    %5375 = vrot.lane.b32.xlu0 %v4404, 32
    %v5376 = vpop.permute.xlu0 %5375
    %v5377 = vsel %vm647, %v5370, 0
    %v5379 = vsel %vm647, %v5372, 0
    %v5381 = vsel %vm647, %v5374, 0
    %v5383 = vsel %vm647, %v5376, 0
    %5385 = vmatprep.subr.mxu0 0.0
    %5386 = vmatpush1.xpose.msra.mxu0 %v5381
    %5387 = vmatprep.subr.mxu0 0.0
    %5388 = vmatpush1.xpose.msra.mxu0 %v5383
    %5389 = vmatprep.subr.mxu0 0.0
    %5390 = vmatpush1.xpose.msra.mxu0 0.0
    %5391 = vmatprep.subr.mxu0 0.0
    %5392 = vmatpush1.xpose.msra.mxu0 0.0
    %5393 = vmatprep.subr.mxu0 0.0
    %5394 = vmatpush1.xpose.msra.mxu0 0.0
    %5395 = vmatprep.subr.mxu0 0.0
    %5396 = vmatpush1.xpose.msra.mxu0 0.0
    %5397 = vmatprep.subr.mxu0 0.0
    %5398 = vmatpush1.xpose.msra.mxu0 0.0
    %5399 = vmatprep.subr.mxu0 0.0
    %5400 = vmatpush1.xpose.msra.mxu0 0.0
    %5401 = vmatprep.subr.mxu0 0.0
    %5402 = vmatpush1.xpose.msra.mxu0 0.0
    %5403 = vmatprep.subr.mxu0 0.0
    %5404 = vmatpush1.xpose.msra.mxu0 0.0
    %5405 = vmatprep.subr.mxu0 0.0
    %5406 = vmatpush1.xpose.msra.mxu0 0.0
    %5407 = vmatprep.subr.mxu0 0.0
    %5408 = vmatpush1.xpose.msra.mxu0 0.0
    %5409 = vmatprep.subr.mxu0 0.0
    %5410 = vmatpush1.xpose.msra.mxu0 0.0
    %5411 = vmatprep.subr.mxu0 0.0
    %5412 = vmatpush1.xpose.msra.mxu0 0.0
    %5413 = vmatprep.subr.mxu0 0.0
    %5414 = vmatpush1.xpose.msra.mxu0 0.0
    %5415 = vmatprep.subr.mxu0 0.0
    %5416 = vmatpush1.xpose.msra.mxu0 0.0
    %5417 = vmatprep.subr.mxu0 0.0
    %5418 = vmatpush1.xpose.msra.mxu0 0.0
    %5419 = vmatprep.subr.mxu0 0.0
    %5420 = vmatpush1.xpose.msra.mxu0 0.0
    %5421 = vmatprep.subr.mxu0 0.0
    %5422 = vmatpush1.xpose.msra.mxu0 0.0
    %5423 = vmatprep.subr.mxu0 0.0
    %5424 = vmatpush1.xpose.msra.mxu0 0.0
    %5425 = vmatprep.subr.mxu0 0.0
    %5426 = vmatpush1.xpose.msra.mxu0 0.0
    %5427 = vmatprep.subr.mxu0 0.0
    %5428 = vmatpush1.xpose.msra.mxu0 0.0
    %5429 = vmatprep.subr.mxu0 0.0
    %5430 = vmatpush1.xpose.msra.mxu0 0.0
    %5431 = vmatprep.subr.mxu0 0.0
    %5432 = vmatpush1.xpose.msra.mxu0 0.0
    %5433 = vmatprep.subr.mxu0 0.0
    %5434 = vmatpush1.xpose.msra.mxu0 0.0
    %5435 = vmatprep.subr.mxu0 0.0
    %5436 = vmatpush1.xpose.msra.mxu0 0.0
    %5437 = vmatprep.subr.mxu0 0.0
    %5438 = vmatpush1.xpose.msra.mxu0 0.0
    %5439 = vmatprep.subr.mxu0 0.0
    %5440 = vmatpush1.xpose.msra.mxu0 0.0
    %5441 = vmatprep.subr.mxu0 0.0
    %5442 = vmatpush1.xpose.msra.mxu0 0.0
    %5443 = vmatprep.subr.mxu0 0.0
    %5444 = vmatpush1.xpose.msra.mxu0 0.0
    %5445 = vmatprep.subr.mxu0 0.0
    %5446 = vmatpush1.xpose.msra.mxu0 0.0
    %5447 = vmatprep.subr.mxu0 0.0
    %5448 = vmatpush1.xpose.msra.mxu0 0.0
    %5449 = vmatprep.mubr.f32.mxu0 0.0
    %5450 = vmatmul.mubr.f32.gmra.mrb[0].mxu0 %v5377
    %v5451 = vpop.f32.mrb[0].mxu0
    %v5452 = vadd.f32 0.0, %v5451
    %v5453 = vpop.f32.mrb[0].mxu0
    %5454 = vmatprep.mubr.f32.mxu0 0.0
    %5455 = vmatmul.mubr.f32.gmra.mrb[0].mxu0 %v5379
    %v5456 = vpop.f32.mrb[0].mxu0
    %v5457 = vadd.f32 0.0, %v5456
    %v5458 = vpop.f32.mrb[0].mxu0
    %5459 = vdwg.mxu0
    %v5460 = vmul.f32 %v5452, 0.17677669
    %v5461 = vmul.f32 %v5457, 0.17677669
    %v5462 = vsel %vm737, %v5460, -inf
    %5463 = vmax.xlane.f32.xlu0 %v5462
    %v5464 = vpop.xlane.xlu0 %5463
    %v5465 = vsel %vm737, %v5461, -inf
    %5466 = vmax.xlane.f32.xlu0 %v5465
    %v5467 = vpop.xlane.xlu0 %5466
    %v5468 = vsub.f32 %v5460, %v5464
    %v5469 = vsub.f32 %v5461, %v5467
    %v5470 = vmul.f32 %v5468, 1.442695
    %v5471 = vpow.pop %v5470
    %v5472 = vmul.f32 %v5469, 1.442695
    %v5473 = vpow.pop %v5472
    %v5474 = vsel %vm737, %v5471, 0.0
    %5475 = vadd.xlane.f32.xlu0 %v5474
    %v5476 = vpop.xlane.xlu0 %5475
    %v5477 = vsel %vm737, %v5473, 0.0
    %5478 = vadd.xlane.f32.xlu0 %v5477
    %v5479 = vpop.xlane.xlu0 %5478
    %v5480 = vrcp.pop %v5476
    %v5481 = vmul.f32 1.0, %v5480
    %v5482 = vrcp.pop %v5479
    %v5483 = vmul.f32 1.0, %v5482
    %v5484 = vmul.f32 %v5471, %v5481
    %v5485 = vmul.f32 %v5473, %v5483
    %5486 = vrot.lane.b32.xlu0 %v4485, 32
    %v5487 = vpop.permute.xlu0 %5486
    %5488 = vrot.lane.b32.xlu0 %v4490, 32
    %v5489 = vpop.permute.xlu0 %5488
    %v5493 = vsel %vm737, %v5484, 0
    %v5496 = vsel %vm737, %v5485, 0
    %5498 = vmatprep.subr.mxu0 0.0
    %5499 = vmatpush1.msra.mxu0 %v5487
    %5500 = vmatprep.subr.mxu0 0.0
    %5501 = vmatpush1.msra.mxu0 %v5489
    %5502 = vmatprep.subr.mxu0 0.0
    %5503 = vmatpush1.msra.mxu0 0.0
    %5504 = vmatprep.subr.mxu0 0.0
    %5505 = vmatpush1.msra.mxu0 0.0
    %5506 = vmatprep.subr.mxu0 0.0
    %5507 = vmatpush1.msra.mxu0 0.0
    %5508 = vmatprep.subr.mxu0 0.0
    %5509 = vmatpush1.msra.mxu0 0.0
    %5510 = vmatprep.subr.mxu0 0.0
    %5511 = vmatpush1.msra.mxu0 0.0
    %5512 = vmatprep.subr.mxu0 0.0
    %5513 = vmatpush1.msra.mxu0 0.0
    %5514 = vmatprep.subr.mxu0 0.0
    %5515 = vmatpush1.msra.mxu0 0.0
    %5516 = vmatprep.subr.mxu0 0.0
    %5517 = vmatpush1.msra.mxu0 0.0
    %5518 = vmatprep.subr.mxu0 0.0
    %5519 = vmatpush1.msra.mxu0 0.0
    %5520 = vmatprep.subr.mxu0 0.0
    %5521 = vmatpush1.msra.mxu0 0.0
    %5522 = vmatprep.subr.mxu0 0.0
    %5523 = vmatpush1.msra.mxu0 0.0
    %5524 = vmatprep.subr.mxu0 0.0
    %5525 = vmatpush1.msra.mxu0 0.0
    %5526 = vmatprep.subr.mxu0 0.0
    %5527 = vmatpush1.msra.mxu0 0.0
    %5528 = vmatprep.subr.mxu0 0.0
    %5529 = vmatpush1.msra.mxu0 0.0
    %5530 = vmatprep.subr.mxu0 0.0
    %5531 = vmatpush1.msra.mxu0 0.0
    %5532 = vmatprep.subr.mxu0 0.0
    %5533 = vmatpush1.msra.mxu0 0.0
    %5534 = vmatprep.subr.mxu0 0.0
    %5535 = vmatpush1.msra.mxu0 0.0
    %5536 = vmatprep.subr.mxu0 0.0
    %5537 = vmatpush1.msra.mxu0 0.0
    %5538 = vmatprep.subr.mxu0 0.0
    %5539 = vmatpush1.msra.mxu0 0.0
    %5540 = vmatprep.subr.mxu0 0.0
    %5541 = vmatpush1.msra.mxu0 0.0
    %5542 = vmatprep.subr.mxu0 0.0
    %5543 = vmatpush1.msra.mxu0 0.0
    %5544 = vmatprep.subr.mxu0 0.0
    %5545 = vmatpush1.msra.mxu0 0.0
    %5546 = vmatprep.subr.mxu0 0.0
    %5547 = vmatpush1.msra.mxu0 0.0
    %5548 = vmatprep.subr.mxu0 0.0
    %5549 = vmatpush1.msra.mxu0 0.0
    %5550 = vmatprep.subr.mxu0 0.0
    %5551 = vmatpush1.msra.mxu0 0.0
    %5552 = vmatprep.subr.mxu0 0.0
    %5553 = vmatpush1.msra.mxu0 0.0
    %5554 = vmatprep.subr.mxu0 0.0
    %5555 = vmatpush1.msra.mxu0 0.0
    %5556 = vmatprep.subr.mxu0 0.0
    %5557 = vmatpush1.msra.mxu0 0.0
    %5558 = vmatprep.subr.mxu0 0.0
    %5559 = vmatpush1.msra.mxu0 0.0
    %5560 = vmatprep.subr.mxu0 0.0
    %5561 = vmatpush1.msra.mxu0 0.0
    %5562 = vmatprep.mubr.f32.mxu0 0.0
    %5563 = vmatmul.mubr.f32.gmra.mrb[0].mxu0 %v5493
    %v5564 = vpop.f32.mrb[0].mxu0
    %v5565 = vadd.f32 0.0, %v5564
    %v5566 = vpop.f32.mrb[0].mxu0
    %5567 = vmatprep.mubr.f32.mxu0 0.0
    %5568 = vmatmul.mubr.f32.gmra.mrb[0].mxu0 %v5496
    %v5569 = vpop.f32.mrb[0].mxu0
    %v5570 = vadd.f32 0.0, %v5569
    %v5571 = vpop.f32.mrb[0].mxu0
    %5572 = vdwg.mxu0
    %v5574 = vsel %vm647, %v5565, 0
    %v5577 = vsel %vm647, %v5570, 0
    %5579 = vmatprep.subr.mxu0 0.0
    %5580 = vmatpush1.msra.mxu0 %v4516
    %5581 = vmatprep.subr.mxu0 0.0
    %5582 = vmatpush1.msra.mxu0 %v4517
    %5583 = vmatprep.subr.mxu0 0.0
    %5584 = vmatpush1.msra.mxu0 %v4518
    %5585 = vmatprep.subr.mxu0 0.0
    %5586 = vmatpush1.msra.mxu0 %v4519
    %5587 = vmatprep.subr.mxu0 0.0
    %5588 = vmatpush1.msra.mxu0 0.0
    %5589 = vmatprep.subr.mxu0 0.0
    %5590 = vmatpush1.msra.mxu0 0.0
    %5591 = vmatprep.subr.mxu0 0.0
    %5592 = vmatpush1.msra.mxu0 0.0
    %5593 = vmatprep.subr.mxu0 0.0
    %5594 = vmatpush1.msra.mxu0 0.0
    %5595 = vmatprep.subr.mxu0 0.0
    %5596 = vmatpush1.msra.mxu0 0.0
    %5597 = vmatprep.subr.mxu0 0.0
    %5598 = vmatpush1.msra.mxu0 0.0
    %5599 = vmatprep.subr.mxu0 0.0
    %5600 = vmatpush1.msra.mxu0 0.0
    %5601 = vmatprep.subr.mxu0 0.0
    %5602 = vmatpush1.msra.mxu0 0.0
    %5603 = vmatprep.subr.mxu0 0.0
    %5604 = vmatpush1.msra.mxu0 0.0
    %5605 = vmatprep.subr.mxu0 0.0
    %5606 = vmatpush1.msra.mxu0 0.0
    %5607 = vmatprep.subr.mxu0 0.0
    %5608 = vmatpush1.msra.mxu0 0.0
    %5609 = vmatprep.subr.mxu0 0.0
    %5610 = vmatpush1.msra.mxu0 0.0
    %5611 = vmatprep.subr.mxu0 0.0
    %5612 = vmatpush1.msra.mxu0 0.0
    %5613 = vmatprep.subr.mxu0 0.0
    %5614 = vmatpush1.msra.mxu0 0.0
    %5615 = vmatprep.subr.mxu0 0.0
    %5616 = vmatpush1.msra.mxu0 0.0
    %5617 = vmatprep.subr.mxu0 0.0
    %5618 = vmatpush1.msra.mxu0 0.0
    %5619 = vmatprep.subr.mxu0 0.0
    %5620 = vmatpush1.msra.mxu0 0.0
    %5621 = vmatprep.subr.mxu0 0.0
    %5622 = vmatpush1.msra.mxu0 0.0
    %5623 = vmatprep.subr.mxu0 0.0
    %5624 = vmatpush1.msra.mxu0 0.0
    %5625 = vmatprep.subr.mxu0 0.0
    %5626 = vmatpush1.msra.mxu0 0.0
    %5627 = vmatprep.subr.mxu0 0.0
    %5628 = vmatpush1.msra.mxu0 0.0
    %5629 = vmatprep.subr.mxu0 0.0
    %5630 = vmatpush1.msra.mxu0 0.0
    %5631 = vmatprep.subr.mxu0 0.0
    %5632 = vmatpush1.msra.mxu0 0.0
    %5633 = vmatprep.subr.mxu0 0.0
    %5634 = vmatpush1.msra.mxu0 0.0
    %5635 = vmatprep.subr.mxu0 0.0
    %5636 = vmatpush1.msra.mxu0 0.0
    %5637 = vmatprep.subr.mxu0 0.0
    %5638 = vmatpush1.msra.mxu0 0.0
    %5639 = vmatprep.subr.mxu0 0.0
    %5640 = vmatpush1.msra.mxu0 0.0
    %5641 = vmatprep.subr.mxu0 0.0
    %5642 = vmatpush1.msra.mxu0 0.0
    %5643 = vmatprep.mubr.f32.mxu0 0.0
    %5644 = vmatmul.mubr.f32.gmra.mrb[0].mxu0 %v5574
    %v5645 = vpop.f32.mrb[0].mxu0
    %v5646 = vadd.f32 0.0, %v5645
    %v5647 = vpop.f32.mrb[0].mxu0
    %5648 = vmatprep.mubr.f32.mxu0 0.0
    %5649 = vmatmul.mubr.f32.gmra.mrb[0].mxu0 %v5577
    %v5650 = vpop.f32.mrb[0].mxu0
    %v5651 = vadd.f32 0.0, %v5650
    %v5652 = vpop.f32.mrb[0].mxu0
    %5653 = vdwg.mxu0
    %v5654 = vadd.f32 %v5367, %v5646
    %v5655 = vadd.f32 %v5368, %v5651
    %v5657 = vsel %vm647, %v4408, 0
    %v5660 = vsel %vm647, %v4414, 0
    %v5663 = vsel %vm647, %v4410, 0
    %v5666 = vsel %vm647, %v4416, 0
    %5668 = vmatprep.subr.mxu0 0.0
    %5669 = vmatpush1.xpose.msra.mxu0 %v5663
    %5670 = vmatprep.subr.mxu0 0.0
    %5671 = vmatpush1.xpose.msra.mxu0 %v5666
    %5672 = vmatprep.subr.mxu0 0.0
    %5673 = vmatpush1.xpose.msra.mxu0 0.0
    %5674 = vmatprep.subr.mxu0 0.0
    %5675 = vmatpush1.xpose.msra.mxu0 0.0
    %5676 = vmatprep.subr.mxu0 0.0
    %5677 = vmatpush1.xpose.msra.mxu0 0.0
    %5678 = vmatprep.subr.mxu0 0.0
    %5679 = vmatpush1.xpose.msra.mxu0 0.0
    %5680 = vmatprep.subr.mxu0 0.0
    %5681 = vmatpush1.xpose.msra.mxu0 0.0
    %5682 = vmatprep.subr.mxu0 0.0
    %5683 = vmatpush1.xpose.msra.mxu0 0.0
    %5684 = vmatprep.subr.mxu0 0.0
    %5685 = vmatpush1.xpose.msra.mxu0 0.0
    %5686 = vmatprep.subr.mxu0 0.0
    %5687 = vmatpush1.xpose.msra.mxu0 0.0
    %5688 = vmatprep.subr.mxu0 0.0
    %5689 = vmatpush1.xpose.msra.mxu0 0.0
    %5690 = vmatprep.subr.mxu0 0.0
    %5691 = vmatpush1.xpose.msra.mxu0 0.0
    %5692 = vmatprep.subr.mxu0 0.0
    %5693 = vmatpush1.xpose.msra.mxu0 0.0
    %5694 = vmatprep.subr.mxu0 0.0
    %5695 = vmatpush1.xpose.msra.mxu0 0.0
    %5696 = vmatprep.subr.mxu0 0.0
    %5697 = vmatpush1.xpose.msra.mxu0 0.0
    %5698 = vmatprep.subr.mxu0 0.0
    %5699 = vmatpush1.xpose.msra.mxu0 0.0
    %5700 = vmatprep.subr.mxu0 0.0
    %5701 = vmatpush1.xpose.msra.mxu0 0.0
    %5702 = vmatprep.subr.mxu0 0.0
    %5703 = vmatpush1.xpose.msra.mxu0 0.0
    %5704 = vmatprep.subr.mxu0 0.0
    %5705 = vmatpush1.xpose.msra.mxu0 0.0
    %5706 = vmatprep.subr.mxu0 0.0
    %5707 = vmatpush1.xpose.msra.mxu0 0.0
    %5708 = vmatprep.subr.mxu0 0.0
    %5709 = vmatpush1.xpose.msra.mxu0 0.0
    %5710 = vmatprep.subr.mxu0 0.0
    %5711 = vmatpush1.xpose.msra.mxu0 0.0
    %5712 = vmatprep.subr.mxu0 0.0
    %5713 = vmatpush1.xpose.msra.mxu0 0.0
    %5714 = vmatprep.subr.mxu0 0.0
    %5715 = vmatpush1.xpose.msra.mxu0 0.0
    %5716 = vmatprep.subr.mxu0 0.0
    %5717 = vmatpush1.xpose.msra.mxu0 0.0
    %5718 = vmatprep.subr.mxu0 0.0
    %5719 = vmatpush1.xpose.msra.mxu0 0.0
    %5720 = vmatprep.subr.mxu0 0.0
    %5721 = vmatpush1.xpose.msra.mxu0 0.0
    %5722 = vmatprep.subr.mxu0 0.0
    %5723 = vmatpush1.xpose.msra.mxu0 0.0
    %5724 = vmatprep.subr.mxu0 0.0
    %5725 = vmatpush1.xpose.msra.mxu0 0.0
    %5726 = vmatprep.subr.mxu0 0.0
    %5727 = vmatpush1.xpose.msra.mxu0 0.0
    %5728 = vmatprep.subr.mxu0 0.0
    %5729 = vmatpush1.xpose.msra.mxu0 0.0
    %5730 = vmatprep.subr.mxu0 0.0
    %5731 = vmatpush1.xpose.msra.mxu0 0.0
    %5732 = vmatprep.mubr.f32.mxu0 0.0
    %5733 = vmatmul.mubr.f32.gmra.mrb[0].mxu0 %v5657
    %v5734 = vpop.f32.mrb[0].mxu0
    %v5735 = vadd.f32 0.0, %v5734
    %v5736 = vpop.f32.mrb[0].mxu0
    %5737 = vmatprep.mubr.f32.mxu0 0.0
    %5738 = vmatmul.mubr.f32.gmra.mrb[0].mxu0 %v5660
    %v5739 = vpop.f32.mrb[0].mxu0
    %v5740 = vadd.f32 0.0, %v5739
    %v5741 = vpop.f32.mrb[0].mxu0
    %5742 = vdwg.mxu0
    %v5743 = vmul.f32 %v5735, 0.17677669
    %v5744 = vmul.f32 %v5740, 0.17677669
    %v5745 = vsel %vm737, %v5743, -inf
    %5746 = vmax.xlane.f32.xlu0 %v5745
    %v5747 = vpop.xlane.xlu0 %5746
    %v5748 = vsel %vm737, %v5744, -inf
    %5749 = vmax.xlane.f32.xlu0 %v5748
    %v5750 = vpop.xlane.xlu0 %5749
    %v5751 = vsub.f32 %v5743, %v5747
    %v5752 = vsub.f32 %v5744, %v5750
    %v5753 = vmul.f32 %v5751, 1.442695
    %v5754 = vpow.pop %v5753
    %v5755 = vmul.f32 %v5752, 1.442695
    %v5756 = vpow.pop %v5755
    %v5757 = vsel %vm737, %v5754, 0.0
    %5758 = vadd.xlane.f32.xlu0 %v5757
    %v5759 = vpop.xlane.xlu0 %5758
    %v5760 = vsel %vm737, %v5756, 0.0
    %5761 = vadd.xlane.f32.xlu0 %v5760
    %v5762 = vpop.xlane.xlu0 %5761
    %v5763 = vrcp.pop %v5759
    %v5764 = vmul.f32 1.0, %v5763
    %v5765 = vrcp.pop %v5762
    %v5766 = vmul.f32 1.0, %v5765
    %v5767 = vmul.f32 %v5754, %v5764
    %v5768 = vmul.f32 %v5756, %v5766
    %v5770 = vsel %vm737, %v5767, 0
    %v5773 = vsel %vm737, %v5768, 0
    %5775 = vmatprep.subr.mxu0 0.0
    %5776 = vmatpush1.msra.mxu0 %v4495
    %5777 = vmatprep.subr.mxu0 0.0
    %5778 = vmatpush1.msra.mxu0 %v4500
    %5779 = vmatprep.subr.mxu0 0.0
    %5780 = vmatpush1.msra.mxu0 0.0
    %5781 = vmatprep.subr.mxu0 0.0
    %5782 = vmatpush1.msra.mxu0 0.0
    %5783 = vmatprep.subr.mxu0 0.0
    %5784 = vmatpush1.msra.mxu0 0.0
    %5785 = vmatprep.subr.mxu0 0.0
    %5786 = vmatpush1.msra.mxu0 0.0
    %5787 = vmatprep.subr.mxu0 0.0
    %5788 = vmatpush1.msra.mxu0 0.0
    %5789 = vmatprep.subr.mxu0 0.0
    %5790 = vmatpush1.msra.mxu0 0.0
    %5791 = vmatprep.subr.mxu0 0.0
    %5792 = vmatpush1.msra.mxu0 0.0
    %5793 = vmatprep.subr.mxu0 0.0
    %5794 = vmatpush1.msra.mxu0 0.0
    %5795 = vmatprep.subr.mxu0 0.0
    %5796 = vmatpush1.msra.mxu0 0.0
    %5797 = vmatprep.subr.mxu0 0.0
    %5798 = vmatpush1.msra.mxu0 0.0
    %5799 = vmatprep.subr.mxu0 0.0
    %5800 = vmatpush1.msra.mxu0 0.0
    %5801 = vmatprep.subr.mxu0 0.0
    %5802 = vmatpush1.msra.mxu0 0.0
    %5803 = vmatprep.subr.mxu0 0.0
    %5804 = vmatpush1.msra.mxu0 0.0
    %5805 = vmatprep.subr.mxu0 0.0
    %5806 = vmatpush1.msra.mxu0 0.0
    %5807 = vmatprep.subr.mxu0 0.0
    %5808 = vmatpush1.msra.mxu0 0.0
    %5809 = vmatprep.subr.mxu0 0.0
    %5810 = vmatpush1.msra.mxu0 0.0
    %5811 = vmatprep.subr.mxu0 0.0
    %5812 = vmatpush1.msra.mxu0 0.0
    %5813 = vmatprep.subr.mxu0 0.0
    %5814 = vmatpush1.msra.mxu0 0.0
    %5815 = vmatprep.subr.mxu0 0.0
    %5816 = vmatpush1.msra.mxu0 0.0
    %5817 = vmatprep.subr.mxu0 0.0
    %5818 = vmatpush1.msra.mxu0 0.0
    %5819 = vmatprep.subr.mxu0 0.0
    %5820 = vmatpush1.msra.mxu0 0.0
    %5821 = vmatprep.subr.mxu0 0.0
    %5822 = vmatpush1.msra.mxu0 0.0
    %5823 = vmatprep.subr.mxu0 0.0
    %5824 = vmatpush1.msra.mxu0 0.0
    %5825 = vmatprep.subr.mxu0 0.0
    %5826 = vmatpush1.msra.mxu0 0.0
    %5827 = vmatprep.subr.mxu0 0.0
    %5828 = vmatpush1.msra.mxu0 0.0
    %5829 = vmatprep.subr.mxu0 0.0
    %5830 = vmatpush1.msra.mxu0 0.0
    %5831 = vmatprep.subr.mxu0 0.0
    %5832 = vmatpush1.msra.mxu0 0.0
    %5833 = vmatprep.subr.mxu0 0.0
    %5834 = vmatpush1.msra.mxu0 0.0
    %5835 = vmatprep.subr.mxu0 0.0
    %5836 = vmatpush1.msra.mxu0 0.0
    %5837 = vmatprep.subr.mxu0 0.0
    %5838 = vmatpush1.msra.mxu0 0.0
    %5839 = vmatprep.mubr.f32.mxu0 0.0
    %5840 = vmatmul.mubr.f32.gmra.mrb[0].mxu0 %v5770
    %v5841 = vpop.f32.mrb[0].mxu0
    %v5842 = vadd.f32 0.0, %v5841
    %v5843 = vpop.f32.mrb[0].mxu0
    %5844 = vmatprep.mubr.f32.mxu0 0.0
    %5845 = vmatmul.mubr.f32.gmra.mrb[0].mxu0 %v5773
    %v5846 = vpop.f32.mrb[0].mxu0
    %v5847 = vadd.f32 0.0, %v5846
    %v5848 = vpop.f32.mrb[0].mxu0
    %5849 = vdwg.mxu0
    %5850 = vrot.lane.b32.xlu0 %v4408, 96
    %v5851 = vpop.permute.xlu0 %5850
    %5852 = vrot.lane.b32.xlu0 %v4414, 96
    %v5853 = vpop.permute.xlu0 %5852
    %5854 = vrot.lane.b32.xlu0 %v4410, 96
    %v5855 = vpop.permute.xlu0 %5854
    %5856 = vrot.lane.b32.xlu0 %v4416, 96
    %v5857 = vpop.permute.xlu0 %5856
    %v5858 = vsel %vm647, %v5851, 0
    %v5860 = vsel %vm647, %v5853, 0
    %v5862 = vsel %vm647, %v5855, 0
    %v5864 = vsel %vm647, %v5857, 0
    %5866 = vmatprep.subr.mxu0 0.0
    %5867 = vmatpush1.xpose.msra.mxu0 %v5862
    %5868 = vmatprep.subr.mxu0 0.0
    %5869 = vmatpush1.xpose.msra.mxu0 %v5864
    %5870 = vmatprep.subr.mxu0 0.0
    %5871 = vmatpush1.xpose.msra.mxu0 0.0
    %5872 = vmatprep.subr.mxu0 0.0
    %5873 = vmatpush1.xpose.msra.mxu0 0.0
    %5874 = vmatprep.subr.mxu0 0.0
    %5875 = vmatpush1.xpose.msra.mxu0 0.0
    %5876 = vmatprep.subr.mxu0 0.0
    %5877 = vmatpush1.xpose.msra.mxu0 0.0
    %5878 = vmatprep.subr.mxu0 0.0
    %5879 = vmatpush1.xpose.msra.mxu0 0.0
    %5880 = vmatprep.subr.mxu0 0.0
    %5881 = vmatpush1.xpose.msra.mxu0 0.0
    %5882 = vmatprep.subr.mxu0 0.0
    %5883 = vmatpush1.xpose.msra.mxu0 0.0
    %5884 = vmatprep.subr.mxu0 0.0
    %5885 = vmatpush1.xpose.msra.mxu0 0.0
    %5886 = vmatprep.subr.mxu0 0.0
    %5887 = vmatpush1.xpose.msra.mxu0 0.0
    %5888 = vmatprep.subr.mxu0 0.0
    %5889 = vmatpush1.xpose.msra.mxu0 0.0
    %5890 = vmatprep.subr.mxu0 0.0
    %5891 = vmatpush1.xpose.msra.mxu0 0.0
    %5892 = vmatprep.subr.mxu0 0.0
    %5893 = vmatpush1.xpose.msra.mxu0 0.0
    %5894 = vmatprep.subr.mxu0 0.0
    %5895 = vmatpush1.xpose.msra.mxu0 0.0
    %5896 = vmatprep.subr.mxu0 0.0
    %5897 = vmatpush1.xpose.msra.mxu0 0.0
    %5898 = vmatprep.subr.mxu0 0.0
    %5899 = vmatpush1.xpose.msra.mxu0 0.0
    %5900 = vmatprep.subr.mxu0 0.0
    %5901 = vmatpush1.xpose.msra.mxu0 0.0
    %5902 = vmatprep.subr.mxu0 0.0
    %5903 = vmatpush1.xpose.msra.mxu0 0.0
    %5904 = vmatprep.subr.mxu0 0.0
    %5905 = vmatpush1.xpose.msra.mxu0 0.0
    %5906 = vmatprep.subr.mxu0 0.0
    %5907 = vmatpush1.xpose.msra.mxu0 0.0
    %5908 = vmatprep.subr.mxu0 0.0
    %5909 = vmatpush1.xpose.msra.mxu0 0.0
    %5910 = vmatprep.subr.mxu0 0.0
    %5911 = vmatpush1.xpose.msra.mxu0 0.0
    %5912 = vmatprep.subr.mxu0 0.0
    %5913 = vmatpush1.xpose.msra.mxu0 0.0
    %5914 = vmatprep.subr.mxu0 0.0
    %5915 = vmatpush1.xpose.msra.mxu0 0.0
    %5916 = vmatprep.subr.mxu0 0.0
    %5917 = vmatpush1.xpose.msra.mxu0 0.0
    %5918 = vmatprep.subr.mxu0 0.0
    %5919 = vmatpush1.xpose.msra.mxu0 0.0
    %5920 = vmatprep.subr.mxu0 0.0
    %5921 = vmatpush1.xpose.msra.mxu0 0.0
    %5922 = vmatprep.subr.mxu0 0.0
    %5923 = vmatpush1.xpose.msra.mxu0 0.0
    %5924 = vmatprep.subr.mxu0 0.0
    %5925 = vmatpush1.xpose.msra.mxu0 0.0
    %5926 = vmatprep.subr.mxu0 0.0
    %5927 = vmatpush1.xpose.msra.mxu0 0.0
    %5928 = vmatprep.subr.mxu0 0.0
    %5929 = vmatpush1.xpose.msra.mxu0 0.0
    %5930 = vmatprep.mubr.f32.mxu0 0.0
    %5931 = vmatmul.mubr.f32.gmra.mrb[0].mxu0 %v5858
    %v5932 = vpop.f32.mrb[0].mxu0
    %v5933 = vadd.f32 0.0, %v5932
    %v5934 = vpop.f32.mrb[0].mxu0
    %5935 = vmatprep.mubr.f32.mxu0 0.0
    %5936 = vmatmul.mubr.f32.gmra.mrb[0].mxu0 %v5860
    %v5937 = vpop.f32.mrb[0].mxu0
    %v5938 = vadd.f32 0.0, %v5937
    %v5939 = vpop.f32.mrb[0].mxu0
    %5940 = vdwg.mxu0
    %v5941 = vmul.f32 %v5933, 0.17677669
    %v5942 = vmul.f32 %v5938, 0.17677669
    %v5943 = vsel %vm737, %v5941, -inf
    %5944 = vmax.xlane.f32.xlu0 %v5943
    %v5945 = vpop.xlane.xlu0 %5944
    %v5946 = vsel %vm737, %v5942, -inf
    %5947 = vmax.xlane.f32.xlu0 %v5946
    %v5948 = vpop.xlane.xlu0 %5947
    %v5949 = vsub.f32 %v5941, %v5945
    %v5950 = vsub.f32 %v5942, %v5948
    %v5951 = vmul.f32 %v5949, 1.442695
    %v5952 = vpow.pop %v5951
    %v5953 = vmul.f32 %v5950, 1.442695
    %v5954 = vpow.pop %v5953
    %v5955 = vsel %vm737, %v5952, 0.0
    %5956 = vadd.xlane.f32.xlu0 %v5955
    %v5957 = vpop.xlane.xlu0 %5956
    %v5958 = vsel %vm737, %v5954, 0.0
    %5959 = vadd.xlane.f32.xlu0 %v5958
    %v5960 = vpop.xlane.xlu0 %5959
    %v5961 = vrcp.pop %v5957
    %v5962 = vmul.f32 1.0, %v5961
    %v5963 = vrcp.pop %v5960
    %v5964 = vmul.f32 1.0, %v5963
    %v5965 = vmul.f32 %v5952, %v5962
    %v5966 = vmul.f32 %v5954, %v5964
    %5969 = vrot.lane.b32.xlu0 %v4495, 96
    %v5970 = vpop.permute.xlu0 %5969
    %5971 = vrot.lane.b32.xlu0 %v4500, 96
    %v5972 = vpop.permute.xlu0 %5971
    %v5976 = vsel %vm737, %v5965, 0
    %v5979 = vsel %vm737, %v5966, 0
    %5981 = vmatprep.subr.mxu0 0.0
    %5982 = vmatpush1.msra.mxu0 %v5970
    %5983 = vmatprep.subr.mxu0 0.0
    %5984 = vmatpush1.msra.mxu0 %v5972
    %5985 = vmatprep.subr.mxu0 0.0
    %5986 = vmatpush1.msra.mxu0 0.0
    %5987 = vmatprep.subr.mxu0 0.0
    %5988 = vmatpush1.msra.mxu0 0.0
    %5989 = vmatprep.subr.mxu0 0.0
    %5990 = vmatpush1.msra.mxu0 0.0
    %5991 = vmatprep.subr.mxu0 0.0
    %5992 = vmatpush1.msra.mxu0 0.0
    %5993 = vmatprep.subr.mxu0 0.0
    %5994 = vmatpush1.msra.mxu0 0.0
    %5995 = vmatprep.subr.mxu0 0.0
    %5996 = vmatpush1.msra.mxu0 0.0
    %5997 = vmatprep.subr.mxu0 0.0
    %5998 = vmatpush1.msra.mxu0 0.0
    %5999 = vmatprep.subr.mxu0 0.0
    %6000 = vmatpush1.msra.mxu0 0.0
    %6001 = vmatprep.subr.mxu0 0.0
    %6002 = vmatpush1.msra.mxu0 0.0
    %6003 = vmatprep.subr.mxu0 0.0
    %6004 = vmatpush1.msra.mxu0 0.0
    %6005 = vmatprep.subr.mxu0 0.0
    %6006 = vmatpush1.msra.mxu0 0.0
    %6007 = vmatprep.subr.mxu0 0.0
    %6008 = vmatpush1.msra.mxu0 0.0
    %6009 = vmatprep.subr.mxu0 0.0
    %6010 = vmatpush1.msra.mxu0 0.0
    %6011 = vmatprep.subr.mxu0 0.0
    %6012 = vmatpush1.msra.mxu0 0.0
    %6013 = vmatprep.subr.mxu0 0.0
    %6014 = vmatpush1.msra.mxu0 0.0
    %6015 = vmatprep.subr.mxu0 0.0
    %6016 = vmatpush1.msra.mxu0 0.0
    %6017 = vmatprep.subr.mxu0 0.0
    %6018 = vmatpush1.msra.mxu0 0.0
    %6019 = vmatprep.subr.mxu0 0.0
    %6020 = vmatpush1.msra.mxu0 0.0
    %6021 = vmatprep.subr.mxu0 0.0
    %6022 = vmatpush1.msra.mxu0 0.0
    %6023 = vmatprep.subr.mxu0 0.0
    %6024 = vmatpush1.msra.mxu0 0.0
    %6025 = vmatprep.subr.mxu0 0.0
    %6026 = vmatpush1.msra.mxu0 0.0
    %6027 = vmatprep.subr.mxu0 0.0
    %6028 = vmatpush1.msra.mxu0 0.0
    %6029 = vmatprep.subr.mxu0 0.0
    %6030 = vmatpush1.msra.mxu0 0.0
    %6031 = vmatprep.subr.mxu0 0.0
    %6032 = vmatpush1.msra.mxu0 0.0
    %6033 = vmatprep.subr.mxu0 0.0
    %6034 = vmatpush1.msra.mxu0 0.0
    %6035 = vmatprep.subr.mxu0 0.0
    %6036 = vmatpush1.msra.mxu0 0.0
    %6037 = vmatprep.subr.mxu0 0.0
    %6038 = vmatpush1.msra.mxu0 0.0
    %6039 = vmatprep.subr.mxu0 0.0
    %6040 = vmatpush1.msra.mxu0 0.0
    %6041 = vmatprep.subr.mxu0 0.0
    %6042 = vmatpush1.msra.mxu0 0.0
    %6043 = vmatprep.subr.mxu0 0.0
    %6044 = vmatpush1.msra.mxu0 0.0
    %6045 = vmatprep.mubr.f32.mxu0 0.0
    %6046 = vmatmul.mubr.f32.gmra.mrb[0].mxu0 %v5976
    %v6047 = vpop.f32.mrb[0].mxu0
    %v6048 = vadd.f32 0.0, %v6047
    %v6049 = vpop.f32.mrb[0].mxu0
    %6050 = vmatprep.mubr.f32.mxu0 0.0
    %6051 = vmatmul.mubr.f32.gmra.mrb[0].mxu0 %v5979
    %v6052 = vpop.f32.mrb[0].mxu0
    %v6053 = vadd.f32 0.0, %v6052
    %v6054 = vpop.f32.mrb[0].mxu0
    %6055 = vdwg.mxu0
    %v6057 = vsel %vm647, %v6048, 0
    %v6060 = vsel %vm647, %v6053, 0
    %6062 = vmatprep.subr.mxu0 0.0
    %6063 = vmatpush1.msra.mxu0 %v4508
    %6064 = vmatprep.subr.mxu0 0.0
    %6065 = vmatpush1.msra.mxu0 %v4509
    %6066 = vmatprep.subr.mxu0 0.0
    %6067 = vmatpush1.msra.mxu0 %v4510
    %6068 = vmatprep.subr.mxu0 0.0
    %6069 = vmatpush1.msra.mxu0 %v4511
    %6070 = vmatprep.subr.mxu0 0.0
    %6071 = vmatpush1.msra.mxu0 0.0
    %6072 = vmatprep.subr.mxu0 0.0
    %6073 = vmatpush1.msra.mxu0 0.0
    %6074 = vmatprep.subr.mxu0 0.0
    %6075 = vmatpush1.msra.mxu0 0.0
    %6076 = vmatprep.subr.mxu0 0.0
    %6077 = vmatpush1.msra.mxu0 0.0
    %6078 = vmatprep.subr.mxu0 0.0
    %6079 = vmatpush1.msra.mxu0 0.0
    %6080 = vmatprep.subr.mxu0 0.0
    %6081 = vmatpush1.msra.mxu0 0.0
    %6082 = vmatprep.subr.mxu0 0.0
    %6083 = vmatpush1.msra.mxu0 0.0
    %6084 = vmatprep.subr.mxu0 0.0
    %6085 = vmatpush1.msra.mxu0 0.0
    %6086 = vmatprep.subr.mxu0 0.0
    %6087 = vmatpush1.msra.mxu0 0.0
    %6088 = vmatprep.subr.mxu0 0.0
    %6089 = vmatpush1.msra.mxu0 0.0
    %6090 = vmatprep.subr.mxu0 0.0
    %6091 = vmatpush1.msra.mxu0 0.0
    %6092 = vmatprep.subr.mxu0 0.0
    %6093 = vmatpush1.msra.mxu0 0.0
    %6094 = vmatprep.subr.mxu0 0.0
    %6095 = vmatpush1.msra.mxu0 0.0
    %6096 = vmatprep.subr.mxu0 0.0
    %6097 = vmatpush1.msra.mxu0 0.0
    %6098 = vmatprep.subr.mxu0 0.0
    %6099 = vmatpush1.msra.mxu0 0.0
    %6100 = vmatprep.subr.mxu0 0.0
    %6101 = vmatpush1.msra.mxu0 0.0
    %6102 = vmatprep.subr.mxu0 0.0
    %6103 = vmatpush1.msra.mxu0 0.0
    %6104 = vmatprep.subr.mxu0 0.0
    %6105 = vmatpush1.msra.mxu0 0.0
    %6106 = vmatprep.subr.mxu0 0.0
    %6107 = vmatpush1.msra.mxu0 0.0
    %6108 = vmatprep.subr.mxu0 0.0
    %6109 = vmatpush1.msra.mxu0 0.0
    %6110 = vmatprep.subr.mxu0 0.0
    %6111 = vmatpush1.msra.mxu0 0.0
    %6112 = vmatprep.subr.mxu0 0.0
    %6113 = vmatpush1.msra.mxu0 0.0
    %6114 = vmatprep.subr.mxu0 0.0
    %6115 = vmatpush1.msra.mxu0 0.0
    %6116 = vmatprep.subr.mxu0 0.0
    %6117 = vmatpush1.msra.mxu0 0.0
    %6118 = vmatprep.subr.mxu0 0.0
    %6119 = vmatpush1.msra.mxu0 0.0
    %6120 = vmatprep.subr.mxu0 0.0
    %6121 = vmatpush1.msra.mxu0 0.0
    %6122 = vmatprep.subr.mxu0 0.0
    %6123 = vmatpush1.msra.mxu0 0.0
    %6124 = vmatprep.subr.mxu0 0.0
    %6125 = vmatpush1.msra.mxu0 0.0
    %6126 = vmatprep.mubr.f32.mxu0 0.0
    %6127 = vmatmul.mubr.f32.gmra.mrb[0].mxu0 %v6057
    %v6128 = vpop.f32.mrb[0].mxu0
    %v6129 = vadd.f32 0.0, %v6128
    %v6130 = vpop.f32.mrb[0].mxu0
    %6131 = vmatprep.mubr.f32.mxu0 0.0
    %6132 = vmatmul.mubr.f32.gmra.mrb[0].mxu0 %v6060
    %v6133 = vpop.f32.mrb[0].mxu0
    %v6134 = vadd.f32 0.0, %v6133
    %v6135 = vpop.f32.mrb[0].mxu0
    %6136 = vdwg.mxu0
    %v6138 = vsel %vm647, %v5842, 0
    %v6141 = vsel %vm647, %v5847, 0
    %6143 = vmatprep.subr.mxu0 0.0
    %6144 = vmatpush1.msra.mxu0 %v4504
    %6145 = vmatprep.subr.mxu0 0.0
    %6146 = vmatpush1.msra.mxu0 %v4505
    %6147 = vmatprep.subr.mxu0 0.0
    %6148 = vmatpush1.msra.mxu0 %v4506
    %6149 = vmatprep.subr.mxu0 0.0
    %6150 = vmatpush1.msra.mxu0 %v4507
    %6151 = vmatprep.subr.mxu0 0.0
    %6152 = vmatpush1.msra.mxu0 0.0
    %6153 = vmatprep.subr.mxu0 0.0
    %6154 = vmatpush1.msra.mxu0 0.0
    %6155 = vmatprep.subr.mxu0 0.0
    %6156 = vmatpush1.msra.mxu0 0.0
    %6157 = vmatprep.subr.mxu0 0.0
    %6158 = vmatpush1.msra.mxu0 0.0
    %6159 = vmatprep.subr.mxu0 0.0
    %6160 = vmatpush1.msra.mxu0 0.0
    %6161 = vmatprep.subr.mxu0 0.0
    %6162 = vmatpush1.msra.mxu0 0.0
    %6163 = vmatprep.subr.mxu0 0.0
    %6164 = vmatpush1.msra.mxu0 0.0
    %6165 = vmatprep.subr.mxu0 0.0
    %6166 = vmatpush1.msra.mxu0 0.0
    %6167 = vmatprep.subr.mxu0 0.0
    %6168 = vmatpush1.msra.mxu0 0.0
    %6169 = vmatprep.subr.mxu0 0.0
    %6170 = vmatpush1.msra.mxu0 0.0
    %6171 = vmatprep.subr.mxu0 0.0
    %6172 = vmatpush1.msra.mxu0 0.0
    %6173 = vmatprep.subr.mxu0 0.0
    %6174 = vmatpush1.msra.mxu0 0.0
    %6175 = vmatprep.subr.mxu0 0.0
    %6176 = vmatpush1.msra.mxu0 0.0
    %6177 = vmatprep.subr.mxu0 0.0
    %6178 = vmatpush1.msra.mxu0 0.0
    %6179 = vmatprep.subr.mxu0 0.0
    %6180 = vmatpush1.msra.mxu0 0.0
    %6181 = vmatprep.subr.mxu0 0.0
    %6182 = vmatpush1.msra.mxu0 0.0
    %6183 = vmatprep.subr.mxu0 0.0
    %6184 = vmatpush1.msra.mxu0 0.0
    %6185 = vmatprep.subr.mxu0 0.0
    %6186 = vmatpush1.msra.mxu0 0.0
    %6187 = vmatprep.subr.mxu0 0.0
    %6188 = vmatpush1.msra.mxu0 0.0
    %6189 = vmatprep.subr.mxu0 0.0
    %6190 = vmatpush1.msra.mxu0 0.0
    %6191 = vmatprep.subr.mxu0 0.0
    %6192 = vmatpush1.msra.mxu0 0.0
    %6193 = vmatprep.subr.mxu0 0.0
    %6194 = vmatpush1.msra.mxu0 0.0
    %6195 = vmatprep.subr.mxu0 0.0
    %6196 = vmatpush1.msra.mxu0 0.0
    %6197 = vmatprep.subr.mxu0 0.0
    %6198 = vmatpush1.msra.mxu0 0.0
    %6199 = vmatprep.subr.mxu0 0.0
    %6200 = vmatpush1.msra.mxu0 0.0
    %6201 = vmatprep.subr.mxu0 0.0
    %6202 = vmatpush1.msra.mxu0 0.0
    %6203 = vmatprep.subr.mxu0 0.0
    %6204 = vmatpush1.msra.mxu0 0.0
    %6205 = vmatprep.subr.mxu0 0.0
    %6206 = vmatpush1.msra.mxu0 0.0
    %6207 = vmatprep.mubr.f32.mxu0 0.0
    %6208 = vmatmul.mubr.f32.gmra.mrb[0].mxu0 %v6138
    %v6209 = vpop.f32.mrb[0].mxu0
    %v6210 = vadd.f32 %v6129, %v6209
    %v6211 = vpop.f32.mrb[0].mxu0
    %6212 = vmatprep.mubr.f32.mxu0 0.0
    %6213 = vmatmul.mubr.f32.gmra.mrb[0].mxu0 %v6141
    %v6214 = vpop.f32.mrb[0].mxu0
    %v6215 = vadd.f32 %v6134, %v6214
    %v6216 = vpop.f32.mrb[0].mxu0
    %6217 = vdwg.mxu0
    %6218 = vrot.lane.b32.xlu0 %v4408, 64
    %v6219 = vpop.permute.xlu0 %6218
    %6220 = vrot.lane.b32.xlu0 %v4414, 64
    %v6221 = vpop.permute.xlu0 %6220
    %6222 = vrot.lane.b32.xlu0 %v4410, 64
    %v6223 = vpop.permute.xlu0 %6222
    %6224 = vrot.lane.b32.xlu0 %v4416, 64
    %v6225 = vpop.permute.xlu0 %6224
    %v6226 = vsel %vm647, %v6219, 0
    %v6228 = vsel %vm647, %v6221, 0
    %v6230 = vsel %vm647, %v6223, 0
    %v6232 = vsel %vm647, %v6225, 0
    %6234 = vmatprep.subr.mxu0 0.0
    %6235 = vmatpush1.xpose.msra.mxu0 %v6230
    %6236 = vmatprep.subr.mxu0 0.0
    %6237 = vmatpush1.xpose.msra.mxu0 %v6232
    %6238 = vmatprep.subr.mxu0 0.0
    %6239 = vmatpush1.xpose.msra.mxu0 0.0
    %6240 = vmatprep.subr.mxu0 0.0
    %6241 = vmatpush1.xpose.msra.mxu0 0.0
    %6242 = vmatprep.subr.mxu0 0.0
    %6243 = vmatpush1.xpose.msra.mxu0 0.0
    %6244 = vmatprep.subr.mxu0 0.0
    %6245 = vmatpush1.xpose.msra.mxu0 0.0
    %6246 = vmatprep.subr.mxu0 0.0
    %6247 = vmatpush1.xpose.msra.mxu0 0.0
    %6248 = vmatprep.subr.mxu0 0.0
    %6249 = vmatpush1.xpose.msra.mxu0 0.0
    %6250 = vmatprep.subr.mxu0 0.0
    %6251 = vmatpush1.xpose.msra.mxu0 0.0
    %6252 = vmatprep.subr.mxu0 0.0
    %6253 = vmatpush1.xpose.msra.mxu0 0.0
    %6254 = vmatprep.subr.mxu0 0.0
    %6255 = vmatpush1.xpose.msra.mxu0 0.0
    %6256 = vmatprep.subr.mxu0 0.0
    %6257 = vmatpush1.xpose.msra.mxu0 0.0
    %6258 = vmatprep.subr.mxu0 0.0
    %6259 = vmatpush1.xpose.msra.mxu0 0.0
    %6260 = vmatprep.subr.mxu0 0.0
    %6261 = vmatpush1.xpose.msra.mxu0 0.0
    %6262 = vmatprep.subr.mxu0 0.0
    %6263 = vmatpush1.xpose.msra.mxu0 0.0
    %6264 = vmatprep.subr.mxu0 0.0
    %6265 = vmatpush1.xpose.msra.mxu0 0.0
    %6266 = vmatprep.subr.mxu0 0.0
    %6267 = vmatpush1.xpose.msra.mxu0 0.0
    %6268 = vmatprep.subr.mxu0 0.0
    %6269 = vmatpush1.xpose.msra.mxu0 0.0
    %6270 = vmatprep.subr.mxu0 0.0
    %6271 = vmatpush1.xpose.msra.mxu0 0.0
    %6272 = vmatprep.subr.mxu0 0.0
    %6273 = vmatpush1.xpose.msra.mxu0 0.0
    %6274 = vmatprep.subr.mxu0 0.0
    %6275 = vmatpush1.xpose.msra.mxu0 0.0
    %6276 = vmatprep.subr.mxu0 0.0
    %6277 = vmatpush1.xpose.msra.mxu0 0.0
    %6278 = vmatprep.subr.mxu0 0.0
    %6279 = vmatpush1.xpose.msra.mxu0 0.0
    %6280 = vmatprep.subr.mxu0 0.0
    %6281 = vmatpush1.xpose.msra.mxu0 0.0
    %6282 = vmatprep.subr.mxu0 0.0
    %6283 = vmatpush1.xpose.msra.mxu0 0.0
    %6284 = vmatprep.subr.mxu0 0.0
    %6285 = vmatpush1.xpose.msra.mxu0 0.0
    %6286 = vmatprep.subr.mxu0 0.0
    %6287 = vmatpush1.xpose.msra.mxu0 0.0
    %6288 = vmatprep.subr.mxu0 0.0
    %6289 = vmatpush1.xpose.msra.mxu0 0.0
    %6290 = vmatprep.subr.mxu0 0.0
    %6291 = vmatpush1.xpose.msra.mxu0 0.0
    %6292 = vmatprep.subr.mxu0 0.0
    %6293 = vmatpush1.xpose.msra.mxu0 0.0
    %6294 = vmatprep.subr.mxu0 0.0
    %6295 = vmatpush1.xpose.msra.mxu0 0.0
    %6296 = vmatprep.subr.mxu0 0.0
    %6297 = vmatpush1.xpose.msra.mxu0 0.0
    %6298 = vmatprep.mubr.f32.mxu0 0.0
    %6299 = vmatmul.mubr.f32.gmra.mrb[0].mxu0 %v6226
    %v6300 = vpop.f32.mrb[0].mxu0
    %v6301 = vadd.f32 0.0, %v6300
    %v6302 = vpop.f32.mrb[0].mxu0
    %6303 = vmatprep.mubr.f32.mxu0 0.0
    %6304 = vmatmul.mubr.f32.gmra.mrb[0].mxu0 %v6228
    %v6305 = vpop.f32.mrb[0].mxu0
    %v6306 = vadd.f32 0.0, %v6305
    %v6307 = vpop.f32.mrb[0].mxu0
    %6308 = vdwg.mxu0
    %v6309 = vmul.f32 %v6301, 0.17677669
    %v6310 = vmul.f32 %v6306, 0.17677669
    %v6311 = vsel %vm737, %v6309, -inf
    %6312 = vmax.xlane.f32.xlu0 %v6311
    %v6313 = vpop.xlane.xlu0 %6312
    %v6314 = vsel %vm737, %v6310, -inf
    %6315 = vmax.xlane.f32.xlu0 %v6314
    %v6316 = vpop.xlane.xlu0 %6315
    %v6317 = vsub.f32 %v6309, %v6313
    %v6318 = vsub.f32 %v6310, %v6316
    %v6319 = vmul.f32 %v6317, 1.442695
    %v6320 = vpow.pop %v6319
    %v6321 = vmul.f32 %v6318, 1.442695
    %v6322 = vpow.pop %v6321
    %v6323 = vsel %vm737, %v6320, 0.0
    %6324 = vadd.xlane.f32.xlu0 %v6323
    %v6325 = vpop.xlane.xlu0 %6324
    %v6326 = vsel %vm737, %v6322, 0.0
    %6327 = vadd.xlane.f32.xlu0 %v6326
    %v6328 = vpop.xlane.xlu0 %6327
    %v6329 = vrcp.pop %v6325
    %v6330 = vmul.f32 1.0, %v6329
    %v6331 = vrcp.pop %v6328
    %v6332 = vmul.f32 1.0, %v6331
    %v6333 = vmul.f32 %v6320, %v6330
    %v6334 = vmul.f32 %v6322, %v6332
    %6335 = vrot.lane.b32.xlu0 %v4495, 64
    %v6336 = vpop.permute.xlu0 %6335
    %6337 = vrot.lane.b32.xlu0 %v4500, 64
    %v6338 = vpop.permute.xlu0 %6337
    %v6342 = vsel %vm737, %v6333, 0
    %v6345 = vsel %vm737, %v6334, 0
    %6347 = vmatprep.subr.mxu0 0.0
    %6348 = vmatpush1.msra.mxu0 %v6336
    %6349 = vmatprep.subr.mxu0 0.0
    %6350 = vmatpush1.msra.mxu0 %v6338
    %6351 = vmatprep.subr.mxu0 0.0
    %6352 = vmatpush1.msra.mxu0 0.0
    %6353 = vmatprep.subr.mxu0 0.0
    %6354 = vmatpush1.msra.mxu0 0.0
    %6355 = vmatprep.subr.mxu0 0.0
    %6356 = vmatpush1.msra.mxu0 0.0
    %6357 = vmatprep.subr.mxu0 0.0
    %6358 = vmatpush1.msra.mxu0 0.0
    %6359 = vmatprep.subr.mxu0 0.0
    %6360 = vmatpush1.msra.mxu0 0.0
    %6361 = vmatprep.subr.mxu0 0.0
    %6362 = vmatpush1.msra.mxu0 0.0
    %6363 = vmatprep.subr.mxu0 0.0
    %6364 = vmatpush1.msra.mxu0 0.0
    %6365 = vmatprep.subr.mxu0 0.0
    %6366 = vmatpush1.msra.mxu0 0.0
    %6367 = vmatprep.subr.mxu0 0.0
    %6368 = vmatpush1.msra.mxu0 0.0
    %6369 = vmatprep.subr.mxu0 0.0
    %6370 = vmatpush1.msra.mxu0 0.0
    %6371 = vmatprep.subr.mxu0 0.0
    %6372 = vmatpush1.msra.mxu0 0.0
    %6373 = vmatprep.subr.mxu0 0.0
    %6374 = vmatpush1.msra.mxu0 0.0
    %6375 = vmatprep.subr.mxu0 0.0
    %6376 = vmatpush1.msra.mxu0 0.0
    %6377 = vmatprep.subr.mxu0 0.0
    %6378 = vmatpush1.msra.mxu0 0.0
    %6379 = vmatprep.subr.mxu0 0.0
    %6380 = vmatpush1.msra.mxu0 0.0
    %6381 = vmatprep.subr.mxu0 0.0
    %6382 = vmatpush1.msra.mxu0 0.0
    %6383 = vmatprep.subr.mxu0 0.0
    %6384 = vmatpush1.msra.mxu0 0.0
    %6385 = vmatprep.subr.mxu0 0.0
    %6386 = vmatpush1.msra.mxu0 0.0
    %6387 = vmatprep.subr.mxu0 0.0
    %6388 = vmatpush1.msra.mxu0 0.0
    %6389 = vmatprep.subr.mxu0 0.0
    %6390 = vmatpush1.msra.mxu0 0.0
    %6391 = vmatprep.subr.mxu0 0.0
    %6392 = vmatpush1.msra.mxu0 0.0
    %6393 = vmatprep.subr.mxu0 0.0
    %6394 = vmatpush1.msra.mxu0 0.0
    %6395 = vmatprep.subr.mxu0 0.0
    %6396 = vmatpush1.msra.mxu0 0.0
    %6397 = vmatprep.subr.mxu0 0.0
    %6398 = vmatpush1.msra.mxu0 0.0
    %6399 = vmatprep.subr.mxu0 0.0
    %6400 = vmatpush1.msra.mxu0 0.0
    %6401 = vmatprep.subr.mxu0 0.0
    %6402 = vmatpush1.msra.mxu0 0.0
    %6403 = vmatprep.subr.mxu0 0.0
    %6404 = vmatpush1.msra.mxu0 0.0
    %6405 = vmatprep.subr.mxu0 0.0
    %6406 = vmatpush1.msra.mxu0 0.0
    %6407 = vmatprep.subr.mxu0 0.0
    %6408 = vmatpush1.msra.mxu0 0.0
    %6409 = vmatprep.subr.mxu0 0.0
    %6410 = vmatpush1.msra.mxu0 0.0
    %6411 = vmatprep.mubr.f32.mxu0 0.0
    %6412 = vmatmul.mubr.f32.gmra.mrb[0].mxu0 %v6342
    %v6413 = vpop.f32.mrb[0].mxu0
    %v6414 = vadd.f32 0.0, %v6413
    %v6415 = vpop.f32.mrb[0].mxu0
    %6416 = vmatprep.mubr.f32.mxu0 0.0
    %6417 = vmatmul.mubr.f32.gmra.mrb[0].mxu0 %v6345
    %v6418 = vpop.f32.mrb[0].mxu0
    %v6419 = vadd.f32 0.0, %v6418
    %v6420 = vpop.f32.mrb[0].mxu0
    %6421 = vdwg.mxu0
    %v6423 = vsel %vm647, %v6414, 0
    %v6426 = vsel %vm647, %v6419, 0
    %6428 = vmatprep.subr.mxu0 0.0
    %6429 = vmatpush1.msra.mxu0 %v4512
    %6430 = vmatprep.subr.mxu0 0.0
    %6431 = vmatpush1.msra.mxu0 %v4513
    %6432 = vmatprep.subr.mxu0 0.0
    %6433 = vmatpush1.msra.mxu0 %v4514
    %6434 = vmatprep.subr.mxu0 0.0
    %6435 = vmatpush1.msra.mxu0 %v4515
    %6436 = vmatprep.subr.mxu0 0.0
    %6437 = vmatpush1.msra.mxu0 0.0
    %6438 = vmatprep.subr.mxu0 0.0
    %6439 = vmatpush1.msra.mxu0 0.0
    %6440 = vmatprep.subr.mxu0 0.0
    %6441 = vmatpush1.msra.mxu0 0.0
    %6442 = vmatprep.subr.mxu0 0.0
    %6443 = vmatpush1.msra.mxu0 0.0
    %6444 = vmatprep.subr.mxu0 0.0
    %6445 = vmatpush1.msra.mxu0 0.0
    %6446 = vmatprep.subr.mxu0 0.0
    %6447 = vmatpush1.msra.mxu0 0.0
    %6448 = vmatprep.subr.mxu0 0.0
    %6449 = vmatpush1.msra.mxu0 0.0
    %6450 = vmatprep.subr.mxu0 0.0
    %6451 = vmatpush1.msra.mxu0 0.0
    %6452 = vmatprep.subr.mxu0 0.0
    %6453 = vmatpush1.msra.mxu0 0.0
    %6454 = vmatprep.subr.mxu0 0.0
    %6455 = vmatpush1.msra.mxu0 0.0
    %6456 = vmatprep.subr.mxu0 0.0
    %6457 = vmatpush1.msra.mxu0 0.0
    %6458 = vmatprep.subr.mxu0 0.0
    %6459 = vmatpush1.msra.mxu0 0.0
    %6460 = vmatprep.subr.mxu0 0.0
    %6461 = vmatpush1.msra.mxu0 0.0
    %6462 = vmatprep.subr.mxu0 0.0
    %6463 = vmatpush1.msra.mxu0 0.0
    %6464 = vmatprep.subr.mxu0 0.0
    %6465 = vmatpush1.msra.mxu0 0.0
    %6466 = vmatprep.subr.mxu0 0.0
    %6467 = vmatpush1.msra.mxu0 0.0
    %6468 = vmatprep.subr.mxu0 0.0
    %6469 = vmatpush1.msra.mxu0 0.0
    %6470 = vmatprep.subr.mxu0 0.0
    %6471 = vmatpush1.msra.mxu0 0.0
    %6472 = vmatprep.subr.mxu0 0.0
    %6473 = vmatpush1.msra.mxu0 0.0
    %6474 = vmatprep.subr.mxu0 0.0
    %6475 = vmatpush1.msra.mxu0 0.0
    %6476 = vmatprep.subr.mxu0 0.0
    %6477 = vmatpush1.msra.mxu0 0.0
    %6478 = vmatprep.subr.mxu0 0.0
    %6479 = vmatpush1.msra.mxu0 0.0
    %6480 = vmatprep.subr.mxu0 0.0
    %6481 = vmatpush1.msra.mxu0 0.0
    %6482 = vmatprep.subr.mxu0 0.0
    %6483 = vmatpush1.msra.mxu0 0.0
    %6484 = vmatprep.subr.mxu0 0.0
    %6485 = vmatpush1.msra.mxu0 0.0
    %6486 = vmatprep.subr.mxu0 0.0
    %6487 = vmatpush1.msra.mxu0 0.0
    %6488 = vmatprep.subr.mxu0 0.0
    %6489 = vmatpush1.msra.mxu0 0.0
    %6490 = vmatprep.subr.mxu0 0.0
    %6491 = vmatpush1.msra.mxu0 0.0
    %6492 = vmatprep.mubr.f32.mxu0 0.0
    %6493 = vmatmul.mubr.f32.gmra.mrb[0].mxu0 %v6423
    %v6494 = vpop.f32.mrb[0].mxu0
    %v6495 = vadd.f32 0.0, %v6494
    %v6496 = vpop.f32.mrb[0].mxu0
    %6497 = vmatprep.mubr.f32.mxu0 0.0
    %6498 = vmatmul.mubr.f32.gmra.mrb[0].mxu0 %v6426
    %v6499 = vpop.f32.mrb[0].mxu0
    %v6500 = vadd.f32 0.0, %v6499
    %v6501 = vpop.f32.mrb[0].mxu0
    %6502 = vdwg.mxu0
    %v6503 = vadd.f32 %v6210, %v6495
    %v6504 = vadd.f32 %v6215, %v6500
    %6505 = vrot.lane.b32.xlu0 %v4408, 32
    %v6506 = vpop.permute.xlu0 %6505
    %6507 = vrot.lane.b32.xlu0 %v4414, 32
    %v6508 = vpop.permute.xlu0 %6507
    %6509 = vrot.lane.b32.xlu0 %v4410, 32
    %v6510 = vpop.permute.xlu0 %6509
    %6511 = vrot.lane.b32.xlu0 %v4416, 32
    %v6512 = vpop.permute.xlu0 %6511
    %v6513 = vsel %vm647, %v6506, 0
    %v6515 = vsel %vm647, %v6508, 0
    %v6517 = vsel %vm647, %v6510, 0
    %v6519 = vsel %vm647, %v6512, 0
    %6521 = vmatprep.subr.mxu0 0.0
    %6522 = vmatpush1.xpose.msra.mxu0 %v6517
    %6523 = vmatprep.subr.mxu0 0.0
    %6524 = vmatpush1.xpose.msra.mxu0 %v6519
    %6525 = vmatprep.subr.mxu0 0.0
    %6526 = vmatpush1.xpose.msra.mxu0 0.0
    %6527 = vmatprep.subr.mxu0 0.0
    %6528 = vmatpush1.xpose.msra.mxu0 0.0
    %6529 = vmatprep.subr.mxu0 0.0
    %6530 = vmatpush1.xpose.msra.mxu0 0.0
    %6531 = vmatprep.subr.mxu0 0.0
    %6532 = vmatpush1.xpose.msra.mxu0 0.0
    %6533 = vmatprep.subr.mxu0 0.0
    %6534 = vmatpush1.xpose.msra.mxu0 0.0
    %6535 = vmatprep.subr.mxu0 0.0
    %6536 = vmatpush1.xpose.msra.mxu0 0.0
    %6537 = vmatprep.subr.mxu0 0.0
    %6538 = vmatpush1.xpose.msra.mxu0 0.0
    %6539 = vmatprep.subr.mxu0 0.0
    %6540 = vmatpush1.xpose.msra.mxu0 0.0
    %6541 = vmatprep.subr.mxu0 0.0
    %6542 = vmatpush1.xpose.msra.mxu0 0.0
    %6543 = vmatprep.subr.mxu0 0.0
    %6544 = vmatpush1.xpose.msra.mxu0 0.0
    %6545 = vmatprep.subr.mxu0 0.0
    %6546 = vmatpush1.xpose.msra.mxu0 0.0
    %6547 = vmatprep.subr.mxu0 0.0
    %6548 = vmatpush1.xpose.msra.mxu0 0.0
    %6549 = vmatprep.subr.mxu0 0.0
    %6550 = vmatpush1.xpose.msra.mxu0 0.0
    %6551 = vmatprep.subr.mxu0 0.0
    %6552 = vmatpush1.xpose.msra.mxu0 0.0
    %6553 = vmatprep.subr.mxu0 0.0
    %6554 = vmatpush1.xpose.msra.mxu0 0.0
    %6555 = vmatprep.subr.mxu0 0.0
    %6556 = vmatpush1.xpose.msra.mxu0 0.0
    %6557 = vmatprep.subr.mxu0 0.0
    %6558 = vmatpush1.xpose.msra.mxu0 0.0
    %6559 = vmatprep.subr.mxu0 0.0
    %6560 = vmatpush1.xpose.msra.mxu0 0.0
    %6561 = vmatprep.subr.mxu0 0.0
    %6562 = vmatpush1.xpose.msra.mxu0 0.0
    %6563 = vmatprep.subr.mxu0 0.0
    %6564 = vmatpush1.xpose.msra.mxu0 0.0
    %6565 = vmatprep.subr.mxu0 0.0
    %6566 = vmatpush1.xpose.msra.mxu0 0.0
    %6567 = vmatprep.subr.mxu0 0.0
    %6568 = vmatpush1.xpose.msra.mxu0 0.0
    %6569 = vmatprep.subr.mxu0 0.0
    %6570 = vmatpush1.xpose.msra.mxu0 0.0
    %6571 = vmatprep.subr.mxu0 0.0
    %6572 = vmatpush1.xpose.msra.mxu0 0.0
    %6573 = vmatprep.subr.mxu0 0.0
    %6574 = vmatpush1.xpose.msra.mxu0 0.0
    %6575 = vmatprep.subr.mxu0 0.0
    %6576 = vmatpush1.xpose.msra.mxu0 0.0
    %6577 = vmatprep.subr.mxu0 0.0
    %6578 = vmatpush1.xpose.msra.mxu0 0.0
    %6579 = vmatprep.subr.mxu0 0.0
    %6580 = vmatpush1.xpose.msra.mxu0 0.0
    %6581 = vmatprep.subr.mxu0 0.0
    %6582 = vmatpush1.xpose.msra.mxu0 0.0
    %6583 = vmatprep.subr.mxu0 0.0
    %6584 = vmatpush1.xpose.msra.mxu0 0.0
    %6585 = vmatprep.mubr.f32.mxu0 0.0
    %6586 = vmatmul.mubr.f32.gmra.mrb[0].mxu0 %v6513
    %v6587 = vpop.f32.mrb[0].mxu0
    %v6588 = vadd.f32 0.0, %v6587
    %v6589 = vpop.f32.mrb[0].mxu0
    %6590 = vmatprep.mubr.f32.mxu0 0.0
    %6591 = vmatmul.mubr.f32.gmra.mrb[0].mxu0 %v6515
    %v6592 = vpop.f32.mrb[0].mxu0
    %v6593 = vadd.f32 0.0, %v6592
    %v6594 = vpop.f32.mrb[0].mxu0
    %6595 = vdwg.mxu0
    %v6596 = vmul.f32 %v6588, 0.17677669
    %v6597 = vmul.f32 %v6593, 0.17677669
    %v6598 = vsel %vm737, %v6596, -inf
    %6599 = vmax.xlane.f32.xlu0 %v6598
    %v6600 = vpop.xlane.xlu0 %6599
    %v6601 = vsel %vm737, %v6597, -inf
    %6602 = vmax.xlane.f32.xlu0 %v6601
    %v6603 = vpop.xlane.xlu0 %6602
    %v6604 = vsub.f32 %v6596, %v6600
    %v6605 = vsub.f32 %v6597, %v6603
    %v6606 = vmul.f32 %v6604, 1.442695
    %v6607 = vpow.pop %v6606
    %v6608 = vmul.f32 %v6605, 1.442695
    %v6609 = vpow.pop %v6608
    %v6610 = vsel %vm737, %v6607, 0.0
    %6611 = vadd.xlane.f32.xlu0 %v6610
    %v6612 = vpop.xlane.xlu0 %6611
    %v6613 = vsel %vm737, %v6609, 0.0
    %6614 = vadd.xlane.f32.xlu0 %v6613
    %v6615 = vpop.xlane.xlu0 %6614
    %v6616 = vrcp.pop %v6612
    %v6617 = vmul.f32 1.0, %v6616
    %v6618 = vrcp.pop %v6615
    %v6619 = vmul.f32 1.0, %v6618
    %v6620 = vmul.f32 %v6607, %v6617
    %v6621 = vmul.f32 %v6609, %v6619
    %6622 = vrot.lane.b32.xlu0 %v4495, 32
    %v6623 = vpop.permute.xlu0 %6622
    %6624 = vrot.lane.b32.xlu0 %v4500, 32
    %v6625 = vpop.permute.xlu0 %6624
    %v6629 = vsel %vm737, %v6620, 0
    %v6632 = vsel %vm737, %v6621, 0
    %6634 = vmatprep.subr.mxu0 0.0
    %6635 = vmatpush1.msra.mxu0 %v6623
    %6636 = vmatprep.subr.mxu0 0.0
    %6637 = vmatpush1.msra.mxu0 %v6625
    %6638 = vmatprep.subr.mxu0 0.0
    %6639 = vmatpush1.msra.mxu0 0.0
    %6640 = vmatprep.subr.mxu0 0.0
    %6641 = vmatpush1.msra.mxu0 0.0
    %6642 = vmatprep.subr.mxu0 0.0
    %6643 = vmatpush1.msra.mxu0 0.0
    %6644 = vmatprep.subr.mxu0 0.0
    %6645 = vmatpush1.msra.mxu0 0.0
    %6646 = vmatprep.subr.mxu0 0.0
    %6647 = vmatpush1.msra.mxu0 0.0
    %6648 = vmatprep.subr.mxu0 0.0
    %6649 = vmatpush1.msra.mxu0 0.0
    %6650 = vmatprep.subr.mxu0 0.0
    %6651 = vmatpush1.msra.mxu0 0.0
    %6652 = vmatprep.subr.mxu0 0.0
    %6653 = vmatpush1.msra.mxu0 0.0
    %6654 = vmatprep.subr.mxu0 0.0
    %6655 = vmatpush1.msra.mxu0 0.0
    %6656 = vmatprep.subr.mxu0 0.0
    %6657 = vmatpush1.msra.mxu0 0.0
    %6658 = vmatprep.subr.mxu0 0.0
    %6659 = vmatpush1.msra.mxu0 0.0
    %6660 = vmatprep.subr.mxu0 0.0
    %6661 = vmatpush1.msra.mxu0 0.0
    %6662 = vmatprep.subr.mxu0 0.0
    %6663 = vmatpush1.msra.mxu0 0.0
    %6664 = vmatprep.subr.mxu0 0.0
    %6665 = vmatpush1.msra.mxu0 0.0
    %6666 = vmatprep.subr.mxu0 0.0
    %6667 = vmatpush1.msra.mxu0 0.0
    %6668 = vmatprep.subr.mxu0 0.0
    %6669 = vmatpush1.msra.mxu0 0.0
    %6670 = vmatprep.subr.mxu0 0.0
    %6671 = vmatpush1.msra.mxu0 0.0
    %6672 = vmatprep.subr.mxu0 0.0
    %6673 = vmatpush1.msra.mxu0 0.0
    %6674 = vmatprep.subr.mxu0 0.0
    %6675 = vmatpush1.msra.mxu0 0.0
    %6676 = vmatprep.subr.mxu0 0.0
    %6677 = vmatpush1.msra.mxu0 0.0
    %6678 = vmatprep.subr.mxu0 0.0
    %6679 = vmatpush1.msra.mxu0 0.0
    %6680 = vmatprep.subr.mxu0 0.0
    %6681 = vmatpush1.msra.mxu0 0.0
    %6682 = vmatprep.subr.mxu0 0.0
    %6683 = vmatpush1.msra.mxu0 0.0
    %6684 = vmatprep.subr.mxu0 0.0
    %6685 = vmatpush1.msra.mxu0 0.0
    %6686 = vmatprep.subr.mxu0 0.0
    %6687 = vmatpush1.msra.mxu0 0.0
    %6688 = vmatprep.subr.mxu0 0.0
    %6689 = vmatpush1.msra.mxu0 0.0
    %6690 = vmatprep.subr.mxu0 0.0
    %6691 = vmatpush1.msra.mxu0 0.0
    %6692 = vmatprep.subr.mxu0 0.0
    %6693 = vmatpush1.msra.mxu0 0.0
    %6694 = vmatprep.subr.mxu0 0.0
    %6695 = vmatpush1.msra.mxu0 0.0
    %6696 = vmatprep.subr.mxu0 0.0
    %6697 = vmatpush1.msra.mxu0 0.0
    %6698 = vmatprep.mubr.f32.mxu0 0.0
    %6699 = vmatmul.mubr.f32.gmra.mrb[0].mxu0 %v6629
    %v6700 = vpop.f32.mrb[0].mxu0
    %v6701 = vadd.f32 0.0, %v6700
    %v6702 = vpop.f32.mrb[0].mxu0
    %6703 = vmatprep.mubr.f32.mxu0 0.0
    %6704 = vmatmul.mubr.f32.gmra.mrb[0].mxu0 %v6632
    %v6705 = vpop.f32.mrb[0].mxu0
    %v6706 = vadd.f32 0.0, %v6705
    %v6707 = vpop.f32.mrb[0].mxu0
    %6708 = vdwg.mxu0
    %v6710 = vsel %vm647, %v6701, 0
    %v6713 = vsel %vm647, %v6706, 0
    %6715 = vmatprep.subr.mxu0 0.0
    %6716 = vmatpush1.msra.mxu0 %v4516
    %6717 = vmatprep.subr.mxu0 0.0
    %6718 = vmatpush1.msra.mxu0 %v4517
    %6719 = vmatprep.subr.mxu0 0.0
    %6720 = vmatpush1.msra.mxu0 %v4518
    %6721 = vmatprep.subr.mxu0 0.0
    %6722 = vmatpush1.msra.mxu0 %v4519
    %6723 = vmatprep.subr.mxu0 0.0
    %6724 = vmatpush1.msra.mxu0 0.0
    %6725 = vmatprep.subr.mxu0 0.0
    %6726 = vmatpush1.msra.mxu0 0.0
    %6727 = vmatprep.subr.mxu0 0.0
    %6728 = vmatpush1.msra.mxu0 0.0
    %6729 = vmatprep.subr.mxu0 0.0
    %6730 = vmatpush1.msra.mxu0 0.0
    %6731 = vmatprep.subr.mxu0 0.0
    %6732 = vmatpush1.msra.mxu0 0.0
    %6733 = vmatprep.subr.mxu0 0.0
    %6734 = vmatpush1.msra.mxu0 0.0
    %6735 = vmatprep.subr.mxu0 0.0
    %6736 = vmatpush1.msra.mxu0 0.0
    %6737 = vmatprep.subr.mxu0 0.0
    %6738 = vmatpush1.msra.mxu0 0.0
    %6739 = vmatprep.subr.mxu0 0.0
    %6740 = vmatpush1.msra.mxu0 0.0
    %6741 = vmatprep.subr.mxu0 0.0
    %6742 = vmatpush1.msra.mxu0 0.0
    %6743 = vmatprep.subr.mxu0 0.0
    %6744 = vmatpush1.msra.mxu0 0.0
    %6745 = vmatprep.subr.mxu0 0.0
    %6746 = vmatpush1.msra.mxu0 0.0
    %6747 = vmatprep.subr.mxu0 0.0
    %6748 = vmatpush1.msra.mxu0 0.0
    %6749 = vmatprep.subr.mxu0 0.0
    %6750 = vmatpush1.msra.mxu0 0.0
    %6751 = vmatprep.subr.mxu0 0.0
    %6752 = vmatpush1.msra.mxu0 0.0
    %6753 = vmatprep.subr.mxu0 0.0
    %6754 = vmatpush1.msra.mxu0 0.0
    %6755 = vmatprep.subr.mxu0 0.0
    %6756 = vmatpush1.msra.mxu0 0.0
    %6757 = vmatprep.subr.mxu0 0.0
    %6758 = vmatpush1.msra.mxu0 0.0
    %6759 = vmatprep.subr.mxu0 0.0
    %6760 = vmatpush1.msra.mxu0 0.0
    %6761 = vmatprep.subr.mxu0 0.0
    %6762 = vmatpush1.msra.mxu0 0.0
    %6763 = vmatprep.subr.mxu0 0.0
    %6764 = vmatpush1.msra.mxu0 0.0
    %6765 = vmatprep.subr.mxu0 0.0
    %6766 = vmatpush1.msra.mxu0 0.0
    %6767 = vmatprep.subr.mxu0 0.0
    %6768 = vmatpush1.msra.mxu0 0.0
    %6769 = vmatprep.subr.mxu0 0.0
    %6770 = vmatpush1.msra.mxu0 0.0
    %6771 = vmatprep.subr.mxu0 0.0
    %6772 = vmatpush1.msra.mxu0 0.0
    %6773 = vmatprep.subr.mxu0 0.0
    %6774 = vmatpush1.msra.mxu0 0.0
    %6775 = vmatprep.subr.mxu0 0.0
    %6776 = vmatpush1.msra.mxu0 0.0
    %6777 = vmatprep.subr.mxu0 0.0
    %6778 = vmatpush1.msra.mxu0 0.0
    %6779 = vmatprep.mubr.f32.mxu0 0.0
    %6780 = vmatmul.mubr.f32.gmra.mrb[0].mxu0 %v6710
    %v6781 = vpop.f32.mrb[0].mxu0
    %v6782 = vadd.f32 0.0, %v6781
    %v6783 = vpop.f32.mrb[0].mxu0
    %6784 = vmatprep.mubr.f32.mxu0 0.0
    %6785 = vmatmul.mubr.f32.gmra.mrb[0].mxu0 %v6713
    %v6786 = vpop.f32.mrb[0].mxu0
    %v6787 = vadd.f32 0.0, %v6786
    %v6788 = vpop.f32.mrb[0].mxu0
    %6789 = vdwg.mxu0
    %v6790 = vadd.f32 %v6503, %v6782
    %v6791 = vadd.f32 %v6504, %v6787
    %v6792 = vadd.f32 %v4158, %v5654
    %v6793 = vadd.f32 %v4159, %v5655
    %v6794 = vadd.f32 %v4160, %v6790
    %v6795 = vadd.f32 %v4161, %v6791
    %s6796 = scalar_lea.vmem [#allocation10], 1
    %v6797 = vld [vmem:[%s6796] sm:$0x1]
    %v6799 = vlaneseq
    %v6800 = vshrl.u32 %v6799, 7
    %v6801 = vsub.s32 0, %v6800
    %v6802 = vrot.slane %v6797, %v6801
    %v6804 = vadd.f32 %v6792, %v6802
    %v6805 = vadd.f32 %v6793, %v6802
    %v6806 = vadd.f32 %v6794, %v6802
    %v6807 = vadd.f32 %v6795, %v6802
    %s6808 = scalar_lea.vmem [#allocation11], 3
    %v6809 = vld [vmem:[%s6808] sm:$0x1]
    %s6810 = scalar_lea.vmem [#allocation13], 3
    %v6811 = vld [vmem:[%s6810] sm:$0x1]
    %6812 = vadd.xlane.f32.xlu0 %v6804
    %v6813 = vpop.xlane.xlu0 %6812
    %6814 = vadd.xlane.f32.xlu0 %v6805
    %v6815 = vpop.xlane.xlu0 %6814
    %6816 = vadd.xlane.f32.xlu0 %v6806
    %v6817 = vpop.xlane.xlu0 %6816
    %6818 = vadd.xlane.f32.xlu0 %v6807
    %v6819 = vpop.xlane.xlu0 %6818
    %v6820 = vmul.f32 %v6813, %v303
    %v6821 = vmul.f32 %v6815, %v303
    %v6822 = vmul.f32 %v6817, %v303
    %v6823 = vmul.f32 %v6819, %v303
    %v6824 = vsub.f32 %v6804, %v6820
    %v6825 = vsub.f32 %v6805, %v6821
    %v6826 = vsub.f32 %v6806, %v6822
    %v6827 = vsub.f32 %v6807, %v6823
    %v6828 = vmul.f32 %v6824, %v6824
    %v6829 = vmul.f32 %v6825, %v6825
    %v6830 = vmul.f32 %v6826, %v6826
    %v6831 = vmul.f32 %v6827, %v6827
    %6832 = vadd.xlane.f32.xlu0 %v6828
    %v6833 = vpop.xlane.xlu0 %6832
    %6834 = vadd.xlane.f32.xlu0 %v6829
    %v6835 = vpop.xlane.xlu0 %6834
    %6836 = vadd.xlane.f32.xlu0 %v6830
    %v6837 = vpop.xlane.xlu0 %6836
    %6838 = vadd.xlane.f32.xlu0 %v6831
    %v6839 = vpop.xlane.xlu0 %6838
    %v6840 = vmul.f32 %v6833, 0.007874016
    %v6841 = vmul.f32 %v6835, 0.007874016
    %v6842 = vmul.f32 %v6837, 0.007874016
    %v6843 = vmul.f32 %v6839, 0.007874016
    %v6844 = vrsqrt.pop %v6840
    %v6845 = vmul.f32 %v6840, %v6844
    %vm6846 = vcmp.eq.f32.partialorder %v6840, inf
    %v6847 = vsel %vm6846, %v6840, %v6845
    %vm6848 = vcmp.eq.f32.partialorder %v6840, 0.0
    %v6849 = vand.u32 %v6840, 2147483648
    %v6850 = vsel %vm6848, %v6849, %v6847
    %v6851 = vrsqrt.pop %v6841
    %v6852 = vmul.f32 %v6841, %v6851
    %vm6853 = vcmp.eq.f32.partialorder %v6841, inf
    %v6854 = vsel %vm6853, %v6841, %v6852
    %vm6855 = vcmp.eq.f32.partialorder %v6841, 0.0
    %v6856 = vand.u32 %v6841, 2147483648
    %v6857 = vsel %vm6855, %v6856, %v6854
    %v6858 = vrsqrt.pop %v6842
    %v6859 = vmul.f32 %v6842, %v6858
    %vm6860 = vcmp.eq.f32.partialorder %v6842, inf
    %v6861 = vsel %vm6860, %v6842, %v6859
    %vm6862 = vcmp.eq.f32.partialorder %v6842, 0.0
    %v6863 = vand.u32 %v6842, 2147483648
    %v6864 = vsel %vm6862, %v6863, %v6861
    %v6865 = vrsqrt.pop %v6843
    %v6866 = vmul.f32 %v6843, %v6865
    %vm6867 = vcmp.eq.f32.partialorder %v6843, inf
    %v6868 = vsel %vm6867, %v6843, %v6866
    %vm6869 = vcmp.eq.f32.partialorder %v6843, 0.0
    %v6870 = vand.u32 %v6843, 2147483648
    %v6871 = vsel %vm6869, %v6870, %v6868
    %v6872 = vadd.f32 %v6850, 1e-06
    %v6873 = vadd.f32 %v6857, 1e-06
    %v6874 = vadd.f32 %v6864, 1e-06
    %v6875 = vadd.f32 %v6871, 1e-06
    %v6876 = vrcp.pop %v6872
    %v6877 = vmul.f32 1.0, %v6876
    %v6878 = vrcp.pop %v6873
    %v6879 = vmul.f32 1.0, %v6878
    %v6880 = vrcp.pop %v6874
    %v6881 = vmul.f32 1.0, %v6880
    %v6882 = vrcp.pop %v6875
    %v6883 = vmul.f32 1.0, %v6882
    %v6884 = vmul.f32 %v6824, %v6877
    %v6885 = vmul.f32 %v6825, %v6879
    %v6886 = vmul.f32 %v6826, %v6881
    %v6887 = vmul.f32 %v6827, %v6883
    %v6889 = vlaneseq
    %v6890 = vshrl.u32 %v6889, 7
    %v6891 = vsub.s32 0, %v6890
    %v6892 = vrot.slane %v6809, %v6891
    %v6894 = vmul.f32 %v6892, %v6884
    %v6895 = vmul.f32 %v6892, %v6885
    %v6896 = vmul.f32 %v6892, %v6886
    %v6897 = vmul.f32 %v6892, %v6887
    %v6899 = vlaneseq
    %v6900 = vshrl.u32 %v6899, 7
    %v6901 = vsub.s32 0, %v6900
    %v6902 = vrot.slane %v6811, %v6901
    %v6904 = vadd.f32 %v6894, %v6902
    %v6905 = vadd.f32 %v6895, %v6902
    %v6906 = vadd.f32 %v6896, %v6902
    %v6907 = vadd.f32 %v6897, %v6902
    %s6908 = scalar_lea.vmem [#allocation17], 1
    %v6909 = vld [vmem:[%s6908] sm:$0x1]
    %s6910 = scalar_lea.vmem [#allocation19], 1
    %v6911 = vld [vmem:[%s6910] sm:$0x1]
    %s6912 = scalar_lea.vmem [#allocation14], 1152
    %v6913 = vld [vmem:[%s6912] sm:$0xff]
    %v6914 = vld [vmem:[%s6912 + $0x8] sm:$0xff]
    %v6915 = vld [vmem:[%s6912 + $0x10] sm:$0xff]
    %v6916 = vld [vmem:[%s6912 + $0x18] sm:$0xff]
    %v6917 = vld [vmem:[%s6912 + $0x20] sm:$0xff]
    %v6918 = vld [vmem:[%s6912 + $0x28] sm:$0xff]
    %v6919 = vld [vmem:[%s6912 + $0x30] sm:$0xff]
    %v6920 = vld [vmem:[%s6912 + $0x38] sm:$0xff]
    %v6921 = vld [vmem:[%s6912 + $0x40] sm:$0xff]
    %v6922 = vld [vmem:[%s6912 + $0x48] sm:$0xff]
    %v6923 = vld [vmem:[%s6912 + $0x50] sm:$0xff]
    %v6924 = vld [vmem:[%s6912 + $0x58] sm:$0xff]
    %v6925 = vld [vmem:[%s6912 + $0x60] sm:$0xff]
    %v6926 = vld [vmem:[%s6912 + $0x68] sm:$0xff]
    %v6927 = vld [vmem:[%s6912 + $0x70] sm:$0xff]
    %v6928 = vld [vmem:[%s6912 + $0x78] sm:$0xff]
    %s6929 = scalar_lea.vmem [#allocation16], 3
    %v6930 = vld [vmem:[%s6929] sm:$0x1]
    %v6932 = vlaneseq
    %v6933 = vshrl.u32 %v6932, 7
    %v6934 = vsub.s32 0, %v6933
    %v6935 = vrot.slane %v6930, %v6934
    %6937 = vmatprep.subr.mxu0 0.0
    %6938 = vmatpush1.msra.mxu0 %v6913
    %6939 = vmatprep.subr.mxu0 0.0
    %6940 = vmatpush1.msra.mxu0 %v6914
    %6941 = vmatprep.subr.mxu0 0.0
    %6942 = vmatpush1.msra.mxu0 %v6915
    %6943 = vmatprep.subr.mxu0 0.0
    %6944 = vmatpush1.msra.mxu0 %v6916
    %6945 = vmatprep.subr.mxu0 0.0
    %6946 = vmatpush1.msra.mxu0 %v6917
    %6947 = vmatprep.subr.mxu0 0.0
    %6948 = vmatpush1.msra.mxu0 %v6918
    %6949 = vmatprep.subr.mxu0 0.0
    %6950 = vmatpush1.msra.mxu0 %v6919
    %6951 = vmatprep.subr.mxu0 0.0
    %6952 = vmatpush1.msra.mxu0 %v6920
    %6953 = vmatprep.subr.mxu0 0.0
    %6954 = vmatpush1.msra.mxu0 %v6921
    %6955 = vmatprep.subr.mxu0 0.0
    %6956 = vmatpush1.msra.mxu0 %v6922
    %6957 = vmatprep.subr.mxu0 0.0
    %6958 = vmatpush1.msra.mxu0 %v6923
    %6959 = vmatprep.subr.mxu0 0.0
    %6960 = vmatpush1.msra.mxu0 %v6924
    %6961 = vmatprep.subr.mxu0 0.0
    %6962 = vmatpush1.msra.mxu0 %v6925
    %6963 = vmatprep.subr.mxu0 0.0
    %6964 = vmatpush1.msra.mxu0 %v6926
    %6965 = vmatprep.subr.mxu0 0.0
    %6966 = vmatpush1.msra.mxu0 %v6927
    %6967 = vmatprep.subr.mxu0 0.0
    %6968 = vmatpush1.msra.mxu0 %v6928
    %6969 = vmatprep.subr.mxu0 0.0
    %6970 = vmatpush1.msra.mxu0 0.0
    %6971 = vmatprep.subr.mxu0 0.0
    %6972 = vmatpush1.msra.mxu0 0.0
    %6973 = vmatprep.subr.mxu0 0.0
    %6974 = vmatpush1.msra.mxu0 0.0
    %6975 = vmatprep.subr.mxu0 0.0
    %6976 = vmatpush1.msra.mxu0 0.0
    %6977 = vmatprep.subr.mxu0 0.0
    %6978 = vmatpush1.msra.mxu0 0.0
    %6979 = vmatprep.subr.mxu0 0.0
    %6980 = vmatpush1.msra.mxu0 0.0
    %6981 = vmatprep.subr.mxu0 0.0
    %6982 = vmatpush1.msra.mxu0 0.0
    %6983 = vmatprep.subr.mxu0 0.0
    %6984 = vmatpush1.msra.mxu0 0.0
    %6985 = vmatprep.subr.mxu0 0.0
    %6986 = vmatpush1.msra.mxu0 0.0
    %6987 = vmatprep.subr.mxu0 0.0
    %6988 = vmatpush1.msra.mxu0 0.0
    %6989 = vmatprep.subr.mxu0 0.0
    %6990 = vmatpush1.msra.mxu0 0.0
    %6991 = vmatprep.subr.mxu0 0.0
    %6992 = vmatpush1.msra.mxu0 0.0
    %6993 = vmatprep.subr.mxu0 0.0
    %6994 = vmatpush1.msra.mxu0 0.0
    %6995 = vmatprep.subr.mxu0 0.0
    %6996 = vmatpush1.msra.mxu0 0.0
    %6997 = vmatprep.subr.mxu0 0.0
    %6998 = vmatpush1.msra.mxu0 0.0
    %6999 = vmatprep.subr.mxu0 0.0
    %7000 = vmatpush1.msra.mxu0 0.0
    %7001 = vmatprep.mubr.f32.mxu0 0.0
    %7002 = vmatmul.mubr.f32.gmra.mrb[0].mxu0 %v6904
    %v7003 = vpop.f32.mrb[0].mxu0
    %v7004 = vadd.f32 %v6935, %v7003
    %v7005 = vpop.f32.mrb[0].mxu0
    %7006 = vmatprep.mubr.f32.mxu0 0.0
    %7007 = vmatmul.mubr.f32.gmra.mrb[0].mxu0 %v6905
    %v7008 = vpop.f32.mrb[0].mxu0
    %v7009 = vadd.f32 %v6935, %v7008
    %v7010 = vpop.f32.mrb[0].mxu0
    %7011 = vmatprep.mubr.f32.mxu0 0.0
    %7012 = vmatmul.mubr.f32.gmra.mrb[0].mxu0 %v6906
    %v7013 = vpop.f32.mrb[0].mxu0
    %v7014 = vadd.f32 %v6935, %v7013
    %v7015 = vpop.f32.mrb[0].mxu0
    %7016 = vmatprep.mubr.f32.mxu0 0.0
    %7017 = vmatmul.mubr.f32.gmra.mrb[0].mxu0 %v6907
    %v7018 = vpop.f32.mrb[0].mxu0
    %v7019 = vadd.f32 %v6935, %v7018
    %v7020 = vpop.f32.mrb[0].mxu0
    %7021 = vdwg.mxu0
    %v7023 = vlaneseq
    %v7024 = vshrl.u32 %v7023, 7
    %v7025 = vsub.s32 0, %v7024
    %v7026 = vrot.slane %v6909, %v7025
    %v7028 = vmul.f32 %v7004, %v7026
    %v7029 = vmul.f32 %v7009, %v7026
    %v7030 = vmul.f32 %v7014, %v7026
    %v7031 = vmul.f32 %v7019, %v7026
    %v7033 = vlaneseq
    %v7034 = vshrl.u32 %v7033, 7
    %v7035 = vsub.s32 0, %v7034
    %v7036 = vrot.slane %v6911, %v7035
    %v7038 = vadd.f32 %v7028, %v7036
    %v7039 = vadd.f32 %v7029, %v7036
    %v7040 = vadd.f32 %v7030, %v7036
    %v7041 = vadd.f32 %v7031, %v7036
    %v7042 = vmax.f32 %v7038, 0.0
    %v7043 = vmax.f32 %v7039, 0.0
    %v7044 = vmax.f32 %v7040, 0.0
    %v7045 = vmax.f32 %v7041, 0.0
    %v7046 = vadd.f32 %v7042, 0.0
    %v7047 = vadd.f32 %v7043, 0.0
    %v7048 = vadd.f32 %v7044, 0.0
    %v7049 = vadd.f32 %v7045, 0.0
    %s7050 = scalar_lea.vmem [#allocation14], 1280
    %v7051 = vld [vmem:[%s7050] sm:$0xff]
    %v7052 = vld [vmem:[%s7050 + $0x8] sm:$0xff]
    %v7053 = vld [vmem:[%s7050 + $0x10] sm:$0xff]
    %v7054 = vld [vmem:[%s7050 + $0x18] sm:$0xff]
    %v7055 = vld [vmem:[%s7050 + $0x20] sm:$0xff]
    %v7056 = vld [vmem:[%s7050 + $0x28] sm:$0xff]
    %v7057 = vld [vmem:[%s7050 + $0x30] sm:$0xff]
    %v7058 = vld [vmem:[%s7050 + $0x38] sm:$0xff]
    %v7059 = vld [vmem:[%s7050 + $0x40] sm:$0xff]
    %v7060 = vld [vmem:[%s7050 + $0x48] sm:$0xff]
    %v7061 = vld [vmem:[%s7050 + $0x50] sm:$0xff]
    %v7062 = vld [vmem:[%s7050 + $0x58] sm:$0xff]
    %v7063 = vld [vmem:[%s7050 + $0x60] sm:$0xff]
    %v7064 = vld [vmem:[%s7050 + $0x68] sm:$0xff]
    %v7065 = vld [vmem:[%s7050 + $0x70] sm:$0xff]
    %v7066 = vld [vmem:[%s7050 + $0x78] sm:$0xff]
    %7067 = vmatprep.subr.mxu0 0.0
    %7068 = vmatpush1.msra.mxu0 %v7051
    %7069 = vmatprep.subr.mxu0 0.0
    %7070 = vmatpush1.msra.mxu0 %v7052
    %7071 = vmatprep.subr.mxu0 0.0
    %7072 = vmatpush1.msra.mxu0 %v7053
    %7073 = vmatprep.subr.mxu0 0.0
    %7074 = vmatpush1.msra.mxu0 %v7054
    %7075 = vmatprep.subr.mxu0 0.0
    %7076 = vmatpush1.msra.mxu0 %v7055
    %7077 = vmatprep.subr.mxu0 0.0
    %7078 = vmatpush1.msra.mxu0 %v7056
    %7079 = vmatprep.subr.mxu0 0.0
    %7080 = vmatpush1.msra.mxu0 %v7057
    %7081 = vmatprep.subr.mxu0 0.0
    %7082 = vmatpush1.msra.mxu0 %v7058
    %7083 = vmatprep.subr.mxu0 0.0
    %7084 = vmatpush1.msra.mxu0 %v7059
    %7085 = vmatprep.subr.mxu0 0.0
    %7086 = vmatpush1.msra.mxu0 %v7060
    %7087 = vmatprep.subr.mxu0 0.0
    %7088 = vmatpush1.msra.mxu0 %v7061
    %7089 = vmatprep.subr.mxu0 0.0
    %7090 = vmatpush1.msra.mxu0 %v7062
    %7091 = vmatprep.subr.mxu0 0.0
    %7092 = vmatpush1.msra.mxu0 %v7063
    %7093 = vmatprep.subr.mxu0 0.0
    %7094 = vmatpush1.msra.mxu0 %v7064
    %7095 = vmatprep.subr.mxu0 0.0
    %7096 = vmatpush1.msra.mxu0 %v7065
    %7097 = vmatprep.subr.mxu0 0.0
    %7098 = vmatpush1.msra.mxu0 %v7066
    %7099 = vmatprep.subr.mxu0 0.0
    %7100 = vmatpush1.msra.mxu0 0.0
    %7101 = vmatprep.subr.mxu0 0.0
    %7102 = vmatpush1.msra.mxu0 0.0
    %7103 = vmatprep.subr.mxu0 0.0
    %7104 = vmatpush1.msra.mxu0 0.0
    %7105 = vmatprep.subr.mxu0 0.0
    %7106 = vmatpush1.msra.mxu0 0.0
    %7107 = vmatprep.subr.mxu0 0.0
    %7108 = vmatpush1.msra.mxu0 0.0
    %7109 = vmatprep.subr.mxu0 0.0
    %7110 = vmatpush1.msra.mxu0 0.0
    %7111 = vmatprep.subr.mxu0 0.0
    %7112 = vmatpush1.msra.mxu0 0.0
    %7113 = vmatprep.subr.mxu0 0.0
    %7114 = vmatpush1.msra.mxu0 0.0
    %7115 = vmatprep.subr.mxu0 0.0
    %7116 = vmatpush1.msra.mxu0 0.0
    %7117 = vmatprep.subr.mxu0 0.0
    %7118 = vmatpush1.msra.mxu0 0.0
    %7119 = vmatprep.subr.mxu0 0.0
    %7120 = vmatpush1.msra.mxu0 0.0
    %7121 = vmatprep.subr.mxu0 0.0
    %7122 = vmatpush1.msra.mxu0 0.0
    %7123 = vmatprep.subr.mxu0 0.0
    %7124 = vmatpush1.msra.mxu0 0.0
    %7125 = vmatprep.subr.mxu0 0.0
    %7126 = vmatpush1.msra.mxu0 0.0
    %7127 = vmatprep.subr.mxu0 0.0
    %7128 = vmatpush1.msra.mxu0 0.0
    %7129 = vmatprep.subr.mxu0 0.0
    %7130 = vmatpush1.msra.mxu0 0.0
    %7131 = vmatprep.mubr.f32.mxu0 0.0
    %7132 = vmatmul.mubr.f32.gmra.mrb[0].mxu0 %v6904
    %v7133 = vpop.f32.mrb[0].mxu0
    %v7134 = vadd.f32 0.0, %v7133
    %v7135 = vpop.f32.mrb[0].mxu0
    %7136 = vmatprep.mubr.f32.mxu0 0.0
    %7137 = vmatmul.mubr.f32.gmra.mrb[0].mxu0 %v6905
    %v7138 = vpop.f32.mrb[0].mxu0
    %v7139 = vadd.f32 0.0, %v7138
    %v7140 = vpop.f32.mrb[0].mxu0
    %7141 = vmatprep.mubr.f32.mxu0 0.0
    %7142 = vmatmul.mubr.f32.gmra.mrb[0].mxu0 %v6906
    %v7143 = vpop.f32.mrb[0].mxu0
    %v7144 = vadd.f32 0.0, %v7143
    %v7145 = vpop.f32.mrb[0].mxu0
    %7146 = vmatprep.mubr.f32.mxu0 0.0
    %7147 = vmatmul.mubr.f32.gmra.mrb[0].mxu0 %v6907
    %v7148 = vpop.f32.mrb[0].mxu0
    %v7149 = vadd.f32 0.0, %v7148
    %v7150 = vpop.f32.mrb[0].mxu0
    %7151 = vdwg.mxu0
    %v7152 = vrot.slane %v7134, 7
    %v7153 = vrot.slane %v7139, 7
    %v7154 = vrot.slane %v7144, 7
    %v7155 = vrot.slane %v7149, 7
    %v7156 = vsel %vm3280, %v7154, %v7155
    %v7157 = vsel %vm3280, %v7153, %v7154
    %v7158 = vsel %vm3280, %v7152, %v7153
    %v7159 = vsel %vm3280, %v7155, %v7152
    %v7160 = vmul.f32 %v7159, %v249
    %v7161 = vmul.f32 %v7158, %v250
    %v7162 = vmul.f32 %v7157, %v251
    %v7163 = vmul.f32 %v7156, %v252
    %v7164 = vadd.f32 %v7160, 0.0
    %v7165 = vadd.f32 %v7161, 0.0
    %v7166 = vadd.f32 %v7162, 0.0
    %v7167 = vadd.f32 %v7163, 0.0
    %s7168 = scalar_lea.vmem [#allocation14], 1408
    %v7169 = vld [vmem:[%s7168] sm:$0xff]
    %v7170 = vld [vmem:[%s7168 + $0x8] sm:$0xff]
    %v7171 = vld [vmem:[%s7168 + $0x10] sm:$0xff]
    %v7172 = vld [vmem:[%s7168 + $0x18] sm:$0xff]
    %v7173 = vld [vmem:[%s7168 + $0x20] sm:$0xff]
    %v7174 = vld [vmem:[%s7168 + $0x28] sm:$0xff]
    %v7175 = vld [vmem:[%s7168 + $0x30] sm:$0xff]
    %v7176 = vld [vmem:[%s7168 + $0x38] sm:$0xff]
    %v7177 = vld [vmem:[%s7168 + $0x40] sm:$0xff]
    %v7178 = vld [vmem:[%s7168 + $0x48] sm:$0xff]
    %v7179 = vld [vmem:[%s7168 + $0x50] sm:$0xff]
    %v7180 = vld [vmem:[%s7168 + $0x58] sm:$0xff]
    %v7181 = vld [vmem:[%s7168 + $0x60] sm:$0xff]
    %v7182 = vld [vmem:[%s7168 + $0x68] sm:$0xff]
    %v7183 = vld [vmem:[%s7168 + $0x70] sm:$0xff]
    %v7184 = vld [vmem:[%s7168 + $0x78] sm:$0xff]
    %7185 = vmatprep.subr.mxu0 0.0
    %7186 = vmatpush1.msra.mxu0 %v7169
    %7187 = vmatprep.subr.mxu0 0.0
    %7188 = vmatpush1.msra.mxu0 %v7170
    %7189 = vmatprep.subr.mxu0 0.0
    %7190 = vmatpush1.msra.mxu0 %v7171
    %7191 = vmatprep.subr.mxu0 0.0
    %7192 = vmatpush1.msra.mxu0 %v7172
    %7193 = vmatprep.subr.mxu0 0.0
    %7194 = vmatpush1.msra.mxu0 %v7173
    %7195 = vmatprep.subr.mxu0 0.0
    %7196 = vmatpush1.msra.mxu0 %v7174
    %7197 = vmatprep.subr.mxu0 0.0
    %7198 = vmatpush1.msra.mxu0 %v7175
    %7199 = vmatprep.subr.mxu0 0.0
    %7200 = vmatpush1.msra.mxu0 %v7176
    %7201 = vmatprep.subr.mxu0 0.0
    %7202 = vmatpush1.msra.mxu0 %v7177
    %7203 = vmatprep.subr.mxu0 0.0
    %7204 = vmatpush1.msra.mxu0 %v7178
    %7205 = vmatprep.subr.mxu0 0.0
    %7206 = vmatpush1.msra.mxu0 %v7179
    %7207 = vmatprep.subr.mxu0 0.0
    %7208 = vmatpush1.msra.mxu0 %v7180
    %7209 = vmatprep.subr.mxu0 0.0
    %7210 = vmatpush1.msra.mxu0 %v7181
    %7211 = vmatprep.subr.mxu0 0.0
    %7212 = vmatpush1.msra.mxu0 %v7182
    %7213 = vmatprep.subr.mxu0 0.0
    %7214 = vmatpush1.msra.mxu0 %v7183
    %7215 = vmatprep.subr.mxu0 0.0
    %7216 = vmatpush1.msra.mxu0 %v7184
    %7217 = vmatprep.subr.mxu0 0.0
    %7218 = vmatpush1.msra.mxu0 0.0
    %7219 = vmatprep.subr.mxu0 0.0
    %7220 = vmatpush1.msra.mxu0 0.0
    %7221 = vmatprep.subr.mxu0 0.0
    %7222 = vmatpush1.msra.mxu0 0.0
    %7223 = vmatprep.subr.mxu0 0.0
    %7224 = vmatpush1.msra.mxu0 0.0
    %7225 = vmatprep.subr.mxu0 0.0
    %7226 = vmatpush1.msra.mxu0 0.0
    %7227 = vmatprep.subr.mxu0 0.0
    %7228 = vmatpush1.msra.mxu0 0.0
    %7229 = vmatprep.subr.mxu0 0.0
    %7230 = vmatpush1.msra.mxu0 0.0
    %7231 = vmatprep.subr.mxu0 0.0
    %7232 = vmatpush1.msra.mxu0 0.0
    %7233 = vmatprep.subr.mxu0 0.0
    %7234 = vmatpush1.msra.mxu0 0.0
    %7235 = vmatprep.subr.mxu0 0.0
    %7236 = vmatpush1.msra.mxu0 0.0
    %7237 = vmatprep.subr.mxu0 0.0
    %7238 = vmatpush1.msra.mxu0 0.0
    %7239 = vmatprep.subr.mxu0 0.0
    %7240 = vmatpush1.msra.mxu0 0.0
    %7241 = vmatprep.subr.mxu0 0.0
    %7242 = vmatpush1.msra.mxu0 0.0
    %7243 = vmatprep.subr.mxu0 0.0
    %7244 = vmatpush1.msra.mxu0 0.0
    %7245 = vmatprep.subr.mxu0 0.0
    %7246 = vmatpush1.msra.mxu0 0.0
    %7247 = vmatprep.subr.mxu0 0.0
    %7248 = vmatpush1.msra.mxu0 0.0
    %7249 = vmatprep.mubr.f32.mxu0 0.0
    %7250 = vmatmul.mubr.f32.gmra.mrb[0].mxu0 %v6904
    %v7251 = vpop.f32.mrb[0].mxu0
    %v7252 = vadd.f32 0.0, %v7251
    %v7253 = vpop.f32.mrb[0].mxu0
    %7254 = vmatprep.mubr.f32.mxu0 0.0
    %7255 = vmatmul.mubr.f32.gmra.mrb[0].mxu0 %v6905
    %v7256 = vpop.f32.mrb[0].mxu0
    %v7257 = vadd.f32 0.0, %v7256
    %v7258 = vpop.f32.mrb[0].mxu0
    %7259 = vmatprep.mubr.f32.mxu0 0.0
    %7260 = vmatmul.mubr.f32.gmra.mrb[0].mxu0 %v6906
    %v7261 = vpop.f32.mrb[0].mxu0
    %v7262 = vadd.f32 0.0, %v7261
    %v7263 = vpop.f32.mrb[0].mxu0
    %7264 = vmatprep.mubr.f32.mxu0 0.0
    %7265 = vmatmul.mubr.f32.gmra.mrb[0].mxu0 %v6907
    %v7266 = vpop.f32.mrb[0].mxu0
    %v7267 = vadd.f32 0.0, %v7266
    %v7268 = vpop.f32.mrb[0].mxu0
    %7269 = vdwg.mxu0
    %v7270 = vadd.f32 %v7164, %v7252
    %v7271 = vadd.f32 %v7165, %v7257
    %v7272 = vadd.f32 %v7166, %v7262
    %v7273 = vadd.f32 %v7167, %v7267
    %s7274 = scalar_lea.vmem [#allocation14], 1536
    %v7275 = vld [vmem:[%s7274] sm:$0xff]
    %v7276 = vld [vmem:[%s7274 + $0x8] sm:$0xff]
    %v7277 = vld [vmem:[%s7274 + $0x10] sm:$0xff]
    %v7278 = vld [vmem:[%s7274 + $0x18] sm:$0xff]
    %v7279 = vld [vmem:[%s7274 + $0x20] sm:$0xff]
    %v7280 = vld [vmem:[%s7274 + $0x28] sm:$0xff]
    %v7281 = vld [vmem:[%s7274 + $0x30] sm:$0xff]
    %v7282 = vld [vmem:[%s7274 + $0x38] sm:$0xff]
    %v7283 = vld [vmem:[%s7274 + $0x40] sm:$0xff]
    %v7284 = vld [vmem:[%s7274 + $0x48] sm:$0xff]
    %v7285 = vld [vmem:[%s7274 + $0x50] sm:$0xff]
    %v7286 = vld [vmem:[%s7274 + $0x58] sm:$0xff]
    %v7287 = vld [vmem:[%s7274 + $0x60] sm:$0xff]
    %v7288 = vld [vmem:[%s7274 + $0x68] sm:$0xff]
    %v7289 = vld [vmem:[%s7274 + $0x70] sm:$0xff]
    %v7290 = vld [vmem:[%s7274 + $0x78] sm:$0xff]
    %7291 = vmatprep.subr.mxu0 0.0
    %7292 = vmatpush1.msra.mxu0 %v7275
    %7293 = vmatprep.subr.mxu0 0.0
    %7294 = vmatpush1.msra.mxu0 %v7276
    %7295 = vmatprep.subr.mxu0 0.0
    %7296 = vmatpush1.msra.mxu0 %v7277
    %7297 = vmatprep.subr.mxu0 0.0
    %7298 = vmatpush1.msra.mxu0 %v7278
    %7299 = vmatprep.subr.mxu0 0.0
    %7300 = vmatpush1.msra.mxu0 %v7279
    %7301 = vmatprep.subr.mxu0 0.0
    %7302 = vmatpush1.msra.mxu0 %v7280
    %7303 = vmatprep.subr.mxu0 0.0
    %7304 = vmatpush1.msra.mxu0 %v7281
    %7305 = vmatprep.subr.mxu0 0.0
    %7306 = vmatpush1.msra.mxu0 %v7282
    %7307 = vmatprep.subr.mxu0 0.0
    %7308 = vmatpush1.msra.mxu0 %v7283
    %7309 = vmatprep.subr.mxu0 0.0
    %7310 = vmatpush1.msra.mxu0 %v7284
    %7311 = vmatprep.subr.mxu0 0.0
    %7312 = vmatpush1.msra.mxu0 %v7285
    %7313 = vmatprep.subr.mxu0 0.0
    %7314 = vmatpush1.msra.mxu0 %v7286
    %7315 = vmatprep.subr.mxu0 0.0
    %7316 = vmatpush1.msra.mxu0 %v7287
    %7317 = vmatprep.subr.mxu0 0.0
    %7318 = vmatpush1.msra.mxu0 %v7288
    %7319 = vmatprep.subr.mxu0 0.0
    %7320 = vmatpush1.msra.mxu0 %v7289
    %7321 = vmatprep.subr.mxu0 0.0
    %7322 = vmatpush1.msra.mxu0 %v7290
    %7323 = vmatprep.subr.mxu0 0.0
    %7324 = vmatpush1.msra.mxu0 0.0
    %7325 = vmatprep.subr.mxu0 0.0
    %7326 = vmatpush1.msra.mxu0 0.0
    %7327 = vmatprep.subr.mxu0 0.0
    %7328 = vmatpush1.msra.mxu0 0.0
    %7329 = vmatprep.subr.mxu0 0.0
    %7330 = vmatpush1.msra.mxu0 0.0
    %7331 = vmatprep.subr.mxu0 0.0
    %7332 = vmatpush1.msra.mxu0 0.0
    %7333 = vmatprep.subr.mxu0 0.0
    %7334 = vmatpush1.msra.mxu0 0.0
    %7335 = vmatprep.subr.mxu0 0.0
    %7336 = vmatpush1.msra.mxu0 0.0
    %7337 = vmatprep.subr.mxu0 0.0
    %7338 = vmatpush1.msra.mxu0 0.0
    %7339 = vmatprep.subr.mxu0 0.0
    %7340 = vmatpush1.msra.mxu0 0.0
    %7341 = vmatprep.subr.mxu0 0.0
    %7342 = vmatpush1.msra.mxu0 0.0
    %7343 = vmatprep.subr.mxu0 0.0
    %7344 = vmatpush1.msra.mxu0 0.0
    %7345 = vmatprep.subr.mxu0 0.0
    %7346 = vmatpush1.msra.mxu0 0.0
    %7347 = vmatprep.subr.mxu0 0.0
    %7348 = vmatpush1.msra.mxu0 0.0
    %7349 = vmatprep.subr.mxu0 0.0
    %7350 = vmatpush1.msra.mxu0 0.0
    %7351 = vmatprep.subr.mxu0 0.0
    %7352 = vmatpush1.msra.mxu0 0.0
    %7353 = vmatprep.subr.mxu0 0.0
    %7354 = vmatpush1.msra.mxu0 0.0
    %7355 = vmatprep.mubr.f32.mxu0 0.0
    %7356 = vmatmul.mubr.f32.gmra.mrb[0].mxu0 %v6904
    %v7357 = vpop.f32.mrb[0].mxu0
    %v7358 = vadd.f32 0.0, %v7357
    %v7359 = vpop.f32.mrb[0].mxu0
    %7360 = vmatprep.mubr.f32.mxu0 0.0
    %7361 = vmatmul.mubr.f32.gmra.mrb[0].mxu0 %v6905
    %v7362 = vpop.f32.mrb[0].mxu0
    %v7363 = vadd.f32 0.0, %v7362
    %v7364 = vpop.f32.mrb[0].mxu0
    %7365 = vmatprep.mubr.f32.mxu0 0.0
    %7366 = vmatmul.mubr.f32.gmra.mrb[0].mxu0 %v6906
    %v7367 = vpop.f32.mrb[0].mxu0
    %v7368 = vadd.f32 0.0, %v7367
    %v7369 = vpop.f32.mrb[0].mxu0
    %7370 = vmatprep.mubr.f32.mxu0 0.0
    %7371 = vmatmul.mubr.f32.gmra.mrb[0].mxu0 %v6907
    %v7372 = vpop.f32.mrb[0].mxu0
    %v7373 = vadd.f32 0.0, %v7372
    %v7374 = vpop.f32.mrb[0].mxu0
    %7375 = vdwg.mxu0
    %v7376 = vrot.slane %v7358, 1
    %v7377 = vrot.slane %v7363, 1
    %v7378 = vrot.slane %v7368, 1
    %v7379 = vrot.slane %v7373, 1
    %v7380 = vsel %vm3505, %v7378, %v7379
    %v7381 = vsel %vm3505, %v7377, %v7378
    %v7382 = vsel %vm3505, %v7376, %v7377
    %v7383 = vsel %vm3505, %v7379, %v7376
    %v7384 = vmul.f32 %v7382, %v261
    %v7385 = vmul.f32 %v7381, %v262
    %v7386 = vmul.f32 %v7380, %v263
    %v7387 = vmul.f32 %v7383, %v264
    %v7388 = vadd.f32 %v7270, %v7384
    %v7389 = vadd.f32 %v7271, %v7385
    %v7390 = vadd.f32 %v7272, %v7386
    %v7391 = vadd.f32 %v7273, %v7387
    %s7392 = scalar_lea.vmem [#allocation16], 4
    %v7393 = vld [vmem:[%s7392] sm:$0x1]
    %v7395 = vlaneseq
    %v7396 = vshrl.u32 %v7395, 7
    %v7397 = vsub.s32 0, %v7396
    %v7398 = vrot.slane %v7393, %v7397
    %v7400 = vadd.f32 %v7388, %v7398
    %v7401 = vadd.f32 %v7389, %v7398
    %v7402 = vadd.f32 %v7390, %v7398
    %v7403 = vadd.f32 %v7391, %v7398
    %v7404 = vmul.f32 %v7400, %v7026
    %v7405 = vmul.f32 %v7401, %v7026
    %v7406 = vmul.f32 %v7402, %v7026
    %v7407 = vmul.f32 %v7403, %v7026
    %v7408 = vadd.f32 %v7404, %v7036
    %v7409 = vadd.f32 %v7405, %v7036
    %v7410 = vadd.f32 %v7406, %v7036
    %v7411 = vadd.f32 %v7407, %v7036
    %v7412 = vmax.f32 %v7408, 0.0
    %v7413 = vmax.f32 %v7409, 0.0
    %v7414 = vmax.f32 %v7410, 0.0
    %v7415 = vmax.f32 %v7411, 0.0
    %v7416 = vadd.f32 %v7046, %v7412
    %v7417 = vadd.f32 %v7047, %v7413
    %v7418 = vadd.f32 %v7048, %v7414
    %v7419 = vadd.f32 %v7049, %v7415
    %s7420 = scalar_lea.vmem [#allocation14], 1664
    %v7421 = vld [vmem:[%s7420] sm:$0xff]
    %v7422 = vld [vmem:[%s7420 + $0x8] sm:$0xff]
    %v7423 = vld [vmem:[%s7420 + $0x10] sm:$0xff]
    %v7424 = vld [vmem:[%s7420 + $0x18] sm:$0xff]
    %v7425 = vld [vmem:[%s7420 + $0x20] sm:$0xff]
    %v7426 = vld [vmem:[%s7420 + $0x28] sm:$0xff]
    %v7427 = vld [vmem:[%s7420 + $0x30] sm:$0xff]
    %v7428 = vld [vmem:[%s7420 + $0x38] sm:$0xff]
    %v7429 = vld [vmem:[%s7420 + $0x40] sm:$0xff]
    %v7430 = vld [vmem:[%s7420 + $0x48] sm:$0xff]
    %v7431 = vld [vmem:[%s7420 + $0x50] sm:$0xff]
    %v7432 = vld [vmem:[%s7420 + $0x58] sm:$0xff]
    %v7433 = vld [vmem:[%s7420 + $0x60] sm:$0xff]
    %v7434 = vld [vmem:[%s7420 + $0x68] sm:$0xff]
    %v7435 = vld [vmem:[%s7420 + $0x70] sm:$0xff]
    %v7436 = vld [vmem:[%s7420 + $0x78] sm:$0xff]
    %7437 = vmatprep.subr.mxu0 0.0
    %7438 = vmatpush1.msra.mxu0 %v7421
    %7439 = vmatprep.subr.mxu0 0.0
    %7440 = vmatpush1.msra.mxu0 %v7422
    %7441 = vmatprep.subr.mxu0 0.0
    %7442 = vmatpush1.msra.mxu0 %v7423
    %7443 = vmatprep.subr.mxu0 0.0
    %7444 = vmatpush1.msra.mxu0 %v7424
    %7445 = vmatprep.subr.mxu0 0.0
    %7446 = vmatpush1.msra.mxu0 %v7425
    %7447 = vmatprep.subr.mxu0 0.0
    %7448 = vmatpush1.msra.mxu0 %v7426
    %7449 = vmatprep.subr.mxu0 0.0
    %7450 = vmatpush1.msra.mxu0 %v7427
    %7451 = vmatprep.subr.mxu0 0.0
    %7452 = vmatpush1.msra.mxu0 %v7428
    %7453 = vmatprep.subr.mxu0 0.0
    %7454 = vmatpush1.msra.mxu0 %v7429
    %7455 = vmatprep.subr.mxu0 0.0
    %7456 = vmatpush1.msra.mxu0 %v7430
    %7457 = vmatprep.subr.mxu0 0.0
    %7458 = vmatpush1.msra.mxu0 %v7431
    %7459 = vmatprep.subr.mxu0 0.0
    %7460 = vmatpush1.msra.mxu0 %v7432
    %7461 = vmatprep.subr.mxu0 0.0
    %7462 = vmatpush1.msra.mxu0 %v7433
    %7463 = vmatprep.subr.mxu0 0.0
    %7464 = vmatpush1.msra.mxu0 %v7434
    %7465 = vmatprep.subr.mxu0 0.0
    %7466 = vmatpush1.msra.mxu0 %v7435
    %7467 = vmatprep.subr.mxu0 0.0
    %7468 = vmatpush1.msra.mxu0 %v7436
    %7469 = vmatprep.subr.mxu0 0.0
    %7470 = vmatpush1.msra.mxu0 0.0
    %7471 = vmatprep.subr.mxu0 0.0
    %7472 = vmatpush1.msra.mxu0 0.0
    %7473 = vmatprep.subr.mxu0 0.0
    %7474 = vmatpush1.msra.mxu0 0.0
    %7475 = vmatprep.subr.mxu0 0.0
    %7476 = vmatpush1.msra.mxu0 0.0
    %7477 = vmatprep.subr.mxu0 0.0
    %7478 = vmatpush1.msra.mxu0 0.0
    %7479 = vmatprep.subr.mxu0 0.0
    %7480 = vmatpush1.msra.mxu0 0.0
    %7481 = vmatprep.subr.mxu0 0.0
    %7482 = vmatpush1.msra.mxu0 0.0
    %7483 = vmatprep.subr.mxu0 0.0
    %7484 = vmatpush1.msra.mxu0 0.0
    %7485 = vmatprep.subr.mxu0 0.0
    %7486 = vmatpush1.msra.mxu0 0.0
    %7487 = vmatprep.subr.mxu0 0.0
    %7488 = vmatpush1.msra.mxu0 0.0
    %7489 = vmatprep.subr.mxu0 0.0
    %7490 = vmatpush1.msra.mxu0 0.0
    %7491 = vmatprep.subr.mxu0 0.0
    %7492 = vmatpush1.msra.mxu0 0.0
    %7493 = vmatprep.subr.mxu0 0.0
    %7494 = vmatpush1.msra.mxu0 0.0
    %7495 = vmatprep.subr.mxu0 0.0
    %7496 = vmatpush1.msra.mxu0 0.0
    %7497 = vmatprep.subr.mxu0 0.0
    %7498 = vmatpush1.msra.mxu0 0.0
    %7499 = vmatprep.subr.mxu0 0.0
    %7500 = vmatpush1.msra.mxu0 0.0
    %7501 = vmatprep.mubr.f32.mxu0 0.0
    %7502 = vmatmul.mubr.f32.gmra.mrb[0].mxu0 %v6904
    %v7503 = vpop.f32.mrb[0].mxu0
    %v7504 = vadd.f32 0.0, %v7503
    %v7505 = vpop.f32.mrb[0].mxu0
    %7506 = vmatprep.mubr.f32.mxu0 0.0
    %7507 = vmatmul.mubr.f32.gmra.mrb[0].mxu0 %v6905
    %v7508 = vpop.f32.mrb[0].mxu0
    %v7509 = vadd.f32 0.0, %v7508
    %v7510 = vpop.f32.mrb[0].mxu0
    %7511 = vmatprep.mubr.f32.mxu0 0.0
    %7512 = vmatmul.mubr.f32.gmra.mrb[0].mxu0 %v6906
    %v7513 = vpop.f32.mrb[0].mxu0
    %v7514 = vadd.f32 0.0, %v7513
    %v7515 = vpop.f32.mrb[0].mxu0
    %7516 = vmatprep.mubr.f32.mxu0 0.0
    %7517 = vmatmul.mubr.f32.gmra.mrb[0].mxu0 %v6907
    %v7518 = vpop.f32.mrb[0].mxu0
    %v7519 = vadd.f32 0.0, %v7518
    %v7520 = vpop.f32.mrb[0].mxu0
    %7521 = vdwg.mxu0
    %v7522 = vrot.slane %v7504, 6
    %v7523 = vrot.slane %v7509, 6
    %v7524 = vrot.slane %v7514, 6
    %v7525 = vrot.slane %v7519, 6
    %v7526 = vsel %vm3652, %v7524, %v7525
    %v7527 = vsel %vm3652, %v7523, %v7524
    %v7528 = vsel %vm3652, %v7522, %v7523
    %v7529 = vsel %vm3652, %v7525, %v7522
    %v7530 = vmul.f32 %v7529, %v273
    %v7531 = vmul.f32 %v7528, %v274
    %v7532 = vmul.f32 %v7527, %v275
    %v7533 = vmul.f32 %v7526, %v276
    %v7534 = vadd.f32 %v7530, 0.0
    %v7535 = vadd.f32 %v7531, 0.0
    %v7536 = vadd.f32 %v7532, 0.0
    %v7537 = vadd.f32 %v7533, 0.0
    %s7538 = scalar_lea.vmem [#allocation14], 1792
    %v7539 = vld [vmem:[%s7538] sm:$0xff]
    %v7540 = vld [vmem:[%s7538 + $0x8] sm:$0xff]
    %v7541 = vld [vmem:[%s7538 + $0x10] sm:$0xff]
    %v7542 = vld [vmem:[%s7538 + $0x18] sm:$0xff]
    %v7543 = vld [vmem:[%s7538 + $0x20] sm:$0xff]
    %v7544 = vld [vmem:[%s7538 + $0x28] sm:$0xff]
    %v7545 = vld [vmem:[%s7538 + $0x30] sm:$0xff]
    %v7546 = vld [vmem:[%s7538 + $0x38] sm:$0xff]
    %v7547 = vld [vmem:[%s7538 + $0x40] sm:$0xff]
    %v7548 = vld [vmem:[%s7538 + $0x48] sm:$0xff]
    %v7549 = vld [vmem:[%s7538 + $0x50] sm:$0xff]
    %v7550 = vld [vmem:[%s7538 + $0x58] sm:$0xff]
    %v7551 = vld [vmem:[%s7538 + $0x60] sm:$0xff]
    %v7552 = vld [vmem:[%s7538 + $0x68] sm:$0xff]
    %v7553 = vld [vmem:[%s7538 + $0x70] sm:$0xff]
    %v7554 = vld [vmem:[%s7538 + $0x78] sm:$0xff]
    %7555 = vmatprep.subr.mxu0 0.0
    %7556 = vmatpush1.msra.mxu0 %v7539
    %7557 = vmatprep.subr.mxu0 0.0
    %7558 = vmatpush1.msra.mxu0 %v7540
    %7559 = vmatprep.subr.mxu0 0.0
    %7560 = vmatpush1.msra.mxu0 %v7541
    %7561 = vmatprep.subr.mxu0 0.0
    %7562 = vmatpush1.msra.mxu0 %v7542
    %7563 = vmatprep.subr.mxu0 0.0
    %7564 = vmatpush1.msra.mxu0 %v7543
    %7565 = vmatprep.subr.mxu0 0.0
    %7566 = vmatpush1.msra.mxu0 %v7544
    %7567 = vmatprep.subr.mxu0 0.0
    %7568 = vmatpush1.msra.mxu0 %v7545
    %7569 = vmatprep.subr.mxu0 0.0
    %7570 = vmatpush1.msra.mxu0 %v7546
    %7571 = vmatprep.subr.mxu0 0.0
    %7572 = vmatpush1.msra.mxu0 %v7547
    %7573 = vmatprep.subr.mxu0 0.0
    %7574 = vmatpush1.msra.mxu0 %v7548
    %7575 = vmatprep.subr.mxu0 0.0
    %7576 = vmatpush1.msra.mxu0 %v7549
    %7577 = vmatprep.subr.mxu0 0.0
    %7578 = vmatpush1.msra.mxu0 %v7550
    %7579 = vmatprep.subr.mxu0 0.0
    %7580 = vmatpush1.msra.mxu0 %v7551
    %7581 = vmatprep.subr.mxu0 0.0
    %7582 = vmatpush1.msra.mxu0 %v7552
    %7583 = vmatprep.subr.mxu0 0.0
    %7584 = vmatpush1.msra.mxu0 %v7553
    %7585 = vmatprep.subr.mxu0 0.0
    %7586 = vmatpush1.msra.mxu0 %v7554
    %7587 = vmatprep.subr.mxu0 0.0
    %7588 = vmatpush1.msra.mxu0 0.0
    %7589 = vmatprep.subr.mxu0 0.0
    %7590 = vmatpush1.msra.mxu0 0.0
    %7591 = vmatprep.subr.mxu0 0.0
    %7592 = vmatpush1.msra.mxu0 0.0
    %7593 = vmatprep.subr.mxu0 0.0
    %7594 = vmatpush1.msra.mxu0 0.0
    %7595 = vmatprep.subr.mxu0 0.0
    %7596 = vmatpush1.msra.mxu0 0.0
    %7597 = vmatprep.subr.mxu0 0.0
    %7598 = vmatpush1.msra.mxu0 0.0
    %7599 = vmatprep.subr.mxu0 0.0
    %7600 = vmatpush1.msra.mxu0 0.0
    %7601 = vmatprep.subr.mxu0 0.0
    %7602 = vmatpush1.msra.mxu0 0.0
    %7603 = vmatprep.subr.mxu0 0.0
    %7604 = vmatpush1.msra.mxu0 0.0
    %7605 = vmatprep.subr.mxu0 0.0
    %7606 = vmatpush1.msra.mxu0 0.0
    %7607 = vmatprep.subr.mxu0 0.0
    %7608 = vmatpush1.msra.mxu0 0.0
    %7609 = vmatprep.subr.mxu0 0.0
    %7610 = vmatpush1.msra.mxu0 0.0
    %7611 = vmatprep.subr.mxu0 0.0
    %7612 = vmatpush1.msra.mxu0 0.0
    %7613 = vmatprep.subr.mxu0 0.0
    %7614 = vmatpush1.msra.mxu0 0.0
    %7615 = vmatprep.subr.mxu0 0.0
    %7616 = vmatpush1.msra.mxu0 0.0
    %7617 = vmatprep.subr.mxu0 0.0
    %7618 = vmatpush1.msra.mxu0 0.0
    %7619 = vmatprep.mubr.f32.mxu0 0.0
    %7620 = vmatmul.mubr.f32.gmra.mrb[0].mxu0 %v6904
    %v7621 = vpop.f32.mrb[0].mxu0
    %v7622 = vadd.f32 0.0, %v7621
    %v7623 = vpop.f32.mrb[0].mxu0
    %7624 = vmatprep.mubr.f32.mxu0 0.0
    %7625 = vmatmul.mubr.f32.gmra.mrb[0].mxu0 %v6905
    %v7626 = vpop.f32.mrb[0].mxu0
    %v7627 = vadd.f32 0.0, %v7626
    %v7628 = vpop.f32.mrb[0].mxu0
    %7629 = vmatprep.mubr.f32.mxu0 0.0
    %7630 = vmatmul.mubr.f32.gmra.mrb[0].mxu0 %v6906
    %v7631 = vpop.f32.mrb[0].mxu0
    %v7632 = vadd.f32 0.0, %v7631
    %v7633 = vpop.f32.mrb[0].mxu0
    %7634 = vmatprep.mubr.f32.mxu0 0.0
    %7635 = vmatmul.mubr.f32.gmra.mrb[0].mxu0 %v6907
    %v7636 = vpop.f32.mrb[0].mxu0
    %v7637 = vadd.f32 0.0, %v7636
    %v7638 = vpop.f32.mrb[0].mxu0
    %7639 = vdwg.mxu0
    %v7640 = vrot.slane %v7622, 7
    %v7641 = vrot.slane %v7627, 7
    %v7642 = vrot.slane %v7632, 7
    %v7643 = vrot.slane %v7637, 7
    %v7644 = vsel %vm3280, %v7642, %v7643
    %v7645 = vsel %vm3280, %v7641, %v7642
    %v7646 = vsel %vm3280, %v7640, %v7641
    %v7647 = vsel %vm3280, %v7643, %v7640
    %v7648 = vmul.f32 %v7647, %v249
    %v7649 = vmul.f32 %v7646, %v250
    %v7650 = vmul.f32 %v7645, %v251
    %v7651 = vmul.f32 %v7644, %v252
    %v7652 = vadd.f32 %v7534, %v7648
    %v7653 = vadd.f32 %v7535, %v7649
    %v7654 = vadd.f32 %v7536, %v7650
    %v7655 = vadd.f32 %v7537, %v7651
    %s7656 = scalar_lea.vmem [#allocation14], 1920
    %v7657 = vld [vmem:[%s7656] sm:$0xff]
    %v7658 = vld [vmem:[%s7656 + $0x8] sm:$0xff]
    %v7659 = vld [vmem:[%s7656 + $0x10] sm:$0xff]
    %v7660 = vld [vmem:[%s7656 + $0x18] sm:$0xff]
    %v7661 = vld [vmem:[%s7656 + $0x20] sm:$0xff]
    %v7662 = vld [vmem:[%s7656 + $0x28] sm:$0xff]
    %v7663 = vld [vmem:[%s7656 + $0x30] sm:$0xff]
    %v7664 = vld [vmem:[%s7656 + $0x38] sm:$0xff]
    %v7665 = vld [vmem:[%s7656 + $0x40] sm:$0xff]
    %v7666 = vld [vmem:[%s7656 + $0x48] sm:$0xff]
    %v7667 = vld [vmem:[%s7656 + $0x50] sm:$0xff]
    %v7668 = vld [vmem:[%s7656 + $0x58] sm:$0xff]
    %v7669 = vld [vmem:[%s7656 + $0x60] sm:$0xff]
    %v7670 = vld [vmem:[%s7656 + $0x68] sm:$0xff]
    %v7671 = vld [vmem:[%s7656 + $0x70] sm:$0xff]
    %v7672 = vld [vmem:[%s7656 + $0x78] sm:$0xff]
    %7673 = vmatprep.subr.mxu0 0.0
    %7674 = vmatpush1.msra.mxu0 %v7657
    %7675 = vmatprep.subr.mxu0 0.0
    %7676 = vmatpush1.msra.mxu0 %v7658
    %7677 = vmatprep.subr.mxu0 0.0
    %7678 = vmatpush1.msra.mxu0 %v7659
    %7679 = vmatprep.subr.mxu0 0.0
    %7680 = vmatpush1.msra.mxu0 %v7660
    %7681 = vmatprep.subr.mxu0 0.0
    %7682 = vmatpush1.msra.mxu0 %v7661
    %7683 = vmatprep.subr.mxu0 0.0
    %7684 = vmatpush1.msra.mxu0 %v7662
    %7685 = vmatprep.subr.mxu0 0.0
    %7686 = vmatpush1.msra.mxu0 %v7663
    %7687 = vmatprep.subr.mxu0 0.0
    %7688 = vmatpush1.msra.mxu0 %v7664
    %7689 = vmatprep.subr.mxu0 0.0
    %7690 = vmatpush1.msra.mxu0 %v7665
    %7691 = vmatprep.subr.mxu0 0.0
    %7692 = vmatpush1.msra.mxu0 %v7666
    %7693 = vmatprep.subr.mxu0 0.0
    %7694 = vmatpush1.msra.mxu0 %v7667
    %7695 = vmatprep.subr.mxu0 0.0
    %7696 = vmatpush1.msra.mxu0 %v7668
    %7697 = vmatprep.subr.mxu0 0.0
    %7698 = vmatpush1.msra.mxu0 %v7669
    %7699 = vmatprep.subr.mxu0 0.0
    %7700 = vmatpush1.msra.mxu0 %v7670
    %7701 = vmatprep.subr.mxu0 0.0
    %7702 = vmatpush1.msra.mxu0 %v7671
    %7703 = vmatprep.subr.mxu0 0.0
    %7704 = vmatpush1.msra.mxu0 %v7672
    %7705 = vmatprep.subr.mxu0 0.0
    %7706 = vmatpush1.msra.mxu0 0.0
    %7707 = vmatprep.subr.mxu0 0.0
    %7708 = vmatpush1.msra.mxu0 0.0
    %7709 = vmatprep.subr.mxu0 0.0
    %7710 = vmatpush1.msra.mxu0 0.0
    %7711 = vmatprep.subr.mxu0 0.0
    %7712 = vmatpush1.msra.mxu0 0.0
    %7713 = vmatprep.subr.mxu0 0.0
    %7714 = vmatpush1.msra.mxu0 0.0
    %7715 = vmatprep.subr.mxu0 0.0
    %7716 = vmatpush1.msra.mxu0 0.0
    %7717 = vmatprep.subr.mxu0 0.0
    %7718 = vmatpush1.msra.mxu0 0.0
    %7719 = vmatprep.subr.mxu0 0.0
    %7720 = vmatpush1.msra.mxu0 0.0
    %7721 = vmatprep.subr.mxu0 0.0
    %7722 = vmatpush1.msra.mxu0 0.0
    %7723 = vmatprep.subr.mxu0 0.0
    %7724 = vmatpush1.msra.mxu0 0.0
    %7725 = vmatprep.subr.mxu0 0.0
    %7726 = vmatpush1.msra.mxu0 0.0
    %7727 = vmatprep.subr.mxu0 0.0
    %7728 = vmatpush1.msra.mxu0 0.0
    %7729 = vmatprep.subr.mxu0 0.0
    %7730 = vmatpush1.msra.mxu0 0.0
    %7731 = vmatprep.subr.mxu0 0.0
    %7732 = vmatpush1.msra.mxu0 0.0
    %7733 = vmatprep.subr.mxu0 0.0
    %7734 = vmatpush1.msra.mxu0 0.0
    %7735 = vmatprep.subr.mxu0 0.0
    %7736 = vmatpush1.msra.mxu0 0.0
    %7737 = vmatprep.mubr.f32.mxu0 0.0
    %7738 = vmatmul.mubr.f32.gmra.mrb[0].mxu0 %v6904
    %v7739 = vpop.f32.mrb[0].mxu0
    %v7740 = vadd.f32 0.0, %v7739
    %v7741 = vpop.f32.mrb[0].mxu0
    %7742 = vmatprep.mubr.f32.mxu0 0.0
    %7743 = vmatmul.mubr.f32.gmra.mrb[0].mxu0 %v6905
    %v7744 = vpop.f32.mrb[0].mxu0
    %v7745 = vadd.f32 0.0, %v7744
    %v7746 = vpop.f32.mrb[0].mxu0
    %7747 = vmatprep.mubr.f32.mxu0 0.0
    %7748 = vmatmul.mubr.f32.gmra.mrb[0].mxu0 %v6906
    %v7749 = vpop.f32.mrb[0].mxu0
    %v7750 = vadd.f32 0.0, %v7749
    %v7751 = vpop.f32.mrb[0].mxu0
    %7752 = vmatprep.mubr.f32.mxu0 0.0
    %7753 = vmatmul.mubr.f32.gmra.mrb[0].mxu0 %v6907
    %v7754 = vpop.f32.mrb[0].mxu0
    %v7755 = vadd.f32 0.0, %v7754
    %v7756 = vpop.f32.mrb[0].mxu0
    %7757 = vdwg.mxu0
    %v7758 = vadd.f32 %v7652, %v7740
    %v7759 = vadd.f32 %v7653, %v7745
    %v7760 = vadd.f32 %v7654, %v7750
    %v7761 = vadd.f32 %v7655, %v7755
    %s7762 = scalar_lea.vmem [#allocation14], 2048
    %v7763 = vld [vmem:[%s7762] sm:$0xff]
    %v7764 = vld [vmem:[%s7762 + $0x8] sm:$0xff]
    %v7765 = vld [vmem:[%s7762 + $0x10] sm:$0xff]
    %v7766 = vld [vmem:[%s7762 + $0x18] sm:$0xff]
    %v7767 = vld [vmem:[%s7762 + $0x20] sm:$0xff]
    %v7768 = vld [vmem:[%s7762 + $0x28] sm:$0xff]
    %v7769 = vld [vmem:[%s7762 + $0x30] sm:$0xff]
    %v7770 = vld [vmem:[%s7762 + $0x38] sm:$0xff]
    %v7771 = vld [vmem:[%s7762 + $0x40] sm:$0xff]
    %v7772 = vld [vmem:[%s7762 + $0x48] sm:$0xff]
    %v7773 = vld [vmem:[%s7762 + $0x50] sm:$0xff]
    %v7774 = vld [vmem:[%s7762 + $0x58] sm:$0xff]
    %v7775 = vld [vmem:[%s7762 + $0x60] sm:$0xff]
    %v7776 = vld [vmem:[%s7762 + $0x68] sm:$0xff]
    %v7777 = vld [vmem:[%s7762 + $0x70] sm:$0xff]
    %v7778 = vld [vmem:[%s7762 + $0x78] sm:$0xff]
    %7779 = vmatprep.subr.mxu0 0.0
    %7780 = vmatpush1.msra.mxu0 %v7763
    %7781 = vmatprep.subr.mxu0 0.0
    %7782 = vmatpush1.msra.mxu0 %v7764
    %7783 = vmatprep.subr.mxu0 0.0
    %7784 = vmatpush1.msra.mxu0 %v7765
    %7785 = vmatprep.subr.mxu0 0.0
    %7786 = vmatpush1.msra.mxu0 %v7766
    %7787 = vmatprep.subr.mxu0 0.0
    %7788 = vmatpush1.msra.mxu0 %v7767
    %7789 = vmatprep.subr.mxu0 0.0
    %7790 = vmatpush1.msra.mxu0 %v7768
    %7791 = vmatprep.subr.mxu0 0.0
    %7792 = vmatpush1.msra.mxu0 %v7769
    %7793 = vmatprep.subr.mxu0 0.0
    %7794 = vmatpush1.msra.mxu0 %v7770
    %7795 = vmatprep.subr.mxu0 0.0
    %7796 = vmatpush1.msra.mxu0 %v7771
    %7797 = vmatprep.subr.mxu0 0.0
    %7798 = vmatpush1.msra.mxu0 %v7772
    %7799 = vmatprep.subr.mxu0 0.0
    %7800 = vmatpush1.msra.mxu0 %v7773
    %7801 = vmatprep.subr.mxu0 0.0
    %7802 = vmatpush1.msra.mxu0 %v7774
    %7803 = vmatprep.subr.mxu0 0.0
    %7804 = vmatpush1.msra.mxu0 %v7775
    %7805 = vmatprep.subr.mxu0 0.0
    %7806 = vmatpush1.msra.mxu0 %v7776
    %7807 = vmatprep.subr.mxu0 0.0
    %7808 = vmatpush1.msra.mxu0 %v7777
    %7809 = vmatprep.subr.mxu0 0.0
    %7810 = vmatpush1.msra.mxu0 %v7778
    %7811 = vmatprep.subr.mxu0 0.0
    %7812 = vmatpush1.msra.mxu0 0.0
    %7813 = vmatprep.subr.mxu0 0.0
    %7814 = vmatpush1.msra.mxu0 0.0
    %7815 = vmatprep.subr.mxu0 0.0
    %7816 = vmatpush1.msra.mxu0 0.0
    %7817 = vmatprep.subr.mxu0 0.0
    %7818 = vmatpush1.msra.mxu0 0.0
    %7819 = vmatprep.subr.mxu0 0.0
    %7820 = vmatpush1.msra.mxu0 0.0
    %7821 = vmatprep.subr.mxu0 0.0
    %7822 = vmatpush1.msra.mxu0 0.0
    %7823 = vmatprep.subr.mxu0 0.0
    %7824 = vmatpush1.msra.mxu0 0.0
    %7825 = vmatprep.subr.mxu0 0.0
    %7826 = vmatpush1.msra.mxu0 0.0
    %7827 = vmatprep.subr.mxu0 0.0
    %7828 = vmatpush1.msra.mxu0 0.0
    %7829 = vmatprep.subr.mxu0 0.0
    %7830 = vmatpush1.msra.mxu0 0.0
    %7831 = vmatprep.subr.mxu0 0.0
    %7832 = vmatpush1.msra.mxu0 0.0
    %7833 = vmatprep.subr.mxu0 0.0
    %7834 = vmatpush1.msra.mxu0 0.0
    %7835 = vmatprep.subr.mxu0 0.0
    %7836 = vmatpush1.msra.mxu0 0.0
    %7837 = vmatprep.subr.mxu0 0.0
    %7838 = vmatpush1.msra.mxu0 0.0
    %7839 = vmatprep.subr.mxu0 0.0
    %7840 = vmatpush1.msra.mxu0 0.0
    %7841 = vmatprep.subr.mxu0 0.0
    %7842 = vmatpush1.msra.mxu0 0.0
    %7843 = vmatprep.mubr.f32.mxu0 0.0
    %7844 = vmatmul.mubr.f32.gmra.mrb[0].mxu0 %v6904
    %v7845 = vpop.f32.mrb[0].mxu0
    %v7846 = vadd.f32 0.0, %v7845
    %v7847 = vpop.f32.mrb[0].mxu0
    %7848 = vmatprep.mubr.f32.mxu0 0.0
    %7849 = vmatmul.mubr.f32.gmra.mrb[0].mxu0 %v6905
    %v7850 = vpop.f32.mrb[0].mxu0
    %v7851 = vadd.f32 0.0, %v7850
    %v7852 = vpop.f32.mrb[0].mxu0
    %7853 = vmatprep.mubr.f32.mxu0 0.0
    %7854 = vmatmul.mubr.f32.gmra.mrb[0].mxu0 %v6906
    %v7855 = vpop.f32.mrb[0].mxu0
    %v7856 = vadd.f32 0.0, %v7855
    %v7857 = vpop.f32.mrb[0].mxu0
    %7858 = vmatprep.mubr.f32.mxu0 0.0
    %7859 = vmatmul.mubr.f32.gmra.mrb[0].mxu0 %v6907
    %v7860 = vpop.f32.mrb[0].mxu0
    %v7861 = vadd.f32 0.0, %v7860
    %v7862 = vpop.f32.mrb[0].mxu0
    %7863 = vdwg.mxu0
    %v7864 = vrot.slane %v7846, 1
    %v7865 = vrot.slane %v7851, 1
    %v7866 = vrot.slane %v7856, 1
    %v7867 = vrot.slane %v7861, 1
    %v7868 = vsel %vm3505, %v7866, %v7867
    %v7869 = vsel %vm3505, %v7865, %v7866
    %v7870 = vsel %vm3505, %v7864, %v7865
    %v7871 = vsel %vm3505, %v7867, %v7864
    %v7872 = vmul.f32 %v7870, %v261
    %v7873 = vmul.f32 %v7869, %v262
    %v7874 = vmul.f32 %v7868, %v263
    %v7875 = vmul.f32 %v7871, %v264
    %v7876 = vadd.f32 %v7758, %v7872
    %v7877 = vadd.f32 %v7759, %v7873
    %v7878 = vadd.f32 %v7760, %v7874
    %v7879 = vadd.f32 %v7761, %v7875
    %s7880 = scalar_lea.vmem [#allocation14], 2176
    %v7881 = vld [vmem:[%s7880] sm:$0xff]
    %v7882 = vld [vmem:[%s7880 + $0x8] sm:$0xff]
    %v7883 = vld [vmem:[%s7880 + $0x10] sm:$0xff]
    %v7884 = vld [vmem:[%s7880 + $0x18] sm:$0xff]
    %v7885 = vld [vmem:[%s7880 + $0x20] sm:$0xff]
    %v7886 = vld [vmem:[%s7880 + $0x28] sm:$0xff]
    %v7887 = vld [vmem:[%s7880 + $0x30] sm:$0xff]
    %v7888 = vld [vmem:[%s7880 + $0x38] sm:$0xff]
    %v7889 = vld [vmem:[%s7880 + $0x40] sm:$0xff]
    %v7890 = vld [vmem:[%s7880 + $0x48] sm:$0xff]
    %v7891 = vld [vmem:[%s7880 + $0x50] sm:$0xff]
    %v7892 = vld [vmem:[%s7880 + $0x58] sm:$0xff]
    %v7893 = vld [vmem:[%s7880 + $0x60] sm:$0xff]
    %v7894 = vld [vmem:[%s7880 + $0x68] sm:$0xff]
    %v7895 = vld [vmem:[%s7880 + $0x70] sm:$0xff]
    %v7896 = vld [vmem:[%s7880 + $0x78] sm:$0xff]
    %7897 = vmatprep.subr.mxu0 0.0
    %7898 = vmatpush1.msra.mxu0 %v7881
    %7899 = vmatprep.subr.mxu0 0.0
    %7900 = vmatpush1.msra.mxu0 %v7882
    %7901 = vmatprep.subr.mxu0 0.0
    %7902 = vmatpush1.msra.mxu0 %v7883
    %7903 = vmatprep.subr.mxu0 0.0
    %7904 = vmatpush1.msra.mxu0 %v7884
    %7905 = vmatprep.subr.mxu0 0.0
    %7906 = vmatpush1.msra.mxu0 %v7885
    %7907 = vmatprep.subr.mxu0 0.0
    %7908 = vmatpush1.msra.mxu0 %v7886
    %7909 = vmatprep.subr.mxu0 0.0
    %7910 = vmatpush1.msra.mxu0 %v7887
    %7911 = vmatprep.subr.mxu0 0.0
    %7912 = vmatpush1.msra.mxu0 %v7888
    %7913 = vmatprep.subr.mxu0 0.0
    %7914 = vmatpush1.msra.mxu0 %v7889
    %7915 = vmatprep.subr.mxu0 0.0
    %7916 = vmatpush1.msra.mxu0 %v7890
    %7917 = vmatprep.subr.mxu0 0.0
    %7918 = vmatpush1.msra.mxu0 %v7891
    %7919 = vmatprep.subr.mxu0 0.0
    %7920 = vmatpush1.msra.mxu0 %v7892
    %7921 = vmatprep.subr.mxu0 0.0
    %7922 = vmatpush1.msra.mxu0 %v7893
    %7923 = vmatprep.subr.mxu0 0.0
    %7924 = vmatpush1.msra.mxu0 %v7894
    %7925 = vmatprep.subr.mxu0 0.0
    %7926 = vmatpush1.msra.mxu0 %v7895
    %7927 = vmatprep.subr.mxu0 0.0
    %7928 = vmatpush1.msra.mxu0 %v7896
    %7929 = vmatprep.subr.mxu0 0.0
    %7930 = vmatpush1.msra.mxu0 0.0
    %7931 = vmatprep.subr.mxu0 0.0
    %7932 = vmatpush1.msra.mxu0 0.0
    %7933 = vmatprep.subr.mxu0 0.0
    %7934 = vmatpush1.msra.mxu0 0.0
    %7935 = vmatprep.subr.mxu0 0.0
    %7936 = vmatpush1.msra.mxu0 0.0
    %7937 = vmatprep.subr.mxu0 0.0
    %7938 = vmatpush1.msra.mxu0 0.0
    %7939 = vmatprep.subr.mxu0 0.0
    %7940 = vmatpush1.msra.mxu0 0.0
    %7941 = vmatprep.subr.mxu0 0.0
    %7942 = vmatpush1.msra.mxu0 0.0
    %7943 = vmatprep.subr.mxu0 0.0
    %7944 = vmatpush1.msra.mxu0 0.0
    %7945 = vmatprep.subr.mxu0 0.0
    %7946 = vmatpush1.msra.mxu0 0.0
    %7947 = vmatprep.subr.mxu0 0.0
    %7948 = vmatpush1.msra.mxu0 0.0
    %7949 = vmatprep.subr.mxu0 0.0
    %7950 = vmatpush1.msra.mxu0 0.0
    %7951 = vmatprep.subr.mxu0 0.0
    %7952 = vmatpush1.msra.mxu0 0.0
    %7953 = vmatprep.subr.mxu0 0.0
    %7954 = vmatpush1.msra.mxu0 0.0
    %7955 = vmatprep.subr.mxu0 0.0
    %7956 = vmatpush1.msra.mxu0 0.0
    %7957 = vmatprep.subr.mxu0 0.0
    %7958 = vmatpush1.msra.mxu0 0.0
    %7959 = vmatprep.subr.mxu0 0.0
    %7960 = vmatpush1.msra.mxu0 0.0
    %7961 = vmatprep.mubr.f32.mxu0 0.0
    %7962 = vmatmul.mubr.f32.gmra.mrb[0].mxu0 %v6904
    %v7963 = vpop.f32.mrb[0].mxu0
    %v7964 = vadd.f32 0.0, %v7963
    %v7965 = vpop.f32.mrb[0].mxu0
    %7966 = vmatprep.mubr.f32.mxu0 0.0
    %7967 = vmatmul.mubr.f32.gmra.mrb[0].mxu0 %v6905
    %v7968 = vpop.f32.mrb[0].mxu0
    %v7969 = vadd.f32 0.0, %v7968
    %v7970 = vpop.f32.mrb[0].mxu0
    %7971 = vmatprep.mubr.f32.mxu0 0.0
    %7972 = vmatmul.mubr.f32.gmra.mrb[0].mxu0 %v6906
    %v7973 = vpop.f32.mrb[0].mxu0
    %v7974 = vadd.f32 0.0, %v7973
    %v7975 = vpop.f32.mrb[0].mxu0
    %7976 = vmatprep.mubr.f32.mxu0 0.0
    %7977 = vmatmul.mubr.f32.gmra.mrb[0].mxu0 %v6907
    %v7978 = vpop.f32.mrb[0].mxu0
    %v7979 = vadd.f32 0.0, %v7978
    %v7980 = vpop.f32.mrb[0].mxu0
    %7981 = vdwg.mxu0
    %v7982 = vrot.slane %v7964, 2
    %v7983 = vrot.slane %v7969, 2
    %v7984 = vrot.slane %v7974, 2
    %v7985 = vrot.slane %v7979, 2
    %v7986 = vsel %vm4113, %v7984, %v7985
    %v7987 = vsel %vm4113, %v7983, %v7984
    %v7988 = vsel %vm4113, %v7982, %v7983
    %v7989 = vsel %vm4113, %v7985, %v7982
    %v7990 = vmul.f32 %v7988, %v285
    %v7991 = vmul.f32 %v7987, %v286
    %v7992 = vmul.f32 %v7986, %v287
    %v7993 = vmul.f32 %v7989, %v288
    %v7994 = vadd.f32 %v7876, %v7990
    %v7995 = vadd.f32 %v7877, %v7991
    %v7996 = vadd.f32 %v7878, %v7992
    %v7997 = vadd.f32 %v7879, %v7993
    %s7998 = scalar_lea.vmem [#allocation16], 5
    %v7999 = vld [vmem:[%s7998] sm:$0x1]
    %v8001 = vlaneseq
    %v8002 = vshrl.u32 %v8001, 7
    %v8003 = vsub.s32 0, %v8002
    %v8004 = vrot.slane %v7999, %v8003
    %v8006 = vadd.f32 %v7994, %v8004
    %v8007 = vadd.f32 %v7995, %v8004
    %v8008 = vadd.f32 %v7996, %v8004
    %v8009 = vadd.f32 %v7997, %v8004
    %v8010 = vmul.f32 %v8006, %v7026
    %v8011 = vmul.f32 %v8007, %v7026
    %v8012 = vmul.f32 %v8008, %v7026
    %v8013 = vmul.f32 %v8009, %v7026
    %v8014 = vadd.f32 %v8010, %v7036
    %v8015 = vadd.f32 %v8011, %v7036
    %v8016 = vadd.f32 %v8012, %v7036
    %v8017 = vadd.f32 %v8013, %v7036
    %v8018 = vmax.f32 %v8014, 0.0
    %v8019 = vmax.f32 %v8015, 0.0
    %v8020 = vmax.f32 %v8016, 0.0
    %v8021 = vmax.f32 %v8017, 0.0
    %v8022 = vadd.f32 %v7416, %v8018
    %v8023 = vadd.f32 %v7417, %v8019
    %v8024 = vadd.f32 %v7418, %v8020
    %v8025 = vadd.f32 %v7419, %v8021
    %v8026 = vmul.f32 %v8022, 0.33333334
    %v8027 = vmul.f32 %v8023, 0.33333334
    %v8028 = vmul.f32 %v8024, 0.33333334
    %v8029 = vmul.f32 %v8025, 0.33333334
    %v8030 = vadd.f32 %v6804, %v8026
    %v8031 = vadd.f32 %v6805, %v8027
    %v8032 = vadd.f32 %v6806, %v8028
    %v8033 = vadd.f32 %v6807, %v8029
    %s8034 = scalar_lea.vmem [#allocation11], 4
    %v8035 = vld [vmem:[%s8034] sm:$0x1]
    %s8036 = scalar_lea.vmem [#allocation13], 4
    %v8037 = vld [vmem:[%s8036] sm:$0x1]
    %8038 = vadd.xlane.f32.xlu0 %v8030
    %v8039 = vpop.xlane.xlu0 %8038
    %8040 = vadd.xlane.f32.xlu0 %v8031
    %v8041 = vpop.xlane.xlu0 %8040
    %8042 = vadd.xlane.f32.xlu0 %v8032
    %v8043 = vpop.xlane.xlu0 %8042
    %8044 = vadd.xlane.f32.xlu0 %v8033
    %v8045 = vpop.xlane.xlu0 %8044
    %v8046 = vmul.f32 %v8039, %v303
    %v8047 = vmul.f32 %v8041, %v303
    %v8048 = vmul.f32 %v8043, %v303
    %v8049 = vmul.f32 %v8045, %v303
    %v8050 = vsub.f32 %v8030, %v8046
    %v8051 = vsub.f32 %v8031, %v8047
    %v8052 = vsub.f32 %v8032, %v8048
    %v8053 = vsub.f32 %v8033, %v8049
    %v8054 = vmul.f32 %v8050, %v8050
    %v8055 = vmul.f32 %v8051, %v8051
    %v8056 = vmul.f32 %v8052, %v8052
    %v8057 = vmul.f32 %v8053, %v8053
    %8058 = vadd.xlane.f32.xlu0 %v8054
    %v8059 = vpop.xlane.xlu0 %8058
    %8060 = vadd.xlane.f32.xlu0 %v8055
    %v8061 = vpop.xlane.xlu0 %8060
    %8062 = vadd.xlane.f32.xlu0 %v8056
    %v8063 = vpop.xlane.xlu0 %8062
    %8064 = vadd.xlane.f32.xlu0 %v8057
    %v8065 = vpop.xlane.xlu0 %8064
    %v8066 = vmul.f32 %v8059, 0.007874016
    %v8067 = vmul.f32 %v8061, 0.007874016
    %v8068 = vmul.f32 %v8063, 0.007874016
    %v8069 = vmul.f32 %v8065, 0.007874016
    %v8070 = vrsqrt.pop %v8066
    %v8071 = vmul.f32 %v8066, %v8070
    %vm8072 = vcmp.eq.f32.partialorder %v8066, inf
    %v8073 = vsel %vm8072, %v8066, %v8071
    %vm8074 = vcmp.eq.f32.partialorder %v8066, 0.0
    %v8075 = vand.u32 %v8066, 2147483648
    %v8076 = vsel %vm8074, %v8075, %v8073
    %v8077 = vrsqrt.pop %v8067
    %v8078 = vmul.f32 %v8067, %v8077
    %vm8079 = vcmp.eq.f32.partialorder %v8067, inf
    %v8080 = vsel %vm8079, %v8067, %v8078
    %vm8081 = vcmp.eq.f32.partialorder %v8067, 0.0
    %v8082 = vand.u32 %v8067, 2147483648
    %v8083 = vsel %vm8081, %v8082, %v8080
    %v8084 = vrsqrt.pop %v8068
    %v8085 = vmul.f32 %v8068, %v8084
    %vm8086 = vcmp.eq.f32.partialorder %v8068, inf
    %v8087 = vsel %vm8086, %v8068, %v8085
    %vm8088 = vcmp.eq.f32.partialorder %v8068, 0.0
    %v8089 = vand.u32 %v8068, 2147483648
    %v8090 = vsel %vm8088, %v8089, %v8087
    %v8091 = vrsqrt.pop %v8069
    %v8092 = vmul.f32 %v8069, %v8091
    %vm8093 = vcmp.eq.f32.partialorder %v8069, inf
    %v8094 = vsel %vm8093, %v8069, %v8092
    %vm8095 = vcmp.eq.f32.partialorder %v8069, 0.0
    %v8096 = vand.u32 %v8069, 2147483648
    %v8097 = vsel %vm8095, %v8096, %v8094
    %v8098 = vadd.f32 %v8076, 1e-06
    %v8099 = vadd.f32 %v8083, 1e-06
    %v8100 = vadd.f32 %v8090, 1e-06
    %v8101 = vadd.f32 %v8097, 1e-06
    %v8102 = vrcp.pop %v8098
    %v8103 = vmul.f32 1.0, %v8102
    %v8104 = vrcp.pop %v8099
    %v8105 = vmul.f32 1.0, %v8104
    %v8106 = vrcp.pop %v8100
    %v8107 = vmul.f32 1.0, %v8106
    %v8108 = vrcp.pop %v8101
    %v8109 = vmul.f32 1.0, %v8108
    %v8110 = vmul.f32 %v8050, %v8103
    %v8111 = vmul.f32 %v8051, %v8105
    %v8112 = vmul.f32 %v8052, %v8107
    %v8113 = vmul.f32 %v8053, %v8109
    %v8115 = vlaneseq
    %v8116 = vshrl.u32 %v8115, 7
    %v8117 = vsub.s32 0, %v8116
    %v8118 = vrot.slane %v8035, %v8117
    %v8120 = vmul.f32 %v8118, %v8110
    %v8121 = vmul.f32 %v8118, %v8111
    %v8122 = vmul.f32 %v8118, %v8112
    %v8123 = vmul.f32 %v8118, %v8113
    %v8125 = vlaneseq
    %v8126 = vshrl.u32 %v8125, 7
    %v8127 = vsub.s32 0, %v8126
    %v8128 = vrot.slane %v8037, %v8127
    %v8130 = vadd.f32 %v8120, %v8128
    %v8131 = vadd.f32 %v8121, %v8128
    %v8132 = vadd.f32 %v8122, %v8128
    %v8133 = vadd.f32 %v8123, %v8128
    %8134 = vst [vmem:[#allocation20] sm:$0xff] %v8130
    %8135 = vst [vmem:[#allocation20 + $0x8] sm:$0xff] %v8131
    %8136 = vst [vmem:[#allocation20 + $0x10] sm:$0xff] %v8132
    %8137 = vst [vmem:[#allocation20 + $0x18] sm:$0xff] %v8133
    // Predicated region
    $region90: #{tpu_custom_call.1} parent=1 // pred_check
      _
    $region91: #{tpu_custom_call.1} parent=1 // pred_check_branch
      %8139 = sbr.rel (0) target = $region93
    $region92: #{tpu_custom_call.1} parent=1 // pred_region
      %s8141 = ssub.s32 512, 512
      %8142 = vsyncadd [#allocation4], %s8141
      %s8143 = sshll.u32 [#allocation20], 4
      %s8144 = int_to_ptr.vmem [resolvable:$true] %s8143
      %8149 = dma.vmem_to_hbm [thread:$0]  %s8144, 512, %s11, [#allocation4], 128, 128, 8
    $region93: #{tpu_custom_call.1} parent=1 // pred_fallthru
      _
    // Predicated region
    $region94: #{tpu_custom_call.1} parent=1 // pred_check
      _
    $region95: #{tpu_custom_call.1} parent=1 // pred_check_branch
      %8151 = sbr.rel (0) target = $region97
    $region96: #{tpu_custom_call.1} parent=1 // pred_region
      %8152 = dma.done [#allocation4], 512
    $region97: #{tpu_custom_call.1} parent=1 // pred_fallthru
      _
    %8153 = vsyncpa [#allocation3], 1
    %8154 = vsyncpa [#allocation6], 1
    %8155 = vsyncpa [#allocation9], 1
    %8156 = vsyncpa [#allocation12], 1
    %8157 = vsyncpa [#allocation15], 1
    %8158 = vsyncpa [#allocation18], 1
    %8159 = vsyncpa [#allocation4], 1

</llo_original>
